<compile_context>
chip_gen: v5e
topology: v5e:2x2
jax: 0.10.0
libtpu: 0.0.40
codegen_flags: <defaults>
</compile_context>

<pallas_src>
from functools import partial

import jax
import jax.numpy as jnp
import numpy as np
from jax.experimental import pallas as pl
from jax.experimental.pallas import tpu as pltpu

P = 6          # number of body parts
C = 1024       # densenet121 feature channels
NB = 256       # ClassBlock_arc bottleneck (num_bottleneck=256)
EMB = 128      # self.linear output dim
EPS = 1e-5     # nn.BatchNorm1d default eps


# ------------------------------------------------------------------
# Generation-aware grid / VMEM planning
# ------------------------------------------------------------------
def _vmem_capacity_bytes():
    try:
        return int(pltpu.get_tpu_info().vmem_capacity_bytes)
    except Exception:
        return 64 * 1024 * 1024      # conservative: v7x per-TensorCore VMEM


def _plan_grid(batch, hwp, x_itemsize):
    """Pick the batch block (bblk), padded batch and vmem limit from VMEM."""
    vmem_cap = _vmem_capacity_bytes()
    # Per-batch-row footprint, double-buffered (input tile + output tiles).
    row_in = P * hwp * C * x_itemsize
    row_out = P * C * 4 + EMB * 4 + P * NB * 4
    per_row = 2 * (row_in + row_out)
    # Resident weights: constant index_maps skip the re-DMA but the pipeline
    # still allocates 2 buffers per spec, so budget 2x.
    weight_bytes = 2 * ((P * C * EMB + P * C * NB) * 2 + EMB * 4
                        + 5 * P * NB * 4)
    budget = int(vmem_cap * 0.7) - weight_bytes
    max_bblk = max(1, budget // per_row)
    if max_bblk >= 8:
        max_bblk = min((max_bblk // 8) * 8, 256)
    bblk = min(max_bblk, batch)

    # v7x (2 TensorCores, ~64 MiB per-TC VMEM): keep >= 2 grid steps so the
    # "parallel" batch axis can be split across cores when there is enough
    # work.  On v5e/v6e (1 TC) a single full-batch step is best.
    multi_tc = vmem_cap <= 80 * 1024 * 1024
    if multi_tc and batch >= 16 and batch <= bblk:
        half = pl.cdiv(batch, 2)
        bblk = max(8, (half // 8) * 8)

    b_pad = pl.cdiv(batch, bblk) * bblk
    # VMEM limit from the actual block shapes + headroom, clamped to 90% of
    # physical capacity -- safe on v5e / v6e / v7x with one code path.
    vmem_limit = weight_bytes + bblk * per_row + (8 << 20)
    vmem_limit = max(32 << 20, min(vmem_limit, int(vmem_cap * 0.9)))
    return bblk, b_pad, vmem_limit


# ------------------------------------------------------------------
# Fused kernel: pool -> linear(6144,128) -> 6x (Linear(1024,256) + BN)
# Streams one part at a time to keep the live vreg set small.
# ------------------------------------------------------------------
def _fused_kernel(x_ref, lw_ref, lb_ref, cw_ref, cb_ref, g_ref, bt_ref,
                  mu_ref, var_ref, pooled_ref, bnfeat_ref, preds_ref, *, hwp):
    inv = 1.0 / float(hwp)
    emb_acc = None
    for p in range(P):                                   # unrolled, P = 6
        # --- AdaptiveAvgPool2d((P,1)): exact per-part mean (H % P == 0) ----
        xp = x_ref[:, p, :, :].astype(jnp.float32)       # (bblk, hwp, C)
        pooled = jnp.sum(xp, axis=1) * inv               # (bblk, C) f32
        pooled_ref[:, p, :] = pooled.astype(pooled_ref.dtype)
        pooled_bf = pooled.astype(jnp.bfloat16)          # MXU operand

        # --- self.linear contribution of part p (f32 MXU accumulation) -----
        d = jnp.dot(pooled_bf, lw_ref[p], preferred_element_type=jnp.float32)
        emb_acc = d if emb_acc is None else emb_acc + d

        # --- ClassBlock_arc head p: Linear(1024,256) + BatchNorm1d (eval) --
        # (Dropout(p=0.5) inside ClassBlock_arc is identity in eval mode.)
        h = jnp.dot(pooled_bf, cw_ref[p],
                    preferred_element_type=jnp.float32) + cb_ref[p]
        scale = g_ref[p] * jax.lax.rsqrt(var_ref[p] + EPS)
        preds_ref[:, p, :] = ((h - mu_ref[p]) * scale
                              + bt_ref[p]).astype(preds_ref.dtype)

    bnfeat_ref[...] = (emb_acc + lb_ref[...])[:, None, :].astype(
        bnfeat_ref.dtype)


def _fused_forward(x_bphwc, kp):
    B, Pn, hwp, Cc = x_bphwc.shape
    assert Pn == P and Cc == C
    bblk, b_pad, vmem_limit = _plan_grid(B, hwp, x_bphwc.dtype.itemsize)
    if b_pad != B:                     # pad odd batches instead of bblk=1
        x_bphwc = jnp.pad(x_bphwc, ((0, b_pad - B), (0, 0), (0, 0), (0, 0)))
    grid = (b_pad // bblk,)

    const3 = lambda b: (0, 0, 0)
    const2 = lambda b: (0, 0)
    vec_spec = pl.BlockSpec((P, 1, NB), const3)

    cost = pl.CostEstimate(
        flops=int(2 * b_pad * P * C * (EMB + NB) + b_pad * P * hwp * C),
        transcendentals=0,
        bytes_accessed=int(
            b_pad * P * hwp * C * x_bphwc.dtype.itemsize   # feature-map read
            + (P * C * EMB + P * C * NB) * 2                # bf16 weights
            + b_pad * (P * C + EMB + P * NB) * 4),          # f32 outputs
    )

    pooled, bnfeat3, preds = pl.pallas_call(
        partial(_fused_kernel, hwp=hwp),
        out_shape=(
            jax.ShapeDtypeStruct((b_pad, P, C), jnp.float32),   # pooled feats
            jax.ShapeDtypeStruct((b_pad, 1, EMB), jnp.float32), # bn_feats
            jax.ShapeDtypeStruct((b_pad, P, NB), jnp.float32),  # predictions
        ),
        grid=grid,
        in_specs=[
            pl.BlockSpec((bblk, P, hwp, C), lambda b: (b, 0, 0, 0)),  # x
            pl.BlockSpec((P, C, EMB), const3),                        # lin_w
            pl.BlockSpec((1, EMB), const2),                           # lin_b
            pl.BlockSpec((P, C, NB), const3),                         # cls_w
            vec_spec, vec_spec, vec_spec, vec_spec, vec_spec,         # cls_b+BN
        ],
        out_specs=[
            pl.BlockSpec((bblk, P, C), lambda b: (b, 0, 0)),
            pl.BlockSpec((bblk, 1, EMB), lambda b: (b, 0, 0)),
            pl.BlockSpec((bblk, P, NB), lambda b: (b, 0, 0)),
        ],
        compiler_params=pltpu.CompilerParams(
            dimension_semantics=("parallel",),
            vmem_limit_bytes=vmem_limit,
        ),
        cost_estimate=cost,
    )(x_bphwc, kp["lin_w_pce"], kp["lin_b"], kp["cls_w"], kp["cls_b"],
      kp["bn_gamma"], kp["bn_beta"], kp["bn_mean"], kp["bn_var"])

    if b_pad != B:
        pooled, bnfeat3, preds = pooled[:B], bnfeat3[:B], preds[:B]
    return pooled, bnfeat3, preds


# ------------------------------------------------------------------
# Parameters: canonical (torch-shaped) init + kernel-layout preparation.
# ------------------------------------------------------------------
def init_params(key):
    k = jax.random.split(key, 3)
    params = {}
    # self.linear = nn.Linear(1024 * 6, 128); stored as (in, out),
    # row index is c*P + p (matching feats.view(B, C*P) flattening).
    params["lin_w"] = (jax.random.normal(k[0], (C * P, EMB), jnp.float32)
                       * (2.0 / EMB) ** 0.5)
    params["lin_b"] = jnp.zeros((EMB,), jnp.float32)
    # 6 x ClassBlock_arc: Linear(1024, 256) (kaiming fan_out, bias 0)
    params["cls_w"] = (jax.random.normal(k[1], (P, C, NB), jnp.float32)
                       * (2.0 / NB) ** 0.5)
    params["cls_b"] = jnp.zeros((P, NB), jnp.float32)
    # BatchNorm1d(256): weight ~ N(1, 0.02), bias = 0, running stats (0, 1).
    params["bn_gamma"] = 1.0 + 0.02 * jax.random.normal(k[2], (P, NB),
                                                        jnp.float32)
    params["bn_beta"] = jnp.zeros((P, NB), jnp.float32)
    params["bn_mean"] = jnp.zeros((P, NB), jnp.float32)
    params["bn_var"] = jnp.ones((P, NB), jnp.float32)
    return params


def prepare_kernel_params(params):
    # Permute linear weight rows (c*P + p) -> (p, c) so the kernel consumes the
    # pooled features in their natural (B, P, C) order; cast matmul weights to
    # bf16 (f32 accumulation inside the kernel).
    lin_w_pce = jnp.transpose(params["lin_w"].reshape(C, P, EMB), (1, 0, 2))
    return {
        "lin_w_pce": lin_w_pce.astype(jnp.bfloat16),           # (P, C, EMB)
        "lin_b": params["lin_b"].reshape(1, EMB).astype(jnp.float32),
        "cls_w": params["cls_w"].astype(jnp.bfloat16),          # (P, C, NB)
        "cls_b": params["cls_b"].reshape(P, 1, NB).astype(jnp.float32),
        "bn_gamma": params["bn_gamma"].reshape(P, 1, NB).astype(jnp.float32),
        "bn_beta": params["bn_beta"].reshape(P, 1, NB).astype(jnp.float32),
        "bn_mean": params["bn_mean"].reshape(P, 1, NB).astype(jnp.float32),
        "bn_var": params["bn_var"].reshape(P, 1, NB).astype(jnp.float32),
    }


# ------------------------------------------------------------------
# Forward wrappers (eval mode: both Dropout layers are identity).
# ------------------------------------------------------------------
def pcb_dense_arc_forward(features_nhwc, kernel_params):
    """features_nhwc: densenet121 feature map in NHWC (B, H, W, 1024).

    Emit the backbone output in NHWC (and ideally bf16) so no HBM-materialized
    transpose / cast is needed at this boundary.  Returns (y, feats, bn_feats):
      y        : list of P arrays, each (B, 256)        (f32)
      feats    : (B, 1024, P) torch layout              (f32)
      bn_feats : (B, 128)                               (f32)
    """
    B, H, W, Cc = features_nhwc.shape
    assert Cc == C and H % P == 0
    hwp = (H // P) * W
    x = features_nhwc.reshape(B, P, hwp, C)            # free contiguous view
    pooled, bnfeat3, preds = _fused_forward(x, kernel_params)
    feats = jnp.transpose(pooled, (0, 2, 1))           # (B, C, P), tiny
    bn_feats = bnfeat3.reshape(B, EMB)
    y = [preds[:, i, :] for i in range(P)]
    return y, feats, bn_feats


def pcb_dense_arc_forward_nchw(features_nchw, kernel_params):
    """Compatibility path for a PyTorch-layout (B, 1024, H, W) feature map.

    NOTE: this transpose is an extra full HBM round trip of the feature map;
    prefer emitting NHWC from the backbone and calling pcb_dense_arc_forward.
    """
    return pcb_dense_arc_forward(
        jnp.transpose(features_nchw, (0, 2, 3, 1)), kernel_params)


if __name__ == "__main__":
    key = jax.random.PRNGKey(0)
    kf, kp_key = jax.random.split(key)
    B, H, W = 2, 24, 8            # small NHWC feature map, H divisible by 6
    # Backbone output arrives in NHWC bf16 (halves the dominant HBM read).
    features = jax.random.normal(kf, (B, H, W, C), jnp.float32).astype(
        jnp.bfloat16)
    params = init_params(kp_key)
    kparams = prepare_kernel_params(params)

    y, feats, bn_feats = pcb_dense_arc_forward(features, kparams)
    jax.block_until_ready((y, feats, bn_feats))

    assert len(y) == P and all(t.shape == (B, NB) for t in y)
    assert feats.shape == (B, C, P) and feats.dtype == jnp.float32
    assert bn_feats.shape == (B, EMB)

    # --- pure-JAX f32 reference (bf16 matmul weights => loose tolerance) ----
    xf = features.astype(jnp.float32)
    pooled_exp = xf.reshape(B, P, (H // P) * W, C).mean(axis=2)     # (B,P,C)
    feats_exp = jnp.transpose(pooled_exp, (0, 2, 1))                # (B,C,P)
    z = feats_exp.reshape(B, -1)                                    # c*P + p
    bn_exp = z @ params["lin_w"] + params["lin_b"]
    np.testing.assert_allclose(np.asarray(feats), np.asarray(feats_exp),
                               rtol=1e-4, atol=1e-4)
    np.testing.assert_allclose(np.asarray(bn_feats), np.asarray(bn_exp),
                               rtol=1e-1, atol=1e-1)
    for i in range(P):
        h = pooled_exp[:, i, :] @ params["cls_w"][i] + params["cls_b"][i]
        s = params["bn_gamma"][i] / jnp.sqrt(params["bn_var"][i] + EPS)
        pred_exp = (h - params["bn_mean"][i]) * s + params["bn_beta"][i]
        np.testing.assert_allclose(np.asarray(y[i]), np.asarray(pred_exp),
                                   rtol=1e-1, atol=1e-1)
    print("KERNEL_OK")
</pallas_src>

<mosaic_0001>
module attributes {stable_mosaic.version = 11 : i64} {
  func.func @_fused_kernel(%arg0: i32, %arg1: memref<2x6x32x1024xbf16, #tpu.memory_space<vmem>>, %arg2: memref<6x1024x128xbf16, #tpu.memory_space<vmem>>, %arg3: memref<1x128xf32, #tpu.memory_space<vmem>>, %arg4: memref<6x1024x256xbf16, #tpu.memory_space<vmem>>, %arg5: memref<6x1x256xf32, #tpu.memory_space<vmem>>, %arg6: memref<6x1x256xf32, #tpu.memory_space<vmem>>, %arg7: memref<6x1x256xf32, #tpu.memory_space<vmem>>, %arg8: memref<6x1x256xf32, #tpu.memory_space<vmem>>, %arg9: memref<6x1x256xf32, #tpu.memory_space<vmem>>, %arg10: memref<2x6x1024xf32, #tpu.memory_space<vmem>>, %arg11: memref<2x1x128xf32, #tpu.memory_space<vmem>>, %arg12: memref<2x6x256xf32, #tpu.memory_space<vmem>>) attributes {dimension_semantics = [#tpu.dimension_semantics<parallel>], iteration_bounds = array<i64: 1>, scalar_prefetch = 0 : i64, scratch_operands = 0 : i64, tpu.core_type = #tpu.core_type<tc>, window_params = [{transform_indices = @transform_0, window_bounds = array<i64: 2, 6, 32, 1024>}, {pipeline_mode = #tpu.pipeline_mode<synchronous>, transform_indices = @transform_1, window_bounds = array<i64: 6, 1024, 128>}, {pipeline_mode = #tpu.pipeline_mode<synchronous>, transform_indices = @transform_2, window_bounds = array<i64: 1, 128>}, {pipeline_mode = #tpu.pipeline_mode<synchronous>, transform_indices = @transform_3, window_bounds = array<i64: 6, 1024, 256>}, {pipeline_mode = #tpu.pipeline_mode<synchronous>, transform_indices = @transform_4, window_bounds = array<i64: 6, 1, 256>}, {pipeline_mode = #tpu.pipeline_mode<synchronous>, transform_indices = @transform_5, window_bounds = array<i64: 6, 1, 256>}, {pipeline_mode = #tpu.pipeline_mode<synchronous>, transform_indices = @transform_6, window_bounds = array<i64: 6, 1, 256>}, {pipeline_mode = #tpu.pipeline_mode<synchronous>, transform_indices = @transform_7, window_bounds = array<i64: 6, 1, 256>}, {pipeline_mode = #tpu.pipeline_mode<synchronous>, transform_indices = @transform_8, window_bounds = array<i64: 6, 1, 256>}, {transform_indices = @transform_9, window_bounds = array<i64: 2, 6, 1024>}, {transform_indices = @transform_10, window_bounds = array<i64: 2, 1, 128>}, {transform_indices = @transform_11, window_bounds = array<i64: 2, 6, 256>}]} {
    %c0 = arith.constant 0 : index
    %c0_0 = arith.constant 0 : index
    %c0_1 = arith.constant 0 : index
    %c0_2 = arith.constant 0 : index
    %0 = vector.load %arg1[%c0, %c0_0, %c0_1, %c0_2] : memref<2x6x32x1024xbf16, #tpu.memory_space<vmem>>, vector<2x1x32x1024xbf16>
    %1 = vector.shape_cast %0 : vector<2x1x32x1024xbf16> to vector<2x32x1024xbf16>
    %2 = arith.extf %1 : vector<2x32x1024xbf16> to vector<2x32x1024xf32>
    %cst = arith.constant dense<0.000000e+00> : vector<2x1024xf32>
    %3 = vector.multi_reduction <add>, %2, %cst [1] : vector<2x32x1024xf32> to vector<2x1024xf32>
    %cst_3 = arith.constant 3.125000e-02 : f32
    %4 = vector.broadcast %cst_3 : f32 to vector<2x1024xf32>
    %5 = arith.mulf %3, %4 : vector<2x1024xf32>
    %c0_4 = arith.constant 0 : index
    %c0_5 = arith.constant 0 : index
    %c0_6 = arith.constant 0 : index
    %6 = vector.load %arg10[%c0_4, %c0_5, %c0_6] : memref<2x6x1024xf32, #tpu.memory_space<vmem>>, vector<2x1x1024xf32>
    %7 = vector.shape_cast %6 : vector<2x1x1024xf32> to vector<2x1024xf32>
    %8 = vector.shape_cast %5 : vector<2x1024xf32> to vector<2x1x1024xf32>
    tpu.vector_store %arg10[%c0_4, %c0_5, %c0_6], %8 {strides = array<i32>} : memref<2x6x1024xf32, #tpu.memory_space<vmem>>, vector<2x1x1024xf32>,
    %9 = arith.truncf %5 : vector<2x1024xf32> to vector<2x1024xbf16>
    %c0_7 = arith.constant 0 : index
    %c0_8 = arith.constant 0 : index
    %c0_9 = arith.constant 0 : index
    %10 = vector.load %arg2[%c0_7, %c0_8, %c0_9] : memref<6x1024x128xbf16, #tpu.memory_space<vmem>>, vector<1x1024x128xbf16>
    %11 = vector.shape_cast %10 : vector<1x1024x128xbf16> to vector<1024x128xbf16>
    %cst_10 = arith.constant dense<0.000000e+00> : vector<2x128xf32>
    %12 = tpu.matmul %9, %11, %cst_10 {dimension_numbers = #tpu.dot_dimension_numbers<[1], [0], [0], [1], [0, 0, 1, 1], [], []>} : vector<2x1024xbf16>, vector<1024x128xbf16>, vector<2x128xf32> -> vector<2x128xf32>
    %c0_11 = arith.constant 0 : index
    %c0_12 = arith.constant 0 : index
    %c0_13 = arith.constant 0 : index
    %13 = vector.load %arg4[%c0_11, %c0_12, %c0_13] : memref<6x1024x256xbf16, #tpu.memory_space<vmem>>, vector<1x1024x256xbf16>
    %14 = vector.shape_cast %13 : vector<1x1024x256xbf16> to vector<1024x256xbf16>
    %cst_14 = arith.constant dense<0.000000e+00> : vector<2x256xf32>
    %15 = tpu.matmul %9, %14, %cst_14 {dimension_numbers = #tpu.dot_dimension_numbers<[1], [0], [0], [1], [0, 0, 1, 1], [], []>} : vector<2x1024xbf16>, vector<1024x256xbf16>, vector<2x256xf32> -> vector<2x256xf32>
    %c0_15 = arith.constant 0 : index
    %c0_16 = arith.constant 0 : index
    %c0_17 = arith.constant 0 : index
    %16 = vector.load %arg5[%c0_15, %c0_16, %c0_17] : memref<6x1x256xf32, #tpu.memory_space<vmem>>, vector<1x1x256xf32>
    %17 = vector.shape_cast %16 : vector<1x1x256xf32> to vector<1x256xf32>
    %18 = vector.broadcast %17 : vector<1x256xf32> to vector<2x256xf32>
    %19 = arith.addf %15, %18 : vector<2x256xf32>
    %c0_18 = arith.constant 0 : index
    %c0_19 = arith.constant 0 : index
    %c0_20 = arith.constant 0 : index
    %20 = vector.load %arg6[%c0_18, %c0_19, %c0_20] : memref<6x1x256xf32, #tpu.memory_space<vmem>>, vector<1x1x256xf32>
    %21 = vector.shape_cast %20 : vector<1x1x256xf32> to vector<1x256xf32>
    %c0_21 = arith.constant 0 : index
    %c0_22 = arith.constant 0 : index
    %c0_23 = arith.constant 0 : index
    %22 = vector.load %arg9[%c0_21, %c0_22, %c0_23] : memref<6x1x256xf32, #tpu.memory_space<vmem>>, vector<1x1x256xf32>
    %23 = vector.shape_cast %22 : vector<1x1x256xf32> to vector<1x256xf32>
    %cst_24 = arith.constant 9.99999974E-6 : f32
    %24 = vector.broadcast %cst_24 : f32 to vector<1x256xf32>
    %25 = arith.addf %23, %24 : vector<1x256xf32>
    %26 = math.rsqrt %25 : vector<1x256xf32>
    %27 = arith.mulf %21, %26 : vector<1x256xf32>
    %c0_25 = arith.constant 0 : index
    %c0_26 = arith.constant 0 : index
    %c0_27 = arith.constant 0 : index
    %28 = vector.load %arg8[%c0_25, %c0_26, %c0_27] : memref<6x1x256xf32, #tpu.memory_space<vmem>>, vector<1x1x256xf32>
    %29 = vector.shape_cast %28 : vector<1x1x256xf32> to vector<1x256xf32>
    %30 = vector.broadcast %29 : vector<1x256xf32> to vector<2x256xf32>
    %31 = arith.subf %19, %30 : vector<2x256xf32>
    %32 = vector.broadcast %27 : vector<1x256xf32> to vector<2x256xf32>
    %33 = arith.mulf %31, %32 : vector<2x256xf32>
    %c0_28 = arith.constant 0 : index
    %c0_29 = arith.constant 0 : index
    %c0_30 = arith.constant 0 : index
    %34 = vector.load %arg7[%c0_28, %c0_29, %c0_30] : memref<6x1x256xf32, #tpu.memory_space<vmem>>, vector<1x1x256xf32>
    %35 = vector.shape_cast %34 : vector<1x1x256xf32> to vector<1x256xf32>
    %36 = vector.broadcast %35 : vector<1x256xf32> to vector<2x256xf32>
    %37 = arith.addf %33, %36 : vector<2x256xf32>
    %c0_31 = arith.constant 0 : index
    %c0_32 = arith.constant 0 : index
    %c0_33 = arith.constant 0 : index
    %38 = vector.load %arg12[%c0_31, %c0_32, %c0_33] : memref<2x6x256xf32, #tpu.memory_space<vmem>>, vector<2x1x256xf32>
    %39 = vector.shape_cast %38 : vector<2x1x256xf32> to vector<2x256xf32>
    %40 = vector.shape_cast %37 : vector<2x256xf32> to vector<2x1x256xf32>
    tpu.vector_store %arg12[%c0_31, %c0_32, %c0_33], %40 {strides = array<i32>} : memref<2x6x256xf32, #tpu.memory_space<vmem>>, vector<2x1x256xf32>,
    %c0_34 = arith.constant 0 : index
    %c1 = arith.constant 1 : index
    %c0_35 = arith.constant 0 : index
    %c0_36 = arith.constant 0 : index
    %41 = vector.load %arg1[%c0_34, %c1, %c0_35, %c0_36] : memref<2x6x32x1024xbf16, #tpu.memory_space<vmem>>, vector<2x1x32x1024xbf16>
    %42 = vector.shape_cast %41 : vector<2x1x32x1024xbf16> to vector<2x32x1024xbf16>
    %43 = arith.extf %42 : vector<2x32x1024xbf16> to vector<2x32x1024xf32>
    %cst_37 = arith.constant dense<0.000000e+00> : vector<2x1024xf32>
    %44 = vector.multi_reduction <add>, %43, %cst_37 [1] : vector<2x32x1024xf32> to vector<2x1024xf32>
    %cst_38 = arith.constant 3.125000e-02 : f32
    %45 = vector.broadcast %cst_38 : f32 to vector<2x1024xf32>
    %46 = arith.mulf %44, %45 : vector<2x1024xf32>
    %c0_39 = arith.constant 0 : index
    %c1_40 = arith.constant 1 : index
    %c0_41 = arith.constant 0 : index
    %47 = vector.load %arg10[%c0_39, %c1_40, %c0_41] : memref<2x6x1024xf32, #tpu.memory_space<vmem>>, vector<2x1x1024xf32>
    %48 = vector.shape_cast %47 : vector<2x1x1024xf32> to vector<2x1024xf32>
    %49 = vector.shape_cast %46 : vector<2x1024xf32> to vector<2x1x1024xf32>
    tpu.vector_store %arg10[%c0_39, %c1_40, %c0_41], %49 {strides = array<i32>} : memref<2x6x1024xf32, #tpu.memory_space<vmem>>, vector<2x1x1024xf32>,
    %50 = arith.truncf %46 : vector<2x1024xf32> to vector<2x1024xbf16>
    %c1_42 = arith.constant 1 : index
    %c0_43 = arith.constant 0 : index
    %c0_44 = arith.constant 0 : index
    %51 = vector.load %arg2[%c1_42, %c0_43, %c0_44] : memref<6x1024x128xbf16, #tpu.memory_space<vmem>>, vector<1x1024x128xbf16>
    %52 = vector.shape_cast %51 : vector<1x1024x128xbf16> to vector<1024x128xbf16>
    %cst_45 = arith.constant dense<0.000000e+00> : vector<2x128xf32>
    %53 = tpu.matmul %50, %52, %cst_45 {dimension_numbers = #tpu.dot_dimension_numbers<[1], [0], [0], [1], [0, 0, 1, 1], [], []>} : vector<2x1024xbf16>, vector<1024x128xbf16>, vector<2x128xf32> -> vector<2x128xf32>
    %54 = arith.addf %12, %53 : vector<2x128xf32>
    %c1_46 = arith.constant 1 : index
    %c0_47 = arith.constant 0 : index
    %c0_48 = arith.constant 0 : index
    %55 = vector.load %arg4[%c1_46, %c0_47, %c0_48] : memref<6x1024x256xbf16, #tpu.memory_space<vmem>>, vector<1x1024x256xbf16>
    %56 = vector.shape_cast %55 : vector<1x1024x256xbf16> to vector<1024x256xbf16>
    %cst_49 = arith.constant dense<0.000000e+00> : vector<2x256xf32>
    %57 = tpu.matmul %50, %56, %cst_49 {dimension_numbers = #tpu.dot_dimension_numbers<[1], [0], [0], [1], [0, 0, 1, 1], [], []>} : vector<2x1024xbf16>, vector<1024x256xbf16>, vector<2x256xf32> -> vector<2x256xf32>
    %c1_50 = arith.constant 1 : index
    %c0_51 = arith.constant 0 : index
    %c0_52 = arith.constant 0 : index
    %58 = vector.load %arg5[%c1_50, %c0_51, %c0_52] : memref<6x1x256xf32, #tpu.memory_space<vmem>>, vector<1x1x256xf32>
    %59 = vector.shape_cast %58 : vector<1x1x256xf32> to vector<1x256xf32>
    %60 = vector.broadcast %59 : vector<1x256xf32> to vector<2x256xf32>
    %61 = arith.addf %57, %60 : vector<2x256xf32>
    %c1_53 = arith.constant 1 : index
    %c0_54 = arith.constant 0 : index
    %c0_55 = arith.constant 0 : index
    %62 = vector.load %arg6[%c1_53, %c0_54, %c0_55] : memref<6x1x256xf32, #tpu.memory_space<vmem>>, vector<1x1x256xf32>
    %63 = vector.shape_cast %62 : vector<1x1x256xf32> to vector<1x256xf32>
    %c1_56 = arith.constant 1 : index
    %c0_57 = arith.constant 0 : index
    %c0_58 = arith.constant 0 : index
    %64 = vector.load %arg9[%c1_56, %c0_57, %c0_58] : memref<6x1x256xf32, #tpu.memory_space<vmem>>, vector<1x1x256xf32>
    %65 = vector.shape_cast %64 : vector<1x1x256xf32> to vector<1x256xf32>
    %cst_59 = arith.constant 9.99999974E-6 : f32
    %66 = vector.broadcast %cst_59 : f32 to vector<1x256xf32>
    %67 = arith.addf %65, %66 : vector<1x256xf32>
    %68 = math.rsqrt %67 : vector<1x256xf32>
    %69 = arith.mulf %63, %68 : vector<1x256xf32>
    %c1_60 = arith.constant 1 : index
    %c0_61 = arith.constant 0 : index
    %c0_62 = arith.constant 0 : index
    %70 = vector.load %arg8[%c1_60, %c0_61, %c0_62] : memref<6x1x256xf32, #tpu.memory_space<vmem>>, vector<1x1x256xf32>
    %71 = vector.shape_cast %70 : vector<1x1x256xf32> to vector<1x256xf32>
    %72 = vector.broadcast %71 : vector<1x256xf32> to vector<2x256xf32>
    %73 = arith.subf %61, %72 : vector<2x256xf32>
    %74 = vector.broadcast %69 : vector<1x256xf32> to vector<2x256xf32>
    %75 = arith.mulf %73, %74 : vector<2x256xf32>
    %c1_63 = arith.constant 1 : index
    %c0_64 = arith.constant 0 : index
    %c0_65 = arith.constant 0 : index
    %76 = vector.load %arg7[%c1_63, %c0_64, %c0_65] : memref<6x1x256xf32, #tpu.memory_space<vmem>>, vector<1x1x256xf32>
    %77 = vector.shape_cast %76 : vector<1x1x256xf32> to vector<1x256xf32>
    %78 = vector.broadcast %77 : vector<1x256xf32> to vector<2x256xf32>
    %79 = arith.addf %75, %78 : vector<2x256xf32>
    %c0_66 = arith.constant 0 : index
    %c1_67 = arith.constant 1 : index
    %c0_68 = arith.constant 0 : index
    %80 = vector.load %arg12[%c0_66, %c1_67, %c0_68] : memref<2x6x256xf32, #tpu.memory_space<vmem>>, vector<2x1x256xf32>
    %81 = vector.shape_cast %80 : vector<2x1x256xf32> to vector<2x256xf32>
    %82 = vector.shape_cast %79 : vector<2x256xf32> to vector<2x1x256xf32>
    tpu.vector_store %arg12[%c0_66, %c1_67, %c0_68], %82 {strides = array<i32>} : memref<2x6x256xf32, #tpu.memory_space<vmem>>, vector<2x1x256xf32>,
    %c0_69 = arith.constant 0 : index
    %c2 = arith.constant 2 : index
    %c0_70 = arith.constant 0 : index
    %c0_71 = arith.constant 0 : index
    %83 = vector.load %arg1[%c0_69, %c2, %c0_70, %c0_71] : memref<2x6x32x1024xbf16, #tpu.memory_space<vmem>>, vector<2x1x32x1024xbf16>
    %84 = vector.shape_cast %83 : vector<2x1x32x1024xbf16> to vector<2x32x1024xbf16>
    %85 = arith.extf %84 : vector<2x32x1024xbf16> to vector<2x32x1024xf32>
    %cst_72 = arith.constant dense<0.000000e+00> : vector<2x1024xf32>
    %86 = vector.multi_reduction <add>, %85, %cst_72 [1] : vector<2x32x1024xf32> to vector<2x1024xf32>
    %cst_73 = arith.constant 3.125000e-02 : f32
    %87 = vector.broadcast %cst_73 : f32 to vector<2x1024xf32>
    %88 = arith.mulf %86, %87 : vector<2x1024xf32>
    %c0_74 = arith.constant 0 : index
    %c2_75 = arith.constant 2 : index
    %c0_76 = arith.constant 0 : index
    %89 = vector.load %arg10[%c0_74, %c2_75, %c0_76] : memref<2x6x1024xf32, #tpu.memory_space<vmem>>, vector<2x1x1024xf32>
    %90 = vector.shape_cast %89 : vector<2x1x1024xf32> to vector<2x1024xf32>
    %91 = vector.shape_cast %88 : vector<2x1024xf32> to vector<2x1x1024xf32>
    tpu.vector_store %arg10[%c0_74, %c2_75, %c0_76], %91 {strides = array<i32>} : memref<2x6x1024xf32, #tpu.memory_space<vmem>>, vector<2x1x1024xf32>,
    %92 = arith.truncf %88 : vector<2x1024xf32> to vector<2x1024xbf16>
    %c2_77 = arith.constant 2 : index
    %c0_78 = arith.constant 0 : index
    %c0_79 = arith.constant 0 : index
    %93 = vector.load %arg2[%c2_77, %c0_78, %c0_79] : memref<6x1024x128xbf16, #tpu.memory_space<vmem>>, vector<1x1024x128xbf16>
    %94 = vector.shape_cast %93 : vector<1x1024x128xbf16> to vector<1024x128xbf16>
    %cst_80 = arith.constant dense<0.000000e+00> : vector<2x128xf32>
    %95 = tpu.matmul %92, %94, %cst_80 {dimension_numbers = #tpu.dot_dimension_numbers<[1], [0], [0], [1], [0, 0, 1, 1], [], []>} : vector<2x1024xbf16>, vector<1024x128xbf16>, vector<2x128xf32> -> vector<2x128xf32>
    %96 = arith.addf %54, %95 : vector<2x128xf32>
    %c2_81 = arith.constant 2 : index
    %c0_82 = arith.constant 0 : index
    %c0_83 = arith.constant 0 : index
    %97 = vector.load %arg4[%c2_81, %c0_82, %c0_83] : memref<6x1024x256xbf16, #tpu.memory_space<vmem>>, vector<1x1024x256xbf16>
    %98 = vector.shape_cast %97 : vector<1x1024x256xbf16> to vector<1024x256xbf16>
    %cst_84 = arith.constant dense<0.000000e+00> : vector<2x256xf32>
    %99 = tpu.matmul %92, %98, %cst_84 {dimension_numbers = #tpu.dot_dimension_numbers<[1], [0], [0], [1], [0, 0, 1, 1], [], []>} : vector<2x1024xbf16>, vector<1024x256xbf16>, vector<2x256xf32> -> vector<2x256xf32>
    %c2_85 = arith.constant 2 : index
    %c0_86 = arith.constant 0 : index
    %c0_87 = arith.constant 0 : index
    %100 = vector.load %arg5[%c2_85, %c0_86, %c0_87] : memref<6x1x256xf32, #tpu.memory_space<vmem>>, vector<1x1x256xf32>
    %101 = vector.shape_cast %100 : vector<1x1x256xf32> to vector<1x256xf32>
    %102 = vector.broadcast %101 : vector<1x256xf32> to vector<2x256xf32>
    %103 = arith.addf %99, %102 : vector<2x256xf32>
    %c2_88 = arith.constant 2 : index
    %c0_89 = arith.constant 0 : index
    %c0_90 = arith.constant 0 : index
    %104 = vector.load %arg6[%c2_88, %c0_89, %c0_90] : memref<6x1x256xf32, #tpu.memory_space<vmem>>, vector<1x1x256xf32>
    %105 = vector.shape_cast %104 : vector<1x1x256xf32> to vector<1x256xf32>
    %c2_91 = arith.constant 2 : index
    %c0_92 = arith.constant 0 : index
    %c0_93 = arith.constant 0 : index
    %106 = vector.load %arg9[%c2_91, %c0_92, %c0_93] : memref<6x1x256xf32, #tpu.memory_space<vmem>>, vector<1x1x256xf32>
    %107 = vector.shape_cast %106 : vector<1x1x256xf32> to vector<1x256xf32>
    %cst_94 = arith.constant 9.99999974E-6 : f32
    %108 = vector.broadcast %cst_94 : f32 to vector<1x256xf32>
    %109 = arith.addf %107, %108 : vector<1x256xf32>
    %110 = math.rsqrt %109 : vector<1x256xf32>
    %111 = arith.mulf %105, %110 : vector<1x256xf32>
    %c2_95 = arith.constant 2 : index
    %c0_96 = arith.constant 0 : index
    %c0_97 = arith.constant 0 : index
    %112 = vector.load %arg8[%c2_95, %c0_96, %c0_97] : memref<6x1x256xf32, #tpu.memory_space<vmem>>, vector<1x1x256xf32>
    %113 = vector.shape_cast %112 : vector<1x1x256xf32> to vector<1x256xf32>
    %114 = vector.broadcast %113 : vector<1x256xf32> to vector<2x256xf32>
    %115 = arith.subf %103, %114 : vector<2x256xf32>
    %116 = vector.broadcast %111 : vector<1x256xf32> to vector<2x256xf32>
    %117 = arith.mulf %115, %116 : vector<2x256xf32>
    %c2_98 = arith.constant 2 : index
    %c0_99 = arith.constant 0 : index
    %c0_100 = arith.constant 0 : index
    %118 = vector.load %arg7[%c2_98, %c0_99, %c0_100] : memref<6x1x256xf32, #tpu.memory_space<vmem>>, vector<1x1x256xf32>
    %119 = vector.shape_cast %118 : vector<1x1x256xf32> to vector<1x256xf32>
    %120 = vector.broadcast %119 : vector<1x256xf32> to vector<2x256xf32>
    %121 = arith.addf %117, %120 : vector<2x256xf32>
    %c0_101 = arith.constant 0 : index
    %c2_102 = arith.constant 2 : index
    %c0_103 = arith.constant 0 : index
    %122 = vector.load %arg12[%c0_101, %c2_102, %c0_103] : memref<2x6x256xf32, #tpu.memory_space<vmem>>, vector<2x1x256xf32>
    %123 = vector.shape_cast %122 : vector<2x1x256xf32> to vector<2x256xf32>
    %124 = vector.shape_cast %121 : vector<2x256xf32> to vector<2x1x256xf32>
    tpu.vector_store %arg12[%c0_101, %c2_102, %c0_103], %124 {strides = array<i32>} : memref<2x6x256xf32, #tpu.memory_space<vmem>>, vector<2x1x256xf32>,
    %c0_104 = arith.constant 0 : index
    %c3 = arith.constant 3 : index
    %c0_105 = arith.constant 0 : index
    %c0_106 = arith.constant 0 : index
    %125 = vector.load %arg1[%c0_104, %c3, %c0_105, %c0_106] : memref<2x6x32x1024xbf16, #tpu.memory_space<vmem>>, vector<2x1x32x1024xbf16>
    %126 = vector.shape_cast %125 : vector<2x1x32x1024xbf16> to vector<2x32x1024xbf16>
    %127 = arith.extf %126 : vector<2x32x1024xbf16> to vector<2x32x1024xf32>
    %cst_107 = arith.constant dense<0.000000e+00> : vector<2x1024xf32>
    %128 = vector.multi_reduction <add>, %127, %cst_107 [1] : vector<2x32x1024xf32> to vector<2x1024xf32>
    %cst_108 = arith.constant 3.125000e-02 : f32
    %129 = vector.broadcast %cst_108 : f32 to vector<2x1024xf32>
    %130 = arith.mulf %128, %129 : vector<2x1024xf32>
    %c0_109 = arith.constant 0 : index
    %c3_110 = arith.constant 3 : index
    %c0_111 = arith.constant 0 : index
    %131 = vector.load %arg10[%c0_109, %c3_110, %c0_111] : memref<2x6x1024xf32, #tpu.memory_space<vmem>>, vector<2x1x1024xf32>
    %132 = vector.shape_cast %131 : vector<2x1x1024xf32> to vector<2x1024xf32>
    %133 = vector.shape_cast %130 : vector<2x1024xf32> to vector<2x1x1024xf32>
    tpu.vector_store %arg10[%c0_109, %c3_110, %c0_111], %133 {strides = array<i32>} : memref<2x6x1024xf32, #tpu.memory_space<vmem>>, vector<2x1x1024xf32>,
    %134 = arith.truncf %130 : vector<2x1024xf32> to vector<2x1024xbf16>
    %c3_112 = arith.constant 3 : index
    %c0_113 = arith.constant 0 : index
    %c0_114 = arith.constant 0 : index
    %135 = vector.load %arg2[%c3_112, %c0_113, %c0_114] : memref<6x1024x128xbf16, #tpu.memory_space<vmem>>, vector<1x1024x128xbf16>
    %136 = vector.shape_cast %135 : vector<1x1024x128xbf16> to vector<1024x128xbf16>
    %cst_115 = arith.constant dense<0.000000e+00> : vector<2x128xf32>
    %137 = tpu.matmul %134, %136, %cst_115 {dimension_numbers = #tpu.dot_dimension_numbers<[1], [0], [0], [1], [0, 0, 1, 1], [], []>} : vector<2x1024xbf16>, vector<1024x128xbf16>, vector<2x128xf32> -> vector<2x128xf32>
    %138 = arith.addf %96, %137 : vector<2x128xf32>
    %c3_116 = arith.constant 3 : index
    %c0_117 = arith.constant 0 : index
    %c0_118 = arith.constant 0 : index
    %139 = vector.load %arg4[%c3_116, %c0_117, %c0_118] : memref<6x1024x256xbf16, #tpu.memory_space<vmem>>, vector<1x1024x256xbf16>
    %140 = vector.shape_cast %139 : vector<1x1024x256xbf16> to vector<1024x256xbf16>
    %cst_119 = arith.constant dense<0.000000e+00> : vector<2x256xf32>
    %141 = tpu.matmul %134, %140, %cst_119 {dimension_numbers = #tpu.dot_dimension_numbers<[1], [0], [0], [1], [0, 0, 1, 1], [], []>} : vector<2x1024xbf16>, vector<1024x256xbf16>, vector<2x256xf32> -> vector<2x256xf32>
    %c3_120 = arith.constant 3 : index
    %c0_121 = arith.constant 0 : index
    %c0_122 = arith.constant 0 : index
    %142 = vector.load %arg5[%c3_120, %c0_121, %c0_122] : memref<6x1x256xf32, #tpu.memory_space<vmem>>, vector<1x1x256xf32>
    %143 = vector.shape_cast %142 : vector<1x1x256xf32> to vector<1x256xf32>
    %144 = vector.broadcast %143 : vector<1x256xf32> to vector<2x256xf32>
    %145 = arith.addf %141, %144 : vector<2x256xf32>
    %c3_123 = arith.constant 3 : index
    %c0_124 = arith.constant 0 : index
    %c0_125 = arith.constant 0 : index
    %146 = vector.load %arg6[%c3_123, %c0_124, %c0_125] : memref<6x1x256xf32, #tpu.memory_space<vmem>>, vector<1x1x256xf32>
    %147 = vector.shape_cast %146 : vector<1x1x256xf32> to vector<1x256xf32>
    %c3_126 = arith.constant 3 : index
    %c0_127 = arith.constant 0 : index
    %c0_128 = arith.constant 0 : index
    %148 = vector.load %arg9[%c3_126, %c0_127, %c0_128] : memref<6x1x256xf32, #tpu.memory_space<vmem>>, vector<1x1x256xf32>
    %149 = vector.shape_cast %148 : vector<1x1x256xf32> to vector<1x256xf32>
    %cst_129 = arith.constant 9.99999974E-6 : f32
    %150 = vector.broadcast %cst_129 : f32 to vector<1x256xf32>
    %151 = arith.addf %149, %150 : vector<1x256xf32>
    %152 = math.rsqrt %151 : vector<1x256xf32>
    %153 = arith.mulf %147, %152 : vector<1x256xf32>
    %c3_130 = arith.constant 3 : index
    %c0_131 = arith.constant 0 : index
    %c0_132 = arith.constant 0 : index
    %154 = vector.load %arg8[%c3_130, %c0_131, %c0_132] : memref<6x1x256xf32, #tpu.memory_space<vmem>>, vector<1x1x256xf32>
    %155 = vector.shape_cast %154 : vector<1x1x256xf32> to vector<1x256xf32>
    %156 = vector.broadcast %155 : vector<1x256xf32> to vector<2x256xf32>
    %157 = arith.subf %145, %156 : vector<2x256xf32>
    %158 = vector.broadcast %153 : vector<1x256xf32> to vector<2x256xf32>
    %159 = arith.mulf %157, %158 : vector<2x256xf32>
    %c3_133 = arith.constant 3 : index
    %c0_134 = arith.constant 0 : index
    %c0_135 = arith.constant 0 : index
    %160 = vector.load %arg7[%c3_133, %c0_134, %c0_135] : memref<6x1x256xf32, #tpu.memory_space<vmem>>, vector<1x1x256xf32>
    %161 = vector.shape_cast %160 : vector<1x1x256xf32> to vector<1x256xf32>
    %162 = vector.broadcast %161 : vector<1x256xf32> to vector<2x256xf32>
    %163 = arith.addf %159, %162 : vector<2x256xf32>
    %c0_136 = arith.constant 0 : index
    %c3_137 = arith.constant 3 : index
    %c0_138 = arith.constant 0 : index
    %164 = vector.load %arg12[%c0_136, %c3_137, %c0_138] : memref<2x6x256xf32, #tpu.memory_space<vmem>>, vector<2x1x256xf32>
    %165 = vector.shape_cast %164 : vector<2x1x256xf32> to vector<2x256xf32>
    %166 = vector.shape_cast %163 : vector<2x256xf32> to vector<2x1x256xf32>
    tpu.vector_store %arg12[%c0_136, %c3_137, %c0_138], %166 {strides = array<i32>} : memref<2x6x256xf32, #tpu.memory_space<vmem>>, vector<2x1x256xf32>,
    %c0_139 = arith.constant 0 : index
    %c4 = arith.constant 4 : index
    %c0_140 = arith.constant 0 : index
    %c0_141 = arith.constant 0 : index
    %167 = vector.load %arg1[%c0_139, %c4, %c0_140, %c0_141] : memref<2x6x32x1024xbf16, #tpu.memory_space<vmem>>, vector<2x1x32x1024xbf16>
    %168 = vector.shape_cast %167 : vector<2x1x32x1024xbf16> to vector<2x32x1024xbf16>
    %169 = arith.extf %168 : vector<2x32x1024xbf16> to vector<2x32x1024xf32>
    %cst_142 = arith.constant dense<0.000000e+00> : vector<2x1024xf32>
    %170 = vector.multi_reduction <add>, %169, %cst_142 [1] : vector<2x32x1024xf32> to vector<2x1024xf32>
    %cst_143 = arith.constant 3.125000e-02 : f32
    %171 = vector.broadcast %cst_143 : f32 to vector<2x1024xf32>
    %172 = arith.mulf %170, %171 : vector<2x1024xf32>
    %c0_144 = arith.constant 0 : index
    %c4_145 = arith.constant 4 : index
    %c0_146 = arith.constant 0 : index
    %173 = vector.load %arg10[%c0_144, %c4_145, %c0_146] : memref<2x6x1024xf32, #tpu.memory_space<vmem>>, vector<2x1x1024xf32>
    %174 = vector.shape_cast %173 : vector<2x1x1024xf32> to vector<2x1024xf32>
    %175 = vector.shape_cast %172 : vector<2x1024xf32> to vector<2x1x1024xf32>
    tpu.vector_store %arg10[%c0_144, %c4_145, %c0_146], %175 {strides = array<i32>} : memref<2x6x1024xf32, #tpu.memory_space<vmem>>, vector<2x1x1024xf32>,
    %176 = arith.truncf %172 : vector<2x1024xf32> to vector<2x1024xbf16>
    %c4_147 = arith.constant 4 : index
    %c0_148 = arith.constant 0 : index
    %c0_149 = arith.constant 0 : index
    %177 = vector.load %arg2[%c4_147, %c0_148, %c0_149] : memref<6x1024x128xbf16, #tpu.memory_space<vmem>>, vector<1x1024x128xbf16>
    %178 = vector.shape_cast %177 : vector<1x1024x128xbf16> to vector<1024x128xbf16>
    %cst_150 = arith.constant dense<0.000000e+00> : vector<2x128xf32>
    %179 = tpu.matmul %176, %178, %cst_150 {dimension_numbers = #tpu.dot_dimension_numbers<[1], [0], [0], [1], [0, 0, 1, 1], [], []>} : vector<2x1024xbf16>, vector<1024x128xbf16>, vector<2x128xf32> -> vector<2x128xf32>
    %180 = arith.addf %138, %179 : vector<2x128xf32>
    %c4_151 = arith.constant 4 : index
    %c0_152 = arith.constant 0 : index
    %c0_153 = arith.constant 0 : index
    %181 = vector.load %arg4[%c4_151, %c0_152, %c0_153] : memref<6x1024x256xbf16, #tpu.memory_space<vmem>>, vector<1x1024x256xbf16>
    %182 = vector.shape_cast %181 : vector<1x1024x256xbf16> to vector<1024x256xbf16>
    %cst_154 = arith.constant dense<0.000000e+00> : vector<2x256xf32>
    %183 = tpu.matmul %176, %182, %cst_154 {dimension_numbers = #tpu.dot_dimension_numbers<[1], [0], [0], [1], [0, 0, 1, 1], [], []>} : vector<2x1024xbf16>, vector<1024x256xbf16>, vector<2x256xf32> -> vector<2x256xf32>
    %c4_155 = arith.constant 4 : index
    %c0_156 = arith.constant 0 : index
    %c0_157 = arith.constant 0 : index
    %184 = vector.load %arg5[%c4_155, %c0_156, %c0_157] : memref<6x1x256xf32, #tpu.memory_space<vmem>>, vector<1x1x256xf32>
    %185 = vector.shape_cast %184 : vector<1x1x256xf32> to vector<1x256xf32>
    %186 = vector.broadcast %185 : vector<1x256xf32> to vector<2x256xf32>
    %187 = arith.addf %183, %186 : vector<2x256xf32>
    %c4_158 = arith.constant 4 : index
    %c0_159 = arith.constant 0 : index
    %c0_160 = arith.constant 0 : index
    %188 = vector.load %arg6[%c4_158, %c0_159, %c0_160] : memref<6x1x256xf32, #tpu.memory_space<vmem>>, vector<1x1x256xf32>
    %189 = vector.shape_cast %188 : vector<1x1x256xf32> to vector<1x256xf32>
    %c4_161 = arith.constant 4 : index
    %c0_162 = arith.constant 0 : index
    %c0_163 = arith.constant 0 : index
    %190 = vector.load %arg9[%c4_161, %c0_162, %c0_163] : memref<6x1x256xf32, #tpu.memory_space<vmem>>, vector<1x1x256xf32>
    %191 = vector.shape_cast %190 : vector<1x1x256xf32> to vector<1x256xf32>
    %cst_164 = arith.constant 9.99999974E-6 : f32
    %192 = vector.broadcast %cst_164 : f32 to vector<1x256xf32>
    %193 = arith.addf %191, %192 : vector<1x256xf32>
    %194 = math.rsqrt %193 : vector<1x256xf32>
    %195 = arith.mulf %189, %194 : vector<1x256xf32>
    %c4_165 = arith.constant 4 : index
    %c0_166 = arith.constant 0 : index
    %c0_167 = arith.constant 0 : index
    %196 = vector.load %arg8[%c4_165, %c0_166, %c0_167] : memref<6x1x256xf32, #tpu.memory_space<vmem>>, vector<1x1x256xf32>
    %197 = vector.shape_cast %196 : vector<1x1x256xf32> to vector<1x256xf32>
    %198 = vector.broadcast %197 : vector<1x256xf32> to vector<2x256xf32>
    %199 = arith.subf %187, %198 : vector<2x256xf32>
    %200 = vector.broadcast %195 : vector<1x256xf32> to vector<2x256xf32>
    %201 = arith.mulf %199, %200 : vector<2x256xf32>
    %c4_168 = arith.constant 4 : index
    %c0_169 = arith.constant 0 : index
    %c0_170 = arith.constant 0 : index
    %202 = vector.load %arg7[%c4_168, %c0_169, %c0_170] : memref<6x1x256xf32, #tpu.memory_space<vmem>>, vector<1x1x256xf32>
    %203 = vector.shape_cast %202 : vector<1x1x256xf32> to vector<1x256xf32>
    %204 = vector.broadcast %203 : vector<1x256xf32> to vector<2x256xf32>
    %205 = arith.addf %201, %204 : vector<2x256xf32>
    %c0_171 = arith.constant 0 : index
    %c4_172 = arith.constant 4 : index
    %c0_173 = arith.constant 0 : index
    %206 = vector.load %arg12[%c0_171, %c4_172, %c0_173] : memref<2x6x256xf32, #tpu.memory_space<vmem>>, vector<2x1x256xf32>
    %207 = vector.shape_cast %206 : vector<2x1x256xf32> to vector<2x256xf32>
    %208 = vector.shape_cast %205 : vector<2x256xf32> to vector<2x1x256xf32>
    tpu.vector_store %arg12[%c0_171, %c4_172, %c0_173], %208 {strides = array<i32>} : memref<2x6x256xf32, #tpu.memory_space<vmem>>, vector<2x1x256xf32>,
    %c0_174 = arith.constant 0 : index
    %c5 = arith.constant 5 : index
    %c0_175 = arith.constant 0 : index
    %c0_176 = arith.constant 0 : index
    %209 = vector.load %arg1[%c0_174, %c5, %c0_175, %c0_176] : memref<2x6x32x1024xbf16, #tpu.memory_space<vmem>>, vector<2x1x32x1024xbf16>
    %210 = vector.shape_cast %209 : vector<2x1x32x1024xbf16> to vector<2x32x1024xbf16>
    %211 = arith.extf %210 : vector<2x32x1024xbf16> to vector<2x32x1024xf32>
    %cst_177 = arith.constant dense<0.000000e+00> : vector<2x1024xf32>
    %212 = vector.multi_reduction <add>, %211, %cst_177 [1] : vector<2x32x1024xf32> to vector<2x1024xf32>
    %cst_178 = arith.constant 3.125000e-02 : f32
    %213 = vector.broadcast %cst_178 : f32 to vector<2x1024xf32>
    %214 = arith.mulf %212, %213 : vector<2x1024xf32>
    %c0_179 = arith.constant 0 : index
    %c5_180 = arith.constant 5 : index
    %c0_181 = arith.constant 0 : index
    %215 = vector.load %arg10[%c0_179, %c5_180, %c0_181] : memref<2x6x1024xf32, #tpu.memory_space<vmem>>, vector<2x1x1024xf32>
    %216 = vector.shape_cast %215 : vector<2x1x1024xf32> to vector<2x1024xf32>
    %217 = vector.shape_cast %214 : vector<2x1024xf32> to vector<2x1x1024xf32>
    tpu.vector_store %arg10[%c0_179, %c5_180, %c0_181], %217 {strides = array<i32>} : memref<2x6x1024xf32, #tpu.memory_space<vmem>>, vector<2x1x1024xf32>,
    %218 = arith.truncf %214 : vector<2x1024xf32> to vector<2x1024xbf16>
    %c5_182 = arith.constant 5 : index
    %c0_183 = arith.constant 0 : index
    %c0_184 = arith.constant 0 : index
    %219 = vector.load %arg2[%c5_182, %c0_183, %c0_184] : memref<6x1024x128xbf16, #tpu.memory_space<vmem>>, vector<1x1024x128xbf16>
    %220 = vector.shape_cast %219 : vector<1x1024x128xbf16> to vector<1024x128xbf16>
    %cst_185 = arith.constant dense<0.000000e+00> : vector<2x128xf32>
    %221 = tpu.matmul %218, %220, %cst_185 {dimension_numbers = #tpu.dot_dimension_numbers<[1], [0], [0], [1], [0, 0, 1, 1], [], []>} : vector<2x1024xbf16>, vector<1024x128xbf16>, vector<2x128xf32> -> vector<2x128xf32>
    %222 = arith.addf %180, %221 : vector<2x128xf32>
    %c5_186 = arith.constant 5 : index
    %c0_187 = arith.constant 0 : index
    %c0_188 = arith.constant 0 : index
    %223 = vector.load %arg4[%c5_186, %c0_187, %c0_188] : memref<6x1024x256xbf16, #tpu.memory_space<vmem>>, vector<1x1024x256xbf16>
    %224 = vector.shape_cast %223 : vector<1x1024x256xbf16> to vector<1024x256xbf16>
    %cst_189 = arith.constant dense<0.000000e+00> : vector<2x256xf32>
    %225 = tpu.matmul %218, %224, %cst_189 {dimension_numbers = #tpu.dot_dimension_numbers<[1], [0], [0], [1], [0, 0, 1, 1], [], []>} : vector<2x1024xbf16>, vector<1024x256xbf16>, vector<2x256xf32> -> vector<2x256xf32>
    %c5_190 = arith.constant 5 : index
    %c0_191 = arith.constant 0 : index
    %c0_192 = arith.constant 0 : index
    %226 = vector.load %arg5[%c5_190, %c0_191, %c0_192] : memref<6x1x256xf32, #tpu.memory_space<vmem>>, vector<1x1x256xf32>
    %227 = vector.shape_cast %226 : vector<1x1x256xf32> to vector<1x256xf32>
    %228 = vector.broadcast %227 : vector<1x256xf32> to vector<2x256xf32>
    %229 = arith.addf %225, %228 : vector<2x256xf32>
    %c5_193 = arith.constant 5 : index
    %c0_194 = arith.constant 0 : index
    %c0_195 = arith.constant 0 : index
    %230 = vector.load %arg6[%c5_193, %c0_194, %c0_195] : memref<6x1x256xf32, #tpu.memory_space<vmem>>, vector<1x1x256xf32>
    %231 = vector.shape_cast %230 : vector<1x1x256xf32> to vector<1x256xf32>
    %c5_196 = arith.constant 5 : index
    %c0_197 = arith.constant 0 : index
    %c0_198 = arith.constant 0 : index
    %232 = vector.load %arg9[%c5_196, %c0_197, %c0_198] : memref<6x1x256xf32, #tpu.memory_space<vmem>>, vector<1x1x256xf32>
    %233 = vector.shape_cast %232 : vector<1x1x256xf32> to vector<1x256xf32>
    %cst_199 = arith.constant 9.99999974E-6 : f32
    %234 = vector.broadcast %cst_199 : f32 to vector<1x256xf32>
    %235 = arith.addf %233, %234 : vector<1x256xf32>
    %236 = math.rsqrt %235 : vector<1x256xf32>
    %237 = arith.mulf %231, %236 : vector<1x256xf32>
    %c5_200 = arith.constant 5 : index
    %c0_201 = arith.constant 0 : index
    %c0_202 = arith.constant 0 : index
    %238 = vector.load %arg8[%c5_200, %c0_201, %c0_202] : memref<6x1x256xf32, #tpu.memory_space<vmem>>, vector<1x1x256xf32>
    %239 = vector.shape_cast %238 : vector<1x1x256xf32> to vector<1x256xf32>
    %240 = vector.broadcast %239 : vector<1x256xf32> to vector<2x256xf32>
    %241 = arith.subf %229, %240 : vector<2x256xf32>
    %242 = vector.broadcast %237 : vector<1x256xf32> to vector<2x256xf32>
    %243 = arith.mulf %241, %242 : vector<2x256xf32>
    %c5_203 = arith.constant 5 : index
    %c0_204 = arith.constant 0 : index
    %c0_205 = arith.constant 0 : index
    %244 = vector.load %arg7[%c5_203, %c0_204, %c0_205] : memref<6x1x256xf32, #tpu.memory_space<vmem>>, vector<1x1x256xf32>
    %245 = vector.shape_cast %244 : vector<1x1x256xf32> to vector<1x256xf32>
    %246 = vector.broadcast %245 : vector<1x256xf32> to vector<2x256xf32>
    %247 = arith.addf %243, %246 : vector<2x256xf32>
    %c0_206 = arith.constant 0 : index
    %c5_207 = arith.constant 5 : index
    %c0_208 = arith.constant 0 : index
    %248 = vector.load %arg12[%c0_206, %c5_207, %c0_208] : memref<2x6x256xf32, #tpu.memory_space<vmem>>, vector<2x1x256xf32>
    %249 = vector.shape_cast %248 : vector<2x1x256xf32> to vector<2x256xf32>
    %250 = vector.shape_cast %247 : vector<2x256xf32> to vector<2x1x256xf32>
    tpu.vector_store %arg12[%c0_206, %c5_207, %c0_208], %250 {strides = array<i32>} : memref<2x6x256xf32, #tpu.memory_space<vmem>>, vector<2x1x256xf32>,
    %c0_209 = arith.constant 0 : index
    %c0_210 = arith.constant 0 : index
    %251 = vector.load %arg3[%c0_209, %c0_210] : memref<1x128xf32, #tpu.memory_space<vmem>>, vector<1x128xf32>
    %252 = vector.broadcast %251 : vector<1x128xf32> to vector<2x128xf32>
    %253 = arith.addf %222, %252 : vector<2x128xf32>
    %254 = vector.shape_cast %253 : vector<2x128xf32> to vector<2x1x128xf32>
    %c0_211 = arith.constant 0 : index
    %c0_212 = arith.constant 0 : index
    %c0_213 = arith.constant 0 : index
    %255 = vector.load %arg11[%c0_211, %c0_212, %c0_213] : memref<2x1x128xf32, #tpu.memory_space<vmem>>, vector<2x1x128xf32>
    tpu.vector_store %arg11[%c0_211, %c0_212, %c0_213], %254 {strides = array<i32>} : memref<2x1x128xf32, #tpu.memory_space<vmem>>, vector<2x1x128xf32>,
    return
  }
  func.func @transform_0(%arg0: i32) -> (i32, i32, i32, i32) {
    %c0_i32 = arith.constant 0 : i32
    %c0_i32_0 = arith.constant 0 : i32
    %c0_i32_1 = arith.constant 0 : i32
    %c0_i32_2 = arith.constant 0 : i32
    return %arg0, %c0_i32, %c0_i32_0, %c0_i32_1 : i32, i32, i32, i32
  }
  func.func @transform_1(%arg0: i32) -> (i32, i32, i32) {
    %c0_i32 = arith.constant 0 : i32
    %c0_i32_0 = arith.constant 0 : i32
    %c0_i32_1 = arith.constant 0 : i32
    %c0_i32_2 = arith.constant 0 : i32
    return %c0_i32, %c0_i32_0, %c0_i32_1 : i32, i32, i32
  }
  func.func @transform_2(%arg0: i32) -> (i32, i32) {
    %c0_i32 = arith.constant 0 : i32
    %c0_i32_0 = arith.constant 0 : i32
    %c0_i32_1 = arith.constant 0 : i32
    return %c0_i32, %c0_i32_0 : i32, i32
  }
  func.func @transform_3(%arg0: i32) -> (i32, i32, i32) {
    %c0_i32 = arith.constant 0 : i32
    %c0_i32_0 = arith.constant 0 : i32
    %c0_i32_1 = arith.constant 0 : i32
    %c0_i32_2 = arith.constant 0 : i32
    return %c0_i32, %c0_i32_0, %c0_i32_1 : i32, i32, i32
  }
  func.func @transform_4(%arg0: i32) -> (i32, i32, i32) {
    %c0_i32 = arith.constant 0 : i32
    %c0_i32_0 = arith.constant 0 : i32
    %c0_i32_1 = arith.constant 0 : i32
    %c0_i32_2 = arith.constant 0 : i32
    return %c0_i32, %c0_i32_0, %c0_i32_1 : i32, i32, i32
  }
  func.func @transform_5(%arg0: i32) -> (i32, i32, i32) {
    %c0_i32 = arith.constant 0 : i32
    %c0_i32_0 = arith.constant 0 : i32
    %c0_i32_1 = arith.constant 0 : i32
    %c0_i32_2 = arith.constant 0 : i32
    return %c0_i32, %c0_i32_0, %c0_i32_1 : i32, i32, i32
  }
  func.func @transform_6(%arg0: i32) -> (i32, i32, i32) {
    %c0_i32 = arith.constant 0 : i32
    %c0_i32_0 = arith.constant 0 : i32
    %c0_i32_1 = arith.constant 0 : i32
    %c0_i32_2 = arith.constant 0 : i32
    return %c0_i32, %c0_i32_0, %c0_i32_1 : i32, i32, i32
  }
  func.func @transform_7(%arg0: i32) -> (i32, i32, i32) {
    %c0_i32 = arith.constant 0 : i32
    %c0_i32_0 = arith.constant 0 : i32
    %c0_i32_1 = arith.constant 0 : i32
    %c0_i32_2 = arith.constant 0 : i32
    return %c0_i32, %c0_i32_0, %c0_i32_1 : i32, i32, i32
  }
  func.func @transform_8(%arg0: i32) -> (i32, i32, i32) {
    %c0_i32 = arith.constant 0 : i32
    %c0_i32_0 = arith.constant 0 : i32
    %c0_i32_1 = arith.constant 0 : i32
    %c0_i32_2 = arith.constant 0 : i32
    return %c0_i32, %c0_i32_0, %c0_i32_1 : i32, i32, i32
  }
  func.func @transform_9(%arg0: i32) -> (i32, i32, i32) {
    %c0_i32 = arith.constant 0 : i32
    %c0_i32_0 = arith.constant 0 : i32
    %c0_i32_1 = arith.constant 0 : i32
    return %arg0, %c0_i32, %c0_i32_0 : i32, i32, i32
  }
  func.func @transform_10(%arg0: i32) -> (i32, i32, i32) {
    %c0_i32 = arith.constant 0 : i32
    %c0_i32_0 = arith.constant 0 : i32
    %c0_i32_1 = arith.constant 0 : i32
    return %arg0, %c0_i32, %c0_i32_0 : i32, i32, i32
  }
  func.func @transform_11(%arg0: i32) -> (i32, i32, i32) {
    %c0_i32 = arith.constant 0 : i32
    %c0_i32_0 = arith.constant 0 : i32
    %c0_i32_1 = arith.constant 0 : i32
    return %arg0, %c0_i32, %c0_i32_0 : i32, i32, i32
  }
}

</mosaic_0001>

<llo_original>
// kernel: tpu_custom_call.1
$region0: #{tpu_custom_call.1}
  #allocation0 [shape = 'u32[]', space=smem, size = 0x4, offset = 0x4, fixed_abs, tag = 'smem constant byte address 0x4 - core index']
  #allocation1 [shape = 'u32[72,128]{1,0:T(1,128)}', space=vmem, size = 0x9000, scoped, tag = 'internal scratch']
  %s0 = inlined_call_operand.hbm [shape: bf16[2,6,32,1024], index: 0, kind: input, shape index: {}]
  %s1 = inlined_call_operand.hbm [shape: bf16[6,1024,128], index: 1, kind: input, shape index: {}]
  %s2 = inlined_call_operand.hbm [shape: f32[1,128], index: 2, kind: input, shape index: {}]
  %s3 = inlined_call_operand.hbm [shape: bf16[6,1024,256], index: 3, kind: input, shape index: {}]
  %s4 = inlined_call_operand.hbm [shape: f32[6,1,256], index: 4, kind: input, shape index: {}]
  %s5 = inlined_call_operand.hbm [shape: f32[6,1,256], index: 5, kind: input, shape index: {}]
  %s6 = inlined_call_operand.hbm [shape: f32[6,1,256], index: 6, kind: input, shape index: {}]
  %s7 = inlined_call_operand.hbm [shape: f32[6,1,256], index: 7, kind: input, shape index: {}]
  %s8 = inlined_call_operand.hbm [shape: f32[6,1,256], index: 8, kind: input, shape index: {}]
  %s9 = inlined_call_operand.vmem [shape: f32[2,6,1024], index: 9, kind: output, shape index: {0}]
  %s10 = inlined_call_operand.hbm [shape: f32[2,1,128], index: 10, kind: output, shape index: {1}]
  %s11 = inlined_call_operand.vmem [shape: f32[2,6,256], index: 11, kind: output, shape index: {2}]
  %12 = xla_tuple %s9, %s10, %s11
  %s13 = sld [smem:[#allocation0]]
  $region98: #{tpu_custom_call.1} parent=0
    _
  %s15 = ssub.s32 1, %s13
  %s16 = scalar_select 0, %s15, %s13
  $region1: #{tpu_custom_call.1} parent=0
    #allocation2 [shape = 'u8[786432]{0}', space=vmem, size = 0xc0000, scoped, tag = 'input window, operand 0, single buffered']
    #allocation3 [shape = 's32[1]{0}', space=sflag, size = 0x4, scoped, tag = 'scoped memory for tpu_custom_call.1']
    #allocation4 [shape = 's32[1]{0}', space=sflag, size = 0x4, scoped, tag = 'scoped memory for tpu_custom_call.1']
    #allocation5 [shape = 'u8[1572864]{0}', space=vmem, size = 0x180000, scoped, tag = 'input window, operand 1, single buffered']
    #allocation6 [shape = 's32[1]{0}', space=sflag, size = 0x4, scoped, tag = 'scoped memory for tpu_custom_call.1']
    #allocation7 [shape = 'u8[512]{0}', space=vmem, size = 0x400, scoped, tag = 'input window, operand 2, single buffered']
    #allocation8 [shape = 'u8[3145728]{0}', space=vmem, size = 0x300000, scoped, tag = 'input window, operand 3, single buffered']
    #allocation9 [shape = 's32[1]{0}', space=sflag, size = 0x4, scoped, tag = 'scoped memory for tpu_custom_call.1']
    #allocation10 [shape = 'u8[6144]{0}', space=vmem, size = 0x1800, scoped, tag = 'input window, operand 4, single buffered']
    #allocation11 [shape = 'u8[6144]{0}', space=vmem, size = 0x1800, scoped, tag = 'input window, operand 5, single buffered']
    #allocation12 [shape = 's32[1]{0}', space=sflag, size = 0x4, scoped, tag = 'scoped memory for tpu_custom_call.1']
    #allocation13 [shape = 'u8[6144]{0}', space=vmem, size = 0x1800, scoped, tag = 'input window, operand 6, single buffered']
    #allocation14 [shape = 'u8[6144]{0}', space=vmem, size = 0x1800, scoped, tag = 'input window, operand 7, single buffered']
    #allocation15 [shape = 's32[1]{0}', space=sflag, size = 0x4, scoped, tag = 'scoped memory for tpu_custom_call.1']
    #allocation16 [shape = 'u8[6144]{0}', space=vmem, size = 0x1800, scoped, tag = 'input window, operand 8, single buffered']
    #allocation17 [shape = 'u8[1024]{0}', space=vmem, size = 0x400, scoped, tag = 'output window, operand 1, single buffered']
    %17 = vsyncpa [#allocation3], 0
    %18 = vsyncpa [#allocation6], 0
    %19 = vsyncpa [#allocation9], 0
    %20 = vsyncpa [#allocation12], 0
    %21 = vsyncpa [#allocation15], 0
    %22 = vsyncpa [#allocation4], 0
    // Predicated region
    $region2: #{tpu_custom_call.1} parent=1 // pred_check
      _
    $region3: #{tpu_custom_call.1} parent=1 // pred_check_branch
      %24 = sbr.rel (0) target = $region5
    $region4: #{tpu_custom_call.1} parent=1 // pred_region
      %26 = vsyncadd [#allocation3], 0
      %s27 = sshll.u32 %s0, 4
      %s28 = int_to_ptr.hbm [resolvable:$true] %s27
      %s29 = sshll.u32 [#allocation2], 4
      %s30 = int_to_ptr.vmem [resolvable:$true] %s29
      %35 = dma.hbm_to_vmem [thread:$0]  %s28, 24576, %s30, [#allocation3], 512, 512, 32
    $region5: #{tpu_custom_call.1} parent=1 // pred_fallthru
      _
    // Predicated region
    $region6: #{tpu_custom_call.1} parent=1 // pred_check
      _
    $region7: #{tpu_custom_call.1} parent=1 // pred_check_branch
      %37 = sbr.rel (0) target = $region9
    $region8: #{tpu_custom_call.1} parent=1 // pred_region
      %39 = vsyncadd [#allocation6], 0
      %s40 = sshll.u32 %s1, 4
      %s41 = int_to_ptr.hbm [resolvable:$true] %s40
      %s42 = sshll.u32 [#allocation5], 4
      %s43 = int_to_ptr.vmem [resolvable:$true] %s42
      %48 = dma.hbm_to_vmem [thread:$0]  %s41, 49152, %s43, [#allocation6], 64, 64, 4
    $region9: #{tpu_custom_call.1} parent=1 // pred_fallthru
      _
    // Predicated region
    $region10: #{tpu_custom_call.1} parent=1 // pred_check
      _
    $region11: #{tpu_custom_call.1} parent=1 // pred_check_branch
      %50 = sbr.rel (0) target = $region13
    $region12: #{tpu_custom_call.1} parent=1 // pred_region
      %52 = vsyncadd [#allocation6], 0
      %s54 = sshll.u32 %s2, 4
      %s55 = int_to_ptr.hbm [resolvable:$true] %s54
      %s56 = sshll.u32 [#allocation7], 4
      %s57 = int_to_ptr.vmem [resolvable:$true] %s56
      %59 = dma.hbm_to_vmem [thread:$0]  %s55, 16, %s57, [#allocation6]
    $region13: #{tpu_custom_call.1} parent=1 // pred_fallthru
      _
    // Predicated region
    $region14: #{tpu_custom_call.1} parent=1 // pred_check
      _
    $region15: #{tpu_custom_call.1} parent=1 // pred_check_branch
      %61 = sbr.rel (0) target = $region17
    $region16: #{tpu_custom_call.1} parent=1 // pred_region
      %63 = vsyncadd [#allocation9], 0
      %s64 = sshll.u32 %s3, 4
      %s65 = int_to_ptr.hbm [resolvable:$true] %s64
      %s66 = sshll.u32 [#allocation8], 4
      %s67 = int_to_ptr.vmem [resolvable:$true] %s66
      %72 = dma.hbm_to_vmem [thread:$0]  %s65, 98304, %s67, [#allocation9], 128, 128, 8
    $region17: #{tpu_custom_call.1} parent=1 // pred_fallthru
      _
    // Predicated region
    $region18: #{tpu_custom_call.1} parent=1 // pred_check
      _
    $region19: #{tpu_custom_call.1} parent=1 // pred_check_branch
      %74 = sbr.rel (0) target = $region21
    $region20: #{tpu_custom_call.1} parent=1 // pred_region
      %76 = vsyncadd [#allocation9], 0
      %s77 = sshll.u32 %s4, 4
      %s78 = int_to_ptr.hbm [resolvable:$true] %s77
      %s79 = sshll.u32 [#allocation10], 4
      %s80 = int_to_ptr.vmem [resolvable:$true] %s79
      %85 = dma.hbm_to_vmem [thread:$0]  %s78, 192, %s80, [#allocation9], 32, 32, 2
    $region21: #{tpu_custom_call.1} parent=1 // pred_fallthru
      _
    // Predicated region
    $region22: #{tpu_custom_call.1} parent=1 // pred_check
      _
    $region23: #{tpu_custom_call.1} parent=1 // pred_check_branch
      %87 = sbr.rel (0) target = $region25
    $region24: #{tpu_custom_call.1} parent=1 // pred_region
      %89 = vsyncadd [#allocation12], 0
      %s90 = sshll.u32 %s5, 4
      %s91 = int_to_ptr.hbm [resolvable:$true] %s90
      %s92 = sshll.u32 [#allocation11], 4
      %s93 = int_to_ptr.vmem [resolvable:$true] %s92
      %98 = dma.hbm_to_vmem [thread:$0]  %s91, 192, %s93, [#allocation12], 32, 32, 2
    $region25: #{tpu_custom_call.1} parent=1 // pred_fallthru
      _
    // Predicated region
    $region26: #{tpu_custom_call.1} parent=1 // pred_check
      _
    $region27: #{tpu_custom_call.1} parent=1 // pred_check_branch
      %100 = sbr.rel (0) target = $region29
    $region28: #{tpu_custom_call.1} parent=1 // pred_region
      %102 = vsyncadd [#allocation12], 0
      %s103 = sshll.u32 %s6, 4
      %s104 = int_to_ptr.hbm [resolvable:$true] %s103
      %s105 = sshll.u32 [#allocation13], 4
      %s106 = int_to_ptr.vmem [resolvable:$true] %s105
      %111 = dma.hbm_to_vmem [thread:$0]  %s104, 192, %s106, [#allocation12], 32, 32, 2
    $region29: #{tpu_custom_call.1} parent=1 // pred_fallthru
      _
    // Predicated region
    $region30: #{tpu_custom_call.1} parent=1 // pred_check
      _
    $region31: #{tpu_custom_call.1} parent=1 // pred_check_branch
      %113 = sbr.rel (0) target = $region33
    $region32: #{tpu_custom_call.1} parent=1 // pred_region
      %115 = vsyncadd [#allocation15], 0
      %s116 = sshll.u32 %s7, 4
      %s117 = int_to_ptr.hbm [resolvable:$true] %s116
      %s118 = sshll.u32 [#allocation14], 4
      %s119 = int_to_ptr.vmem [resolvable:$true] %s118
      %124 = dma.hbm_to_vmem [thread:$0]  %s117, 192, %s119, [#allocation15], 32, 32, 2
    $region33: #{tpu_custom_call.1} parent=1 // pred_fallthru
      _
    // Predicated region
    $region34: #{tpu_custom_call.1} parent=1 // pred_check
      _
    $region35: #{tpu_custom_call.1} parent=1 // pred_check_branch
      %126 = sbr.rel (0) target = $region37
    $region36: #{tpu_custom_call.1} parent=1 // pred_region
      %128 = vsyncadd [#allocation15], 0
      %s129 = sshll.u32 %s8, 4
      %s130 = int_to_ptr.hbm [resolvable:$true] %s129
      %s131 = sshll.u32 [#allocation16], 4
      %s132 = int_to_ptr.vmem [resolvable:$true] %s131
      %137 = dma.hbm_to_vmem [thread:$0]  %s130, 192, %s132, [#allocation15], 32, 32, 2
    $region37: #{tpu_custom_call.1} parent=1 // pred_fallthru
      _
    // Predicated region
    $region38: #{tpu_custom_call.1} parent=1 // pred_check
      _
    $region39: #{tpu_custom_call.1} parent=1 // pred_check_branch
      %139 = sbr.rel (0) target = $region41
    $region40: #{tpu_custom_call.1} parent=1 // pred_region
      %141 = dma.done [#allocation3], 24576
    $region41: #{tpu_custom_call.1} parent=1 // pred_fallthru
      _
    // Predicated region
    $region42: #{tpu_custom_call.1} parent=1 // pred_check
      _
    $region43: #{tpu_custom_call.1} parent=1 // pred_check_branch
      %143 = sbr.rel (0) target = $region45
    $region44: #{tpu_custom_call.1} parent=1 // pred_region
      %145 = dma.done [#allocation6], 49152
    $region45: #{tpu_custom_call.1} parent=1 // pred_fallthru
      _
    // Predicated region
    $region46: #{tpu_custom_call.1} parent=1 // pred_check
      _
    $region47: #{tpu_custom_call.1} parent=1 // pred_check_branch
      %147 = sbr.rel (0) target = $region49
    $region48: #{tpu_custom_call.1} parent=1 // pred_region
      %149 = dma.done [#allocation6], 16
    $region49: #{tpu_custom_call.1} parent=1 // pred_fallthru
      _
    // Predicated region
    $region50: #{tpu_custom_call.1} parent=1 // pred_check
      _
    $region51: #{tpu_custom_call.1} parent=1 // pred_check_branch
      %151 = sbr.rel (0) target = $region53
    $region52: #{tpu_custom_call.1} parent=1 // pred_region
      %153 = dma.done [#allocation9], 98304
    $region53: #{tpu_custom_call.1} parent=1 // pred_fallthru
      _
    // Predicated region
    $region54: #{tpu_custom_call.1} parent=1 // pred_check
      _
    $region55: #{tpu_custom_call.1} parent=1 // pred_check_branch
      %155 = sbr.rel (0) target = $region57
    $region56: #{tpu_custom_call.1} parent=1 // pred_region
      %157 = dma.done [#allocation9], 192
    $region57: #{tpu_custom_call.1} parent=1 // pred_fallthru
      _
    // Predicated region
    $region58: #{tpu_custom_call.1} parent=1 // pred_check
      _
    $region59: #{tpu_custom_call.1} parent=1 // pred_check_branch
      %159 = sbr.rel (0) target = $region61
    $region60: #{tpu_custom_call.1} parent=1 // pred_region
      %161 = dma.done [#allocation12], 192
    $region61: #{tpu_custom_call.1} parent=1 // pred_fallthru
      _
    // Predicated region
    $region62: #{tpu_custom_call.1} parent=1 // pred_check
      _
    $region63: #{tpu_custom_call.1} parent=1 // pred_check_branch
      %163 = sbr.rel (0) target = $region65
    $region64: #{tpu_custom_call.1} parent=1 // pred_region
      %165 = dma.done [#allocation12], 192
    $region65: #{tpu_custom_call.1} parent=1 // pred_fallthru
      _
    // Predicated region
    $region66: #{tpu_custom_call.1} parent=1 // pred_check
      _
    $region67: #{tpu_custom_call.1} parent=1 // pred_check_branch
      %167 = sbr.rel (0) target = $region69
    $region68: #{tpu_custom_call.1} parent=1 // pred_region
      %169 = dma.done [#allocation15], 192
    $region69: #{tpu_custom_call.1} parent=1 // pred_fallthru
      _
    // Predicated region
    $region70: #{tpu_custom_call.1} parent=1 // pred_check
      _
    $region71: #{tpu_custom_call.1} parent=1 // pred_check_branch
      %171 = sbr.rel (0) target = $region73
    $region72: #{tpu_custom_call.1} parent=1 // pred_region
      %173 = dma.done [#allocation15], 192
    $region73: #{tpu_custom_call.1} parent=1 // pred_fallthru
      _
    %v174 = vld [vmem:[#allocation2] sm:$0xff]
    %v175 = vld [vmem:[#allocation2 + $0x8] sm:$0xff]
    %v176 = vld [vmem:[#allocation2 + $0x10] sm:$0xff]
    %v177 = vld [vmem:[#allocation2 + $0x18] sm:$0xff]
    %v178 = vld [vmem:[#allocation2 + $0x20] sm:$0xff]
    %v179 = vld [vmem:[#allocation2 + $0x28] sm:$0xff]
    %v180 = vld [vmem:[#allocation2 + $0x30] sm:$0xff]
    %v181 = vld [vmem:[#allocation2 + $0x38] sm:$0xff]
    %v182 = vld [vmem:[#allocation2 + $0x40] sm:$0xff]
    %v183 = vld [vmem:[#allocation2 + $0x48] sm:$0xff]
    %v184 = vld [vmem:[#allocation2 + $0x50] sm:$0xff]
    %v185 = vld [vmem:[#allocation2 + $0x58] sm:$0xff]
    %v186 = vld [vmem:[#allocation2 + $0x60] sm:$0xff]
    %v187 = vld [vmem:[#allocation2 + $0x68] sm:$0xff]
    %v188 = vld [vmem:[#allocation2 + $0x70] sm:$0xff]
    %v189 = vld [vmem:[#allocation2 + $0x78] sm:$0xff]
    %v190 = vld [vmem:[#allocation2 + $0x300] sm:$0xff]
    %v191 = vld [vmem:[#allocation2 + $0x308] sm:$0xff]
    %v192 = vld [vmem:[#allocation2 + $0x310] sm:$0xff]
    %v193 = vld [vmem:[#allocation2 + $0x318] sm:$0xff]
    %v194 = vld [vmem:[#allocation2 + $0x320] sm:$0xff]
    %v195 = vld [vmem:[#allocation2 + $0x328] sm:$0xff]
    %v196 = vld [vmem:[#allocation2 + $0x330] sm:$0xff]
    %v197 = vld [vmem:[#allocation2 + $0x338] sm:$0xff]
    %v198 = vld [vmem:[#allocation2 + $0x340] sm:$0xff]
    %v199 = vld [vmem:[#allocation2 + $0x348] sm:$0xff]
    %v200 = vld [vmem:[#allocation2 + $0x350] sm:$0xff]
    %v201 = vld [vmem:[#allocation2 + $0x358] sm:$0xff]
    %v202 = vld [vmem:[#allocation2 + $0x360] sm:$0xff]
    %v203 = vld [vmem:[#allocation2 + $0x368] sm:$0xff]
    %v204 = vld [vmem:[#allocation2 + $0x370] sm:$0xff]
    %v205 = vld [vmem:[#allocation2 + $0x378] sm:$0xff]
    %v206 = vunpack.c.l.bf16 %v174
    %v207 = vunpack.c.h.bf16 %v174
    %v208 = vunpack.c.l.bf16 %v175
    %v209 = vunpack.c.h.bf16 %v175
    %v210 = vunpack.c.l.bf16 %v176
    %v211 = vunpack.c.h.bf16 %v176
    %v212 = vunpack.c.l.bf16 %v177
    %v213 = vunpack.c.h.bf16 %v177
    %v214 = vunpack.c.l.bf16 %v178
    %v215 = vunpack.c.h.bf16 %v178
    %v216 = vunpack.c.l.bf16 %v179
    %v217 = vunpack.c.h.bf16 %v179
    %v218 = vunpack.c.l.bf16 %v180
    %v219 = vunpack.c.h.bf16 %v180
    %v220 = vunpack.c.l.bf16 %v181
    %v221 = vunpack.c.h.bf16 %v181
    %v222 = vunpack.c.l.bf16 %v182
    %v223 = vunpack.c.h.bf16 %v182
    %v224 = vunpack.c.l.bf16 %v183
    %v225 = vunpack.c.h.bf16 %v183
    %v226 = vunpack.c.l.bf16 %v184
    %v227 = vunpack.c.h.bf16 %v184
    %v228 = vunpack.c.l.bf16 %v185
    %v229 = vunpack.c.h.bf16 %v185
    %v230 = vunpack.c.l.bf16 %v186
    %v231 = vunpack.c.h.bf16 %v186
    %v232 = vunpack.c.l.bf16 %v187
    %v233 = vunpack.c.h.bf16 %v187
    %v234 = vunpack.c.l.bf16 %v188
    %v235 = vunpack.c.h.bf16 %v188
    %v236 = vunpack.c.l.bf16 %v189
    %v237 = vunpack.c.h.bf16 %v189
    %v238 = vunpack.c.l.bf16 %v190
    %v239 = vunpack.c.h.bf16 %v190
    %v240 = vunpack.c.l.bf16 %v191
    %v241 = vunpack.c.h.bf16 %v191
    %v242 = vunpack.c.l.bf16 %v192
    %v243 = vunpack.c.h.bf16 %v192
    %v244 = vunpack.c.l.bf16 %v193
    %v245 = vunpack.c.h.bf16 %v193
    %v246 = vunpack.c.l.bf16 %v194
    %v247 = vunpack.c.h.bf16 %v194
    %v248 = vunpack.c.l.bf16 %v195
    %v249 = vunpack.c.h.bf16 %v195
    %v250 = vunpack.c.l.bf16 %v196
    %v251 = vunpack.c.h.bf16 %v196
    %v252 = vunpack.c.l.bf16 %v197
    %v253 = vunpack.c.h.bf16 %v197
    %v254 = vunpack.c.l.bf16 %v198
    %v255 = vunpack.c.h.bf16 %v198
    %v256 = vunpack.c.l.bf16 %v199
    %v257 = vunpack.c.h.bf16 %v199
    %v258 = vunpack.c.l.bf16 %v200
    %v259 = vunpack.c.h.bf16 %v200
    %v260 = vunpack.c.l.bf16 %v201
    %v261 = vunpack.c.h.bf16 %v201
    %v262 = vunpack.c.l.bf16 %v202
    %v263 = vunpack.c.h.bf16 %v202
    %v264 = vunpack.c.l.bf16 %v203
    %v265 = vunpack.c.h.bf16 %v203
    %v266 = vunpack.c.l.bf16 %v204
    %v267 = vunpack.c.h.bf16 %v204
    %v268 = vunpack.c.l.bf16 %v205
    %v269 = vunpack.c.h.bf16 %v205
    %v270 = vadd.f32 %v206, %v214
    %v271 = vadd.f32 %v270, %v222
    %v272 = vadd.f32 %v271, %v230
    %v273 = vrot.slane %v272, 4
    %v274 = vadd.f32 %v272, %v273
    %v275 = vrot.slane %v274, 2
    %v276 = vadd.f32 %v274, %v275
    %v277 = vrot.slane %v276, 1
    %v278 = vadd.f32 %v276, %v277
    %v279 = vadd.f32 %v207, %v215
    %v280 = vadd.f32 %v279, %v223
    %v281 = vadd.f32 %v280, %v231
    %v282 = vrot.slane %v281, 4
    %v283 = vadd.f32 %v281, %v282
    %v284 = vrot.slane %v283, 2
    %v285 = vadd.f32 %v283, %v284
    %v286 = vrot.slane %v285, 1
    %v287 = vadd.f32 %v285, %v286
    %v288 = vadd.f32 %v208, %v216
    %v289 = vadd.f32 %v288, %v224
    %v290 = vadd.f32 %v289, %v232
    %v291 = vrot.slane %v290, 4
    %v292 = vadd.f32 %v290, %v291
    %v293 = vrot.slane %v292, 2
    %v294 = vadd.f32 %v292, %v293
    %v295 = vrot.slane %v294, 1
    %v296 = vadd.f32 %v294, %v295
    %v297 = vadd.f32 %v209, %v217
    %v298 = vadd.f32 %v297, %v225
    %v299 = vadd.f32 %v298, %v233
    %v300 = vrot.slane %v299, 4
    %v301 = vadd.f32 %v299, %v300
    %v302 = vrot.slane %v301, 2
    %v303 = vadd.f32 %v301, %v302
    %v304 = vrot.slane %v303, 1
    %v305 = vadd.f32 %v303, %v304
    %v306 = vadd.f32 %v210, %v218
    %v307 = vadd.f32 %v306, %v226
    %v308 = vadd.f32 %v307, %v234
    %v309 = vrot.slane %v308, 4
    %v310 = vadd.f32 %v308, %v309
    %v311 = vrot.slane %v310, 2
    %v312 = vadd.f32 %v310, %v311
    %v313 = vrot.slane %v312, 1
    %v314 = vadd.f32 %v312, %v313
    %v315 = vadd.f32 %v211, %v219
    %v316 = vadd.f32 %v315, %v227
    %v317 = vadd.f32 %v316, %v235
    %v318 = vrot.slane %v317, 4
    %v319 = vadd.f32 %v317, %v318
    %v320 = vrot.slane %v319, 2
    %v321 = vadd.f32 %v319, %v320
    %v322 = vrot.slane %v321, 1
    %v323 = vadd.f32 %v321, %v322
    %v324 = vadd.f32 %v212, %v220
    %v325 = vadd.f32 %v324, %v228
    %v326 = vadd.f32 %v325, %v236
    %v327 = vrot.slane %v326, 4
    %v328 = vadd.f32 %v326, %v327
    %v329 = vrot.slane %v328, 2
    %v330 = vadd.f32 %v328, %v329
    %v331 = vrot.slane %v330, 1
    %v332 = vadd.f32 %v330, %v331
    %v333 = vadd.f32 %v213, %v221
    %v334 = vadd.f32 %v333, %v229
    %v335 = vadd.f32 %v334, %v237
    %v336 = vrot.slane %v335, 4
    %v337 = vadd.f32 %v335, %v336
    %v338 = vrot.slane %v337, 2
    %v339 = vadd.f32 %v337, %v338
    %v340 = vrot.slane %v339, 1
    %v341 = vadd.f32 %v339, %v340
    %v342 = vadd.f32 %v238, %v246
    %v343 = vadd.f32 %v342, %v254
    %v344 = vadd.f32 %v343, %v262
    %v345 = vrot.slane %v344, 4
    %v346 = vadd.f32 %v344, %v345
    %v347 = vrot.slane %v346, 2
    %v348 = vadd.f32 %v346, %v347
    %v349 = vrot.slane %v348, 1
    %v350 = vadd.f32 %v348, %v349
    %v351 = vadd.f32 %v239, %v247
    %v352 = vadd.f32 %v351, %v255
    %v353 = vadd.f32 %v352, %v263
    %v354 = vrot.slane %v353, 4
    %v355 = vadd.f32 %v353, %v354
    %v356 = vrot.slane %v355, 2
    %v357 = vadd.f32 %v355, %v356
    %v358 = vrot.slane %v357, 1
    %v359 = vadd.f32 %v357, %v358
    %v360 = vadd.f32 %v240, %v248
    %v361 = vadd.f32 %v360, %v256
    %v362 = vadd.f32 %v361, %v264
    %v363 = vrot.slane %v362, 4
    %v364 = vadd.f32 %v362, %v363
    %v365 = vrot.slane %v364, 2
    %v366 = vadd.f32 %v364, %v365
    %v367 = vrot.slane %v366, 1
    %v368 = vadd.f32 %v366, %v367
    %v369 = vadd.f32 %v241, %v249
    %v370 = vadd.f32 %v369, %v257
    %v371 = vadd.f32 %v370, %v265
    %v372 = vrot.slane %v371, 4
    %v373 = vadd.f32 %v371, %v372
    %v374 = vrot.slane %v373, 2
    %v375 = vadd.f32 %v373, %v374
    %v376 = vrot.slane %v375, 1
    %v377 = vadd.f32 %v375, %v376
    %v378 = vadd.f32 %v242, %v250
    %v379 = vadd.f32 %v378, %v258
    %v380 = vadd.f32 %v379, %v266
    %v381 = vrot.slane %v380, 4
    %v382 = vadd.f32 %v380, %v381
    %v383 = vrot.slane %v382, 2
    %v384 = vadd.f32 %v382, %v383
    %v385 = vrot.slane %v384, 1
    %v386 = vadd.f32 %v384, %v385
    %v387 = vadd.f32 %v243, %v251
    %v388 = vadd.f32 %v387, %v259
    %v389 = vadd.f32 %v388, %v267
    %v390 = vrot.slane %v389, 4
    %v391 = vadd.f32 %v389, %v390
    %v392 = vrot.slane %v391, 2
    %v393 = vadd.f32 %v391, %v392
    %v394 = vrot.slane %v393, 1
    %v395 = vadd.f32 %v393, %v394
    %v396 = vadd.f32 %v244, %v252
    %v397 = vadd.f32 %v396, %v260
    %v398 = vadd.f32 %v397, %v268
    %v399 = vrot.slane %v398, 4
    %v400 = vadd.f32 %v398, %v399
    %v401 = vrot.slane %v400, 2
    %v402 = vadd.f32 %v400, %v401
    %v403 = vrot.slane %v402, 1
    %v404 = vadd.f32 %v402, %v403
    %v405 = vadd.f32 %v245, %v253
    %v406 = vadd.f32 %v405, %v261
    %v407 = vadd.f32 %v406, %v269
    %v408 = vrot.slane %v407, 4
    %v409 = vadd.f32 %v407, %v408
    %v410 = vrot.slane %v409, 2
    %v411 = vadd.f32 %v409, %v410
    %v412 = vrot.slane %v411, 1
    %v413 = vadd.f32 %v411, %v412
    %v414 = vmul.f32 %v278, 0.03125
    %v415 = vmul.f32 %v287, 0.03125
    %v416 = vmul.f32 %v296, 0.03125
    %v417 = vmul.f32 %v305, 0.03125
    %v418 = vmul.f32 %v314, 0.03125
    %v419 = vmul.f32 %v323, 0.03125
    %v420 = vmul.f32 %v332, 0.03125
    %v421 = vmul.f32 %v341, 0.03125
    %v422 = vmul.f32 %v350, 0.03125
    %v423 = vmul.f32 %v359, 0.03125
    %v424 = vmul.f32 %v368, 0.03125
    %v425 = vmul.f32 %v377, 0.03125
    %v426 = vmul.f32 %v386, 0.03125
    %v427 = vmul.f32 %v395, 0.03125
    %v428 = vmul.f32 %v404, 0.03125
    %v429 = vmul.f32 %v413, 0.03125
    %v446 = vrot.slane %v415, 7
    %v447 = vrot.slane %v416, 6
    %v448 = vrot.slane %v417, 5
    %v449 = vrot.slane %v418, 4
    %v450 = vrot.slane %v419, 3
    %v451 = vrot.slane %v420, 2
    %v452 = vrot.slane %v421, 1
    %v453 = vrot.slane %v423, 7
    %v454 = vrot.slane %v424, 6
    %v455 = vrot.slane %v425, 5
    %v456 = vrot.slane %v426, 4
    %v457 = vrot.slane %v427, 3
    %v458 = vrot.slane %v428, 2
    %v459 = vrot.slane %v429, 1
    %vm460 = vcmask 1040384
    %v461 = vsel %vm460, %v414, %v446
    %vm462 = vcmask 1042434
    %v463 = vsel %vm462, %v447, %v448
    %vm464 = vcmask 1041408
    %v465 = vsel %vm464, %v461, %v463
    %vm466 = vcmask 1044484
    %v467 = vsel %vm466, %v449, %v450
    %vm468 = vcmask 1046534
    %v469 = vsel %vm468, %v451, %v452
    %vm470 = vcmask 1045508
    %v471 = vsel %vm470, %v467, %v469
    %vm472 = vcmask 1043456
    %v473 = vsel %vm472, %v465, %v471
    %v474 = vsel %vm460, %v422, %v453
    %v475 = vsel %vm462, %v454, %v455
    %v476 = vsel %vm464, %v474, %v475
    %v477 = vsel %vm466, %v456, %v457
    %v478 = vsel %vm468, %v458, %v459
    %v479 = vsel %vm470, %v477, %v478
    %v480 = vsel %vm472, %v476, %v479
    %483 = vst [vmem:[%s9] ss:$8 sm:$0xf] %v473
    %484 = vst [vmem:[%s9] ss:$8 sm:$0xf0] %v473
    %s485 = scalar_lea.vmem %s9, 64
    %486 = vst [vmem:[%s485] ss:$8 sm:$0xf] %v480
    %487 = vst [vmem:[%s485] ss:$8 sm:$0xf0] %v480
    %v488 = vpack.c.bf16 %v414, %v414
    %v489 = vpack.c.bf16 %v415, %v415
    %v490 = vpack.c.bf16 %v416, %v416
    %v491 = vpack.c.bf16 %v417, %v417
    %v492 = vpack.c.bf16 %v418, %v418
    %v493 = vpack.c.bf16 %v419, %v419
    %v494 = vpack.c.bf16 %v420, %v420
    %v495 = vpack.c.bf16 %v421, %v421
    %v496 = vpack.c.bf16 %v422, %v422
    %v497 = vpack.c.bf16 %v423, %v423
    %v498 = vpack.c.bf16 %v424, %v424
    %v499 = vpack.c.bf16 %v425, %v425
    %v500 = vpack.c.bf16 %v426, %v426
    %v501 = vpack.c.bf16 %v427, %v427
    %v502 = vpack.c.bf16 %v428, %v428
    %v503 = vpack.c.bf16 %v429, %v429
    %v504 = vld [vmem:[#allocation5] sm:$0xf]
    %v505 = vld [vmem:[#allocation5 + $0x4] sm:$0xf]
    %v506 = vld [vmem:[#allocation5 + $0x8] sm:$0xf]
    %v507 = vld [vmem:[#allocation5 + $0xc] sm:$0xf]
    %v508 = vld [vmem:[#allocation5 + $0x10] sm:$0xf]
    %v509 = vld [vmem:[#allocation5 + $0x14] sm:$0xf]
    %v510 = vld [vmem:[#allocation5 + $0x18] sm:$0xf]
    %v511 = vld [vmem:[#allocation5 + $0x1c] sm:$0xf]
    %v512 = vld [vmem:[#allocation5 + $0x20] sm:$0xf]
    %v513 = vld [vmem:[#allocation5 + $0x24] sm:$0xf]
    %v514 = vld [vmem:[#allocation5 + $0x28] sm:$0xf]
    %v515 = vld [vmem:[#allocation5 + $0x2c] sm:$0xf]
    %v516 = vld [vmem:[#allocation5 + $0x30] sm:$0xf]
    %v517 = vld [vmem:[#allocation5 + $0x34] sm:$0xf]
    %v518 = vld [vmem:[#allocation5 + $0x38] sm:$0xf]
    %v519 = vld [vmem:[#allocation5 + $0x3c] sm:$0xf]
    %v520 = vld [vmem:[#allocation5 + $0x40] sm:$0xf]
    %v521 = vld [vmem:[#allocation5 + $0x44] sm:$0xf]
    %v522 = vld [vmem:[#allocation5 + $0x48] sm:$0xf]
    %v523 = vld [vmem:[#allocation5 + $0x4c] sm:$0xf]
    %v524 = vld [vmem:[#allocation5 + $0x50] sm:$0xf]
    %v525 = vld [vmem:[#allocation5 + $0x54] sm:$0xf]
    %v526 = vld [vmem:[#allocation5 + $0x58] sm:$0xf]
    %v527 = vld [vmem:[#allocation5 + $0x5c] sm:$0xf]
    %v528 = vld [vmem:[#allocation5 + $0x60] sm:$0xf]
    %v529 = vld [vmem:[#allocation5 + $0x64] sm:$0xf]
    %v530 = vld [vmem:[#allocation5 + $0x68] sm:$0xf]
    %v531 = vld [vmem:[#allocation5 + $0x6c] sm:$0xf]
    %v532 = vld [vmem:[#allocation5 + $0x70] sm:$0xf]
    %v533 = vld [vmem:[#allocation5 + $0x74] sm:$0xf]
    %v534 = vld [vmem:[#allocation5 + $0x78] sm:$0xf]
    %v535 = vld [vmem:[#allocation5 + $0x7c] sm:$0xf]
    %v536 = vld [vmem:[#allocation5 + $0x80] sm:$0xf]
    %v537 = vld [vmem:[#allocation5 + $0x84] sm:$0xf]
    %v538 = vld [vmem:[#allocation5 + $0x88] sm:$0xf]
    %v539 = vld [vmem:[#allocation5 + $0x8c] sm:$0xf]
    %v540 = vld [vmem:[#allocation5 + $0x90] sm:$0xf]
    %v541 = vld [vmem:[#allocation5 + $0x94] sm:$0xf]
    %v542 = vld [vmem:[#allocation5 + $0x98] sm:$0xf]
    %v543 = vld [vmem:[#allocation5 + $0x9c] sm:$0xf]
    %v544 = vld [vmem:[#allocation5 + $0xa0] sm:$0xf]
    %v545 = vld [vmem:[#allocation5 + $0xa4] sm:$0xf]
    %v546 = vld [vmem:[#allocation5 + $0xa8] sm:$0xf]
    %v547 = vld [vmem:[#allocation5 + $0xac] sm:$0xf]
    %v548 = vld [vmem:[#allocation5 + $0xb0] sm:$0xf]
    %v549 = vld [vmem:[#allocation5 + $0xb4] sm:$0xf]
    %v550 = vld [vmem:[#allocation5 + $0xb8] sm:$0xf]
    %v551 = vld [vmem:[#allocation5 + $0xbc] sm:$0xf]
    %v552 = vld [vmem:[#allocation5 + $0xc0] sm:$0xf]
    %v553 = vld [vmem:[#allocation5 + $0xc4] sm:$0xf]
    %v554 = vld [vmem:[#allocation5 + $0xc8] sm:$0xf]
    %v555 = vld [vmem:[#allocation5 + $0xcc] sm:$0xf]
    %v556 = vld [vmem:[#allocation5 + $0xd0] sm:$0xf]
    %v557 = vld [vmem:[#allocation5 + $0xd4] sm:$0xf]
    %v558 = vld [vmem:[#allocation5 + $0xd8] sm:$0xf]
    %v559 = vld [vmem:[#allocation5 + $0xdc] sm:$0xf]
    %v560 = vld [vmem:[#allocation5 + $0xe0] sm:$0xf]
    %v561 = vld [vmem:[#allocation5 + $0xe4] sm:$0xf]
    %v562 = vld [vmem:[#allocation5 + $0xe8] sm:$0xf]
    %v563 = vld [vmem:[#allocation5 + $0xec] sm:$0xf]
    %v564 = vld [vmem:[#allocation5 + $0xf0] sm:$0xf]
    %v565 = vld [vmem:[#allocation5 + $0xf4] sm:$0xf]
    %v566 = vld [vmem:[#allocation5 + $0xf8] sm:$0xf]
    %v567 = vld [vmem:[#allocation5 + $0xfc] sm:$0xf]
    %v568 = vld [vmem:[#allocation5 + $0x100] sm:$0xf]
    %v569 = vld [vmem:[#allocation5 + $0x104] sm:$0xf]
    %v570 = vld [vmem:[#allocation5 + $0x108] sm:$0xf]
    %v571 = vld [vmem:[#allocation5 + $0x10c] sm:$0xf]
    %v572 = vld [vmem:[#allocation5 + $0x110] sm:$0xf]
    %v573 = vld [vmem:[#allocation5 + $0x114] sm:$0xf]
    %v574 = vld [vmem:[#allocation5 + $0x118] sm:$0xf]
    %v575 = vld [vmem:[#allocation5 + $0x11c] sm:$0xf]
    %v576 = vld [vmem:[#allocation5 + $0x120] sm:$0xf]
    %v577 = vld [vmem:[#allocation5 + $0x124] sm:$0xf]
    %v578 = vld [vmem:[#allocation5 + $0x128] sm:$0xf]
    %v579 = vld [vmem:[#allocation5 + $0x12c] sm:$0xf]
    %v580 = vld [vmem:[#allocation5 + $0x130] sm:$0xf]
    %v581 = vld [vmem:[#allocation5 + $0x134] sm:$0xf]
    %v582 = vld [vmem:[#allocation5 + $0x138] sm:$0xf]
    %v583 = vld [vmem:[#allocation5 + $0x13c] sm:$0xf]
    %v584 = vld [vmem:[#allocation5 + $0x140] sm:$0xf]
    %v585 = vld [vmem:[#allocation5 + $0x144] sm:$0xf]
    %v586 = vld [vmem:[#allocation5 + $0x148] sm:$0xf]
    %v587 = vld [vmem:[#allocation5 + $0x14c] sm:$0xf]
    %v588 = vld [vmem:[#allocation5 + $0x150] sm:$0xf]
    %v589 = vld [vmem:[#allocation5 + $0x154] sm:$0xf]
    %v590 = vld [vmem:[#allocation5 + $0x158] sm:$0xf]
    %v591 = vld [vmem:[#allocation5 + $0x15c] sm:$0xf]
    %v592 = vld [vmem:[#allocation5 + $0x160] sm:$0xf]
    %v593 = vld [vmem:[#allocation5 + $0x164] sm:$0xf]
    %v594 = vld [vmem:[#allocation5 + $0x168] sm:$0xf]
    %v595 = vld [vmem:[#allocation5 + $0x16c] sm:$0xf]
    %v596 = vld [vmem:[#allocation5 + $0x170] sm:$0xf]
    %v597 = vld [vmem:[#allocation5 + $0x174] sm:$0xf]
    %v598 = vld [vmem:[#allocation5 + $0x178] sm:$0xf]
    %v599 = vld [vmem:[#allocation5 + $0x17c] sm:$0xf]
    %v600 = vld [vmem:[#allocation5 + $0x180] sm:$0xf]
    %v601 = vld [vmem:[#allocation5 + $0x184] sm:$0xf]
    %v602 = vld [vmem:[#allocation5 + $0x188] sm:$0xf]
    %v603 = vld [vmem:[#allocation5 + $0x18c] sm:$0xf]
    %v604 = vld [vmem:[#allocation5 + $0x190] sm:$0xf]
    %v605 = vld [vmem:[#allocation5 + $0x194] sm:$0xf]
    %v606 = vld [vmem:[#allocation5 + $0x198] sm:$0xf]
    %v607 = vld [vmem:[#allocation5 + $0x19c] sm:$0xf]
    %v608 = vld [vmem:[#allocation5 + $0x1a0] sm:$0xf]
    %v609 = vld [vmem:[#allocation5 + $0x1a4] sm:$0xf]
    %v610 = vld [vmem:[#allocation5 + $0x1a8] sm:$0xf]
    %v611 = vld [vmem:[#allocation5 + $0x1ac] sm:$0xf]
    %v612 = vld [vmem:[#allocation5 + $0x1b0] sm:$0xf]
    %v613 = vld [vmem:[#allocation5 + $0x1b4] sm:$0xf]
    %v614 = vld [vmem:[#allocation5 + $0x1b8] sm:$0xf]
    %v615 = vld [vmem:[#allocation5 + $0x1bc] sm:$0xf]
    %v616 = vld [vmem:[#allocation5 + $0x1c0] sm:$0xf]
    %v617 = vld [vmem:[#allocation5 + $0x1c4] sm:$0xf]
    %v618 = vld [vmem:[#allocation5 + $0x1c8] sm:$0xf]
    %v619 = vld [vmem:[#allocation5 + $0x1cc] sm:$0xf]
    %v620 = vld [vmem:[#allocation5 + $0x1d0] sm:$0xf]
    %v621 = vld [vmem:[#allocation5 + $0x1d4] sm:$0xf]
    %v622 = vld [vmem:[#allocation5 + $0x1d8] sm:$0xf]
    %v623 = vld [vmem:[#allocation5 + $0x1dc] sm:$0xf]
    %v624 = vld [vmem:[#allocation5 + $0x1e0] sm:$0xf]
    %v625 = vld [vmem:[#allocation5 + $0x1e4] sm:$0xf]
    %v626 = vld [vmem:[#allocation5 + $0x1e8] sm:$0xf]
    %v627 = vld [vmem:[#allocation5 + $0x1ec] sm:$0xf]
    %v628 = vld [vmem:[#allocation5 + $0x1f0] sm:$0xf]
    %v629 = vld [vmem:[#allocation5 + $0x1f4] sm:$0xf]
    %v630 = vld [vmem:[#allocation5 + $0x1f8] sm:$0xf]
    %v631 = vld [vmem:[#allocation5 + $0x1fc] sm:$0xf]
    %v632 = vld [vmem:[#allocation8] sm:$0xff]
    %v633 = vld [vmem:[#allocation8 + $0x8] sm:$0xff]
    %v634 = vld [vmem:[#allocation8 + $0x10] sm:$0xff]
    %v635 = vld [vmem:[#allocation8 + $0x18] sm:$0xff]
    %v636 = vld [vmem:[#allocation8 + $0x20] sm:$0xff]
    %v637 = vld [vmem:[#allocation8 + $0x28] sm:$0xff]
    %v638 = vld [vmem:[#allocation8 + $0x30] sm:$0xff]
    %v639 = vld [vmem:[#allocation8 + $0x38] sm:$0xff]
    %v640 = vld [vmem:[#allocation8 + $0x40] sm:$0xff]
    %v641 = vld [vmem:[#allocation8 + $0x48] sm:$0xff]
    %v642 = vld [vmem:[#allocation8 + $0x50] sm:$0xff]
    %v643 = vld [vmem:[#allocation8 + $0x58] sm:$0xff]
    %v644 = vld [vmem:[#allocation8 + $0x60] sm:$0xff]
    %v645 = vld [vmem:[#allocation8 + $0x68] sm:$0xff]
    %v646 = vld [vmem:[#allocation8 + $0x70] sm:$0xff]
    %v647 = vld [vmem:[#allocation8 + $0x78] sm:$0xff]
    %v648 = vld [vmem:[#allocation8 + $0x80] sm:$0xff]
    %v649 = vld [vmem:[#allocation8 + $0x88] sm:$0xff]
    %v650 = vld [vmem:[#allocation8 + $0x90] sm:$0xff]
    %v651 = vld [vmem:[#allocation8 + $0x98] sm:$0xff]
    %v652 = vld [vmem:[#allocation8 + $0xa0] sm:$0xff]
    %v653 = vld [vmem:[#allocation8 + $0xa8] sm:$0xff]
    %v654 = vld [vmem:[#allocation8 + $0xb0] sm:$0xff]
    %v655 = vld [vmem:[#allocation8 + $0xb8] sm:$0xff]
    %v656 = vld [vmem:[#allocation8 + $0xc0] sm:$0xff]
    %v657 = vld [vmem:[#allocation8 + $0xc8] sm:$0xff]
    %v658 = vld [vmem:[#allocation8 + $0xd0] sm:$0xff]
    %v659 = vld [vmem:[#allocation8 + $0xd8] sm:$0xff]
    %v660 = vld [vmem:[#allocation8 + $0xe0] sm:$0xff]
    %v661 = vld [vmem:[#allocation8 + $0xe8] sm:$0xff]
    %v662 = vld [vmem:[#allocation8 + $0xf0] sm:$0xff]
    %v663 = vld [vmem:[#allocation8 + $0xf8] sm:$0xff]
    %v664 = vld [vmem:[#allocation8 + $0x100] sm:$0xff]
    %v665 = vld [vmem:[#allocation8 + $0x108] sm:$0xff]
    %v666 = vld [vmem:[#allocation8 + $0x110] sm:$0xff]
    %v667 = vld [vmem:[#allocation8 + $0x118] sm:$0xff]
    %v668 = vld [vmem:[#allocation8 + $0x120] sm:$0xff]
    %v669 = vld [vmem:[#allocation8 + $0x128] sm:$0xff]
    %v670 = vld [vmem:[#allocation8 + $0x130] sm:$0xff]
    %v671 = vld [vmem:[#allocation8 + $0x138] sm:$0xff]
    %v672 = vld [vmem:[#allocation8 + $0x140] sm:$0xff]
    %v673 = vld [vmem:[#allocation8 + $0x148] sm:$0xff]
    %v674 = vld [vmem:[#allocation8 + $0x150] sm:$0xff]
    %v675 = vld [vmem:[#allocation8 + $0x158] sm:$0xff]
    %v676 = vld [vmem:[#allocation8 + $0x160] sm:$0xff]
    %v677 = vld [vmem:[#allocation8 + $0x168] sm:$0xff]
    %v678 = vld [vmem:[#allocation8 + $0x170] sm:$0xff]
    %v679 = vld [vmem:[#allocation8 + $0x178] sm:$0xff]
    %v680 = vld [vmem:[#allocation8 + $0x180] sm:$0xff]
    %v681 = vld [vmem:[#allocation8 + $0x188] sm:$0xff]
    %v682 = vld [vmem:[#allocation8 + $0x190] sm:$0xff]
    %v683 = vld [vmem:[#allocation8 + $0x198] sm:$0xff]
    %v684 = vld [vmem:[#allocation8 + $0x1a0] sm:$0xff]
    %v685 = vld [vmem:[#allocation8 + $0x1a8] sm:$0xff]
    %v686 = vld [vmem:[#allocation8 + $0x1b0] sm:$0xff]
    %v687 = vld [vmem:[#allocation8 + $0x1b8] sm:$0xff]
    %v688 = vld [vmem:[#allocation8 + $0x1c0] sm:$0xff]
    %v689 = vld [vmem:[#allocation8 + $0x1c8] sm:$0xff]
    %v690 = vld [vmem:[#allocation8 + $0x1d0] sm:$0xff]
    %v691 = vld [vmem:[#allocation8 + $0x1d8] sm:$0xff]
    %v692 = vld [vmem:[#allocation8 + $0x1e0] sm:$0xff]
    %v693 = vld [vmem:[#allocation8 + $0x1e8] sm:$0xff]
    %v694 = vld [vmem:[#allocation8 + $0x1f0] sm:$0xff]
    %v695 = vld [vmem:[#allocation8 + $0x1f8] sm:$0xff]
    %v696 = vld [vmem:[#allocation8 + $0x200] sm:$0xff]
    %v697 = vld [vmem:[#allocation8 + $0x208] sm:$0xff]
    %v698 = vld [vmem:[#allocation8 + $0x210] sm:$0xff]
    %v699 = vld [vmem:[#allocation8 + $0x218] sm:$0xff]
    %v700 = vld [vmem:[#allocation8 + $0x220] sm:$0xff]
    %v701 = vld [vmem:[#allocation8 + $0x228] sm:$0xff]
    %v702 = vld [vmem:[#allocation8 + $0x230] sm:$0xff]
    %v703 = vld [vmem:[#allocation8 + $0x238] sm:$0xff]
    %v704 = vld [vmem:[#allocation8 + $0x240] sm:$0xff]
    %v705 = vld [vmem:[#allocation8 + $0x248] sm:$0xff]
    %v706 = vld [vmem:[#allocation8 + $0x250] sm:$0xff]
    %v707 = vld [vmem:[#allocation8 + $0x258] sm:$0xff]
    %v708 = vld [vmem:[#allocation8 + $0x260] sm:$0xff]
    %v709 = vld [vmem:[#allocation8 + $0x268] sm:$0xff]
    %v710 = vld [vmem:[#allocation8 + $0x270] sm:$0xff]
    %v711 = vld [vmem:[#allocation8 + $0x278] sm:$0xff]
    %v712 = vld [vmem:[#allocation8 + $0x280] sm:$0xff]
    %v713 = vld [vmem:[#allocation8 + $0x288] sm:$0xff]
    %v714 = vld [vmem:[#allocation8 + $0x290] sm:$0xff]
    %v715 = vld [vmem:[#allocation8 + $0x298] sm:$0xff]
    %v716 = vld [vmem:[#allocation8 + $0x2a0] sm:$0xff]
    %v717 = vld [vmem:[#allocation8 + $0x2a8] sm:$0xff]
    %v718 = vld [vmem:[#allocation8 + $0x2b0] sm:$0xff]
    %v719 = vld [vmem:[#allocation8 + $0x2b8] sm:$0xff]
    %v720 = vld [vmem:[#allocation8 + $0x2c0] sm:$0xff]
    %v721 = vld [vmem:[#allocation8 + $0x2c8] sm:$0xff]
    %v722 = vld [vmem:[#allocation8 + $0x2d0] sm:$0xff]
    %v723 = vld [vmem:[#allocation8 + $0x2d8] sm:$0xff]
    %v724 = vld [vmem:[#allocation8 + $0x2e0] sm:$0xff]
    %v725 = vld [vmem:[#allocation8 + $0x2e8] sm:$0xff]
    %v726 = vld [vmem:[#allocation8 + $0x2f0] sm:$0xff]
    %v727 = vld [vmem:[#allocation8 + $0x2f8] sm:$0xff]
    %v728 = vld [vmem:[#allocation8 + $0x300] sm:$0xff]
    %v729 = vld [vmem:[#allocation8 + $0x308] sm:$0xff]
    %v730 = vld [vmem:[#allocation8 + $0x310] sm:$0xff]
    %v731 = vld [vmem:[#allocation8 + $0x318] sm:$0xff]
    %v732 = vld [vmem:[#allocation8 + $0x320] sm:$0xff]
    %v733 = vld [vmem:[#allocation8 + $0x328] sm:$0xff]
    %v734 = vld [vmem:[#allocation8 + $0x330] sm:$0xff]
    %v735 = vld [vmem:[#allocation8 + $0x338] sm:$0xff]
    %v736 = vld [vmem:[#allocation8 + $0x340] sm:$0xff]
    %v737 = vld [vmem:[#allocation8 + $0x348] sm:$0xff]
    %v738 = vld [vmem:[#allocation8 + $0x350] sm:$0xff]
    %v739 = vld [vmem:[#allocation8 + $0x358] sm:$0xff]
    %v740 = vld [vmem:[#allocation8 + $0x360] sm:$0xff]
    %v741 = vld [vmem:[#allocation8 + $0x368] sm:$0xff]
    %v742 = vld [vmem:[#allocation8 + $0x370] sm:$0xff]
    %v743 = vld [vmem:[#allocation8 + $0x378] sm:$0xff]
    %v744 = vld [vmem:[#allocation8 + $0x380] sm:$0xff]
    %v745 = vld [vmem:[#allocation8 + $0x388] sm:$0xff]
    %v746 = vld [vmem:[#allocation8 + $0x390] sm:$0xff]
    %v747 = vld [vmem:[#allocation8 + $0x398] sm:$0xff]
    %v748 = vld [vmem:[#allocation8 + $0x3a0] sm:$0xff]
    %v749 = vld [vmem:[#allocation8 + $0x3a8] sm:$0xff]
    %v750 = vld [vmem:[#allocation8 + $0x3b0] sm:$0xff]
    %v751 = vld [vmem:[#allocation8 + $0x3b8] sm:$0xff]
    %v752 = vld [vmem:[#allocation8 + $0x3c0] sm:$0xff]
    %v753 = vld [vmem:[#allocation8 + $0x3c8] sm:$0xff]
    %v754 = vld [vmem:[#allocation8 + $0x3d0] sm:$0xff]
    %v755 = vld [vmem:[#allocation8 + $0x3d8] sm:$0xff]
    %v756 = vld [vmem:[#allocation8 + $0x3e0] sm:$0xff]
    %v757 = vld [vmem:[#allocation8 + $0x3e8] sm:$0xff]
    %v758 = vld [vmem:[#allocation8 + $0x3f0] sm:$0xff]
    %v759 = vld [vmem:[#allocation8 + $0x3f8] sm:$0xff]
    %v760 = vld [vmem:[#allocation10] sm:$0x3]
    %v762 = vperm.slane %v760, 0
    %v763 = vperm.slane %v760, 1
    %v782 = vunpack.c.l.b16 %v488
    %v783 = vunpack.c.l.b16 %v489
    %v784 = vunpack.c.l.b16 %v490
    %v785 = vunpack.c.l.b16 %v491
    %v786 = vunpack.c.l.b16 %v492
    %v787 = vunpack.c.l.b16 %v493
    %v788 = vunpack.c.l.b16 %v494
    %v789 = vunpack.c.l.b16 %v495
    %v790 = vunpack.c.l.b16 %v496
    %v791 = vunpack.c.l.b16 %v497
    %v792 = vunpack.c.l.b16 %v498
    %v793 = vunpack.c.l.b16 %v499
    %v794 = vunpack.c.l.b16 %v500
    %v795 = vunpack.c.l.b16 %v501
    %v796 = vunpack.c.l.b16 %v502
    %v797 = vunpack.c.l.b16 %v503
    %vm798 = vcmask 1041409
    %v799 = vsel %vm798, %v790, %v782
    %v800 = vsel %vm798, %v791, %v783
    %v801 = vsel %vm798, %v792, %v784
    %v802 = vsel %vm798, %v793, %v785
    %v803 = vsel %vm798, %v794, %v786
    %v804 = vsel %vm798, %v795, %v787
    %v805 = vsel %vm798, %v796, %v788
    %v806 = vsel %vm798, %v797, %v789
    %v807 = vpack.c.b16 %v799, %v799
    %v808 = vpack.c.b16 %v800, %v800
    %v809 = vpack.c.b16 %v801, %v801
    %v810 = vpack.c.b16 %v802, %v802
    %v811 = vpack.c.b16 %v803, %v803
    %v812 = vpack.c.b16 %v804, %v804
    %v813 = vpack.c.b16 %v805, %v805
    %v814 = vpack.c.b16 %v806, %v806
    %v951 = vunpack.c.l.b16 %v632
    %v952 = vunpack.c.h.b16 %v632
    %v953 = vunpack.c.l.b16 %v633
    %v954 = vunpack.c.h.b16 %v633
    %v955 = vunpack.c.l.b16 %v634
    %v956 = vunpack.c.h.b16 %v634
    %v957 = vunpack.c.l.b16 %v635
    %v958 = vunpack.c.h.b16 %v635
    %v959 = vunpack.c.l.b16 %v636
    %v960 = vunpack.c.h.b16 %v636
    %v961 = vunpack.c.l.b16 %v637
    %v962 = vunpack.c.h.b16 %v637
    %v963 = vunpack.c.l.b16 %v638
    %v964 = vunpack.c.h.b16 %v638
    %v965 = vunpack.c.l.b16 %v639
    %v966 = vunpack.c.h.b16 %v639
    %v967 = vunpack.c.l.b16 %v640
    %v968 = vunpack.c.h.b16 %v640
    %v969 = vunpack.c.l.b16 %v641
    %v970 = vunpack.c.h.b16 %v641
    %v971 = vunpack.c.l.b16 %v642
    %v972 = vunpack.c.h.b16 %v642
    %v973 = vunpack.c.l.b16 %v643
    %v974 = vunpack.c.h.b16 %v643
    %v975 = vunpack.c.l.b16 %v644
    %v976 = vunpack.c.h.b16 %v644
    %v977 = vunpack.c.l.b16 %v645
    %v978 = vunpack.c.h.b16 %v645
    %v979 = vunpack.c.l.b16 %v646
    %v980 = vunpack.c.h.b16 %v646
    %v981 = vunpack.c.l.b16 %v647
    %v982 = vunpack.c.h.b16 %v647
    %v983 = vunpack.c.l.b16 %v648
    %v984 = vunpack.c.h.b16 %v648
    %v985 = vunpack.c.l.b16 %v649
    %v986 = vunpack.c.h.b16 %v649
    %v987 = vunpack.c.l.b16 %v650
    %v988 = vunpack.c.h.b16 %v650
    %v989 = vunpack.c.l.b16 %v651
    %v990 = vunpack.c.h.b16 %v651
    %v991 = vunpack.c.l.b16 %v652
    %v992 = vunpack.c.h.b16 %v652
    %v993 = vunpack.c.l.b16 %v653
    %v994 = vunpack.c.h.b16 %v653
    %v995 = vunpack.c.l.b16 %v654
    %v996 = vunpack.c.h.b16 %v654
    %v997 = vunpack.c.l.b16 %v655
    %v998 = vunpack.c.h.b16 %v655
    %v999 = vunpack.c.l.b16 %v656
    %v1000 = vunpack.c.h.b16 %v656
    %v1001 = vunpack.c.l.b16 %v657
    %v1002 = vunpack.c.h.b16 %v657
    %v1003 = vunpack.c.l.b16 %v658
    %v1004 = vunpack.c.h.b16 %v658
    %v1005 = vunpack.c.l.b16 %v659
    %v1006 = vunpack.c.h.b16 %v659
    %v1007 = vunpack.c.l.b16 %v660
    %v1008 = vunpack.c.h.b16 %v660
    %v1009 = vunpack.c.l.b16 %v661
    %v1010 = vunpack.c.h.b16 %v661
    %v1011 = vunpack.c.l.b16 %v662
    %v1012 = vunpack.c.h.b16 %v662
    %v1013 = vunpack.c.l.b16 %v663
    %v1014 = vunpack.c.h.b16 %v663
    %v1015 = vunpack.c.l.b16 %v664
    %v1016 = vunpack.c.h.b16 %v664
    %v1017 = vunpack.c.l.b16 %v665
    %v1018 = vunpack.c.h.b16 %v665
    %v1019 = vunpack.c.l.b16 %v666
    %v1020 = vunpack.c.h.b16 %v666
    %v1021 = vunpack.c.l.b16 %v667
    %v1022 = vunpack.c.h.b16 %v667
    %v1023 = vunpack.c.l.b16 %v668
    %v1024 = vunpack.c.h.b16 %v668
    %v1025 = vunpack.c.l.b16 %v669
    %v1026 = vunpack.c.h.b16 %v669
    %v1027 = vunpack.c.l.b16 %v670
    %v1028 = vunpack.c.h.b16 %v670
    %v1029 = vunpack.c.l.b16 %v671
    %v1030 = vunpack.c.h.b16 %v671
    %v1031 = vunpack.c.l.b16 %v672
    %v1032 = vunpack.c.h.b16 %v672
    %v1033 = vunpack.c.l.b16 %v673
    %v1034 = vunpack.c.h.b16 %v673
    %v1035 = vunpack.c.l.b16 %v674
    %v1036 = vunpack.c.h.b16 %v674
    %v1037 = vunpack.c.l.b16 %v675
    %v1038 = vunpack.c.h.b16 %v675
    %v1039 = vunpack.c.l.b16 %v676
    %v1040 = vunpack.c.h.b16 %v676
    %v1041 = vunpack.c.l.b16 %v677
    %v1042 = vunpack.c.h.b16 %v677
    %v1043 = vunpack.c.l.b16 %v678
    %v1044 = vunpack.c.h.b16 %v678
    %v1045 = vunpack.c.l.b16 %v679
    %v1046 = vunpack.c.h.b16 %v679
    %v1047 = vunpack.c.l.b16 %v680
    %v1048 = vunpack.c.h.b16 %v680
    %v1049 = vunpack.c.l.b16 %v681
    %v1050 = vunpack.c.h.b16 %v681
    %v1051 = vunpack.c.l.b16 %v682
    %v1052 = vunpack.c.h.b16 %v682
    %v1053 = vunpack.c.l.b16 %v683
    %v1054 = vunpack.c.h.b16 %v683
    %v1055 = vunpack.c.l.b16 %v684
    %v1056 = vunpack.c.h.b16 %v684
    %v1057 = vunpack.c.l.b16 %v685
    %v1058 = vunpack.c.h.b16 %v685
    %v1059 = vunpack.c.l.b16 %v686
    %v1060 = vunpack.c.h.b16 %v686
    %v1061 = vunpack.c.l.b16 %v687
    %v1062 = vunpack.c.h.b16 %v687
    %v1063 = vunpack.c.l.b16 %v688
    %v1064 = vunpack.c.h.b16 %v688
    %v1065 = vunpack.c.l.b16 %v689
    %v1066 = vunpack.c.h.b16 %v689
    %v1067 = vunpack.c.l.b16 %v690
    %v1068 = vunpack.c.h.b16 %v690
    %v1069 = vunpack.c.l.b16 %v691
    %v1070 = vunpack.c.h.b16 %v691
    %v1071 = vunpack.c.l.b16 %v692
    %v1072 = vunpack.c.h.b16 %v692
    %v1073 = vunpack.c.l.b16 %v693
    %v1074 = vunpack.c.h.b16 %v693
    %v1075 = vunpack.c.l.b16 %v694
    %v1076 = vunpack.c.h.b16 %v694
    %v1077 = vunpack.c.l.b16 %v695
    %v1078 = vunpack.c.h.b16 %v695
    %v1079 = vunpack.c.l.b16 %v696
    %v1080 = vunpack.c.h.b16 %v696
    %v1081 = vunpack.c.l.b16 %v697
    %v1082 = vunpack.c.h.b16 %v697
    %v1083 = vunpack.c.l.b16 %v698
    %v1084 = vunpack.c.h.b16 %v698
    %v1085 = vunpack.c.l.b16 %v699
    %v1086 = vunpack.c.h.b16 %v699
    %v1087 = vunpack.c.l.b16 %v700
    %v1088 = vunpack.c.h.b16 %v700
    %v1089 = vunpack.c.l.b16 %v701
    %v1090 = vunpack.c.h.b16 %v701
    %v1091 = vunpack.c.l.b16 %v702
    %v1092 = vunpack.c.h.b16 %v702
    %v1093 = vunpack.c.l.b16 %v703
    %v1094 = vunpack.c.h.b16 %v703
    %v1095 = vunpack.c.l.b16 %v704
    %v1096 = vunpack.c.h.b16 %v704
    %v1097 = vunpack.c.l.b16 %v705
    %v1098 = vunpack.c.h.b16 %v705
    %v1099 = vunpack.c.l.b16 %v706
    %v1100 = vunpack.c.h.b16 %v706
    %v1101 = vunpack.c.l.b16 %v707
    %v1102 = vunpack.c.h.b16 %v707
    %v1103 = vunpack.c.l.b16 %v708
    %v1104 = vunpack.c.h.b16 %v708
    %v1105 = vunpack.c.l.b16 %v709
    %v1106 = vunpack.c.h.b16 %v709
    %v1107 = vunpack.c.l.b16 %v710
    %v1108 = vunpack.c.h.b16 %v710
    %v1109 = vunpack.c.l.b16 %v711
    %v1110 = vunpack.c.h.b16 %v711
    %v1111 = vunpack.c.l.b16 %v712
    %v1112 = vunpack.c.h.b16 %v712
    %v1113 = vunpack.c.l.b16 %v713
    %v1114 = vunpack.c.h.b16 %v713
    %v1115 = vunpack.c.l.b16 %v714
    %v1116 = vunpack.c.h.b16 %v714
    %v1117 = vunpack.c.l.b16 %v715
    %v1118 = vunpack.c.h.b16 %v715
    %v1119 = vunpack.c.l.b16 %v716
    %v1120 = vunpack.c.h.b16 %v716
    %v1121 = vunpack.c.l.b16 %v717
    %v1122 = vunpack.c.h.b16 %v717
    %v1123 = vunpack.c.l.b16 %v718
    %v1124 = vunpack.c.h.b16 %v718
    %v1125 = vunpack.c.l.b16 %v719
    %v1126 = vunpack.c.h.b16 %v719
    %v1127 = vunpack.c.l.b16 %v720
    %v1128 = vunpack.c.h.b16 %v720
    %v1129 = vunpack.c.l.b16 %v721
    %v1130 = vunpack.c.h.b16 %v721
    %v1131 = vunpack.c.l.b16 %v722
    %v1132 = vunpack.c.h.b16 %v722
    %v1133 = vunpack.c.l.b16 %v723
    %v1134 = vunpack.c.h.b16 %v723
    %v1135 = vunpack.c.l.b16 %v724
    %v1136 = vunpack.c.h.b16 %v724
    %v1137 = vunpack.c.l.b16 %v725
    %v1138 = vunpack.c.h.b16 %v725
    %v1139 = vunpack.c.l.b16 %v726
    %v1140 = vunpack.c.h.b16 %v726
    %v1141 = vunpack.c.l.b16 %v727
    %v1142 = vunpack.c.h.b16 %v727
    %v1143 = vunpack.c.l.b16 %v728
    %v1144 = vunpack.c.h.b16 %v728
    %v1145 = vunpack.c.l.b16 %v729
    %v1146 = vunpack.c.h.b16 %v729
    %v1147 = vunpack.c.l.b16 %v730
    %v1148 = vunpack.c.h.b16 %v730
    %v1149 = vunpack.c.l.b16 %v731
    %v1150 = vunpack.c.h.b16 %v731
    %v1151 = vunpack.c.l.b16 %v732
    %v1152 = vunpack.c.h.b16 %v732
    %v1153 = vunpack.c.l.b16 %v733
    %v1154 = vunpack.c.h.b16 %v733
    %v1155 = vunpack.c.l.b16 %v734
    %v1156 = vunpack.c.h.b16 %v734
    %v1157 = vunpack.c.l.b16 %v735
    %v1158 = vunpack.c.h.b16 %v735
    %v1159 = vunpack.c.l.b16 %v736
    %v1160 = vunpack.c.h.b16 %v736
    %v1161 = vunpack.c.l.b16 %v737
    %v1162 = vunpack.c.h.b16 %v737
    %v1163 = vunpack.c.l.b16 %v738
    %v1164 = vunpack.c.h.b16 %v738
    %v1165 = vunpack.c.l.b16 %v739
    %v1166 = vunpack.c.h.b16 %v739
    %v1167 = vunpack.c.l.b16 %v740
    %v1168 = vunpack.c.h.b16 %v740
    %v1169 = vunpack.c.l.b16 %v741
    %v1170 = vunpack.c.h.b16 %v741
    %v1171 = vunpack.c.l.b16 %v742
    %v1172 = vunpack.c.h.b16 %v742
    %v1173 = vunpack.c.l.b16 %v743
    %v1174 = vunpack.c.h.b16 %v743
    %v1175 = vunpack.c.l.b16 %v744
    %v1176 = vunpack.c.h.b16 %v744
    %v1177 = vunpack.c.l.b16 %v745
    %v1178 = vunpack.c.h.b16 %v745
    %v1179 = vunpack.c.l.b16 %v746
    %v1180 = vunpack.c.h.b16 %v746
    %v1181 = vunpack.c.l.b16 %v747
    %v1182 = vunpack.c.h.b16 %v747
    %v1183 = vunpack.c.l.b16 %v748
    %v1184 = vunpack.c.h.b16 %v748
    %v1185 = vunpack.c.l.b16 %v749
    %v1186 = vunpack.c.h.b16 %v749
    %v1187 = vunpack.c.l.b16 %v750
    %v1188 = vunpack.c.h.b16 %v750
    %v1189 = vunpack.c.l.b16 %v751
    %v1190 = vunpack.c.h.b16 %v751
    %v1191 = vunpack.c.l.b16 %v752
    %v1192 = vunpack.c.h.b16 %v752
    %v1193 = vunpack.c.l.b16 %v753
    %v1194 = vunpack.c.h.b16 %v753
    %v1195 = vunpack.c.l.b16 %v754
    %v1196 = vunpack.c.h.b16 %v754
    %v1197 = vunpack.c.l.b16 %v755
    %v1198 = vunpack.c.h.b16 %v755
    %v1199 = vunpack.c.l.b16 %v756
    %v1200 = vunpack.c.h.b16 %v756
    %v1201 = vunpack.c.l.b16 %v757
    %v1202 = vunpack.c.h.b16 %v757
    %v1203 = vunpack.c.l.b16 %v758
    %v1204 = vunpack.c.h.b16 %v758
    %v1205 = vunpack.c.l.b16 %v759
    %v1206 = vunpack.c.h.b16 %v759
    %v1207 = vpack.c.b16 %v953, %v951
    %v1208 = vpack.c.b16 %v954, %v952
    %v1209 = vpack.c.b16 %v957, %v955
    %v1210 = vpack.c.b16 %v958, %v956
    %v1211 = vpack.c.b16 %v961, %v959
    %v1212 = vpack.c.b16 %v962, %v960
    %v1213 = vpack.c.b16 %v965, %v963
    %v1214 = vpack.c.b16 %v966, %v964
    %v1215 = vpack.c.b16 %v969, %v967
    %v1216 = vpack.c.b16 %v970, %v968
    %v1217 = vpack.c.b16 %v973, %v971
    %v1218 = vpack.c.b16 %v974, %v972
    %v1219 = vpack.c.b16 %v977, %v975
    %v1220 = vpack.c.b16 %v978, %v976
    %v1221 = vpack.c.b16 %v981, %v979
    %v1222 = vpack.c.b16 %v982, %v980
    %v1223 = vpack.c.b16 %v985, %v983
    %v1224 = vpack.c.b16 %v986, %v984
    %v1225 = vpack.c.b16 %v989, %v987
    %v1226 = vpack.c.b16 %v990, %v988
    %v1227 = vpack.c.b16 %v993, %v991
    %v1228 = vpack.c.b16 %v994, %v992
    %v1229 = vpack.c.b16 %v997, %v995
    %v1230 = vpack.c.b16 %v998, %v996
    %v1231 = vpack.c.b16 %v1001, %v999
    %v1232 = vpack.c.b16 %v1002, %v1000
    %v1233 = vpack.c.b16 %v1005, %v1003
    %v1234 = vpack.c.b16 %v1006, %v1004
    %v1235 = vpack.c.b16 %v1009, %v1007
    %v1236 = vpack.c.b16 %v1010, %v1008
    %v1237 = vpack.c.b16 %v1013, %v1011
    %v1238 = vpack.c.b16 %v1014, %v1012
    %v1239 = vpack.c.b16 %v1017, %v1015
    %v1240 = vpack.c.b16 %v1018, %v1016
    %v1241 = vpack.c.b16 %v1021, %v1019
    %v1242 = vpack.c.b16 %v1022, %v1020
    %v1243 = vpack.c.b16 %v1025, %v1023
    %v1244 = vpack.c.b16 %v1026, %v1024
    %v1245 = vpack.c.b16 %v1029, %v1027
    %v1246 = vpack.c.b16 %v1030, %v1028
    %v1247 = vpack.c.b16 %v1033, %v1031
    %v1248 = vpack.c.b16 %v1034, %v1032
    %v1249 = vpack.c.b16 %v1037, %v1035
    %v1250 = vpack.c.b16 %v1038, %v1036
    %v1251 = vpack.c.b16 %v1041, %v1039
    %v1252 = vpack.c.b16 %v1042, %v1040
    %v1253 = vpack.c.b16 %v1045, %v1043
    %v1254 = vpack.c.b16 %v1046, %v1044
    %v1255 = vpack.c.b16 %v1049, %v1047
    %v1256 = vpack.c.b16 %v1050, %v1048
    %v1257 = vpack.c.b16 %v1053, %v1051
    %v1258 = vpack.c.b16 %v1054, %v1052
    %v1259 = vpack.c.b16 %v1057, %v1055
    %v1260 = vpack.c.b16 %v1058, %v1056
    %v1261 = vpack.c.b16 %v1061, %v1059
    %v1262 = vpack.c.b16 %v1062, %v1060
    %v1263 = vpack.c.b16 %v1065, %v1063
    %v1264 = vpack.c.b16 %v1066, %v1064
    %v1265 = vpack.c.b16 %v1069, %v1067
    %v1266 = vpack.c.b16 %v1070, %v1068
    %v1267 = vpack.c.b16 %v1073, %v1071
    %v1268 = vpack.c.b16 %v1074, %v1072
    %v1269 = vpack.c.b16 %v1077, %v1075
    %v1270 = vpack.c.b16 %v1078, %v1076
    %v1271 = vpack.c.b16 %v1081, %v1079
    %v1272 = vpack.c.b16 %v1082, %v1080
    %v1273 = vpack.c.b16 %v1085, %v1083
    %v1274 = vpack.c.b16 %v1086, %v1084
    %v1275 = vpack.c.b16 %v1089, %v1087
    %v1276 = vpack.c.b16 %v1090, %v1088
    %v1277 = vpack.c.b16 %v1093, %v1091
    %v1278 = vpack.c.b16 %v1094, %v1092
    %v1279 = vpack.c.b16 %v1097, %v1095
    %v1280 = vpack.c.b16 %v1098, %v1096
    %v1281 = vpack.c.b16 %v1101, %v1099
    %v1282 = vpack.c.b16 %v1102, %v1100
    %v1283 = vpack.c.b16 %v1105, %v1103
    %v1284 = vpack.c.b16 %v1106, %v1104
    %v1285 = vpack.c.b16 %v1109, %v1107
    %v1286 = vpack.c.b16 %v1110, %v1108
    %v1287 = vpack.c.b16 %v1113, %v1111
    %v1288 = vpack.c.b16 %v1114, %v1112
    %v1289 = vpack.c.b16 %v1117, %v1115
    %v1290 = vpack.c.b16 %v1118, %v1116
    %v1291 = vpack.c.b16 %v1121, %v1119
    %v1292 = vpack.c.b16 %v1122, %v1120
    %v1293 = vpack.c.b16 %v1125, %v1123
    %v1294 = vpack.c.b16 %v1126, %v1124
    %v1295 = vpack.c.b16 %v1129, %v1127
    %v1296 = vpack.c.b16 %v1130, %v1128
    %v1297 = vpack.c.b16 %v1133, %v1131
    %v1298 = vpack.c.b16 %v1134, %v1132
    %v1299 = vpack.c.b16 %v1137, %v1135
    %v1300 = vpack.c.b16 %v1138, %v1136
    %v1301 = vpack.c.b16 %v1141, %v1139
    %v1302 = vpack.c.b16 %v1142, %v1140
    %v1303 = vpack.c.b16 %v1145, %v1143
    %v1304 = vpack.c.b16 %v1146, %v1144
    %v1305 = vpack.c.b16 %v1149, %v1147
    %v1306 = vpack.c.b16 %v1150, %v1148
    %v1307 = vpack.c.b16 %v1153, %v1151
    %v1308 = vpack.c.b16 %v1154, %v1152
    %v1309 = vpack.c.b16 %v1157, %v1155
    %v1310 = vpack.c.b16 %v1158, %v1156
    %v1311 = vpack.c.b16 %v1161, %v1159
    %v1312 = vpack.c.b16 %v1162, %v1160
    %v1313 = vpack.c.b16 %v1165, %v1163
    %v1314 = vpack.c.b16 %v1166, %v1164
    %v1315 = vpack.c.b16 %v1169, %v1167
    %v1316 = vpack.c.b16 %v1170, %v1168
    %v1317 = vpack.c.b16 %v1173, %v1171
    %v1318 = vpack.c.b16 %v1174, %v1172
    %v1319 = vpack.c.b16 %v1177, %v1175
    %v1320 = vpack.c.b16 %v1178, %v1176
    %v1321 = vpack.c.b16 %v1181, %v1179
    %v1322 = vpack.c.b16 %v1182, %v1180
    %v1323 = vpack.c.b16 %v1185, %v1183
    %v1324 = vpack.c.b16 %v1186, %v1184
    %v1325 = vpack.c.b16 %v1189, %v1187
    %v1326 = vpack.c.b16 %v1190, %v1188
    %v1327 = vpack.c.b16 %v1193, %v1191
    %v1328 = vpack.c.b16 %v1194, %v1192
    %v1329 = vpack.c.b16 %v1197, %v1195
    %v1330 = vpack.c.b16 %v1198, %v1196
    %v1331 = vpack.c.b16 %v1201, %v1199
    %v1332 = vpack.c.b16 %v1202, %v1200
    %v1333 = vpack.c.b16 %v1205, %v1203
    %v1334 = vpack.c.b16 %v1206, %v1204
    %1463 = vmatpush.bf16.msra.mxu0 %v1221
    %1464 = vmatpush.bf16.msra.mxu0 %v1219
    %1465 = vmatpush.bf16.msra.mxu0 %v1217
    %1466 = vmatpush.bf16.msra.mxu0 %v1215
    %1467 = vmatpush.bf16.msra.mxu0 %v1213
    %1468 = vmatpush.bf16.msra.mxu0 %v1211
    %1469 = vmatpush.bf16.msra.mxu0 %v1209
    %1470 = vmatpush.bf16.msra.mxu0 %v1207
    %1471 = vmatmul.bf16.gmra.mxu0 %v807
    %v1472 = vpop.f32.mrf.mxu0
    %v1473 = vadd.f32 %v762, %v1472
    %v1474 = vpop.f32.mrf.mxu0
    %1475 = vdwg.mxu0
    %1476 = vmatpush.bf16.msra.mxu0 %v1237
    %1477 = vmatpush.bf16.msra.mxu0 %v1235
    %1478 = vmatpush.bf16.msra.mxu0 %v1233
    %1479 = vmatpush.bf16.msra.mxu0 %v1231
    %1480 = vmatpush.bf16.msra.mxu0 %v1229
    %1481 = vmatpush.bf16.msra.mxu0 %v1227
    %1482 = vmatpush.bf16.msra.mxu0 %v1225
    %1483 = vmatpush.bf16.msra.mxu0 %v1223
    %1484 = vmatmul.bf16.gmra.mxu0 %v808
    %v1485 = vpop.f32.mrf.mxu0
    %v1486 = vadd.f32 %v1473, %v1485
    %v1487 = vpop.f32.mrf.mxu0
    %1488 = vdwg.mxu0
    %1489 = vmatpush.bf16.msra.mxu0 %v1253
    %1490 = vmatpush.bf16.msra.mxu0 %v1251
    %1491 = vmatpush.bf16.msra.mxu0 %v1249
    %1492 = vmatpush.bf16.msra.mxu0 %v1247
    %1493 = vmatpush.bf16.msra.mxu0 %v1245
    %1494 = vmatpush.bf16.msra.mxu0 %v1243
    %1495 = vmatpush.bf16.msra.mxu0 %v1241
    %1496 = vmatpush.bf16.msra.mxu0 %v1239
    %1497 = vmatmul.bf16.gmra.mxu0 %v809
    %v1498 = vpop.f32.mrf.mxu0
    %v1499 = vadd.f32 %v1486, %v1498
    %v1500 = vpop.f32.mrf.mxu0
    %1501 = vdwg.mxu0
    %1502 = vmatpush.bf16.msra.mxu0 %v1269
    %1503 = vmatpush.bf16.msra.mxu0 %v1267
    %1504 = vmatpush.bf16.msra.mxu0 %v1265
    %1505 = vmatpush.bf16.msra.mxu0 %v1263
    %1506 = vmatpush.bf16.msra.mxu0 %v1261
    %1507 = vmatpush.bf16.msra.mxu0 %v1259
    %1508 = vmatpush.bf16.msra.mxu0 %v1257
    %1509 = vmatpush.bf16.msra.mxu0 %v1255
    %1510 = vmatmul.bf16.gmra.mxu0 %v810
    %v1511 = vpop.f32.mrf.mxu0
    %v1512 = vadd.f32 %v1499, %v1511
    %v1513 = vpop.f32.mrf.mxu0
    %1514 = vdwg.mxu0
    %1515 = vmatpush.bf16.msra.mxu0 %v1285
    %1516 = vmatpush.bf16.msra.mxu0 %v1283
    %1517 = vmatpush.bf16.msra.mxu0 %v1281
    %1518 = vmatpush.bf16.msra.mxu0 %v1279
    %1519 = vmatpush.bf16.msra.mxu0 %v1277
    %1520 = vmatpush.bf16.msra.mxu0 %v1275
    %1521 = vmatpush.bf16.msra.mxu0 %v1273
    %1522 = vmatpush.bf16.msra.mxu0 %v1271
    %1523 = vmatmul.bf16.gmra.mxu0 %v811
    %v1524 = vpop.f32.mrf.mxu0
    %v1525 = vadd.f32 %v1512, %v1524
    %v1526 = vpop.f32.mrf.mxu0
    %1527 = vdwg.mxu0
    %1528 = vmatpush.bf16.msra.mxu0 %v1301
    %1529 = vmatpush.bf16.msra.mxu0 %v1299
    %1530 = vmatpush.bf16.msra.mxu0 %v1297
    %1531 = vmatpush.bf16.msra.mxu0 %v1295
    %1532 = vmatpush.bf16.msra.mxu0 %v1293
    %1533 = vmatpush.bf16.msra.mxu0 %v1291
    %1534 = vmatpush.bf16.msra.mxu0 %v1289
    %1535 = vmatpush.bf16.msra.mxu0 %v1287
    %1536 = vmatmul.bf16.gmra.mxu0 %v812
    %v1537 = vpop.f32.mrf.mxu0
    %v1538 = vadd.f32 %v1525, %v1537
    %v1539 = vpop.f32.mrf.mxu0
    %1540 = vdwg.mxu0
    %1541 = vmatpush.bf16.msra.mxu0 %v1317
    %1542 = vmatpush.bf16.msra.mxu0 %v1315
    %1543 = vmatpush.bf16.msra.mxu0 %v1313
    %1544 = vmatpush.bf16.msra.mxu0 %v1311
    %1545 = vmatpush.bf16.msra.mxu0 %v1309
    %1546 = vmatpush.bf16.msra.mxu0 %v1307
    %1547 = vmatpush.bf16.msra.mxu0 %v1305
    %1548 = vmatpush.bf16.msra.mxu0 %v1303
    %1549 = vmatmul.bf16.gmra.mxu0 %v813
    %v1550 = vpop.f32.mrf.mxu0
    %v1551 = vadd.f32 %v1538, %v1550
    %v1552 = vpop.f32.mrf.mxu0
    %1553 = vdwg.mxu0
    %1554 = vmatpush.bf16.msra.mxu0 %v1333
    %1555 = vmatpush.bf16.msra.mxu0 %v1331
    %1556 = vmatpush.bf16.msra.mxu0 %v1329
    %1557 = vmatpush.bf16.msra.mxu0 %v1327
    %1558 = vmatpush.bf16.msra.mxu0 %v1325
    %1559 = vmatpush.bf16.msra.mxu0 %v1323
    %1560 = vmatpush.bf16.msra.mxu0 %v1321
    %1561 = vmatpush.bf16.msra.mxu0 %v1319
    %1562 = vmatmul.bf16.gmra.mxu0 %v814
    %v1563 = vpop.f32.mrf.mxu0
    %v1564 = vadd.f32 %v1551, %v1563
    %v1565 = vpop.f32.mrf.mxu0
    %1566 = vdwg.mxu0
    %1567 = vmatpush.bf16.msra.mxu0 %v1222
    %1568 = vmatpush.bf16.msra.mxu0 %v1220
    %1569 = vmatpush.bf16.msra.mxu0 %v1218
    %1570 = vmatpush.bf16.msra.mxu0 %v1216
    %1571 = vmatpush.bf16.msra.mxu0 %v1214
    %1572 = vmatpush.bf16.msra.mxu0 %v1212
    %1573 = vmatpush.bf16.msra.mxu0 %v1210
    %1574 = vmatpush.bf16.msra.mxu0 %v1208
    %1575 = vmatmul.bf16.gmra.mxu0 %v807
    %v1576 = vpop.f32.mrf.mxu0
    %v1577 = vadd.f32 %v763, %v1576
    %v1578 = vpop.f32.mrf.mxu0
    %1579 = vdwg.mxu0
    %1580 = vmatpush.bf16.msra.mxu0 %v1238
    %1581 = vmatpush.bf16.msra.mxu0 %v1236
    %1582 = vmatpush.bf16.msra.mxu0 %v1234
    %1583 = vmatpush.bf16.msra.mxu0 %v1232
    %1584 = vmatpush.bf16.msra.mxu0 %v1230
    %1585 = vmatpush.bf16.msra.mxu0 %v1228
    %1586 = vmatpush.bf16.msra.mxu0 %v1226
    %1587 = vmatpush.bf16.msra.mxu0 %v1224
    %1588 = vmatmul.bf16.gmra.mxu0 %v808
    %v1589 = vpop.f32.mrf.mxu0
    %v1590 = vadd.f32 %v1577, %v1589
    %v1591 = vpop.f32.mrf.mxu0
    %1592 = vdwg.mxu0
    %1593 = vmatpush.bf16.msra.mxu0 %v1254
    %1594 = vmatpush.bf16.msra.mxu0 %v1252
    %1595 = vmatpush.bf16.msra.mxu0 %v1250
    %1596 = vmatpush.bf16.msra.mxu0 %v1248
    %1597 = vmatpush.bf16.msra.mxu0 %v1246
    %1598 = vmatpush.bf16.msra.mxu0 %v1244
    %1599 = vmatpush.bf16.msra.mxu0 %v1242
    %1600 = vmatpush.bf16.msra.mxu0 %v1240
    %1601 = vmatmul.bf16.gmra.mxu0 %v809
    %v1602 = vpop.f32.mrf.mxu0
    %v1603 = vadd.f32 %v1590, %v1602
    %v1604 = vpop.f32.mrf.mxu0
    %1605 = vdwg.mxu0
    %1606 = vmatpush.bf16.msra.mxu0 %v1270
    %1607 = vmatpush.bf16.msra.mxu0 %v1268
    %1608 = vmatpush.bf16.msra.mxu0 %v1266
    %1609 = vmatpush.bf16.msra.mxu0 %v1264
    %1610 = vmatpush.bf16.msra.mxu0 %v1262
    %1611 = vmatpush.bf16.msra.mxu0 %v1260
    %1612 = vmatpush.bf16.msra.mxu0 %v1258
    %1613 = vmatpush.bf16.msra.mxu0 %v1256
    %1614 = vmatmul.bf16.gmra.mxu0 %v810
    %v1615 = vpop.f32.mrf.mxu0
    %v1616 = vadd.f32 %v1603, %v1615
    %v1617 = vpop.f32.mrf.mxu0
    %1618 = vdwg.mxu0
    %1619 = vmatpush.bf16.msra.mxu0 %v1286
    %1620 = vmatpush.bf16.msra.mxu0 %v1284
    %1621 = vmatpush.bf16.msra.mxu0 %v1282
    %1622 = vmatpush.bf16.msra.mxu0 %v1280
    %1623 = vmatpush.bf16.msra.mxu0 %v1278
    %1624 = vmatpush.bf16.msra.mxu0 %v1276
    %1625 = vmatpush.bf16.msra.mxu0 %v1274
    %1626 = vmatpush.bf16.msra.mxu0 %v1272
    %1627 = vmatmul.bf16.gmra.mxu0 %v811
    %v1628 = vpop.f32.mrf.mxu0
    %v1629 = vadd.f32 %v1616, %v1628
    %v1630 = vpop.f32.mrf.mxu0
    %1631 = vdwg.mxu0
    %1632 = vmatpush.bf16.msra.mxu0 %v1302
    %1633 = vmatpush.bf16.msra.mxu0 %v1300
    %1634 = vmatpush.bf16.msra.mxu0 %v1298
    %1635 = vmatpush.bf16.msra.mxu0 %v1296
    %1636 = vmatpush.bf16.msra.mxu0 %v1294
    %1637 = vmatpush.bf16.msra.mxu0 %v1292
    %1638 = vmatpush.bf16.msra.mxu0 %v1290
    %1639 = vmatpush.bf16.msra.mxu0 %v1288
    %1640 = vmatmul.bf16.gmra.mxu0 %v812
    %v1641 = vpop.f32.mrf.mxu0
    %v1642 = vadd.f32 %v1629, %v1641
    %v1643 = vpop.f32.mrf.mxu0
    %1644 = vdwg.mxu0
    %1645 = vmatpush.bf16.msra.mxu0 %v1318
    %1646 = vmatpush.bf16.msra.mxu0 %v1316
    %1647 = vmatpush.bf16.msra.mxu0 %v1314
    %1648 = vmatpush.bf16.msra.mxu0 %v1312
    %1649 = vmatpush.bf16.msra.mxu0 %v1310
    %1650 = vmatpush.bf16.msra.mxu0 %v1308
    %1651 = vmatpush.bf16.msra.mxu0 %v1306
    %1652 = vmatpush.bf16.msra.mxu0 %v1304
    %1653 = vmatmul.bf16.gmra.mxu0 %v813
    %v1654 = vpop.f32.mrf.mxu0
    %v1655 = vadd.f32 %v1642, %v1654
    %v1656 = vpop.f32.mrf.mxu0
    %1657 = vdwg.mxu0
    %1658 = vmatpush.bf16.msra.mxu0 %v1334
    %1659 = vmatpush.bf16.msra.mxu0 %v1332
    %1660 = vmatpush.bf16.msra.mxu0 %v1330
    %1661 = vmatpush.bf16.msra.mxu0 %v1328
    %1662 = vmatpush.bf16.msra.mxu0 %v1326
    %1663 = vmatpush.bf16.msra.mxu0 %v1324
    %1664 = vmatpush.bf16.msra.mxu0 %v1322
    %1665 = vmatpush.bf16.msra.mxu0 %v1320
    %1666 = vmatmul.bf16.gmra.mxu0 %v814
    %v1667 = vpop.f32.mrf.mxu0
    %v1668 = vadd.f32 %v1655, %v1667
    %v1669 = vpop.f32.mrf.mxu0
    %1670 = vdwg.mxu0
    %v1671 = vld [vmem:[#allocation11] sm:$0x3]
    %v1672 = vld [vmem:[#allocation16] sm:$0x3]
    %v1673 = vadd.f32 %v1672, 1e-05
    %v1674 = vrsqrt.pop %v1673
    %v1675 = vmul.f32 %v1674, %v1673
    %v1676 = vmul.f32 %v1675, %v1674
    %v1677 = vmul.f32 0.5, %v1676
    %v1678 = vsub.f32 1.5, %v1677
    %v1679 = vmul.f32 %v1674, %v1678
    %vm1680 = vweird.f32 %v1673
    %vm1681 = vweird.f32 %v1674
    %vm1682 = vmor %vm1680, %vm1681
    %v1683 = vsel %vm1682, %v1674, %v1679
    %v1684 = vmul.f32 %v1671, %v1683
    %v1685 = vld [vmem:[#allocation14] sm:$0x3]
    %v1687 = vperm.slane %v1685, 0
    %v1688 = vperm.slane %v1685, 1
    %v1691 = vsub.f32 %v1564, %v1687
    %v1692 = vsub.f32 %v1668, %v1688
    %v1694 = vperm.slane %v1684, 0
    %v1695 = vperm.slane %v1684, 1
    %v1698 = vmul.f32 %v1691, %v1694
    %v1699 = vmul.f32 %v1692, %v1695
    %v1700 = vld [vmem:[#allocation13] sm:$0x3]
    %v1702 = vperm.slane %v1700, 0
    %v1703 = vperm.slane %v1700, 1
    %v1706 = vadd.f32 %v1698, %v1702
    %v1707 = vadd.f32 %v1699, %v1703
    %v1710 = vrot.slane %v1707, 7
    %v1711 = vsel %vm460, %v1706, %v1710
    %v1712 = vsel %vm798, %v1706, %v1710
    %v1713 = vrot.slane %v1712, 1
    %v1716 = vlaneseq
    %vm1717 = vcmp.ge.s32.totalorder %v1716, 0
    %vm1718 = vcmp.lt.s32.totalorder %v1716, 256
    %vm1719 = vmand %vm1717, %vm1718
    %1720 = vst.msk [vmem:[%s11] ss:$8 sm:$0x3] %vm1719, %v1711
    %1721 = vst.msk [vmem:[%s11] ss:$8 sm:$0x0] %vm1719, %v1711
    %s1722 = scalar_lea.vmem %s11, 16
    %1723 = vst.msk [vmem:[%s1722] ss:$8 sm:$0x3] %vm1719, %v1713
    %1724 = vst.msk [vmem:[%s1722] ss:$8 sm:$0x0] %vm1719, %v1713
    %s1725 = scalar_lea.vmem [#allocation2], 128
    %v1726 = vld [vmem:[%s1725] sm:$0xff]
    %v1727 = vld [vmem:[%s1725 + $0x8] sm:$0xff]
    %v1728 = vld [vmem:[%s1725 + $0x10] sm:$0xff]
    %v1729 = vld [vmem:[%s1725 + $0x18] sm:$0xff]
    %v1730 = vld [vmem:[%s1725 + $0x20] sm:$0xff]
    %v1731 = vld [vmem:[%s1725 + $0x28] sm:$0xff]
    %v1732 = vld [vmem:[%s1725 + $0x30] sm:$0xff]
    %v1733 = vld [vmem:[%s1725 + $0x38] sm:$0xff]
    %v1734 = vld [vmem:[%s1725 + $0x40] sm:$0xff]
    %v1735 = vld [vmem:[%s1725 + $0x48] sm:$0xff]
    %v1736 = vld [vmem:[%s1725 + $0x50] sm:$0xff]
    %v1737 = vld [vmem:[%s1725 + $0x58] sm:$0xff]
    %v1738 = vld [vmem:[%s1725 + $0x60] sm:$0xff]
    %v1739 = vld [vmem:[%s1725 + $0x68] sm:$0xff]
    %v1740 = vld [vmem:[%s1725 + $0x70] sm:$0xff]
    %v1741 = vld [vmem:[%s1725 + $0x78] sm:$0xff]
    %v1742 = vld [vmem:[%s1725 + $0x300] sm:$0xff]
    %v1743 = vld [vmem:[%s1725 + $0x308] sm:$0xff]
    %v1744 = vld [vmem:[%s1725 + $0x310] sm:$0xff]
    %v1745 = vld [vmem:[%s1725 + $0x318] sm:$0xff]
    %v1746 = vld [vmem:[%s1725 + $0x320] sm:$0xff]
    %v1747 = vld [vmem:[%s1725 + $0x328] sm:$0xff]
    %v1748 = vld [vmem:[%s1725 + $0x330] sm:$0xff]
    %v1749 = vld [vmem:[%s1725 + $0x338] sm:$0xff]
    %v1750 = vld [vmem:[%s1725 + $0x340] sm:$0xff]
    %v1751 = vld [vmem:[%s1725 + $0x348] sm:$0xff]
    %v1752 = vld [vmem:[%s1725 + $0x350] sm:$0xff]
    %v1753 = vld [vmem:[%s1725 + $0x358] sm:$0xff]
    %v1754 = vld [vmem:[%s1725 + $0x360] sm:$0xff]
    %v1755 = vld [vmem:[%s1725 + $0x368] sm:$0xff]
    %v1756 = vld [vmem:[%s1725 + $0x370] sm:$0xff]
    %v1757 = vld [vmem:[%s1725 + $0x378] sm:$0xff]
    %v1758 = vunpack.c.l.bf16 %v1726
    %v1759 = vunpack.c.h.bf16 %v1726
    %v1760 = vunpack.c.l.bf16 %v1727
    %v1761 = vunpack.c.h.bf16 %v1727
    %v1762 = vunpack.c.l.bf16 %v1728
    %v1763 = vunpack.c.h.bf16 %v1728
    %v1764 = vunpack.c.l.bf16 %v1729
    %v1765 = vunpack.c.h.bf16 %v1729
    %v1766 = vunpack.c.l.bf16 %v1730
    %v1767 = vunpack.c.h.bf16 %v1730
    %v1768 = vunpack.c.l.bf16 %v1731
    %v1769 = vunpack.c.h.bf16 %v1731
    %v1770 = vunpack.c.l.bf16 %v1732
    %v1771 = vunpack.c.h.bf16 %v1732
    %v1772 = vunpack.c.l.bf16 %v1733
    %v1773 = vunpack.c.h.bf16 %v1733
    %v1774 = vunpack.c.l.bf16 %v1734
    %v1775 = vunpack.c.h.bf16 %v1734
    %v1776 = vunpack.c.l.bf16 %v1735
    %v1777 = vunpack.c.h.bf16 %v1735
    %v1778 = vunpack.c.l.bf16 %v1736
    %v1779 = vunpack.c.h.bf16 %v1736
    %v1780 = vunpack.c.l.bf16 %v1737
    %v1781 = vunpack.c.h.bf16 %v1737
    %v1782 = vunpack.c.l.bf16 %v1738
    %v1783 = vunpack.c.h.bf16 %v1738
    %v1784 = vunpack.c.l.bf16 %v1739
    %v1785 = vunpack.c.h.bf16 %v1739
    %v1786 = vunpack.c.l.bf16 %v1740
    %v1787 = vunpack.c.h.bf16 %v1740
    %v1788 = vunpack.c.l.bf16 %v1741
    %v1789 = vunpack.c.h.bf16 %v1741
    %v1790 = vunpack.c.l.bf16 %v1742
    %v1791 = vunpack.c.h.bf16 %v1742
    %v1792 = vunpack.c.l.bf16 %v1743
    %v1793 = vunpack.c.h.bf16 %v1743
    %v1794 = vunpack.c.l.bf16 %v1744
    %v1795 = vunpack.c.h.bf16 %v1744
    %v1796 = vunpack.c.l.bf16 %v1745
    %v1797 = vunpack.c.h.bf16 %v1745
    %v1798 = vunpack.c.l.bf16 %v1746
    %v1799 = vunpack.c.h.bf16 %v1746
    %v1800 = vunpack.c.l.bf16 %v1747
    %v1801 = vunpack.c.h.bf16 %v1747
    %v1802 = vunpack.c.l.bf16 %v1748
    %v1803 = vunpack.c.h.bf16 %v1748
    %v1804 = vunpack.c.l.bf16 %v1749
    %v1805 = vunpack.c.h.bf16 %v1749
    %v1806 = vunpack.c.l.bf16 %v1750
    %v1807 = vunpack.c.h.bf16 %v1750
    %v1808 = vunpack.c.l.bf16 %v1751
    %v1809 = vunpack.c.h.bf16 %v1751
    %v1810 = vunpack.c.l.bf16 %v1752
    %v1811 = vunpack.c.h.bf16 %v1752
    %v1812 = vunpack.c.l.bf16 %v1753
    %v1813 = vunpack.c.h.bf16 %v1753
    %v1814 = vunpack.c.l.bf16 %v1754
    %v1815 = vunpack.c.h.bf16 %v1754
    %v1816 = vunpack.c.l.bf16 %v1755
    %v1817 = vunpack.c.h.bf16 %v1755
    %v1818 = vunpack.c.l.bf16 %v1756
    %v1819 = vunpack.c.h.bf16 %v1756
    %v1820 = vunpack.c.l.bf16 %v1757
    %v1821 = vunpack.c.h.bf16 %v1757
    %v1822 = vadd.f32 %v1758, %v1766
    %v1823 = vadd.f32 %v1822, %v1774
    %v1824 = vadd.f32 %v1823, %v1782
    %v1825 = vrot.slane %v1824, 4
    %v1826 = vadd.f32 %v1824, %v1825
    %v1827 = vrot.slane %v1826, 2
    %v1828 = vadd.f32 %v1826, %v1827
    %v1829 = vrot.slane %v1828, 1
    %v1830 = vadd.f32 %v1828, %v1829
    %v1831 = vadd.f32 %v1759, %v1767
    %v1832 = vadd.f32 %v1831, %v1775
    %v1833 = vadd.f32 %v1832, %v1783
    %v1834 = vrot.slane %v1833, 4
    %v1835 = vadd.f32 %v1833, %v1834
    %v1836 = vrot.slane %v1835, 2
    %v1837 = vadd.f32 %v1835, %v1836
    %v1838 = vrot.slane %v1837, 1
    %v1839 = vadd.f32 %v1837, %v1838
    %v1840 = vadd.f32 %v1760, %v1768
    %v1841 = vadd.f32 %v1840, %v1776
    %v1842 = vadd.f32 %v1841, %v1784
    %v1843 = vrot.slane %v1842, 4
    %v1844 = vadd.f32 %v1842, %v1843
    %v1845 = vrot.slane %v1844, 2
    %v1846 = vadd.f32 %v1844, %v1845
    %v1847 = vrot.slane %v1846, 1
    %v1848 = vadd.f32 %v1846, %v1847
    %v1849 = vadd.f32 %v1761, %v1769
    %v1850 = vadd.f32 %v1849, %v1777
    %v1851 = vadd.f32 %v1850, %v1785
    %v1852 = vrot.slane %v1851, 4
    %v1853 = vadd.f32 %v1851, %v1852
    %v1854 = vrot.slane %v1853, 2
    %v1855 = vadd.f32 %v1853, %v1854
    %v1856 = vrot.slane %v1855, 1
    %v1857 = vadd.f32 %v1855, %v1856
    %v1858 = vadd.f32 %v1762, %v1770
    %v1859 = vadd.f32 %v1858, %v1778
    %v1860 = vadd.f32 %v1859, %v1786
    %v1861 = vrot.slane %v1860, 4
    %v1862 = vadd.f32 %v1860, %v1861
    %v1863 = vrot.slane %v1862, 2
    %v1864 = vadd.f32 %v1862, %v1863
    %v1865 = vrot.slane %v1864, 1
    %v1866 = vadd.f32 %v1864, %v1865
    %v1867 = vadd.f32 %v1763, %v1771
    %v1868 = vadd.f32 %v1867, %v1779
    %v1869 = vadd.f32 %v1868, %v1787
    %v1870 = vrot.slane %v1869, 4
    %v1871 = vadd.f32 %v1869, %v1870
    %v1872 = vrot.slane %v1871, 2
    %v1873 = vadd.f32 %v1871, %v1872
    %v1874 = vrot.slane %v1873, 1
    %v1875 = vadd.f32 %v1873, %v1874
    %v1876 = vadd.f32 %v1764, %v1772
    %v1877 = vadd.f32 %v1876, %v1780
    %v1878 = vadd.f32 %v1877, %v1788
    %v1879 = vrot.slane %v1878, 4
    %v1880 = vadd.f32 %v1878, %v1879
    %v1881 = vrot.slane %v1880, 2
    %v1882 = vadd.f32 %v1880, %v1881
    %v1883 = vrot.slane %v1882, 1
    %v1884 = vadd.f32 %v1882, %v1883
    %v1885 = vadd.f32 %v1765, %v1773
    %v1886 = vadd.f32 %v1885, %v1781
    %v1887 = vadd.f32 %v1886, %v1789
    %v1888 = vrot.slane %v1887, 4
    %v1889 = vadd.f32 %v1887, %v1888
    %v1890 = vrot.slane %v1889, 2
    %v1891 = vadd.f32 %v1889, %v1890
    %v1892 = vrot.slane %v1891, 1
    %v1893 = vadd.f32 %v1891, %v1892
    %v1894 = vadd.f32 %v1790, %v1798
    %v1895 = vadd.f32 %v1894, %v1806
    %v1896 = vadd.f32 %v1895, %v1814
    %v1897 = vrot.slane %v1896, 4
    %v1898 = vadd.f32 %v1896, %v1897
    %v1899 = vrot.slane %v1898, 2
    %v1900 = vadd.f32 %v1898, %v1899
    %v1901 = vrot.slane %v1900, 1
    %v1902 = vadd.f32 %v1900, %v1901
    %v1903 = vadd.f32 %v1791, %v1799
    %v1904 = vadd.f32 %v1903, %v1807
    %v1905 = vadd.f32 %v1904, %v1815
    %v1906 = vrot.slane %v1905, 4
    %v1907 = vadd.f32 %v1905, %v1906
    %v1908 = vrot.slane %v1907, 2
    %v1909 = vadd.f32 %v1907, %v1908
    %v1910 = vrot.slane %v1909, 1
    %v1911 = vadd.f32 %v1909, %v1910
    %v1912 = vadd.f32 %v1792, %v1800
    %v1913 = vadd.f32 %v1912, %v1808
    %v1914 = vadd.f32 %v1913, %v1816
    %v1915 = vrot.slane %v1914, 4
    %v1916 = vadd.f32 %v1914, %v1915
    %v1917 = vrot.slane %v1916, 2
    %v1918 = vadd.f32 %v1916, %v1917
    %v1919 = vrot.slane %v1918, 1
    %v1920 = vadd.f32 %v1918, %v1919
    %v1921 = vadd.f32 %v1793, %v1801
    %v1922 = vadd.f32 %v1921, %v1809
    %v1923 = vadd.f32 %v1922, %v1817
    %v1924 = vrot.slane %v1923, 4
    %v1925 = vadd.f32 %v1923, %v1924
    %v1926 = vrot.slane %v1925, 2
    %v1927 = vadd.f32 %v1925, %v1926
    %v1928 = vrot.slane %v1927, 1
    %v1929 = vadd.f32 %v1927, %v1928
    %v1930 = vadd.f32 %v1794, %v1802
    %v1931 = vadd.f32 %v1930, %v1810
    %v1932 = vadd.f32 %v1931, %v1818
    %v1933 = vrot.slane %v1932, 4
    %v1934 = vadd.f32 %v1932, %v1933
    %v1935 = vrot.slane %v1934, 2
    %v1936 = vadd.f32 %v1934, %v1935
    %v1937 = vrot.slane %v1936, 1
    %v1938 = vadd.f32 %v1936, %v1937
    %v1939 = vadd.f32 %v1795, %v1803
    %v1940 = vadd.f32 %v1939, %v1811
    %v1941 = vadd.f32 %v1940, %v1819
    %v1942 = vrot.slane %v1941, 4
    %v1943 = vadd.f32 %v1941, %v1942
    %v1944 = vrot.slane %v1943, 2
    %v1945 = vadd.f32 %v1943, %v1944
    %v1946 = vrot.slane %v1945, 1
    %v1947 = vadd.f32 %v1945, %v1946
    %v1948 = vadd.f32 %v1796, %v1804
    %v1949 = vadd.f32 %v1948, %v1812
    %v1950 = vadd.f32 %v1949, %v1820
    %v1951 = vrot.slane %v1950, 4
    %v1952 = vadd.f32 %v1950, %v1951
    %v1953 = vrot.slane %v1952, 2
    %v1954 = vadd.f32 %v1952, %v1953
    %v1955 = vrot.slane %v1954, 1
    %v1956 = vadd.f32 %v1954, %v1955
    %v1957 = vadd.f32 %v1797, %v1805
    %v1958 = vadd.f32 %v1957, %v1813
    %v1959 = vadd.f32 %v1958, %v1821
    %v1960 = vrot.slane %v1959, 4
    %v1961 = vadd.f32 %v1959, %v1960
    %v1962 = vrot.slane %v1961, 2
    %v1963 = vadd.f32 %v1961, %v1962
    %v1964 = vrot.slane %v1963, 1
    %v1965 = vadd.f32 %v1963, %v1964
    %v1966 = vmul.f32 %v1830, 0.03125
    %v1967 = vmul.f32 %v1839, 0.03125
    %v1968 = vmul.f32 %v1848, 0.03125
    %v1969 = vmul.f32 %v1857, 0.03125
    %v1970 = vmul.f32 %v1866, 0.03125
    %v1971 = vmul.f32 %v1875, 0.03125
    %v1972 = vmul.f32 %v1884, 0.03125
    %v1973 = vmul.f32 %v1893, 0.03125
    %v1974 = vmul.f32 %v1902, 0.03125
    %v1975 = vmul.f32 %v1911, 0.03125
    %v1976 = vmul.f32 %v1920, 0.03125
    %v1977 = vmul.f32 %v1929, 0.03125
    %v1978 = vmul.f32 %v1938, 0.03125
    %v1979 = vmul.f32 %v1947, 0.03125
    %v1980 = vmul.f32 %v1956, 0.03125
    %v1981 = vmul.f32 %v1965, 0.03125
    %v1998 = vrot.slane %v1967, 7
    %v1999 = vrot.slane %v1968, 6
    %v2000 = vrot.slane %v1969, 5
    %v2001 = vrot.slane %v1970, 4
    %v2002 = vrot.slane %v1971, 3
    %v2003 = vrot.slane %v1972, 2
    %v2004 = vrot.slane %v1973, 1
    %v2005 = vrot.slane %v1975, 7
    %v2006 = vrot.slane %v1976, 6
    %v2007 = vrot.slane %v1977, 5
    %v2008 = vrot.slane %v1978, 4
    %v2009 = vrot.slane %v1979, 3
    %v2010 = vrot.slane %v1980, 2
    %v2011 = vrot.slane %v1981, 1
    %v2012 = vsel %vm460, %v1966, %v1998
    %v2013 = vsel %vm462, %v1999, %v2000
    %v2014 = vsel %vm464, %v2012, %v2013
    %v2015 = vsel %vm466, %v2001, %v2002
    %v2016 = vsel %vm468, %v2003, %v2004
    %v2017 = vsel %vm470, %v2015, %v2016
    %v2018 = vsel %vm472, %v2014, %v2017
    %v2019 = vsel %vm460, %v1974, %v2005
    %v2020 = vsel %vm462, %v2006, %v2007
    %v2021 = vsel %vm464, %v2019, %v2020
    %v2022 = vsel %vm466, %v2008, %v2009
    %v2023 = vsel %vm468, %v2010, %v2011
    %v2024 = vsel %vm470, %v2022, %v2023
    %v2025 = vsel %vm472, %v2021, %v2024
    %s2028 = scalar_lea.vmem %s9, 1
    %2029 = vst [vmem:[%s2028] ss:$8 sm:$0xf] %v2018
    %2030 = vst [vmem:[%s2028] ss:$8 sm:$0xf0] %v2018
    %s2031 = scalar_lea.vmem %s9, 65
    %2032 = vst [vmem:[%s2031] ss:$8 sm:$0xf] %v2025
    %2033 = vst [vmem:[%s2031] ss:$8 sm:$0xf0] %v2025
    %v2034 = vpack.c.bf16 %v1966, %v1966
    %v2035 = vpack.c.bf16 %v1967, %v1967
    %v2036 = vpack.c.bf16 %v1968, %v1968
    %v2037 = vpack.c.bf16 %v1969, %v1969
    %v2038 = vpack.c.bf16 %v1970, %v1970
    %v2039 = vpack.c.bf16 %v1971, %v1971
    %v2040 = vpack.c.bf16 %v1972, %v1972
    %v2041 = vpack.c.bf16 %v1973, %v1973
    %v2042 = vpack.c.bf16 %v1974, %v1974
    %v2043 = vpack.c.bf16 %v1975, %v1975
    %v2044 = vpack.c.bf16 %v1976, %v1976
    %v2045 = vpack.c.bf16 %v1977, %v1977
    %v2046 = vpack.c.bf16 %v1978, %v1978
    %v2047 = vpack.c.bf16 %v1979, %v1979
    %v2048 = vpack.c.bf16 %v1980, %v1980
    %v2049 = vpack.c.bf16 %v1981, %v1981
    %s2050 = scalar_lea.vmem [#allocation5], 512
    %v2051 = vld [vmem:[%s2050] sm:$0xf]
    %v2052 = vld [vmem:[%s2050 + $0x4] sm:$0xf]
    %v2053 = vld [vmem:[%s2050 + $0x8] sm:$0xf]
    %v2054 = vld [vmem:[%s2050 + $0xc] sm:$0xf]
    %v2055 = vld [vmem:[%s2050 + $0x10] sm:$0xf]
    %v2056 = vld [vmem:[%s2050 + $0x14] sm:$0xf]
    %v2057 = vld [vmem:[%s2050 + $0x18] sm:$0xf]
    %v2058 = vld [vmem:[%s2050 + $0x1c] sm:$0xf]
    %v2059 = vld [vmem:[%s2050 + $0x20] sm:$0xf]
    %v2060 = vld [vmem:[%s2050 + $0x24] sm:$0xf]
    %v2061 = vld [vmem:[%s2050 + $0x28] sm:$0xf]
    %v2062 = vld [vmem:[%s2050 + $0x2c] sm:$0xf]
    %v2063 = vld [vmem:[%s2050 + $0x30] sm:$0xf]
    %v2064 = vld [vmem:[%s2050 + $0x34] sm:$0xf]
    %v2065 = vld [vmem:[%s2050 + $0x38] sm:$0xf]
    %v2066 = vld [vmem:[%s2050 + $0x3c] sm:$0xf]
    %v2067 = vld [vmem:[%s2050 + $0x40] sm:$0xf]
    %v2068 = vld [vmem:[%s2050 + $0x44] sm:$0xf]
    %v2069 = vld [vmem:[%s2050 + $0x48] sm:$0xf]
    %v2070 = vld [vmem:[%s2050 + $0x4c] sm:$0xf]
    %v2071 = vld [vmem:[%s2050 + $0x50] sm:$0xf]
    %v2072 = vld [vmem:[%s2050 + $0x54] sm:$0xf]
    %v2073 = vld [vmem:[%s2050 + $0x58] sm:$0xf]
    %v2074 = vld [vmem:[%s2050 + $0x5c] sm:$0xf]
    %v2075 = vld [vmem:[%s2050 + $0x60] sm:$0xf]
    %v2076 = vld [vmem:[%s2050 + $0x64] sm:$0xf]
    %v2077 = vld [vmem:[%s2050 + $0x68] sm:$0xf]
    %v2078 = vld [vmem:[%s2050 + $0x6c] sm:$0xf]
    %v2079 = vld [vmem:[%s2050 + $0x70] sm:$0xf]
    %v2080 = vld [vmem:[%s2050 + $0x74] sm:$0xf]
    %v2081 = vld [vmem:[%s2050 + $0x78] sm:$0xf]
    %v2082 = vld [vmem:[%s2050 + $0x7c] sm:$0xf]
    %v2083 = vld [vmem:[%s2050 + $0x80] sm:$0xf]
    %v2084 = vld [vmem:[%s2050 + $0x84] sm:$0xf]
    %v2085 = vld [vmem:[%s2050 + $0x88] sm:$0xf]
    %v2086 = vld [vmem:[%s2050 + $0x8c] sm:$0xf]
    %v2087 = vld [vmem:[%s2050 + $0x90] sm:$0xf]
    %v2088 = vld [vmem:[%s2050 + $0x94] sm:$0xf]
    %v2089 = vld [vmem:[%s2050 + $0x98] sm:$0xf]
    %v2090 = vld [vmem:[%s2050 + $0x9c] sm:$0xf]
    %v2091 = vld [vmem:[%s2050 + $0xa0] sm:$0xf]
    %v2092 = vld [vmem:[%s2050 + $0xa4] sm:$0xf]
    %v2093 = vld [vmem:[%s2050 + $0xa8] sm:$0xf]
    %v2094 = vld [vmem:[%s2050 + $0xac] sm:$0xf]
    %v2095 = vld [vmem:[%s2050 + $0xb0] sm:$0xf]
    %v2096 = vld [vmem:[%s2050 + $0xb4] sm:$0xf]
    %v2097 = vld [vmem:[%s2050 + $0xb8] sm:$0xf]
    %v2098 = vld [vmem:[%s2050 + $0xbc] sm:$0xf]
    %v2099 = vld [vmem:[%s2050 + $0xc0] sm:$0xf]
    %v2100 = vld [vmem:[%s2050 + $0xc4] sm:$0xf]
    %v2101 = vld [vmem:[%s2050 + $0xc8] sm:$0xf]
    %v2102 = vld [vmem:[%s2050 + $0xcc] sm:$0xf]
    %v2103 = vld [vmem:[%s2050 + $0xd0] sm:$0xf]
    %v2104 = vld [vmem:[%s2050 + $0xd4] sm:$0xf]
    %v2105 = vld [vmem:[%s2050 + $0xd8] sm:$0xf]
    %v2106 = vld [vmem:[%s2050 + $0xdc] sm:$0xf]
    %v2107 = vld [vmem:[%s2050 + $0xe0] sm:$0xf]
    %v2108 = vld [vmem:[%s2050 + $0xe4] sm:$0xf]
    %v2109 = vld [vmem:[%s2050 + $0xe8] sm:$0xf]
    %v2110 = vld [vmem:[%s2050 + $0xec] sm:$0xf]
    %v2111 = vld [vmem:[%s2050 + $0xf0] sm:$0xf]
    %v2112 = vld [vmem:[%s2050 + $0xf4] sm:$0xf]
    %v2113 = vld [vmem:[%s2050 + $0xf8] sm:$0xf]
    %v2114 = vld [vmem:[%s2050 + $0xfc] sm:$0xf]
    %v2115 = vld [vmem:[%s2050 + $0x100] sm:$0xf]
    %v2116 = vld [vmem:[%s2050 + $0x104] sm:$0xf]
    %v2117 = vld [vmem:[%s2050 + $0x108] sm:$0xf]
    %v2118 = vld [vmem:[%s2050 + $0x10c] sm:$0xf]
    %v2119 = vld [vmem:[%s2050 + $0x110] sm:$0xf]
    %v2120 = vld [vmem:[%s2050 + $0x114] sm:$0xf]
    %v2121 = vld [vmem:[%s2050 + $0x118] sm:$0xf]
    %v2122 = vld [vmem:[%s2050 + $0x11c] sm:$0xf]
    %v2123 = vld [vmem:[%s2050 + $0x120] sm:$0xf]
    %v2124 = vld [vmem:[%s2050 + $0x124] sm:$0xf]
    %v2125 = vld [vmem:[%s2050 + $0x128] sm:$0xf]
    %v2126 = vld [vmem:[%s2050 + $0x12c] sm:$0xf]
    %v2127 = vld [vmem:[%s2050 + $0x130] sm:$0xf]
    %v2128 = vld [vmem:[%s2050 + $0x134] sm:$0xf]
    %v2129 = vld [vmem:[%s2050 + $0x138] sm:$0xf]
    %v2130 = vld [vmem:[%s2050 + $0x13c] sm:$0xf]
    %v2131 = vld [vmem:[%s2050 + $0x140] sm:$0xf]
    %v2132 = vld [vmem:[%s2050 + $0x144] sm:$0xf]
    %v2133 = vld [vmem:[%s2050 + $0x148] sm:$0xf]
    %v2134 = vld [vmem:[%s2050 + $0x14c] sm:$0xf]
    %v2135 = vld [vmem:[%s2050 + $0x150] sm:$0xf]
    %v2136 = vld [vmem:[%s2050 + $0x154] sm:$0xf]
    %v2137 = vld [vmem:[%s2050 + $0x158] sm:$0xf]
    %v2138 = vld [vmem:[%s2050 + $0x15c] sm:$0xf]
    %v2139 = vld [vmem:[%s2050 + $0x160] sm:$0xf]
    %v2140 = vld [vmem:[%s2050 + $0x164] sm:$0xf]
    %v2141 = vld [vmem:[%s2050 + $0x168] sm:$0xf]
    %v2142 = vld [vmem:[%s2050 + $0x16c] sm:$0xf]
    %v2143 = vld [vmem:[%s2050 + $0x170] sm:$0xf]
    %v2144 = vld [vmem:[%s2050 + $0x174] sm:$0xf]
    %v2145 = vld [vmem:[%s2050 + $0x178] sm:$0xf]
    %v2146 = vld [vmem:[%s2050 + $0x17c] sm:$0xf]
    %v2147 = vld [vmem:[%s2050 + $0x180] sm:$0xf]
    %v2148 = vld [vmem:[%s2050 + $0x184] sm:$0xf]
    %v2149 = vld [vmem:[%s2050 + $0x188] sm:$0xf]
    %v2150 = vld [vmem:[%s2050 + $0x18c] sm:$0xf]
    %v2151 = vld [vmem:[%s2050 + $0x190] sm:$0xf]
    %v2152 = vld [vmem:[%s2050 + $0x194] sm:$0xf]
    %v2153 = vld [vmem:[%s2050 + $0x198] sm:$0xf]
    %v2154 = vld [vmem:[%s2050 + $0x19c] sm:$0xf]
    %v2155 = vld [vmem:[%s2050 + $0x1a0] sm:$0xf]
    %v2156 = vld [vmem:[%s2050 + $0x1a4] sm:$0xf]
    %v2157 = vld [vmem:[%s2050 + $0x1a8] sm:$0xf]
    %v2158 = vld [vmem:[%s2050 + $0x1ac] sm:$0xf]
    %v2159 = vld [vmem:[%s2050 + $0x1b0] sm:$0xf]
    %v2160 = vld [vmem:[%s2050 + $0x1b4] sm:$0xf]
    %v2161 = vld [vmem:[%s2050 + $0x1b8] sm:$0xf]
    %v2162 = vld [vmem:[%s2050 + $0x1bc] sm:$0xf]
    %v2163 = vld [vmem:[%s2050 + $0x1c0] sm:$0xf]
    %v2164 = vld [vmem:[%s2050 + $0x1c4] sm:$0xf]
    %v2165 = vld [vmem:[%s2050 + $0x1c8] sm:$0xf]
    %v2166 = vld [vmem:[%s2050 + $0x1cc] sm:$0xf]
    %v2167 = vld [vmem:[%s2050 + $0x1d0] sm:$0xf]
    %v2168 = vld [vmem:[%s2050 + $0x1d4] sm:$0xf]
    %v2169 = vld [vmem:[%s2050 + $0x1d8] sm:$0xf]
    %v2170 = vld [vmem:[%s2050 + $0x1dc] sm:$0xf]
    %v2171 = vld [vmem:[%s2050 + $0x1e0] sm:$0xf]
    %v2172 = vld [vmem:[%s2050 + $0x1e4] sm:$0xf]
    %v2173 = vld [vmem:[%s2050 + $0x1e8] sm:$0xf]
    %v2174 = vld [vmem:[%s2050 + $0x1ec] sm:$0xf]
    %v2175 = vld [vmem:[%s2050 + $0x1f0] sm:$0xf]
    %v2176 = vld [vmem:[%s2050 + $0x1f4] sm:$0xf]
    %v2177 = vld [vmem:[%s2050 + $0x1f8] sm:$0xf]
    %v2178 = vld [vmem:[%s2050 + $0x1fc] sm:$0xf]
    %v2195 = vunpack.c.l.b16 %v2034
    %v2196 = vunpack.c.l.b16 %v2035
    %v2197 = vunpack.c.l.b16 %v2036
    %v2198 = vunpack.c.l.b16 %v2037
    %v2199 = vunpack.c.l.b16 %v2038
    %v2200 = vunpack.c.l.b16 %v2039
    %v2201 = vunpack.c.l.b16 %v2040
    %v2202 = vunpack.c.l.b16 %v2041
    %v2203 = vunpack.c.l.b16 %v2042
    %v2204 = vunpack.c.l.b16 %v2043
    %v2205 = vunpack.c.l.b16 %v2044
    %v2206 = vunpack.c.l.b16 %v2045
    %v2207 = vunpack.c.l.b16 %v2046
    %v2208 = vunpack.c.l.b16 %v2047
    %v2209 = vunpack.c.l.b16 %v2048
    %v2210 = vunpack.c.l.b16 %v2049
    %v2211 = vsel %vm798, %v2203, %v2195
    %v2212 = vsel %vm798, %v2204, %v2196
    %v2213 = vsel %vm798, %v2205, %v2197
    %v2214 = vsel %vm798, %v2206, %v2198
    %v2215 = vsel %vm798, %v2207, %v2199
    %v2216 = vsel %vm798, %v2208, %v2200
    %v2217 = vsel %vm798, %v2209, %v2201
    %v2218 = vsel %vm798, %v2210, %v2202
    %v2219 = vpack.c.b16 %v2211, %v2211
    %v2220 = vpack.c.b16 %v2212, %v2212
    %v2221 = vpack.c.b16 %v2213, %v2213
    %v2222 = vpack.c.b16 %v2214, %v2214
    %v2223 = vpack.c.b16 %v2215, %v2215
    %v2224 = vpack.c.b16 %v2216, %v2216
    %v2225 = vpack.c.b16 %v2217, %v2217
    %v2226 = vpack.c.b16 %v2218, %v2218
    %v2363 = vunpack.c.l.b16 %v2051
    %v2364 = vunpack.c.l.b16 %v2052
    %v2365 = vunpack.c.l.b16 %v2053
    %v2366 = vunpack.c.l.b16 %v2054
    %v2367 = vunpack.c.l.b16 %v2055
    %v2368 = vunpack.c.l.b16 %v2056
    %v2369 = vunpack.c.l.b16 %v2057
    %v2370 = vunpack.c.l.b16 %v2058
    %v2371 = vunpack.c.l.b16 %v2059
    %v2372 = vunpack.c.l.b16 %v2060
    %v2373 = vunpack.c.l.b16 %v2061
    %v2374 = vunpack.c.l.b16 %v2062
    %v2375 = vunpack.c.l.b16 %v2063
    %v2376 = vunpack.c.l.b16 %v2064
    %v2377 = vunpack.c.l.b16 %v2065
    %v2378 = vunpack.c.l.b16 %v2066
    %v2379 = vunpack.c.l.b16 %v2067
    %v2380 = vunpack.c.l.b16 %v2068
    %v2381 = vunpack.c.l.b16 %v2069
    %v2382 = vunpack.c.l.b16 %v2070
    %v2383 = vunpack.c.l.b16 %v2071
    %v2384 = vunpack.c.l.b16 %v2072
    %v2385 = vunpack.c.l.b16 %v2073
    %v2386 = vunpack.c.l.b16 %v2074
    %v2387 = vunpack.c.l.b16 %v2075
    %v2388 = vunpack.c.l.b16 %v2076
    %v2389 = vunpack.c.l.b16 %v2077
    %v2390 = vunpack.c.l.b16 %v2078
    %v2391 = vunpack.c.l.b16 %v2079
    %v2392 = vunpack.c.l.b16 %v2080
    %v2393 = vunpack.c.l.b16 %v2081
    %v2394 = vunpack.c.l.b16 %v2082
    %v2395 = vunpack.c.l.b16 %v2083
    %v2396 = vunpack.c.l.b16 %v2084
    %v2397 = vunpack.c.l.b16 %v2085
    %v2398 = vunpack.c.l.b16 %v2086
    %v2399 = vunpack.c.l.b16 %v2087
    %v2400 = vunpack.c.l.b16 %v2088
    %v2401 = vunpack.c.l.b16 %v2089
    %v2402 = vunpack.c.l.b16 %v2090
    %v2403 = vunpack.c.l.b16 %v2091
    %v2404 = vunpack.c.l.b16 %v2092
    %v2405 = vunpack.c.l.b16 %v2093
    %v2406 = vunpack.c.l.b16 %v2094
    %v2407 = vunpack.c.l.b16 %v2095
    %v2408 = vunpack.c.l.b16 %v2096
    %v2409 = vunpack.c.l.b16 %v2097
    %v2410 = vunpack.c.l.b16 %v2098
    %v2411 = vunpack.c.l.b16 %v2099
    %v2412 = vunpack.c.l.b16 %v2100
    %v2413 = vunpack.c.l.b16 %v2101
    %v2414 = vunpack.c.l.b16 %v2102
    %v2415 = vunpack.c.l.b16 %v2103
    %v2416 = vunpack.c.l.b16 %v2104
    %v2417 = vunpack.c.l.b16 %v2105
    %v2418 = vunpack.c.l.b16 %v2106
    %v2419 = vunpack.c.l.b16 %v2107
    %v2420 = vunpack.c.l.b16 %v2108
    %v2421 = vunpack.c.l.b16 %v2109
    %v2422 = vunpack.c.l.b16 %v2110
    %v2423 = vunpack.c.l.b16 %v2111
    %v2424 = vunpack.c.l.b16 %v2112
    %v2425 = vunpack.c.l.b16 %v2113
    %v2426 = vunpack.c.l.b16 %v2114
    %v2427 = vunpack.c.l.b16 %v2115
    %v2428 = vunpack.c.l.b16 %v2116
    %v2429 = vunpack.c.l.b16 %v2117
    %v2430 = vunpack.c.l.b16 %v2118
    %v2431 = vunpack.c.l.b16 %v2119
    %v2432 = vunpack.c.l.b16 %v2120
    %v2433 = vunpack.c.l.b16 %v2121
    %v2434 = vunpack.c.l.b16 %v2122
    %v2435 = vunpack.c.l.b16 %v2123
    %v2436 = vunpack.c.l.b16 %v2124
    %v2437 = vunpack.c.l.b16 %v2125
    %v2438 = vunpack.c.l.b16 %v2126
    %v2439 = vunpack.c.l.b16 %v2127
    %v2440 = vunpack.c.l.b16 %v2128
    %v2441 = vunpack.c.l.b16 %v2129
    %v2442 = vunpack.c.l.b16 %v2130
    %v2443 = vunpack.c.l.b16 %v2131
    %v2444 = vunpack.c.l.b16 %v2132
    %v2445 = vunpack.c.l.b16 %v2133
    %v2446 = vunpack.c.l.b16 %v2134
    %v2447 = vunpack.c.l.b16 %v2135
    %v2448 = vunpack.c.l.b16 %v2136
    %v2449 = vunpack.c.l.b16 %v2137
    %v2450 = vunpack.c.l.b16 %v2138
    %v2451 = vunpack.c.l.b16 %v2139
    %v2452 = vunpack.c.l.b16 %v2140
    %v2453 = vunpack.c.l.b16 %v2141
    %v2454 = vunpack.c.l.b16 %v2142
    %v2455 = vunpack.c.l.b16 %v2143
    %v2456 = vunpack.c.l.b16 %v2144
    %v2457 = vunpack.c.l.b16 %v2145
    %v2458 = vunpack.c.l.b16 %v2146
    %v2459 = vunpack.c.l.b16 %v2147
    %v2460 = vunpack.c.l.b16 %v2148
    %v2461 = vunpack.c.l.b16 %v2149
    %v2462 = vunpack.c.l.b16 %v2150
    %v2463 = vunpack.c.l.b16 %v2151
    %v2464 = vunpack.c.l.b16 %v2152
    %v2465 = vunpack.c.l.b16 %v2153
    %v2466 = vunpack.c.l.b16 %v2154
    %v2467 = vunpack.c.l.b16 %v2155
    %v2468 = vunpack.c.l.b16 %v2156
    %v2469 = vunpack.c.l.b16 %v2157
    %v2470 = vunpack.c.l.b16 %v2158
    %v2471 = vunpack.c.l.b16 %v2159
    %v2472 = vunpack.c.l.b16 %v2160
    %v2473 = vunpack.c.l.b16 %v2161
    %v2474 = vunpack.c.l.b16 %v2162
    %v2475 = vunpack.c.l.b16 %v2163
    %v2476 = vunpack.c.l.b16 %v2164
    %v2477 = vunpack.c.l.b16 %v2165
    %v2478 = vunpack.c.l.b16 %v2166
    %v2479 = vunpack.c.l.b16 %v2167
    %v2480 = vunpack.c.l.b16 %v2168
    %v2481 = vunpack.c.l.b16 %v2169
    %v2482 = vunpack.c.l.b16 %v2170
    %v2483 = vunpack.c.l.b16 %v2171
    %v2484 = vunpack.c.l.b16 %v2172
    %v2485 = vunpack.c.l.b16 %v2173
    %v2486 = vunpack.c.l.b16 %v2174
    %v2487 = vunpack.c.l.b16 %v2175
    %v2488 = vunpack.c.l.b16 %v2176
    %v2489 = vunpack.c.l.b16 %v2177
    %v2490 = vunpack.c.l.b16 %v2178
    %v2491 = vpack.c.b16 %v2364, %v2363
    %v2492 = vpack.c.b16 %v2366, %v2365
    %v2493 = vpack.c.b16 %v2368, %v2367
    %v2494 = vpack.c.b16 %v2370, %v2369
    %v2495 = vpack.c.b16 %v2372, %v2371
    %v2496 = vpack.c.b16 %v2374, %v2373
    %v2497 = vpack.c.b16 %v2376, %v2375
    %v2498 = vpack.c.b16 %v2378, %v2377
    %v2499 = vpack.c.b16 %v2380, %v2379
    %v2500 = vpack.c.b16 %v2382, %v2381
    %v2501 = vpack.c.b16 %v2384, %v2383
    %v2502 = vpack.c.b16 %v2386, %v2385
    %v2503 = vpack.c.b16 %v2388, %v2387
    %v2504 = vpack.c.b16 %v2390, %v2389
    %v2505 = vpack.c.b16 %v2392, %v2391
    %v2506 = vpack.c.b16 %v2394, %v2393
    %v2507 = vpack.c.b16 %v2396, %v2395
    %v2508 = vpack.c.b16 %v2398, %v2397
    %v2509 = vpack.c.b16 %v2400, %v2399
    %v2510 = vpack.c.b16 %v2402, %v2401
    %v2511 = vpack.c.b16 %v2404, %v2403
    %v2512 = vpack.c.b16 %v2406, %v2405
    %v2513 = vpack.c.b16 %v2408, %v2407
    %v2514 = vpack.c.b16 %v2410, %v2409
    %v2515 = vpack.c.b16 %v2412, %v2411
    %v2516 = vpack.c.b16 %v2414, %v2413
    %v2517 = vpack.c.b16 %v2416, %v2415
    %v2518 = vpack.c.b16 %v2418, %v2417
    %v2519 = vpack.c.b16 %v2420, %v2419
    %v2520 = vpack.c.b16 %v2422, %v2421
    %v2521 = vpack.c.b16 %v2424, %v2423
    %v2522 = vpack.c.b16 %v2426, %v2425
    %v2523 = vpack.c.b16 %v2428, %v2427
    %v2524 = vpack.c.b16 %v2430, %v2429
    %v2525 = vpack.c.b16 %v2432, %v2431
    %v2526 = vpack.c.b16 %v2434, %v2433
    %v2527 = vpack.c.b16 %v2436, %v2435
    %v2528 = vpack.c.b16 %v2438, %v2437
    %v2529 = vpack.c.b16 %v2440, %v2439
    %v2530 = vpack.c.b16 %v2442, %v2441
    %v2531 = vpack.c.b16 %v2444, %v2443
    %v2532 = vpack.c.b16 %v2446, %v2445
    %v2533 = vpack.c.b16 %v2448, %v2447
    %v2534 = vpack.c.b16 %v2450, %v2449
    %v2535 = vpack.c.b16 %v2452, %v2451
    %v2536 = vpack.c.b16 %v2454, %v2453
    %v2537 = vpack.c.b16 %v2456, %v2455
    %v2538 = vpack.c.b16 %v2458, %v2457
    %v2539 = vpack.c.b16 %v2460, %v2459
    %v2540 = vpack.c.b16 %v2462, %v2461
    %v2541 = vpack.c.b16 %v2464, %v2463
    %v2542 = vpack.c.b16 %v2466, %v2465
    %v2543 = vpack.c.b16 %v2468, %v2467
    %v2544 = vpack.c.b16 %v2470, %v2469
    %v2545 = vpack.c.b16 %v2472, %v2471
    %v2546 = vpack.c.b16 %v2474, %v2473
    %v2547 = vpack.c.b16 %v2476, %v2475
    %v2548 = vpack.c.b16 %v2478, %v2477
    %v2549 = vpack.c.b16 %v2480, %v2479
    %v2550 = vpack.c.b16 %v2482, %v2481
    %v2551 = vpack.c.b16 %v2484, %v2483
    %v2552 = vpack.c.b16 %v2486, %v2485
    %v2553 = vpack.c.b16 %v2488, %v2487
    %v2554 = vpack.c.b16 %v2490, %v2489
    %2619 = vmatpush.bf16.msra.mxu0 %v2498
    %2620 = vmatpush.bf16.msra.mxu0 %v2497
    %2621 = vmatpush.bf16.msra.mxu0 %v2496
    %2622 = vmatpush.bf16.msra.mxu0 %v2495
    %2623 = vmatpush.bf16.msra.mxu0 %v2494
    %2624 = vmatpush.bf16.msra.mxu0 %v2493
    %2625 = vmatpush.bf16.msra.mxu0 %v2492
    %2626 = vmatpush.bf16.msra.mxu0 %v2491
    %2627 = vmatmul.bf16.gmra.mxu0 %v2219
    %v2628 = vpop.f32.mrf.mxu0
    %v2629 = vadd.f32 0.0, %v2628
    %v2630 = vpop.f32.mrf.mxu0
    %2631 = vdwg.mxu0
    %2632 = vmatpush.bf16.msra.mxu0 %v2506
    %2633 = vmatpush.bf16.msra.mxu0 %v2505
    %2634 = vmatpush.bf16.msra.mxu0 %v2504
    %2635 = vmatpush.bf16.msra.mxu0 %v2503
    %2636 = vmatpush.bf16.msra.mxu0 %v2502
    %2637 = vmatpush.bf16.msra.mxu0 %v2501
    %2638 = vmatpush.bf16.msra.mxu0 %v2500
    %2639 = vmatpush.bf16.msra.mxu0 %v2499
    %2640 = vmatmul.bf16.gmra.mxu0 %v2220
    %v2641 = vpop.f32.mrf.mxu0
    %v2642 = vadd.f32 %v2629, %v2641
    %v2643 = vpop.f32.mrf.mxu0
    %2644 = vdwg.mxu0
    %2645 = vmatpush.bf16.msra.mxu0 %v2514
    %2646 = vmatpush.bf16.msra.mxu0 %v2513
    %2647 = vmatpush.bf16.msra.mxu0 %v2512
    %2648 = vmatpush.bf16.msra.mxu0 %v2511
    %2649 = vmatpush.bf16.msra.mxu0 %v2510
    %2650 = vmatpush.bf16.msra.mxu0 %v2509
    %2651 = vmatpush.bf16.msra.mxu0 %v2508
    %2652 = vmatpush.bf16.msra.mxu0 %v2507
    %2653 = vmatmul.bf16.gmra.mxu0 %v2221
    %v2654 = vpop.f32.mrf.mxu0
    %v2655 = vadd.f32 %v2642, %v2654
    %v2656 = vpop.f32.mrf.mxu0
    %2657 = vdwg.mxu0
    %2658 = vmatpush.bf16.msra.mxu0 %v2522
    %2659 = vmatpush.bf16.msra.mxu0 %v2521
    %2660 = vmatpush.bf16.msra.mxu0 %v2520
    %2661 = vmatpush.bf16.msra.mxu0 %v2519
    %2662 = vmatpush.bf16.msra.mxu0 %v2518
    %2663 = vmatpush.bf16.msra.mxu0 %v2517
    %2664 = vmatpush.bf16.msra.mxu0 %v2516
    %2665 = vmatpush.bf16.msra.mxu0 %v2515
    %2666 = vmatmul.bf16.gmra.mxu0 %v2222
    %v2667 = vpop.f32.mrf.mxu0
    %v2668 = vadd.f32 %v2655, %v2667
    %v2669 = vpop.f32.mrf.mxu0
    %2670 = vdwg.mxu0
    %2671 = vmatpush.bf16.msra.mxu0 %v2530
    %2672 = vmatpush.bf16.msra.mxu0 %v2529
    %2673 = vmatpush.bf16.msra.mxu0 %v2528
    %2674 = vmatpush.bf16.msra.mxu0 %v2527
    %2675 = vmatpush.bf16.msra.mxu0 %v2526
    %2676 = vmatpush.bf16.msra.mxu0 %v2525
    %2677 = vmatpush.bf16.msra.mxu0 %v2524
    %2678 = vmatpush.bf16.msra.mxu0 %v2523
    %2679 = vmatmul.bf16.gmra.mxu0 %v2223
    %v2680 = vpop.f32.mrf.mxu0
    %v2681 = vadd.f32 %v2668, %v2680
    %v2682 = vpop.f32.mrf.mxu0
    %2683 = vdwg.mxu0
    %2684 = vmatpush.bf16.msra.mxu0 %v2538
    %2685 = vmatpush.bf16.msra.mxu0 %v2537
    %2686 = vmatpush.bf16.msra.mxu0 %v2536
    %2687 = vmatpush.bf16.msra.mxu0 %v2535
    %2688 = vmatpush.bf16.msra.mxu0 %v2534
    %2689 = vmatpush.bf16.msra.mxu0 %v2533
    %2690 = vmatpush.bf16.msra.mxu0 %v2532
    %2691 = vmatpush.bf16.msra.mxu0 %v2531
    %2692 = vmatmul.bf16.gmra.mxu0 %v2224
    %v2693 = vpop.f32.mrf.mxu0
    %v2694 = vadd.f32 %v2681, %v2693
    %v2695 = vpop.f32.mrf.mxu0
    %2696 = vdwg.mxu0
    %2697 = vmatpush.bf16.msra.mxu0 %v2546
    %2698 = vmatpush.bf16.msra.mxu0 %v2545
    %2699 = vmatpush.bf16.msra.mxu0 %v2544
    %2700 = vmatpush.bf16.msra.mxu0 %v2543
    %2701 = vmatpush.bf16.msra.mxu0 %v2542
    %2702 = vmatpush.bf16.msra.mxu0 %v2541
    %2703 = vmatpush.bf16.msra.mxu0 %v2540
    %2704 = vmatpush.bf16.msra.mxu0 %v2539
    %2705 = vmatmul.bf16.gmra.mxu0 %v2225
    %v2706 = vpop.f32.mrf.mxu0
    %v2707 = vadd.f32 %v2694, %v2706
    %v2708 = vpop.f32.mrf.mxu0
    %2709 = vdwg.mxu0
    %2710 = vmatpush.bf16.msra.mxu0 %v2554
    %2711 = vmatpush.bf16.msra.mxu0 %v2553
    %2712 = vmatpush.bf16.msra.mxu0 %v2552
    %2713 = vmatpush.bf16.msra.mxu0 %v2551
    %2714 = vmatpush.bf16.msra.mxu0 %v2550
    %2715 = vmatpush.bf16.msra.mxu0 %v2549
    %2716 = vmatpush.bf16.msra.mxu0 %v2548
    %2717 = vmatpush.bf16.msra.mxu0 %v2547
    %2718 = vmatmul.bf16.gmra.mxu0 %v2226
    %v2719 = vpop.f32.mrf.mxu0
    %v2720 = vadd.f32 %v2707, %v2719
    %v2721 = vpop.f32.mrf.mxu0
    %2722 = vdwg.mxu0
    %v2851 = vunpack.c.l.b16 %v504
    %v2852 = vunpack.c.l.b16 %v505
    %v2853 = vunpack.c.l.b16 %v506
    %v2854 = vunpack.c.l.b16 %v507
    %v2855 = vunpack.c.l.b16 %v508
    %v2856 = vunpack.c.l.b16 %v509
    %v2857 = vunpack.c.l.b16 %v510
    %v2858 = vunpack.c.l.b16 %v511
    %v2859 = vunpack.c.l.b16 %v512
    %v2860 = vunpack.c.l.b16 %v513
    %v2861 = vunpack.c.l.b16 %v514
    %v2862 = vunpack.c.l.b16 %v515
    %v2863 = vunpack.c.l.b16 %v516
    %v2864 = vunpack.c.l.b16 %v517
    %v2865 = vunpack.c.l.b16 %v518
    %v2866 = vunpack.c.l.b16 %v519
    %v2867 = vunpack.c.l.b16 %v520
    %v2868 = vunpack.c.l.b16 %v521
    %v2869 = vunpack.c.l.b16 %v522
    %v2870 = vunpack.c.l.b16 %v523
    %v2871 = vunpack.c.l.b16 %v524
    %v2872 = vunpack.c.l.b16 %v525
    %v2873 = vunpack.c.l.b16 %v526
    %v2874 = vunpack.c.l.b16 %v527
    %v2875 = vunpack.c.l.b16 %v528
    %v2876 = vunpack.c.l.b16 %v529
    %v2877 = vunpack.c.l.b16 %v530
    %v2878 = vunpack.c.l.b16 %v531
    %v2879 = vunpack.c.l.b16 %v532
    %v2880 = vunpack.c.l.b16 %v533
    %v2881 = vunpack.c.l.b16 %v534
    %v2882 = vunpack.c.l.b16 %v535
    %v2883 = vunpack.c.l.b16 %v536
    %v2884 = vunpack.c.l.b16 %v537
    %v2885 = vunpack.c.l.b16 %v538
    %v2886 = vunpack.c.l.b16 %v539
    %v2887 = vunpack.c.l.b16 %v540
    %v2888 = vunpack.c.l.b16 %v541
    %v2889 = vunpack.c.l.b16 %v542
    %v2890 = vunpack.c.l.b16 %v543
    %v2891 = vunpack.c.l.b16 %v544
    %v2892 = vunpack.c.l.b16 %v545
    %v2893 = vunpack.c.l.b16 %v546
    %v2894 = vunpack.c.l.b16 %v547
    %v2895 = vunpack.c.l.b16 %v548
    %v2896 = vunpack.c.l.b16 %v549
    %v2897 = vunpack.c.l.b16 %v550
    %v2898 = vunpack.c.l.b16 %v551
    %v2899 = vunpack.c.l.b16 %v552
    %v2900 = vunpack.c.l.b16 %v553
    %v2901 = vunpack.c.l.b16 %v554
    %v2902 = vunpack.c.l.b16 %v555
    %v2903 = vunpack.c.l.b16 %v556
    %v2904 = vunpack.c.l.b16 %v557
    %v2905 = vunpack.c.l.b16 %v558
    %v2906 = vunpack.c.l.b16 %v559
    %v2907 = vunpack.c.l.b16 %v560
    %v2908 = vunpack.c.l.b16 %v561
    %v2909 = vunpack.c.l.b16 %v562
    %v2910 = vunpack.c.l.b16 %v563
    %v2911 = vunpack.c.l.b16 %v564
    %v2912 = vunpack.c.l.b16 %v565
    %v2913 = vunpack.c.l.b16 %v566
    %v2914 = vunpack.c.l.b16 %v567
    %v2915 = vunpack.c.l.b16 %v568
    %v2916 = vunpack.c.l.b16 %v569
    %v2917 = vunpack.c.l.b16 %v570
    %v2918 = vunpack.c.l.b16 %v571
    %v2919 = vunpack.c.l.b16 %v572
    %v2920 = vunpack.c.l.b16 %v573
    %v2921 = vunpack.c.l.b16 %v574
    %v2922 = vunpack.c.l.b16 %v575
    %v2923 = vunpack.c.l.b16 %v576
    %v2924 = vunpack.c.l.b16 %v577
    %v2925 = vunpack.c.l.b16 %v578
    %v2926 = vunpack.c.l.b16 %v579
    %v2927 = vunpack.c.l.b16 %v580
    %v2928 = vunpack.c.l.b16 %v581
    %v2929 = vunpack.c.l.b16 %v582
    %v2930 = vunpack.c.l.b16 %v583
    %v2931 = vunpack.c.l.b16 %v584
    %v2932 = vunpack.c.l.b16 %v585
    %v2933 = vunpack.c.l.b16 %v586
    %v2934 = vunpack.c.l.b16 %v587
    %v2935 = vunpack.c.l.b16 %v588
    %v2936 = vunpack.c.l.b16 %v589
    %v2937 = vunpack.c.l.b16 %v590
    %v2938 = vunpack.c.l.b16 %v591
    %v2939 = vunpack.c.l.b16 %v592
    %v2940 = vunpack.c.l.b16 %v593
    %v2941 = vunpack.c.l.b16 %v594
    %v2942 = vunpack.c.l.b16 %v595
    %v2943 = vunpack.c.l.b16 %v596
    %v2944 = vunpack.c.l.b16 %v597
    %v2945 = vunpack.c.l.b16 %v598
    %v2946 = vunpack.c.l.b16 %v599
    %v2947 = vunpack.c.l.b16 %v600
    %v2948 = vunpack.c.l.b16 %v601
    %v2949 = vunpack.c.l.b16 %v602
    %v2950 = vunpack.c.l.b16 %v603
    %v2951 = vunpack.c.l.b16 %v604
    %v2952 = vunpack.c.l.b16 %v605
    %v2953 = vunpack.c.l.b16 %v606
    %v2954 = vunpack.c.l.b16 %v607
    %v2955 = vunpack.c.l.b16 %v608
    %v2956 = vunpack.c.l.b16 %v609
    %v2957 = vunpack.c.l.b16 %v610
    %v2958 = vunpack.c.l.b16 %v611
    %v2959 = vunpack.c.l.b16 %v612
    %v2960 = vunpack.c.l.b16 %v613
    %v2961 = vunpack.c.l.b16 %v614
    %v2962 = vunpack.c.l.b16 %v615
    %v2963 = vunpack.c.l.b16 %v616
    %v2964 = vunpack.c.l.b16 %v617
    %v2965 = vunpack.c.l.b16 %v618
    %v2966 = vunpack.c.l.b16 %v619
    %v2967 = vunpack.c.l.b16 %v620
    %v2968 = vunpack.c.l.b16 %v621
    %v2969 = vunpack.c.l.b16 %v622
    %v2970 = vunpack.c.l.b16 %v623
    %v2971 = vunpack.c.l.b16 %v624
    %v2972 = vunpack.c.l.b16 %v625
    %v2973 = vunpack.c.l.b16 %v626
    %v2974 = vunpack.c.l.b16 %v627
    %v2975 = vunpack.c.l.b16 %v628
    %v2976 = vunpack.c.l.b16 %v629
    %v2977 = vunpack.c.l.b16 %v630
    %v2978 = vunpack.c.l.b16 %v631
    %v2979 = vpack.c.b16 %v2852, %v2851
    %v2980 = vpack.c.b16 %v2854, %v2853
    %v2981 = vpack.c.b16 %v2856, %v2855
    %v2982 = vpack.c.b16 %v2858, %v2857
    %v2983 = vpack.c.b16 %v2860, %v2859
    %v2984 = vpack.c.b16 %v2862, %v2861
    %v2985 = vpack.c.b16 %v2864, %v2863
    %v2986 = vpack.c.b16 %v2866, %v2865
    %v2987 = vpack.c.b16 %v2868, %v2867
    %v2988 = vpack.c.b16 %v2870, %v2869
    %v2989 = vpack.c.b16 %v2872, %v2871
    %v2990 = vpack.c.b16 %v2874, %v2873
    %v2991 = vpack.c.b16 %v2876, %v2875
    %v2992 = vpack.c.b16 %v2878, %v2877
    %v2993 = vpack.c.b16 %v2880, %v2879
    %v2994 = vpack.c.b16 %v2882, %v2881
    %v2995 = vpack.c.b16 %v2884, %v2883
    %v2996 = vpack.c.b16 %v2886, %v2885
    %v2997 = vpack.c.b16 %v2888, %v2887
    %v2998 = vpack.c.b16 %v2890, %v2889
    %v2999 = vpack.c.b16 %v2892, %v2891
    %v3000 = vpack.c.b16 %v2894, %v2893
    %v3001 = vpack.c.b16 %v2896, %v2895
    %v3002 = vpack.c.b16 %v2898, %v2897
    %v3003 = vpack.c.b16 %v2900, %v2899
    %v3004 = vpack.c.b16 %v2902, %v2901
    %v3005 = vpack.c.b16 %v2904, %v2903
    %v3006 = vpack.c.b16 %v2906, %v2905
    %v3007 = vpack.c.b16 %v2908, %v2907
    %v3008 = vpack.c.b16 %v2910, %v2909
    %v3009 = vpack.c.b16 %v2912, %v2911
    %v3010 = vpack.c.b16 %v2914, %v2913
    %v3011 = vpack.c.b16 %v2916, %v2915
    %v3012 = vpack.c.b16 %v2918, %v2917
    %v3013 = vpack.c.b16 %v2920, %v2919
    %v3014 = vpack.c.b16 %v2922, %v2921
    %v3015 = vpack.c.b16 %v2924, %v2923
    %v3016 = vpack.c.b16 %v2926, %v2925
    %v3017 = vpack.c.b16 %v2928, %v2927
    %v3018 = vpack.c.b16 %v2930, %v2929
    %v3019 = vpack.c.b16 %v2932, %v2931
    %v3020 = vpack.c.b16 %v2934, %v2933
    %v3021 = vpack.c.b16 %v2936, %v2935
    %v3022 = vpack.c.b16 %v2938, %v2937
    %v3023 = vpack.c.b16 %v2940, %v2939
    %v3024 = vpack.c.b16 %v2942, %v2941
    %v3025 = vpack.c.b16 %v2944, %v2943
    %v3026 = vpack.c.b16 %v2946, %v2945
    %v3027 = vpack.c.b16 %v2948, %v2947
    %v3028 = vpack.c.b16 %v2950, %v2949
    %v3029 = vpack.c.b16 %v2952, %v2951
    %v3030 = vpack.c.b16 %v2954, %v2953
    %v3031 = vpack.c.b16 %v2956, %v2955
    %v3032 = vpack.c.b16 %v2958, %v2957
    %v3033 = vpack.c.b16 %v2960, %v2959
    %v3034 = vpack.c.b16 %v2962, %v2961
    %v3035 = vpack.c.b16 %v2964, %v2963
    %v3036 = vpack.c.b16 %v2966, %v2965
    %v3037 = vpack.c.b16 %v2968, %v2967
    %v3038 = vpack.c.b16 %v2970, %v2969
    %v3039 = vpack.c.b16 %v2972, %v2971
    %v3040 = vpack.c.b16 %v2974, %v2973
    %v3041 = vpack.c.b16 %v2976, %v2975
    %v3042 = vpack.c.b16 %v2978, %v2977
    %3107 = vmatpush.bf16.msra.mxu0 %v2986
    %3108 = vmatpush.bf16.msra.mxu0 %v2985
    %3109 = vmatpush.bf16.msra.mxu0 %v2984
    %3110 = vmatpush.bf16.msra.mxu0 %v2983
    %3111 = vmatpush.bf16.msra.mxu0 %v2982
    %3112 = vmatpush.bf16.msra.mxu0 %v2981
    %3113 = vmatpush.bf16.msra.mxu0 %v2980
    %3114 = vmatpush.bf16.msra.mxu0 %v2979
    %3115 = vmatmul.bf16.gmra.mxu0 %v807
    %v3116 = vpop.f32.mrf.mxu0
    %v3117 = vadd.f32 %v2720, %v3116
    %v3118 = vpop.f32.mrf.mxu0
    %3119 = vdwg.mxu0
    %3120 = vmatpush.bf16.msra.mxu0 %v2994
    %3121 = vmatpush.bf16.msra.mxu0 %v2993
    %3122 = vmatpush.bf16.msra.mxu0 %v2992
    %3123 = vmatpush.bf16.msra.mxu0 %v2991
    %3124 = vmatpush.bf16.msra.mxu0 %v2990
    %3125 = vmatpush.bf16.msra.mxu0 %v2989
    %3126 = vmatpush.bf16.msra.mxu0 %v2988
    %3127 = vmatpush.bf16.msra.mxu0 %v2987
    %3128 = vmatmul.bf16.gmra.mxu0 %v808
    %v3129 = vpop.f32.mrf.mxu0
    %v3130 = vadd.f32 %v3117, %v3129
    %v3131 = vpop.f32.mrf.mxu0
    %3132 = vdwg.mxu0
    %3133 = vmatpush.bf16.msra.mxu0 %v3002
    %3134 = vmatpush.bf16.msra.mxu0 %v3001
    %3135 = vmatpush.bf16.msra.mxu0 %v3000
    %3136 = vmatpush.bf16.msra.mxu0 %v2999
    %3137 = vmatpush.bf16.msra.mxu0 %v2998
    %3138 = vmatpush.bf16.msra.mxu0 %v2997
    %3139 = vmatpush.bf16.msra.mxu0 %v2996
    %3140 = vmatpush.bf16.msra.mxu0 %v2995
    %3141 = vmatmul.bf16.gmra.mxu0 %v809
    %v3142 = vpop.f32.mrf.mxu0
    %v3143 = vadd.f32 %v3130, %v3142
    %v3144 = vpop.f32.mrf.mxu0
    %3145 = vdwg.mxu0
    %3146 = vmatpush.bf16.msra.mxu0 %v3010
    %3147 = vmatpush.bf16.msra.mxu0 %v3009
    %3148 = vmatpush.bf16.msra.mxu0 %v3008
    %3149 = vmatpush.bf16.msra.mxu0 %v3007
    %3150 = vmatpush.bf16.msra.mxu0 %v3006
    %3151 = vmatpush.bf16.msra.mxu0 %v3005
    %3152 = vmatpush.bf16.msra.mxu0 %v3004
    %3153 = vmatpush.bf16.msra.mxu0 %v3003
    %3154 = vmatmul.bf16.gmra.mxu0 %v810
    %v3155 = vpop.f32.mrf.mxu0
    %v3156 = vadd.f32 %v3143, %v3155
    %v3157 = vpop.f32.mrf.mxu0
    %3158 = vdwg.mxu0
    %3159 = vmatpush.bf16.msra.mxu0 %v3018
    %3160 = vmatpush.bf16.msra.mxu0 %v3017
    %3161 = vmatpush.bf16.msra.mxu0 %v3016
    %3162 = vmatpush.bf16.msra.mxu0 %v3015
    %3163 = vmatpush.bf16.msra.mxu0 %v3014
    %3164 = vmatpush.bf16.msra.mxu0 %v3013
    %3165 = vmatpush.bf16.msra.mxu0 %v3012
    %3166 = vmatpush.bf16.msra.mxu0 %v3011
    %3167 = vmatmul.bf16.gmra.mxu0 %v811
    %v3168 = vpop.f32.mrf.mxu0
    %v3169 = vadd.f32 %v3156, %v3168
    %v3170 = vpop.f32.mrf.mxu0
    %3171 = vdwg.mxu0
    %3172 = vmatpush.bf16.msra.mxu0 %v3026
    %3173 = vmatpush.bf16.msra.mxu0 %v3025
    %3174 = vmatpush.bf16.msra.mxu0 %v3024
    %3175 = vmatpush.bf16.msra.mxu0 %v3023
    %3176 = vmatpush.bf16.msra.mxu0 %v3022
    %3177 = vmatpush.bf16.msra.mxu0 %v3021
    %3178 = vmatpush.bf16.msra.mxu0 %v3020
    %3179 = vmatpush.bf16.msra.mxu0 %v3019
    %3180 = vmatmul.bf16.gmra.mxu0 %v812
    %v3181 = vpop.f32.mrf.mxu0
    %v3182 = vadd.f32 %v3169, %v3181
    %v3183 = vpop.f32.mrf.mxu0
    %3184 = vdwg.mxu0
    %3185 = vmatpush.bf16.msra.mxu0 %v3034
    %3186 = vmatpush.bf16.msra.mxu0 %v3033
    %3187 = vmatpush.bf16.msra.mxu0 %v3032
    %3188 = vmatpush.bf16.msra.mxu0 %v3031
    %3189 = vmatpush.bf16.msra.mxu0 %v3030
    %3190 = vmatpush.bf16.msra.mxu0 %v3029
    %3191 = vmatpush.bf16.msra.mxu0 %v3028
    %3192 = vmatpush.bf16.msra.mxu0 %v3027
    %3193 = vmatmul.bf16.gmra.mxu0 %v813
    %v3194 = vpop.f32.mrf.mxu0
    %v3195 = vadd.f32 %v3182, %v3194
    %v3196 = vpop.f32.mrf.mxu0
    %3197 = vdwg.mxu0
    %3198 = vmatpush.bf16.msra.mxu0 %v3042
    %3199 = vmatpush.bf16.msra.mxu0 %v3041
    %3200 = vmatpush.bf16.msra.mxu0 %v3040
    %3201 = vmatpush.bf16.msra.mxu0 %v3039
    %3202 = vmatpush.bf16.msra.mxu0 %v3038
    %3203 = vmatpush.bf16.msra.mxu0 %v3037
    %3204 = vmatpush.bf16.msra.mxu0 %v3036
    %3205 = vmatpush.bf16.msra.mxu0 %v3035
    %3206 = vmatmul.bf16.gmra.mxu0 %v814
    %v3207 = vpop.f32.mrf.mxu0
    %v3208 = vadd.f32 %v3195, %v3207
    %v3209 = vpop.f32.mrf.mxu0
    %3210 = vdwg.mxu0
    %s3211 = scalar_lea.vmem [#allocation8], 1024
    %v3212 = vld [vmem:[%s3211] sm:$0xff]
    %v3213 = vld [vmem:[%s3211 + $0x8] sm:$0xff]
    %v3214 = vld [vmem:[%s3211 + $0x10] sm:$0xff]
    %v3215 = vld [vmem:[%s3211 + $0x18] sm:$0xff]
    %v3216 = vld [vmem:[%s3211 + $0x20] sm:$0xff]
    %v3217 = vld [vmem:[%s3211 + $0x28] sm:$0xff]
    %v3218 = vld [vmem:[%s3211 + $0x30] sm:$0xff]
    %v3219 = vld [vmem:[%s3211 + $0x38] sm:$0xff]
    %v3220 = vld [vmem:[%s3211 + $0x40] sm:$0xff]
    %v3221 = vld [vmem:[%s3211 + $0x48] sm:$0xff]
    %v3222 = vld [vmem:[%s3211 + $0x50] sm:$0xff]
    %v3223 = vld [vmem:[%s3211 + $0x58] sm:$0xff]
    %v3224 = vld [vmem:[%s3211 + $0x60] sm:$0xff]
    %v3225 = vld [vmem:[%s3211 + $0x68] sm:$0xff]
    %v3226 = vld [vmem:[%s3211 + $0x70] sm:$0xff]
    %v3227 = vld [vmem:[%s3211 + $0x78] sm:$0xff]
    %v3228 = vld [vmem:[%s3211 + $0x80] sm:$0xff]
    %v3229 = vld [vmem:[%s3211 + $0x88] sm:$0xff]
    %v3230 = vld [vmem:[%s3211 + $0x90] sm:$0xff]
    %v3231 = vld [vmem:[%s3211 + $0x98] sm:$0xff]
    %v3232 = vld [vmem:[%s3211 + $0xa0] sm:$0xff]
    %v3233 = vld [vmem:[%s3211 + $0xa8] sm:$0xff]
    %v3234 = vld [vmem:[%s3211 + $0xb0] sm:$0xff]
    %v3235 = vld [vmem:[%s3211 + $0xb8] sm:$0xff]
    %v3236 = vld [vmem:[%s3211 + $0xc0] sm:$0xff]
    %v3237 = vld [vmem:[%s3211 + $0xc8] sm:$0xff]
    %v3238 = vld [vmem:[%s3211 + $0xd0] sm:$0xff]
    %v3239 = vld [vmem:[%s3211 + $0xd8] sm:$0xff]
    %v3240 = vld [vmem:[%s3211 + $0xe0] sm:$0xff]
    %v3241 = vld [vmem:[%s3211 + $0xe8] sm:$0xff]
    %v3242 = vld [vmem:[%s3211 + $0xf0] sm:$0xff]
    %v3243 = vld [vmem:[%s3211 + $0xf8] sm:$0xff]
    %v3244 = vld [vmem:[%s3211 + $0x100] sm:$0xff]
    %v3245 = vld [vmem:[%s3211 + $0x108] sm:$0xff]
    %v3246 = vld [vmem:[%s3211 + $0x110] sm:$0xff]
    %v3247 = vld [vmem:[%s3211 + $0x118] sm:$0xff]
    %v3248 = vld [vmem:[%s3211 + $0x120] sm:$0xff]
    %v3249 = vld [vmem:[%s3211 + $0x128] sm:$0xff]
    %v3250 = vld [vmem:[%s3211 + $0x130] sm:$0xff]
    %v3251 = vld [vmem:[%s3211 + $0x138] sm:$0xff]
    %v3252 = vld [vmem:[%s3211 + $0x140] sm:$0xff]
    %v3253 = vld [vmem:[%s3211 + $0x148] sm:$0xff]
    %v3254 = vld [vmem:[%s3211 + $0x150] sm:$0xff]
    %v3255 = vld [vmem:[%s3211 + $0x158] sm:$0xff]
    %v3256 = vld [vmem:[%s3211 + $0x160] sm:$0xff]
    %v3257 = vld [vmem:[%s3211 + $0x168] sm:$0xff]
    %v3258 = vld [vmem:[%s3211 + $0x170] sm:$0xff]
    %v3259 = vld [vmem:[%s3211 + $0x178] sm:$0xff]
    %v3260 = vld [vmem:[%s3211 + $0x180] sm:$0xff]
    %v3261 = vld [vmem:[%s3211 + $0x188] sm:$0xff]
    %v3262 = vld [vmem:[%s3211 + $0x190] sm:$0xff]
    %v3263 = vld [vmem:[%s3211 + $0x198] sm:$0xff]
    %v3264 = vld [vmem:[%s3211 + $0x1a0] sm:$0xff]
    %v3265 = vld [vmem:[%s3211 + $0x1a8] sm:$0xff]
    %v3266 = vld [vmem:[%s3211 + $0x1b0] sm:$0xff]
    %v3267 = vld [vmem:[%s3211 + $0x1b8] sm:$0xff]
    %v3268 = vld [vmem:[%s3211 + $0x1c0] sm:$0xff]
    %v3269 = vld [vmem:[%s3211 + $0x1c8] sm:$0xff]
    %v3270 = vld [vmem:[%s3211 + $0x1d0] sm:$0xff]
    %v3271 = vld [vmem:[%s3211 + $0x1d8] sm:$0xff]
    %v3272 = vld [vmem:[%s3211 + $0x1e0] sm:$0xff]
    %v3273 = vld [vmem:[%s3211 + $0x1e8] sm:$0xff]
    %v3274 = vld [vmem:[%s3211 + $0x1f0] sm:$0xff]
    %v3275 = vld [vmem:[%s3211 + $0x1f8] sm:$0xff]
    %v3276 = vld [vmem:[%s3211 + $0x200] sm:$0xff]
    %v3277 = vld [vmem:[%s3211 + $0x208] sm:$0xff]
    %v3278 = vld [vmem:[%s3211 + $0x210] sm:$0xff]
    %v3279 = vld [vmem:[%s3211 + $0x218] sm:$0xff]
    %v3280 = vld [vmem:[%s3211 + $0x220] sm:$0xff]
    %v3281 = vld [vmem:[%s3211 + $0x228] sm:$0xff]
    %v3282 = vld [vmem:[%s3211 + $0x230] sm:$0xff]
    %v3283 = vld [vmem:[%s3211 + $0x238] sm:$0xff]
    %v3284 = vld [vmem:[%s3211 + $0x240] sm:$0xff]
    %v3285 = vld [vmem:[%s3211 + $0x248] sm:$0xff]
    %v3286 = vld [vmem:[%s3211 + $0x250] sm:$0xff]
    %v3287 = vld [vmem:[%s3211 + $0x258] sm:$0xff]
    %v3288 = vld [vmem:[%s3211 + $0x260] sm:$0xff]
    %v3289 = vld [vmem:[%s3211 + $0x268] sm:$0xff]
    %v3290 = vld [vmem:[%s3211 + $0x270] sm:$0xff]
    %v3291 = vld [vmem:[%s3211 + $0x278] sm:$0xff]
    %v3292 = vld [vmem:[%s3211 + $0x280] sm:$0xff]
    %v3293 = vld [vmem:[%s3211 + $0x288] sm:$0xff]
    %v3294 = vld [vmem:[%s3211 + $0x290] sm:$0xff]
    %v3295 = vld [vmem:[%s3211 + $0x298] sm:$0xff]
    %v3296 = vld [vmem:[%s3211 + $0x2a0] sm:$0xff]
    %v3297 = vld [vmem:[%s3211 + $0x2a8] sm:$0xff]
    %v3298 = vld [vmem:[%s3211 + $0x2b0] sm:$0xff]
    %v3299 = vld [vmem:[%s3211 + $0x2b8] sm:$0xff]
    %v3300 = vld [vmem:[%s3211 + $0x2c0] sm:$0xff]
    %v3301 = vld [vmem:[%s3211 + $0x2c8] sm:$0xff]
    %v3302 = vld [vmem:[%s3211 + $0x2d0] sm:$0xff]
    %v3303 = vld [vmem:[%s3211 + $0x2d8] sm:$0xff]
    %v3304 = vld [vmem:[%s3211 + $0x2e0] sm:$0xff]
    %v3305 = vld [vmem:[%s3211 + $0x2e8] sm:$0xff]
    %v3306 = vld [vmem:[%s3211 + $0x2f0] sm:$0xff]
    %v3307 = vld [vmem:[%s3211 + $0x2f8] sm:$0xff]
    %v3308 = vld [vmem:[%s3211 + $0x300] sm:$0xff]
    %v3309 = vld [vmem:[%s3211 + $0x308] sm:$0xff]
    %v3310 = vld [vmem:[%s3211 + $0x310] sm:$0xff]
    %v3311 = vld [vmem:[%s3211 + $0x318] sm:$0xff]
    %v3312 = vld [vmem:[%s3211 + $0x320] sm:$0xff]
    %v3313 = vld [vmem:[%s3211 + $0x328] sm:$0xff]
    %v3314 = vld [vmem:[%s3211 + $0x330] sm:$0xff]
    %v3315 = vld [vmem:[%s3211 + $0x338] sm:$0xff]
    %v3316 = vld [vmem:[%s3211 + $0x340] sm:$0xff]
    %v3317 = vld [vmem:[%s3211 + $0x348] sm:$0xff]
    %v3318 = vld [vmem:[%s3211 + $0x350] sm:$0xff]
    %v3319 = vld [vmem:[%s3211 + $0x358] sm:$0xff]
    %v3320 = vld [vmem:[%s3211 + $0x360] sm:$0xff]
    %v3321 = vld [vmem:[%s3211 + $0x368] sm:$0xff]
    %v3322 = vld [vmem:[%s3211 + $0x370] sm:$0xff]
    %v3323 = vld [vmem:[%s3211 + $0x378] sm:$0xff]
    %v3324 = vld [vmem:[%s3211 + $0x380] sm:$0xff]
    %v3325 = vld [vmem:[%s3211 + $0x388] sm:$0xff]
    %v3326 = vld [vmem:[%s3211 + $0x390] sm:$0xff]
    %v3327 = vld [vmem:[%s3211 + $0x398] sm:$0xff]
    %v3328 = vld [vmem:[%s3211 + $0x3a0] sm:$0xff]
    %v3329 = vld [vmem:[%s3211 + $0x3a8] sm:$0xff]
    %v3330 = vld [vmem:[%s3211 + $0x3b0] sm:$0xff]
    %v3331 = vld [vmem:[%s3211 + $0x3b8] sm:$0xff]
    %v3332 = vld [vmem:[%s3211 + $0x3c0] sm:$0xff]
    %v3333 = vld [vmem:[%s3211 + $0x3c8] sm:$0xff]
    %v3334 = vld [vmem:[%s3211 + $0x3d0] sm:$0xff]
    %v3335 = vld [vmem:[%s3211 + $0x3d8] sm:$0xff]
    %v3336 = vld [vmem:[%s3211 + $0x3e0] sm:$0xff]
    %v3337 = vld [vmem:[%s3211 + $0x3e8] sm:$0xff]
    %v3338 = vld [vmem:[%s3211 + $0x3f0] sm:$0xff]
    %v3339 = vld [vmem:[%s3211 + $0x3f8] sm:$0xff]
    %s3340 = scalar_lea.vmem [#allocation10], 2
    %v3341 = vld [vmem:[%s3340] sm:$0x3]
    %v3343 = vperm.slane %v3341, 0
    %v3344 = vperm.slane %v3341, 1
    %v3475 = vunpack.c.l.b16 %v3212
    %v3476 = vunpack.c.h.b16 %v3212
    %v3477 = vunpack.c.l.b16 %v3213
    %v3478 = vunpack.c.h.b16 %v3213
    %v3479 = vunpack.c.l.b16 %v3214
    %v3480 = vunpack.c.h.b16 %v3214
    %v3481 = vunpack.c.l.b16 %v3215
    %v3482 = vunpack.c.h.b16 %v3215
    %v3483 = vunpack.c.l.b16 %v3216
    %v3484 = vunpack.c.h.b16 %v3216
    %v3485 = vunpack.c.l.b16 %v3217
    %v3486 = vunpack.c.h.b16 %v3217
    %v3487 = vunpack.c.l.b16 %v3218
    %v3488 = vunpack.c.h.b16 %v3218
    %v3489 = vunpack.c.l.b16 %v3219
    %v3490 = vunpack.c.h.b16 %v3219
    %v3491 = vunpack.c.l.b16 %v3220
    %v3492 = vunpack.c.h.b16 %v3220
    %v3493 = vunpack.c.l.b16 %v3221
    %v3494 = vunpack.c.h.b16 %v3221
    %v3495 = vunpack.c.l.b16 %v3222
    %v3496 = vunpack.c.h.b16 %v3222
    %v3497 = vunpack.c.l.b16 %v3223
    %v3498 = vunpack.c.h.b16 %v3223
    %v3499 = vunpack.c.l.b16 %v3224
    %v3500 = vunpack.c.h.b16 %v3224
    %v3501 = vunpack.c.l.b16 %v3225
    %v3502 = vunpack.c.h.b16 %v3225
    %v3503 = vunpack.c.l.b16 %v3226
    %v3504 = vunpack.c.h.b16 %v3226
    %v3505 = vunpack.c.l.b16 %v3227
    %v3506 = vunpack.c.h.b16 %v3227
    %v3507 = vunpack.c.l.b16 %v3228
    %v3508 = vunpack.c.h.b16 %v3228
    %v3509 = vunpack.c.l.b16 %v3229
    %v3510 = vunpack.c.h.b16 %v3229
    %v3511 = vunpack.c.l.b16 %v3230
    %v3512 = vunpack.c.h.b16 %v3230
    %v3513 = vunpack.c.l.b16 %v3231
    %v3514 = vunpack.c.h.b16 %v3231
    %v3515 = vunpack.c.l.b16 %v3232
    %v3516 = vunpack.c.h.b16 %v3232
    %v3517 = vunpack.c.l.b16 %v3233
    %v3518 = vunpack.c.h.b16 %v3233
    %v3519 = vunpack.c.l.b16 %v3234
    %v3520 = vunpack.c.h.b16 %v3234
    %v3521 = vunpack.c.l.b16 %v3235
    %v3522 = vunpack.c.h.b16 %v3235
    %v3523 = vunpack.c.l.b16 %v3236
    %v3524 = vunpack.c.h.b16 %v3236
    %v3525 = vunpack.c.l.b16 %v3237
    %v3526 = vunpack.c.h.b16 %v3237
    %v3527 = vunpack.c.l.b16 %v3238
    %v3528 = vunpack.c.h.b16 %v3238
    %v3529 = vunpack.c.l.b16 %v3239
    %v3530 = vunpack.c.h.b16 %v3239
    %v3531 = vunpack.c.l.b16 %v3240
    %v3532 = vunpack.c.h.b16 %v3240
    %v3533 = vunpack.c.l.b16 %v3241
    %v3534 = vunpack.c.h.b16 %v3241
    %v3535 = vunpack.c.l.b16 %v3242
    %v3536 = vunpack.c.h.b16 %v3242
    %v3537 = vunpack.c.l.b16 %v3243
    %v3538 = vunpack.c.h.b16 %v3243
    %v3539 = vunpack.c.l.b16 %v3244
    %v3540 = vunpack.c.h.b16 %v3244
    %v3541 = vunpack.c.l.b16 %v3245
    %v3542 = vunpack.c.h.b16 %v3245
    %v3543 = vunpack.c.l.b16 %v3246
    %v3544 = vunpack.c.h.b16 %v3246
    %v3545 = vunpack.c.l.b16 %v3247
    %v3546 = vunpack.c.h.b16 %v3247
    %v3547 = vunpack.c.l.b16 %v3248
    %v3548 = vunpack.c.h.b16 %v3248
    %v3549 = vunpack.c.l.b16 %v3249
    %v3550 = vunpack.c.h.b16 %v3249
    %v3551 = vunpack.c.l.b16 %v3250
    %v3552 = vunpack.c.h.b16 %v3250
    %v3553 = vunpack.c.l.b16 %v3251
    %v3554 = vunpack.c.h.b16 %v3251
    %v3555 = vunpack.c.l.b16 %v3252
    %v3556 = vunpack.c.h.b16 %v3252
    %v3557 = vunpack.c.l.b16 %v3253
    %v3558 = vunpack.c.h.b16 %v3253
    %v3559 = vunpack.c.l.b16 %v3254
    %v3560 = vunpack.c.h.b16 %v3254
    %v3561 = vunpack.c.l.b16 %v3255
    %v3562 = vunpack.c.h.b16 %v3255
    %v3563 = vunpack.c.l.b16 %v3256
    %v3564 = vunpack.c.h.b16 %v3256
    %v3565 = vunpack.c.l.b16 %v3257
    %v3566 = vunpack.c.h.b16 %v3257
    %v3567 = vunpack.c.l.b16 %v3258
    %v3568 = vunpack.c.h.b16 %v3258
    %v3569 = vunpack.c.l.b16 %v3259
    %v3570 = vunpack.c.h.b16 %v3259
    %v3571 = vunpack.c.l.b16 %v3260
    %v3572 = vunpack.c.h.b16 %v3260
    %v3573 = vunpack.c.l.b16 %v3261
    %v3574 = vunpack.c.h.b16 %v3261
    %v3575 = vunpack.c.l.b16 %v3262
    %v3576 = vunpack.c.h.b16 %v3262
    %v3577 = vunpack.c.l.b16 %v3263
    %v3578 = vunpack.c.h.b16 %v3263
    %v3579 = vunpack.c.l.b16 %v3264
    %v3580 = vunpack.c.h.b16 %v3264
    %v3581 = vunpack.c.l.b16 %v3265
    %v3582 = vunpack.c.h.b16 %v3265
    %v3583 = vunpack.c.l.b16 %v3266
    %v3584 = vunpack.c.h.b16 %v3266
    %v3585 = vunpack.c.l.b16 %v3267
    %v3586 = vunpack.c.h.b16 %v3267
    %v3587 = vunpack.c.l.b16 %v3268
    %v3588 = vunpack.c.h.b16 %v3268
    %v3589 = vunpack.c.l.b16 %v3269
    %v3590 = vunpack.c.h.b16 %v3269
    %v3591 = vunpack.c.l.b16 %v3270
    %v3592 = vunpack.c.h.b16 %v3270
    %v3593 = vunpack.c.l.b16 %v3271
    %v3594 = vunpack.c.h.b16 %v3271
    %v3595 = vunpack.c.l.b16 %v3272
    %v3596 = vunpack.c.h.b16 %v3272
    %v3597 = vunpack.c.l.b16 %v3273
    %v3598 = vunpack.c.h.b16 %v3273
    %v3599 = vunpack.c.l.b16 %v3274
    %v3600 = vunpack.c.h.b16 %v3274
    %v3601 = vunpack.c.l.b16 %v3275
    %v3602 = vunpack.c.h.b16 %v3275
    %v3603 = vunpack.c.l.b16 %v3276
    %v3604 = vunpack.c.h.b16 %v3276
    %v3605 = vunpack.c.l.b16 %v3277
    %v3606 = vunpack.c.h.b16 %v3277
    %v3607 = vunpack.c.l.b16 %v3278
    %v3608 = vunpack.c.h.b16 %v3278
    %v3609 = vunpack.c.l.b16 %v3279
    %v3610 = vunpack.c.h.b16 %v3279
    %v3611 = vunpack.c.l.b16 %v3280
    %v3612 = vunpack.c.h.b16 %v3280
    %v3613 = vunpack.c.l.b16 %v3281
    %v3614 = vunpack.c.h.b16 %v3281
    %v3615 = vunpack.c.l.b16 %v3282
    %v3616 = vunpack.c.h.b16 %v3282
    %v3617 = vunpack.c.l.b16 %v3283
    %v3618 = vunpack.c.h.b16 %v3283
    %v3619 = vunpack.c.l.b16 %v3284
    %v3620 = vunpack.c.h.b16 %v3284
    %v3621 = vunpack.c.l.b16 %v3285
    %v3622 = vunpack.c.h.b16 %v3285
    %v3623 = vunpack.c.l.b16 %v3286
    %v3624 = vunpack.c.h.b16 %v3286
    %v3625 = vunpack.c.l.b16 %v3287
    %v3626 = vunpack.c.h.b16 %v3287
    %v3627 = vunpack.c.l.b16 %v3288
    %v3628 = vunpack.c.h.b16 %v3288
    %v3629 = vunpack.c.l.b16 %v3289
    %v3630 = vunpack.c.h.b16 %v3289
    %v3631 = vunpack.c.l.b16 %v3290
    %v3632 = vunpack.c.h.b16 %v3290
    %v3633 = vunpack.c.l.b16 %v3291
    %v3634 = vunpack.c.h.b16 %v3291
    %v3635 = vunpack.c.l.b16 %v3292
    %v3636 = vunpack.c.h.b16 %v3292
    %v3637 = vunpack.c.l.b16 %v3293
    %v3638 = vunpack.c.h.b16 %v3293
    %v3639 = vunpack.c.l.b16 %v3294
    %v3640 = vunpack.c.h.b16 %v3294
    %v3641 = vunpack.c.l.b16 %v3295
    %v3642 = vunpack.c.h.b16 %v3295
    %v3643 = vunpack.c.l.b16 %v3296
    %v3644 = vunpack.c.h.b16 %v3296
    %v3645 = vunpack.c.l.b16 %v3297
    %v3646 = vunpack.c.h.b16 %v3297
    %v3647 = vunpack.c.l.b16 %v3298
    %v3648 = vunpack.c.h.b16 %v3298
    %v3649 = vunpack.c.l.b16 %v3299
    %v3650 = vunpack.c.h.b16 %v3299
    %v3651 = vunpack.c.l.b16 %v3300
    %v3652 = vunpack.c.h.b16 %v3300
    %v3653 = vunpack.c.l.b16 %v3301
    %v3654 = vunpack.c.h.b16 %v3301
    %v3655 = vunpack.c.l.b16 %v3302
    %v3656 = vunpack.c.h.b16 %v3302
    %v3657 = vunpack.c.l.b16 %v3303
    %v3658 = vunpack.c.h.b16 %v3303
    %v3659 = vunpack.c.l.b16 %v3304
    %v3660 = vunpack.c.h.b16 %v3304
    %v3661 = vunpack.c.l.b16 %v3305
    %v3662 = vunpack.c.h.b16 %v3305
    %v3663 = vunpack.c.l.b16 %v3306
    %v3664 = vunpack.c.h.b16 %v3306
    %v3665 = vunpack.c.l.b16 %v3307
    %v3666 = vunpack.c.h.b16 %v3307
    %v3667 = vunpack.c.l.b16 %v3308
    %v3668 = vunpack.c.h.b16 %v3308
    %v3669 = vunpack.c.l.b16 %v3309
    %v3670 = vunpack.c.h.b16 %v3309
    %v3671 = vunpack.c.l.b16 %v3310
    %v3672 = vunpack.c.h.b16 %v3310
    %v3673 = vunpack.c.l.b16 %v3311
    %v3674 = vunpack.c.h.b16 %v3311
    %v3675 = vunpack.c.l.b16 %v3312
    %v3676 = vunpack.c.h.b16 %v3312
    %v3677 = vunpack.c.l.b16 %v3313
    %v3678 = vunpack.c.h.b16 %v3313
    %v3679 = vunpack.c.l.b16 %v3314
    %v3680 = vunpack.c.h.b16 %v3314
    %v3681 = vunpack.c.l.b16 %v3315
    %v3682 = vunpack.c.h.b16 %v3315
    %v3683 = vunpack.c.l.b16 %v3316
    %v3684 = vunpack.c.h.b16 %v3316
    %v3685 = vunpack.c.l.b16 %v3317
    %v3686 = vunpack.c.h.b16 %v3317
    %v3687 = vunpack.c.l.b16 %v3318
    %v3688 = vunpack.c.h.b16 %v3318
    %v3689 = vunpack.c.l.b16 %v3319
    %v3690 = vunpack.c.h.b16 %v3319
    %v3691 = vunpack.c.l.b16 %v3320
    %v3692 = vunpack.c.h.b16 %v3320
    %v3693 = vunpack.c.l.b16 %v3321
    %v3694 = vunpack.c.h.b16 %v3321
    %v3695 = vunpack.c.l.b16 %v3322
    %v3696 = vunpack.c.h.b16 %v3322
    %v3697 = vunpack.c.l.b16 %v3323
    %v3698 = vunpack.c.h.b16 %v3323
    %v3699 = vunpack.c.l.b16 %v3324
    %v3700 = vunpack.c.h.b16 %v3324
    %v3701 = vunpack.c.l.b16 %v3325
    %v3702 = vunpack.c.h.b16 %v3325
    %v3703 = vunpack.c.l.b16 %v3326
    %v3704 = vunpack.c.h.b16 %v3326
    %v3705 = vunpack.c.l.b16 %v3327
    %v3706 = vunpack.c.h.b16 %v3327
    %v3707 = vunpack.c.l.b16 %v3328
    %v3708 = vunpack.c.h.b16 %v3328
    %v3709 = vunpack.c.l.b16 %v3329
    %v3710 = vunpack.c.h.b16 %v3329
    %v3711 = vunpack.c.l.b16 %v3330
    %v3712 = vunpack.c.h.b16 %v3330
    %v3713 = vunpack.c.l.b16 %v3331
    %v3714 = vunpack.c.h.b16 %v3331
    %v3715 = vunpack.c.l.b16 %v3332
    %v3716 = vunpack.c.h.b16 %v3332
    %v3717 = vunpack.c.l.b16 %v3333
    %v3718 = vunpack.c.h.b16 %v3333
    %v3719 = vunpack.c.l.b16 %v3334
    %v3720 = vunpack.c.h.b16 %v3334
    %v3721 = vunpack.c.l.b16 %v3335
    %v3722 = vunpack.c.h.b16 %v3335
    %v3723 = vunpack.c.l.b16 %v3336
    %v3724 = vunpack.c.h.b16 %v3336
    %v3725 = vunpack.c.l.b16 %v3337
    %v3726 = vunpack.c.h.b16 %v3337
    %v3727 = vunpack.c.l.b16 %v3338
    %v3728 = vunpack.c.h.b16 %v3338
    %v3729 = vunpack.c.l.b16 %v3339
    %v3730 = vunpack.c.h.b16 %v3339
    %v3731 = vpack.c.b16 %v3477, %v3475
    %v3732 = vpack.c.b16 %v3478, %v3476
    %v3733 = vpack.c.b16 %v3481, %v3479
    %v3734 = vpack.c.b16 %v3482, %v3480
    %v3735 = vpack.c.b16 %v3485, %v3483
    %v3736 = vpack.c.b16 %v3486, %v3484
    %v3737 = vpack.c.b16 %v3489, %v3487
    %v3738 = vpack.c.b16 %v3490, %v3488
    %v3739 = vpack.c.b16 %v3493, %v3491
    %v3740 = vpack.c.b16 %v3494, %v3492
    %v3741 = vpack.c.b16 %v3497, %v3495
    %v3742 = vpack.c.b16 %v3498, %v3496
    %v3743 = vpack.c.b16 %v3501, %v3499
    %v3744 = vpack.c.b16 %v3502, %v3500
    %v3745 = vpack.c.b16 %v3505, %v3503
    %v3746 = vpack.c.b16 %v3506, %v3504
    %v3747 = vpack.c.b16 %v3509, %v3507
    %v3748 = vpack.c.b16 %v3510, %v3508
    %v3749 = vpack.c.b16 %v3513, %v3511
    %v3750 = vpack.c.b16 %v3514, %v3512
    %v3751 = vpack.c.b16 %v3517, %v3515
    %v3752 = vpack.c.b16 %v3518, %v3516
    %v3753 = vpack.c.b16 %v3521, %v3519
    %v3754 = vpack.c.b16 %v3522, %v3520
    %v3755 = vpack.c.b16 %v3525, %v3523
    %v3756 = vpack.c.b16 %v3526, %v3524
    %v3757 = vpack.c.b16 %v3529, %v3527
    %v3758 = vpack.c.b16 %v3530, %v3528
    %v3759 = vpack.c.b16 %v3533, %v3531
    %v3760 = vpack.c.b16 %v3534, %v3532
    %v3761 = vpack.c.b16 %v3537, %v3535
    %v3762 = vpack.c.b16 %v3538, %v3536
    %v3763 = vpack.c.b16 %v3541, %v3539
    %v3764 = vpack.c.b16 %v3542, %v3540
    %v3765 = vpack.c.b16 %v3545, %v3543
    %v3766 = vpack.c.b16 %v3546, %v3544
    %v3767 = vpack.c.b16 %v3549, %v3547
    %v3768 = vpack.c.b16 %v3550, %v3548
    %v3769 = vpack.c.b16 %v3553, %v3551
    %v3770 = vpack.c.b16 %v3554, %v3552
    %v3771 = vpack.c.b16 %v3557, %v3555
    %v3772 = vpack.c.b16 %v3558, %v3556
    %v3773 = vpack.c.b16 %v3561, %v3559
    %v3774 = vpack.c.b16 %v3562, %v3560
    %v3775 = vpack.c.b16 %v3565, %v3563
    %v3776 = vpack.c.b16 %v3566, %v3564
    %v3777 = vpack.c.b16 %v3569, %v3567
    %v3778 = vpack.c.b16 %v3570, %v3568
    %v3779 = vpack.c.b16 %v3573, %v3571
    %v3780 = vpack.c.b16 %v3574, %v3572
    %v3781 = vpack.c.b16 %v3577, %v3575
    %v3782 = vpack.c.b16 %v3578, %v3576
    %v3783 = vpack.c.b16 %v3581, %v3579
    %v3784 = vpack.c.b16 %v3582, %v3580
    %v3785 = vpack.c.b16 %v3585, %v3583
    %v3786 = vpack.c.b16 %v3586, %v3584
    %v3787 = vpack.c.b16 %v3589, %v3587
    %v3788 = vpack.c.b16 %v3590, %v3588
    %v3789 = vpack.c.b16 %v3593, %v3591
    %v3790 = vpack.c.b16 %v3594, %v3592
    %v3791 = vpack.c.b16 %v3597, %v3595
    %v3792 = vpack.c.b16 %v3598, %v3596
    %v3793 = vpack.c.b16 %v3601, %v3599
    %v3794 = vpack.c.b16 %v3602, %v3600
    %v3795 = vpack.c.b16 %v3605, %v3603
    %v3796 = vpack.c.b16 %v3606, %v3604
    %v3797 = vpack.c.b16 %v3609, %v3607
    %v3798 = vpack.c.b16 %v3610, %v3608
    %v3799 = vpack.c.b16 %v3613, %v3611
    %v3800 = vpack.c.b16 %v3614, %v3612
    %v3801 = vpack.c.b16 %v3617, %v3615
    %v3802 = vpack.c.b16 %v3618, %v3616
    %v3803 = vpack.c.b16 %v3621, %v3619
    %v3804 = vpack.c.b16 %v3622, %v3620
    %v3805 = vpack.c.b16 %v3625, %v3623
    %v3806 = vpack.c.b16 %v3626, %v3624
    %v3807 = vpack.c.b16 %v3629, %v3627
    %v3808 = vpack.c.b16 %v3630, %v3628
    %v3809 = vpack.c.b16 %v3633, %v3631
    %v3810 = vpack.c.b16 %v3634, %v3632
    %v3811 = vpack.c.b16 %v3637, %v3635
    %v3812 = vpack.c.b16 %v3638, %v3636
    %v3813 = vpack.c.b16 %v3641, %v3639
    %v3814 = vpack.c.b16 %v3642, %v3640
    %v3815 = vpack.c.b16 %v3645, %v3643
    %v3816 = vpack.c.b16 %v3646, %v3644
    %v3817 = vpack.c.b16 %v3649, %v3647
    %v3818 = vpack.c.b16 %v3650, %v3648
    %v3819 = vpack.c.b16 %v3653, %v3651
    %v3820 = vpack.c.b16 %v3654, %v3652
    %v3821 = vpack.c.b16 %v3657, %v3655
    %v3822 = vpack.c.b16 %v3658, %v3656
    %v3823 = vpack.c.b16 %v3661, %v3659
    %v3824 = vpack.c.b16 %v3662, %v3660
    %v3825 = vpack.c.b16 %v3665, %v3663
    %v3826 = vpack.c.b16 %v3666, %v3664
    %v3827 = vpack.c.b16 %v3669, %v3667
    %v3828 = vpack.c.b16 %v3670, %v3668
    %v3829 = vpack.c.b16 %v3673, %v3671
    %v3830 = vpack.c.b16 %v3674, %v3672
    %v3831 = vpack.c.b16 %v3677, %v3675
    %v3832 = vpack.c.b16 %v3678, %v3676
    %v3833 = vpack.c.b16 %v3681, %v3679
    %v3834 = vpack.c.b16 %v3682, %v3680
    %v3835 = vpack.c.b16 %v3685, %v3683
    %v3836 = vpack.c.b16 %v3686, %v3684
    %v3837 = vpack.c.b16 %v3689, %v3687
    %v3838 = vpack.c.b16 %v3690, %v3688
    %v3839 = vpack.c.b16 %v3693, %v3691
    %v3840 = vpack.c.b16 %v3694, %v3692
    %v3841 = vpack.c.b16 %v3697, %v3695
    %v3842 = vpack.c.b16 %v3698, %v3696
    %v3843 = vpack.c.b16 %v3701, %v3699
    %v3844 = vpack.c.b16 %v3702, %v3700
    %v3845 = vpack.c.b16 %v3705, %v3703
    %v3846 = vpack.c.b16 %v3706, %v3704
    %v3847 = vpack.c.b16 %v3709, %v3707
    %v3848 = vpack.c.b16 %v3710, %v3708
    %v3849 = vpack.c.b16 %v3713, %v3711
    %v3850 = vpack.c.b16 %v3714, %v3712
    %v3851 = vpack.c.b16 %v3717, %v3715
    %v3852 = vpack.c.b16 %v3718, %v3716
    %v3853 = vpack.c.b16 %v3721, %v3719
    %v3854 = vpack.c.b16 %v3722, %v3720
    %v3855 = vpack.c.b16 %v3725, %v3723
    %v3856 = vpack.c.b16 %v3726, %v3724
    %v3857 = vpack.c.b16 %v3729, %v3727
    %v3858 = vpack.c.b16 %v3730, %v3728
    %3987 = vmatpush.bf16.msra.mxu0 %v3745
    %3988 = vmatpush.bf16.msra.mxu0 %v3743
    %3989 = vmatpush.bf16.msra.mxu0 %v3741
    %3990 = vmatpush.bf16.msra.mxu0 %v3739
    %3991 = vmatpush.bf16.msra.mxu0 %v3737
    %3992 = vmatpush.bf16.msra.mxu0 %v3735
    %3993 = vmatpush.bf16.msra.mxu0 %v3733
    %3994 = vmatpush.bf16.msra.mxu0 %v3731
    %3995 = vmatmul.bf16.gmra.mxu0 %v2219
    %v3996 = vpop.f32.mrf.mxu0
    %v3997 = vadd.f32 %v3343, %v3996
    %v3998 = vpop.f32.mrf.mxu0
    %3999 = vdwg.mxu0
    %4000 = vmatpush.bf16.msra.mxu0 %v3761
    %4001 = vmatpush.bf16.msra.mxu0 %v3759
    %4002 = vmatpush.bf16.msra.mxu0 %v3757
    %4003 = vmatpush.bf16.msra.mxu0 %v3755
    %4004 = vmatpush.bf16.msra.mxu0 %v3753
    %4005 = vmatpush.bf16.msra.mxu0 %v3751
    %4006 = vmatpush.bf16.msra.mxu0 %v3749
    %4007 = vmatpush.bf16.msra.mxu0 %v3747
    %4008 = vmatmul.bf16.gmra.mxu0 %v2220
    %v4009 = vpop.f32.mrf.mxu0
    %v4010 = vadd.f32 %v3997, %v4009
    %v4011 = vpop.f32.mrf.mxu0
    %4012 = vdwg.mxu0
    %4013 = vmatpush.bf16.msra.mxu0 %v3777
    %4014 = vmatpush.bf16.msra.mxu0 %v3775
    %4015 = vmatpush.bf16.msra.mxu0 %v3773
    %4016 = vmatpush.bf16.msra.mxu0 %v3771
    %4017 = vmatpush.bf16.msra.mxu0 %v3769
    %4018 = vmatpush.bf16.msra.mxu0 %v3767
    %4019 = vmatpush.bf16.msra.mxu0 %v3765
    %4020 = vmatpush.bf16.msra.mxu0 %v3763
    %4021 = vmatmul.bf16.gmra.mxu0 %v2221
    %v4022 = vpop.f32.mrf.mxu0
    %v4023 = vadd.f32 %v4010, %v4022
    %v4024 = vpop.f32.mrf.mxu0
    %4025 = vdwg.mxu0
    %4026 = vmatpush.bf16.msra.mxu0 %v3793
    %4027 = vmatpush.bf16.msra.mxu0 %v3791
    %4028 = vmatpush.bf16.msra.mxu0 %v3789
    %4029 = vmatpush.bf16.msra.mxu0 %v3787
    %4030 = vmatpush.bf16.msra.mxu0 %v3785
    %4031 = vmatpush.bf16.msra.mxu0 %v3783
    %4032 = vmatpush.bf16.msra.mxu0 %v3781
    %4033 = vmatpush.bf16.msra.mxu0 %v3779
    %4034 = vmatmul.bf16.gmra.mxu0 %v2222
    %v4035 = vpop.f32.mrf.mxu0
    %v4036 = vadd.f32 %v4023, %v4035
    %v4037 = vpop.f32.mrf.mxu0
    %4038 = vdwg.mxu0
    %4039 = vmatpush.bf16.msra.mxu0 %v3809
    %4040 = vmatpush.bf16.msra.mxu0 %v3807
    %4041 = vmatpush.bf16.msra.mxu0 %v3805
    %4042 = vmatpush.bf16.msra.mxu0 %v3803
    %4043 = vmatpush.bf16.msra.mxu0 %v3801
    %4044 = vmatpush.bf16.msra.mxu0 %v3799
    %4045 = vmatpush.bf16.msra.mxu0 %v3797
    %4046 = vmatpush.bf16.msra.mxu0 %v3795
    %4047 = vmatmul.bf16.gmra.mxu0 %v2223
    %v4048 = vpop.f32.mrf.mxu0
    %v4049 = vadd.f32 %v4036, %v4048
    %v4050 = vpop.f32.mrf.mxu0
    %4051 = vdwg.mxu0
    %4052 = vmatpush.bf16.msra.mxu0 %v3825
    %4053 = vmatpush.bf16.msra.mxu0 %v3823
    %4054 = vmatpush.bf16.msra.mxu0 %v3821
    %4055 = vmatpush.bf16.msra.mxu0 %v3819
    %4056 = vmatpush.bf16.msra.mxu0 %v3817
    %4057 = vmatpush.bf16.msra.mxu0 %v3815
    %4058 = vmatpush.bf16.msra.mxu0 %v3813
    %4059 = vmatpush.bf16.msra.mxu0 %v3811
    %4060 = vmatmul.bf16.gmra.mxu0 %v2224
    %v4061 = vpop.f32.mrf.mxu0
    %v4062 = vadd.f32 %v4049, %v4061
    %v4063 = vpop.f32.mrf.mxu0
    %4064 = vdwg.mxu0
    %4065 = vmatpush.bf16.msra.mxu0 %v3841
    %4066 = vmatpush.bf16.msra.mxu0 %v3839
    %4067 = vmatpush.bf16.msra.mxu0 %v3837
    %4068 = vmatpush.bf16.msra.mxu0 %v3835
    %4069 = vmatpush.bf16.msra.mxu0 %v3833
    %4070 = vmatpush.bf16.msra.mxu0 %v3831
    %4071 = vmatpush.bf16.msra.mxu0 %v3829
    %4072 = vmatpush.bf16.msra.mxu0 %v3827
    %4073 = vmatmul.bf16.gmra.mxu0 %v2225
    %v4074 = vpop.f32.mrf.mxu0
    %v4075 = vadd.f32 %v4062, %v4074
    %v4076 = vpop.f32.mrf.mxu0
    %4077 = vdwg.mxu0
    %4078 = vmatpush.bf16.msra.mxu0 %v3857
    %4079 = vmatpush.bf16.msra.mxu0 %v3855
    %4080 = vmatpush.bf16.msra.mxu0 %v3853
    %4081 = vmatpush.bf16.msra.mxu0 %v3851
    %4082 = vmatpush.bf16.msra.mxu0 %v3849
    %4083 = vmatpush.bf16.msra.mxu0 %v3847
    %4084 = vmatpush.bf16.msra.mxu0 %v3845
    %4085 = vmatpush.bf16.msra.mxu0 %v3843
    %4086 = vmatmul.bf16.gmra.mxu0 %v2226
    %v4087 = vpop.f32.mrf.mxu0
    %v4088 = vadd.f32 %v4075, %v4087
    %v4089 = vpop.f32.mrf.mxu0
    %4090 = vdwg.mxu0
    %4091 = vmatpush.bf16.msra.mxu0 %v3746
    %4092 = vmatpush.bf16.msra.mxu0 %v3744
    %4093 = vmatpush.bf16.msra.mxu0 %v3742
    %4094 = vmatpush.bf16.msra.mxu0 %v3740
    %4095 = vmatpush.bf16.msra.mxu0 %v3738
    %4096 = vmatpush.bf16.msra.mxu0 %v3736
    %4097 = vmatpush.bf16.msra.mxu0 %v3734
    %4098 = vmatpush.bf16.msra.mxu0 %v3732
    %4099 = vmatmul.bf16.gmra.mxu0 %v2219
    %v4100 = vpop.f32.mrf.mxu0
    %v4101 = vadd.f32 %v3344, %v4100
    %v4102 = vpop.f32.mrf.mxu0
    %4103 = vdwg.mxu0
    %4104 = vmatpush.bf16.msra.mxu0 %v3762
    %4105 = vmatpush.bf16.msra.mxu0 %v3760
    %4106 = vmatpush.bf16.msra.mxu0 %v3758
    %4107 = vmatpush.bf16.msra.mxu0 %v3756
    %4108 = vmatpush.bf16.msra.mxu0 %v3754
    %4109 = vmatpush.bf16.msra.mxu0 %v3752
    %4110 = vmatpush.bf16.msra.mxu0 %v3750
    %4111 = vmatpush.bf16.msra.mxu0 %v3748
    %4112 = vmatmul.bf16.gmra.mxu0 %v2220
    %v4113 = vpop.f32.mrf.mxu0
    %v4114 = vadd.f32 %v4101, %v4113
    %v4115 = vpop.f32.mrf.mxu0
    %4116 = vdwg.mxu0
    %4117 = vmatpush.bf16.msra.mxu0 %v3778
    %4118 = vmatpush.bf16.msra.mxu0 %v3776
    %4119 = vmatpush.bf16.msra.mxu0 %v3774
    %4120 = vmatpush.bf16.msra.mxu0 %v3772
    %4121 = vmatpush.bf16.msra.mxu0 %v3770
    %4122 = vmatpush.bf16.msra.mxu0 %v3768
    %4123 = vmatpush.bf16.msra.mxu0 %v3766
    %4124 = vmatpush.bf16.msra.mxu0 %v3764
    %4125 = vmatmul.bf16.gmra.mxu0 %v2221
    %v4126 = vpop.f32.mrf.mxu0
    %v4127 = vadd.f32 %v4114, %v4126
    %v4128 = vpop.f32.mrf.mxu0
    %4129 = vdwg.mxu0
    %4130 = vmatpush.bf16.msra.mxu0 %v3794
    %4131 = vmatpush.bf16.msra.mxu0 %v3792
    %4132 = vmatpush.bf16.msra.mxu0 %v3790
    %4133 = vmatpush.bf16.msra.mxu0 %v3788
    %4134 = vmatpush.bf16.msra.mxu0 %v3786
    %4135 = vmatpush.bf16.msra.mxu0 %v3784
    %4136 = vmatpush.bf16.msra.mxu0 %v3782
    %4137 = vmatpush.bf16.msra.mxu0 %v3780
    %4138 = vmatmul.bf16.gmra.mxu0 %v2222
    %v4139 = vpop.f32.mrf.mxu0
    %v4140 = vadd.f32 %v4127, %v4139
    %v4141 = vpop.f32.mrf.mxu0
    %4142 = vdwg.mxu0
    %4143 = vmatpush.bf16.msra.mxu0 %v3810
    %4144 = vmatpush.bf16.msra.mxu0 %v3808
    %4145 = vmatpush.bf16.msra.mxu0 %v3806
    %4146 = vmatpush.bf16.msra.mxu0 %v3804
    %4147 = vmatpush.bf16.msra.mxu0 %v3802
    %4148 = vmatpush.bf16.msra.mxu0 %v3800
    %4149 = vmatpush.bf16.msra.mxu0 %v3798
    %4150 = vmatpush.bf16.msra.mxu0 %v3796
    %4151 = vmatmul.bf16.gmra.mxu0 %v2223
    %v4152 = vpop.f32.mrf.mxu0
    %v4153 = vadd.f32 %v4140, %v4152
    %v4154 = vpop.f32.mrf.mxu0
    %4155 = vdwg.mxu0
    %4156 = vmatpush.bf16.msra.mxu0 %v3826
    %4157 = vmatpush.bf16.msra.mxu0 %v3824
    %4158 = vmatpush.bf16.msra.mxu0 %v3822
    %4159 = vmatpush.bf16.msra.mxu0 %v3820
    %4160 = vmatpush.bf16.msra.mxu0 %v3818
    %4161 = vmatpush.bf16.msra.mxu0 %v3816
    %4162 = vmatpush.bf16.msra.mxu0 %v3814
    %4163 = vmatpush.bf16.msra.mxu0 %v3812
    %4164 = vmatmul.bf16.gmra.mxu0 %v2224
    %v4165 = vpop.f32.mrf.mxu0
    %v4166 = vadd.f32 %v4153, %v4165
    %v4167 = vpop.f32.mrf.mxu0
    %4168 = vdwg.mxu0
    %4169 = vmatpush.bf16.msra.mxu0 %v3842
    %4170 = vmatpush.bf16.msra.mxu0 %v3840
    %4171 = vmatpush.bf16.msra.mxu0 %v3838
    %4172 = vmatpush.bf16.msra.mxu0 %v3836
    %4173 = vmatpush.bf16.msra.mxu0 %v3834
    %4174 = vmatpush.bf16.msra.mxu0 %v3832
    %4175 = vmatpush.bf16.msra.mxu0 %v3830
    %4176 = vmatpush.bf16.msra.mxu0 %v3828
    %4177 = vmatmul.bf16.gmra.mxu0 %v2225
    %v4178 = vpop.f32.mrf.mxu0
    %v4179 = vadd.f32 %v4166, %v4178
    %v4180 = vpop.f32.mrf.mxu0
    %4181 = vdwg.mxu0
    %4182 = vmatpush.bf16.msra.mxu0 %v3858
    %4183 = vmatpush.bf16.msra.mxu0 %v3856
    %4184 = vmatpush.bf16.msra.mxu0 %v3854
    %4185 = vmatpush.bf16.msra.mxu0 %v3852
    %4186 = vmatpush.bf16.msra.mxu0 %v3850
    %4187 = vmatpush.bf16.msra.mxu0 %v3848
    %4188 = vmatpush.bf16.msra.mxu0 %v3846
    %4189 = vmatpush.bf16.msra.mxu0 %v3844
    %4190 = vmatmul.bf16.gmra.mxu0 %v2226
    %v4191 = vpop.f32.mrf.mxu0
    %v4192 = vadd.f32 %v4179, %v4191
    %v4193 = vpop.f32.mrf.mxu0
    %4194 = vdwg.mxu0
    %s4195 = scalar_lea.vmem [#allocation11], 2
    %v4196 = vld [vmem:[%s4195] sm:$0x3]
    %s4197 = scalar_lea.vmem [#allocation16], 2
    %v4198 = vld [vmem:[%s4197] sm:$0x3]
    %v4199 = vadd.f32 %v4198, 1e-05
    %v4200 = vrsqrt.pop %v4199
    %v4201 = vmul.f32 %v4200, %v4199
    %v4202 = vmul.f32 %v4201, %v4200
    %v4203 = vmul.f32 0.5, %v4202
    %v4204 = vsub.f32 1.5, %v4203
    %v4205 = vmul.f32 %v4200, %v4204
    %vm4206 = vweird.f32 %v4199
    %vm4207 = vweird.f32 %v4200
    %vm4208 = vmor %vm4206, %vm4207
    %v4209 = vsel %vm4208, %v4200, %v4205
    %v4210 = vmul.f32 %v4196, %v4209
    %s4211 = scalar_lea.vmem [#allocation14], 2
    %v4212 = vld [vmem:[%s4211] sm:$0x3]
    %v4214 = vperm.slane %v4212, 0
    %v4215 = vperm.slane %v4212, 1
    %v4218 = vsub.f32 %v4088, %v4214
    %v4219 = vsub.f32 %v4192, %v4215
    %v4221 = vperm.slane %v4210, 0
    %v4222 = vperm.slane %v4210, 1
    %v4225 = vmul.f32 %v4218, %v4221
    %v4226 = vmul.f32 %v4219, %v4222
    %s4227 = scalar_lea.vmem [#allocation13], 2
    %v4228 = vld [vmem:[%s4227] sm:$0x3]
    %v4230 = vperm.slane %v4228, 0
    %v4231 = vperm.slane %v4228, 1
    %v4234 = vadd.f32 %v4225, %v4230
    %v4235 = vadd.f32 %v4226, %v4231
    %v4238 = vrot.slane %v4235, 7
    %v4239 = vsel %vm460, %v4234, %v4238
    %v4240 = vsel %vm798, %v4234, %v4238
    %v4241 = vrot.slane %v4240, 1
    %s4244 = scalar_lea.vmem %s11, 1
    %4245 = vst.msk [vmem:[%s4244] ss:$8 sm:$0x3] %vm1719, %v4239
    %4246 = vst.msk [vmem:[%s4244] ss:$8 sm:$0x0] %vm1719, %v4239
    %s4247 = scalar_lea.vmem %s11, 17
    %4248 = vst.msk [vmem:[%s4247] ss:$8 sm:$0x3] %vm1719, %v4241
    %4249 = vst.msk [vmem:[%s4247] ss:$8 sm:$0x0] %vm1719, %v4241
    %s4250 = scalar_lea.vmem [#allocation2], 256
    %v4251 = vld [vmem:[%s4250] sm:$0xff]
    %v4252 = vld [vmem:[%s4250 + $0x8] sm:$0xff]
    %v4253 = vld [vmem:[%s4250 + $0x10] sm:$0xff]
    %v4254 = vld [vmem:[%s4250 + $0x18] sm:$0xff]
    %v4255 = vld [vmem:[%s4250 + $0x20] sm:$0xff]
    %v4256 = vld [vmem:[%s4250 + $0x28] sm:$0xff]
    %v4257 = vld [vmem:[%s4250 + $0x30] sm:$0xff]
    %v4258 = vld [vmem:[%s4250 + $0x38] sm:$0xff]
    %v4259 = vld [vmem:[%s4250 + $0x40] sm:$0xff]
    %v4260 = vld [vmem:[%s4250 + $0x48] sm:$0xff]
    %v4261 = vld [vmem:[%s4250 + $0x50] sm:$0xff]
    %v4262 = vld [vmem:[%s4250 + $0x58] sm:$0xff]
    %v4263 = vld [vmem:[%s4250 + $0x60] sm:$0xff]
    %v4264 = vld [vmem:[%s4250 + $0x68] sm:$0xff]
    %v4265 = vld [vmem:[%s4250 + $0x70] sm:$0xff]
    %v4266 = vld [vmem:[%s4250 + $0x78] sm:$0xff]
    %v4267 = vld [vmem:[%s4250 + $0x300] sm:$0xff]
    %v4268 = vld [vmem:[%s4250 + $0x308] sm:$0xff]
    %v4269 = vld [vmem:[%s4250 + $0x310] sm:$0xff]
    %v4270 = vld [vmem:[%s4250 + $0x318] sm:$0xff]
    %v4271 = vld [vmem:[%s4250 + $0x320] sm:$0xff]
    %v4272 = vld [vmem:[%s4250 + $0x328] sm:$0xff]
    %v4273 = vld [vmem:[%s4250 + $0x330] sm:$0xff]
    %v4274 = vld [vmem:[%s4250 + $0x338] sm:$0xff]
    %v4275 = vld [vmem:[%s4250 + $0x340] sm:$0xff]
    %v4276 = vld [vmem:[%s4250 + $0x348] sm:$0xff]
    %v4277 = vld [vmem:[%s4250 + $0x350] sm:$0xff]
    %v4278 = vld [vmem:[%s4250 + $0x358] sm:$0xff]
    %v4279 = vld [vmem:[%s4250 + $0x360] sm:$0xff]
    %v4280 = vld [vmem:[%s4250 + $0x368] sm:$0xff]
    %v4281 = vld [vmem:[%s4250 + $0x370] sm:$0xff]
    %v4282 = vld [vmem:[%s4250 + $0x378] sm:$0xff]
    %v4283 = vunpack.c.l.bf16 %v4251
    %v4284 = vunpack.c.h.bf16 %v4251
    %v4285 = vunpack.c.l.bf16 %v4252
    %v4286 = vunpack.c.h.bf16 %v4252
    %v4287 = vunpack.c.l.bf16 %v4253
    %v4288 = vunpack.c.h.bf16 %v4253
    %v4289 = vunpack.c.l.bf16 %v4254
    %v4290 = vunpack.c.h.bf16 %v4254
    %v4291 = vunpack.c.l.bf16 %v4255
    %v4292 = vunpack.c.h.bf16 %v4255
    %v4293 = vunpack.c.l.bf16 %v4256
    %v4294 = vunpack.c.h.bf16 %v4256
    %v4295 = vunpack.c.l.bf16 %v4257
    %v4296 = vunpack.c.h.bf16 %v4257
    %v4297 = vunpack.c.l.bf16 %v4258
    %v4298 = vunpack.c.h.bf16 %v4258
    %v4299 = vunpack.c.l.bf16 %v4259
    %v4300 = vunpack.c.h.bf16 %v4259
    %v4301 = vunpack.c.l.bf16 %v4260
    %v4302 = vunpack.c.h.bf16 %v4260
    %v4303 = vunpack.c.l.bf16 %v4261
    %v4304 = vunpack.c.h.bf16 %v4261
    %v4305 = vunpack.c.l.bf16 %v4262
    %v4306 = vunpack.c.h.bf16 %v4262
    %v4307 = vunpack.c.l.bf16 %v4263
    %v4308 = vunpack.c.h.bf16 %v4263
    %v4309 = vunpack.c.l.bf16 %v4264
    %v4310 = vunpack.c.h.bf16 %v4264
    %v4311 = vunpack.c.l.bf16 %v4265
    %v4312 = vunpack.c.h.bf16 %v4265
    %v4313 = vunpack.c.l.bf16 %v4266
    %v4314 = vunpack.c.h.bf16 %v4266
    %v4315 = vunpack.c.l.bf16 %v4267
    %v4316 = vunpack.c.h.bf16 %v4267
    %v4317 = vunpack.c.l.bf16 %v4268
    %v4318 = vunpack.c.h.bf16 %v4268
    %v4319 = vunpack.c.l.bf16 %v4269
    %v4320 = vunpack.c.h.bf16 %v4269
    %v4321 = vunpack.c.l.bf16 %v4270
    %v4322 = vunpack.c.h.bf16 %v4270
    %v4323 = vunpack.c.l.bf16 %v4271
    %v4324 = vunpack.c.h.bf16 %v4271
    %v4325 = vunpack.c.l.bf16 %v4272
    %v4326 = vunpack.c.h.bf16 %v4272
    %v4327 = vunpack.c.l.bf16 %v4273
    %v4328 = vunpack.c.h.bf16 %v4273
    %v4329 = vunpack.c.l.bf16 %v4274
    %v4330 = vunpack.c.h.bf16 %v4274
    %v4331 = vunpack.c.l.bf16 %v4275
    %v4332 = vunpack.c.h.bf16 %v4275
    %v4333 = vunpack.c.l.bf16 %v4276
    %v4334 = vunpack.c.h.bf16 %v4276
    %v4335 = vunpack.c.l.bf16 %v4277
    %v4336 = vunpack.c.h.bf16 %v4277
    %v4337 = vunpack.c.l.bf16 %v4278
    %v4338 = vunpack.c.h.bf16 %v4278
    %v4339 = vunpack.c.l.bf16 %v4279
    %v4340 = vunpack.c.h.bf16 %v4279
    %v4341 = vunpack.c.l.bf16 %v4280
    %v4342 = vunpack.c.h.bf16 %v4280
    %v4343 = vunpack.c.l.bf16 %v4281
    %v4344 = vunpack.c.h.bf16 %v4281
    %v4345 = vunpack.c.l.bf16 %v4282
    %v4346 = vunpack.c.h.bf16 %v4282
    %v4347 = vadd.f32 %v4283, %v4291
    %v4348 = vadd.f32 %v4347, %v4299
    %v4349 = vadd.f32 %v4348, %v4307
    %v4350 = vrot.slane %v4349, 4
    %v4351 = vadd.f32 %v4349, %v4350
    %v4352 = vrot.slane %v4351, 2
    %v4353 = vadd.f32 %v4351, %v4352
    %v4354 = vrot.slane %v4353, 1
    %v4355 = vadd.f32 %v4353, %v4354
    %v4356 = vadd.f32 %v4284, %v4292
    %v4357 = vadd.f32 %v4356, %v4300
    %v4358 = vadd.f32 %v4357, %v4308
    %v4359 = vrot.slane %v4358, 4
    %v4360 = vadd.f32 %v4358, %v4359
    %v4361 = vrot.slane %v4360, 2
    %v4362 = vadd.f32 %v4360, %v4361
    %v4363 = vrot.slane %v4362, 1
    %v4364 = vadd.f32 %v4362, %v4363
    %v4365 = vadd.f32 %v4285, %v4293
    %v4366 = vadd.f32 %v4365, %v4301
    %v4367 = vadd.f32 %v4366, %v4309
    %v4368 = vrot.slane %v4367, 4
    %v4369 = vadd.f32 %v4367, %v4368
    %v4370 = vrot.slane %v4369, 2
    %v4371 = vadd.f32 %v4369, %v4370
    %v4372 = vrot.slane %v4371, 1
    %v4373 = vadd.f32 %v4371, %v4372
    %v4374 = vadd.f32 %v4286, %v4294
    %v4375 = vadd.f32 %v4374, %v4302
    %v4376 = vadd.f32 %v4375, %v4310
    %v4377 = vrot.slane %v4376, 4
    %v4378 = vadd.f32 %v4376, %v4377
    %v4379 = vrot.slane %v4378, 2
    %v4380 = vadd.f32 %v4378, %v4379
    %v4381 = vrot.slane %v4380, 1
    %v4382 = vadd.f32 %v4380, %v4381
    %v4383 = vadd.f32 %v4287, %v4295
    %v4384 = vadd.f32 %v4383, %v4303
    %v4385 = vadd.f32 %v4384, %v4311
    %v4386 = vrot.slane %v4385, 4
    %v4387 = vadd.f32 %v4385, %v4386
    %v4388 = vrot.slane %v4387, 2
    %v4389 = vadd.f32 %v4387, %v4388
    %v4390 = vrot.slane %v4389, 1
    %v4391 = vadd.f32 %v4389, %v4390
    %v4392 = vadd.f32 %v4288, %v4296
    %v4393 = vadd.f32 %v4392, %v4304
    %v4394 = vadd.f32 %v4393, %v4312
    %v4395 = vrot.slane %v4394, 4
    %v4396 = vadd.f32 %v4394, %v4395
    %v4397 = vrot.slane %v4396, 2
    %v4398 = vadd.f32 %v4396, %v4397
    %v4399 = vrot.slane %v4398, 1
    %v4400 = vadd.f32 %v4398, %v4399
    %v4401 = vadd.f32 %v4289, %v4297
    %v4402 = vadd.f32 %v4401, %v4305
    %v4403 = vadd.f32 %v4402, %v4313
    %v4404 = vrot.slane %v4403, 4
    %v4405 = vadd.f32 %v4403, %v4404
    %v4406 = vrot.slane %v4405, 2
    %v4407 = vadd.f32 %v4405, %v4406
    %v4408 = vrot.slane %v4407, 1
    %v4409 = vadd.f32 %v4407, %v4408
    %v4410 = vadd.f32 %v4290, %v4298
    %v4411 = vadd.f32 %v4410, %v4306
    %v4412 = vadd.f32 %v4411, %v4314
    %v4413 = vrot.slane %v4412, 4
    %v4414 = vadd.f32 %v4412, %v4413
    %v4415 = vrot.slane %v4414, 2
    %v4416 = vadd.f32 %v4414, %v4415
    %v4417 = vrot.slane %v4416, 1
    %v4418 = vadd.f32 %v4416, %v4417
    %v4419 = vadd.f32 %v4315, %v4323
    %v4420 = vadd.f32 %v4419, %v4331
    %v4421 = vadd.f32 %v4420, %v4339
    %v4422 = vrot.slane %v4421, 4
    %v4423 = vadd.f32 %v4421, %v4422
    %v4424 = vrot.slane %v4423, 2
    %v4425 = vadd.f32 %v4423, %v4424
    %v4426 = vrot.slane %v4425, 1
    %v4427 = vadd.f32 %v4425, %v4426
    %v4428 = vadd.f32 %v4316, %v4324
    %v4429 = vadd.f32 %v4428, %v4332
    %v4430 = vadd.f32 %v4429, %v4340
    %v4431 = vrot.slane %v4430, 4
    %v4432 = vadd.f32 %v4430, %v4431
    %v4433 = vrot.slane %v4432, 2
    %v4434 = vadd.f32 %v4432, %v4433
    %v4435 = vrot.slane %v4434, 1
    %v4436 = vadd.f32 %v4434, %v4435
    %v4437 = vadd.f32 %v4317, %v4325
    %v4438 = vadd.f32 %v4437, %v4333
    %v4439 = vadd.f32 %v4438, %v4341
    %v4440 = vrot.slane %v4439, 4
    %v4441 = vadd.f32 %v4439, %v4440
    %v4442 = vrot.slane %v4441, 2
    %v4443 = vadd.f32 %v4441, %v4442
    %v4444 = vrot.slane %v4443, 1
    %v4445 = vadd.f32 %v4443, %v4444
    %v4446 = vadd.f32 %v4318, %v4326
    %v4447 = vadd.f32 %v4446, %v4334
    %v4448 = vadd.f32 %v4447, %v4342
    %v4449 = vrot.slane %v4448, 4
    %v4450 = vadd.f32 %v4448, %v4449
    %v4451 = vrot.slane %v4450, 2
    %v4452 = vadd.f32 %v4450, %v4451
    %v4453 = vrot.slane %v4452, 1
    %v4454 = vadd.f32 %v4452, %v4453
    %v4455 = vadd.f32 %v4319, %v4327
    %v4456 = vadd.f32 %v4455, %v4335
    %v4457 = vadd.f32 %v4456, %v4343
    %v4458 = vrot.slane %v4457, 4
    %v4459 = vadd.f32 %v4457, %v4458
    %v4460 = vrot.slane %v4459, 2
    %v4461 = vadd.f32 %v4459, %v4460
    %v4462 = vrot.slane %v4461, 1
    %v4463 = vadd.f32 %v4461, %v4462
    %v4464 = vadd.f32 %v4320, %v4328
    %v4465 = vadd.f32 %v4464, %v4336
    %v4466 = vadd.f32 %v4465, %v4344
    %v4467 = vrot.slane %v4466, 4
    %v4468 = vadd.f32 %v4466, %v4467
    %v4469 = vrot.slane %v4468, 2
    %v4470 = vadd.f32 %v4468, %v4469
    %v4471 = vrot.slane %v4470, 1
    %v4472 = vadd.f32 %v4470, %v4471
    %v4473 = vadd.f32 %v4321, %v4329
    %v4474 = vadd.f32 %v4473, %v4337
    %v4475 = vadd.f32 %v4474, %v4345
    %v4476 = vrot.slane %v4475, 4
    %v4477 = vadd.f32 %v4475, %v4476
    %v4478 = vrot.slane %v4477, 2
    %v4479 = vadd.f32 %v4477, %v4478
    %v4480 = vrot.slane %v4479, 1
    %v4481 = vadd.f32 %v4479, %v4480
    %v4482 = vadd.f32 %v4322, %v4330
    %v4483 = vadd.f32 %v4482, %v4338
    %v4484 = vadd.f32 %v4483, %v4346
    %v4485 = vrot.slane %v4484, 4
    %v4486 = vadd.f32 %v4484, %v4485
    %v4487 = vrot.slane %v4486, 2
    %v4488 = vadd.f32 %v4486, %v4487
    %v4489 = vrot.slane %v4488, 1
    %v4490 = vadd.f32 %v4488, %v4489
    %v4491 = vmul.f32 %v4355, 0.03125
    %v4492 = vmul.f32 %v4364, 0.03125
    %v4493 = vmul.f32 %v4373, 0.03125
    %v4494 = vmul.f32 %v4382, 0.03125
    %v4495 = vmul.f32 %v4391, 0.03125
    %v4496 = vmul.f32 %v4400, 0.03125
    %v4497 = vmul.f32 %v4409, 0.03125
    %v4498 = vmul.f32 %v4418, 0.03125
    %v4499 = vmul.f32 %v4427, 0.03125
    %v4500 = vmul.f32 %v4436, 0.03125
    %v4501 = vmul.f32 %v4445, 0.03125
    %v4502 = vmul.f32 %v4454, 0.03125
    %v4503 = vmul.f32 %v4463, 0.03125
    %v4504 = vmul.f32 %v4472, 0.03125
    %v4505 = vmul.f32 %v4481, 0.03125
    %v4506 = vmul.f32 %v4490, 0.03125
    %v4523 = vrot.slane %v4492, 7
    %v4524 = vrot.slane %v4493, 6
    %v4525 = vrot.slane %v4494, 5
    %v4526 = vrot.slane %v4495, 4
    %v4527 = vrot.slane %v4496, 3
    %v4528 = vrot.slane %v4497, 2
    %v4529 = vrot.slane %v4498, 1
    %v4530 = vrot.slane %v4500, 7
    %v4531 = vrot.slane %v4501, 6
    %v4532 = vrot.slane %v4502, 5
    %v4533 = vrot.slane %v4503, 4
    %v4534 = vrot.slane %v4504, 3
    %v4535 = vrot.slane %v4505, 2
    %v4536 = vrot.slane %v4506, 1
    %v4537 = vsel %vm460, %v4491, %v4523
    %v4538 = vsel %vm462, %v4524, %v4525
    %v4539 = vsel %vm464, %v4537, %v4538
    %v4540 = vsel %vm466, %v4526, %v4527
    %v4541 = vsel %vm468, %v4528, %v4529
    %v4542 = vsel %vm470, %v4540, %v4541
    %v4543 = vsel %vm472, %v4539, %v4542
    %v4544 = vsel %vm460, %v4499, %v4530
    %v4545 = vsel %vm462, %v4531, %v4532
    %v4546 = vsel %vm464, %v4544, %v4545
    %v4547 = vsel %vm466, %v4533, %v4534
    %v4548 = vsel %vm468, %v4535, %v4536
    %v4549 = vsel %vm470, %v4547, %v4548
    %v4550 = vsel %vm472, %v4546, %v4549
    %s4553 = scalar_lea.vmem %s9, 2
    %4554 = vst [vmem:[%s4553] ss:$8 sm:$0xf] %v4543
    %4555 = vst [vmem:[%s4553] ss:$8 sm:$0xf0] %v4543
    %s4556 = scalar_lea.vmem %s9, 66
    %4557 = vst [vmem:[%s4556] ss:$8 sm:$0xf] %v4550
    %4558 = vst [vmem:[%s4556] ss:$8 sm:$0xf0] %v4550
    %v4559 = vpack.c.bf16 %v4491, %v4491
    %v4560 = vpack.c.bf16 %v4492, %v4492
    %v4561 = vpack.c.bf16 %v4493, %v4493
    %v4562 = vpack.c.bf16 %v4494, %v4494
    %v4563 = vpack.c.bf16 %v4495, %v4495
    %v4564 = vpack.c.bf16 %v4496, %v4496
    %v4565 = vpack.c.bf16 %v4497, %v4497
    %v4566 = vpack.c.bf16 %v4498, %v4498
    %v4567 = vpack.c.bf16 %v4499, %v4499
    %v4568 = vpack.c.bf16 %v4500, %v4500
    %v4569 = vpack.c.bf16 %v4501, %v4501
    %v4570 = vpack.c.bf16 %v4502, %v4502
    %v4571 = vpack.c.bf16 %v4503, %v4503
    %v4572 = vpack.c.bf16 %v4504, %v4504
    %v4573 = vpack.c.bf16 %v4505, %v4505
    %v4574 = vpack.c.bf16 %v4506, %v4506
    %s4575 = scalar_lea.vmem [#allocation5], 1024
    %v4576 = vld [vmem:[%s4575] sm:$0xf]
    %v4577 = vld [vmem:[%s4575 + $0x4] sm:$0xf]
    %v4578 = vld [vmem:[%s4575 + $0x8] sm:$0xf]
    %v4579 = vld [vmem:[%s4575 + $0xc] sm:$0xf]
    %v4580 = vld [vmem:[%s4575 + $0x10] sm:$0xf]
    %v4581 = vld [vmem:[%s4575 + $0x14] sm:$0xf]
    %v4582 = vld [vmem:[%s4575 + $0x18] sm:$0xf]
    %v4583 = vld [vmem:[%s4575 + $0x1c] sm:$0xf]
    %v4584 = vld [vmem:[%s4575 + $0x20] sm:$0xf]
    %v4585 = vld [vmem:[%s4575 + $0x24] sm:$0xf]
    %v4586 = vld [vmem:[%s4575 + $0x28] sm:$0xf]
    %v4587 = vld [vmem:[%s4575 + $0x2c] sm:$0xf]
    %v4588 = vld [vmem:[%s4575 + $0x30] sm:$0xf]
    %v4589 = vld [vmem:[%s4575 + $0x34] sm:$0xf]
    %v4590 = vld [vmem:[%s4575 + $0x38] sm:$0xf]
    %v4591 = vld [vmem:[%s4575 + $0x3c] sm:$0xf]
    %v4592 = vld [vmem:[%s4575 + $0x40] sm:$0xf]
    %v4593 = vld [vmem:[%s4575 + $0x44] sm:$0xf]
    %v4594 = vld [vmem:[%s4575 + $0x48] sm:$0xf]
    %v4595 = vld [vmem:[%s4575 + $0x4c] sm:$0xf]
    %v4596 = vld [vmem:[%s4575 + $0x50] sm:$0xf]
    %v4597 = vld [vmem:[%s4575 + $0x54] sm:$0xf]
    %v4598 = vld [vmem:[%s4575 + $0x58] sm:$0xf]
    %v4599 = vld [vmem:[%s4575 + $0x5c] sm:$0xf]
    %v4600 = vld [vmem:[%s4575 + $0x60] sm:$0xf]
    %v4601 = vld [vmem:[%s4575 + $0x64] sm:$0xf]
    %v4602 = vld [vmem:[%s4575 + $0x68] sm:$0xf]
    %v4603 = vld [vmem:[%s4575 + $0x6c] sm:$0xf]
    %v4604 = vld [vmem:[%s4575 + $0x70] sm:$0xf]
    %v4605 = vld [vmem:[%s4575 + $0x74] sm:$0xf]
    %v4606 = vld [vmem:[%s4575 + $0x78] sm:$0xf]
    %v4607 = vld [vmem:[%s4575 + $0x7c] sm:$0xf]
    %v4608 = vld [vmem:[%s4575 + $0x80] sm:$0xf]
    %v4609 = vld [vmem:[%s4575 + $0x84] sm:$0xf]
    %v4610 = vld [vmem:[%s4575 + $0x88] sm:$0xf]
    %v4611 = vld [vmem:[%s4575 + $0x8c] sm:$0xf]
    %v4612 = vld [vmem:[%s4575 + $0x90] sm:$0xf]
    %v4613 = vld [vmem:[%s4575 + $0x94] sm:$0xf]
    %v4614 = vld [vmem:[%s4575 + $0x98] sm:$0xf]
    %v4615 = vld [vmem:[%s4575 + $0x9c] sm:$0xf]
    %v4616 = vld [vmem:[%s4575 + $0xa0] sm:$0xf]
    %v4617 = vld [vmem:[%s4575 + $0xa4] sm:$0xf]
    %v4618 = vld [vmem:[%s4575 + $0xa8] sm:$0xf]
    %v4619 = vld [vmem:[%s4575 + $0xac] sm:$0xf]
    %v4620 = vld [vmem:[%s4575 + $0xb0] sm:$0xf]
    %v4621 = vld [vmem:[%s4575 + $0xb4] sm:$0xf]
    %v4622 = vld [vmem:[%s4575 + $0xb8] sm:$0xf]
    %v4623 = vld [vmem:[%s4575 + $0xbc] sm:$0xf]
    %v4624 = vld [vmem:[%s4575 + $0xc0] sm:$0xf]
    %v4625 = vld [vmem:[%s4575 + $0xc4] sm:$0xf]
    %v4626 = vld [vmem:[%s4575 + $0xc8] sm:$0xf]
    %v4627 = vld [vmem:[%s4575 + $0xcc] sm:$0xf]
    %v4628 = vld [vmem:[%s4575 + $0xd0] sm:$0xf]
    %v4629 = vld [vmem:[%s4575 + $0xd4] sm:$0xf]
    %v4630 = vld [vmem:[%s4575 + $0xd8] sm:$0xf]
    %v4631 = vld [vmem:[%s4575 + $0xdc] sm:$0xf]
    %v4632 = vld [vmem:[%s4575 + $0xe0] sm:$0xf]
    %v4633 = vld [vmem:[%s4575 + $0xe4] sm:$0xf]
    %v4634 = vld [vmem:[%s4575 + $0xe8] sm:$0xf]
    %v4635 = vld [vmem:[%s4575 + $0xec] sm:$0xf]
    %v4636 = vld [vmem:[%s4575 + $0xf0] sm:$0xf]
    %v4637 = vld [vmem:[%s4575 + $0xf4] sm:$0xf]
    %v4638 = vld [vmem:[%s4575 + $0xf8] sm:$0xf]
    %v4639 = vld [vmem:[%s4575 + $0xfc] sm:$0xf]
    %v4640 = vld [vmem:[%s4575 + $0x100] sm:$0xf]
    %v4641 = vld [vmem:[%s4575 + $0x104] sm:$0xf]
    %v4642 = vld [vmem:[%s4575 + $0x108] sm:$0xf]
    %v4643 = vld [vmem:[%s4575 + $0x10c] sm:$0xf]
    %v4644 = vld [vmem:[%s4575 + $0x110] sm:$0xf]
    %v4645 = vld [vmem:[%s4575 + $0x114] sm:$0xf]
    %v4646 = vld [vmem:[%s4575 + $0x118] sm:$0xf]
    %v4647 = vld [vmem:[%s4575 + $0x11c] sm:$0xf]
    %v4648 = vld [vmem:[%s4575 + $0x120] sm:$0xf]
    %v4649 = vld [vmem:[%s4575 + $0x124] sm:$0xf]
    %v4650 = vld [vmem:[%s4575 + $0x128] sm:$0xf]
    %v4651 = vld [vmem:[%s4575 + $0x12c] sm:$0xf]
    %v4652 = vld [vmem:[%s4575 + $0x130] sm:$0xf]
    %v4653 = vld [vmem:[%s4575 + $0x134] sm:$0xf]
    %v4654 = vld [vmem:[%s4575 + $0x138] sm:$0xf]
    %v4655 = vld [vmem:[%s4575 + $0x13c] sm:$0xf]
    %v4656 = vld [vmem:[%s4575 + $0x140] sm:$0xf]
    %v4657 = vld [vmem:[%s4575 + $0x144] sm:$0xf]
    %v4658 = vld [vmem:[%s4575 + $0x148] sm:$0xf]
    %v4659 = vld [vmem:[%s4575 + $0x14c] sm:$0xf]
    %v4660 = vld [vmem:[%s4575 + $0x150] sm:$0xf]
    %v4661 = vld [vmem:[%s4575 + $0x154] sm:$0xf]
    %v4662 = vld [vmem:[%s4575 + $0x158] sm:$0xf]
    %v4663 = vld [vmem:[%s4575 + $0x15c] sm:$0xf]
    %v4664 = vld [vmem:[%s4575 + $0x160] sm:$0xf]
    %v4665 = vld [vmem:[%s4575 + $0x164] sm:$0xf]
    %v4666 = vld [vmem:[%s4575 + $0x168] sm:$0xf]
    %v4667 = vld [vmem:[%s4575 + $0x16c] sm:$0xf]
    %v4668 = vld [vmem:[%s4575 + $0x170] sm:$0xf]
    %v4669 = vld [vmem:[%s4575 + $0x174] sm:$0xf]
    %v4670 = vld [vmem:[%s4575 + $0x178] sm:$0xf]
    %v4671 = vld [vmem:[%s4575 + $0x17c] sm:$0xf]
    %v4672 = vld [vmem:[%s4575 + $0x180] sm:$0xf]
    %v4673 = vld [vmem:[%s4575 + $0x184] sm:$0xf]
    %v4674 = vld [vmem:[%s4575 + $0x188] sm:$0xf]
    %v4675 = vld [vmem:[%s4575 + $0x18c] sm:$0xf]
    %v4676 = vld [vmem:[%s4575 + $0x190] sm:$0xf]
    %v4677 = vld [vmem:[%s4575 + $0x194] sm:$0xf]
    %v4678 = vld [vmem:[%s4575 + $0x198] sm:$0xf]
    %v4679 = vld [vmem:[%s4575 + $0x19c] sm:$0xf]
    %v4680 = vld [vmem:[%s4575 + $0x1a0] sm:$0xf]
    %v4681 = vld [vmem:[%s4575 + $0x1a4] sm:$0xf]
    %v4682 = vld [vmem:[%s4575 + $0x1a8] sm:$0xf]
    %v4683 = vld [vmem:[%s4575 + $0x1ac] sm:$0xf]
    %v4684 = vld [vmem:[%s4575 + $0x1b0] sm:$0xf]
    %v4685 = vld [vmem:[%s4575 + $0x1b4] sm:$0xf]
    %v4686 = vld [vmem:[%s4575 + $0x1b8] sm:$0xf]
    %v4687 = vld [vmem:[%s4575 + $0x1bc] sm:$0xf]
    %v4688 = vld [vmem:[%s4575 + $0x1c0] sm:$0xf]
    %v4689 = vld [vmem:[%s4575 + $0x1c4] sm:$0xf]
    %v4690 = vld [vmem:[%s4575 + $0x1c8] sm:$0xf]
    %v4691 = vld [vmem:[%s4575 + $0x1cc] sm:$0xf]
    %v4692 = vld [vmem:[%s4575 + $0x1d0] sm:$0xf]
    %v4693 = vld [vmem:[%s4575 + $0x1d4] sm:$0xf]
    %v4694 = vld [vmem:[%s4575 + $0x1d8] sm:$0xf]
    %v4695 = vld [vmem:[%s4575 + $0x1dc] sm:$0xf]
    %v4696 = vld [vmem:[%s4575 + $0x1e0] sm:$0xf]
    %v4697 = vld [vmem:[%s4575 + $0x1e4] sm:$0xf]
    %v4698 = vld [vmem:[%s4575 + $0x1e8] sm:$0xf]
    %v4699 = vld [vmem:[%s4575 + $0x1ec] sm:$0xf]
    %v4700 = vld [vmem:[%s4575 + $0x1f0] sm:$0xf]
    %v4701 = vld [vmem:[%s4575 + $0x1f4] sm:$0xf]
    %v4702 = vld [vmem:[%s4575 + $0x1f8] sm:$0xf]
    %v4703 = vld [vmem:[%s4575 + $0x1fc] sm:$0xf]
    %v4720 = vunpack.c.l.b16 %v4559
    %v4721 = vunpack.c.l.b16 %v4560
    %v4722 = vunpack.c.l.b16 %v4561
    %v4723 = vunpack.c.l.b16 %v4562
    %v4724 = vunpack.c.l.b16 %v4563
    %v4725 = vunpack.c.l.b16 %v4564
    %v4726 = vunpack.c.l.b16 %v4565
    %v4727 = vunpack.c.l.b16 %v4566
    %v4728 = vunpack.c.l.b16 %v4567
    %v4729 = vunpack.c.l.b16 %v4568
    %v4730 = vunpack.c.l.b16 %v4569
    %v4731 = vunpack.c.l.b16 %v4570
    %v4732 = vunpack.c.l.b16 %v4571
    %v4733 = vunpack.c.l.b16 %v4572
    %v4734 = vunpack.c.l.b16 %v4573
    %v4735 = vunpack.c.l.b16 %v4574
    %v4736 = vsel %vm798, %v4728, %v4720
    %v4737 = vsel %vm798, %v4729, %v4721
    %v4738 = vsel %vm798, %v4730, %v4722
    %v4739 = vsel %vm798, %v4731, %v4723
    %v4740 = vsel %vm798, %v4732, %v4724
    %v4741 = vsel %vm798, %v4733, %v4725
    %v4742 = vsel %vm798, %v4734, %v4726
    %v4743 = vsel %vm798, %v4735, %v4727
    %v4744 = vpack.c.b16 %v4736, %v4736
    %v4745 = vpack.c.b16 %v4737, %v4737
    %v4746 = vpack.c.b16 %v4738, %v4738
    %v4747 = vpack.c.b16 %v4739, %v4739
    %v4748 = vpack.c.b16 %v4740, %v4740
    %v4749 = vpack.c.b16 %v4741, %v4741
    %v4750 = vpack.c.b16 %v4742, %v4742
    %v4751 = vpack.c.b16 %v4743, %v4743
    %v4888 = vunpack.c.l.b16 %v4576
    %v4889 = vunpack.c.l.b16 %v4577
    %v4890 = vunpack.c.l.b16 %v4578
    %v4891 = vunpack.c.l.b16 %v4579
    %v4892 = vunpack.c.l.b16 %v4580
    %v4893 = vunpack.c.l.b16 %v4581
    %v4894 = vunpack.c.l.b16 %v4582
    %v4895 = vunpack.c.l.b16 %v4583
    %v4896 = vunpack.c.l.b16 %v4584
    %v4897 = vunpack.c.l.b16 %v4585
    %v4898 = vunpack.c.l.b16 %v4586
    %v4899 = vunpack.c.l.b16 %v4587
    %v4900 = vunpack.c.l.b16 %v4588
    %v4901 = vunpack.c.l.b16 %v4589
    %v4902 = vunpack.c.l.b16 %v4590
    %v4903 = vunpack.c.l.b16 %v4591
    %v4904 = vunpack.c.l.b16 %v4592
    %v4905 = vunpack.c.l.b16 %v4593
    %v4906 = vunpack.c.l.b16 %v4594
    %v4907 = vunpack.c.l.b16 %v4595
    %v4908 = vunpack.c.l.b16 %v4596
    %v4909 = vunpack.c.l.b16 %v4597
    %v4910 = vunpack.c.l.b16 %v4598
    %v4911 = vunpack.c.l.b16 %v4599
    %v4912 = vunpack.c.l.b16 %v4600
    %v4913 = vunpack.c.l.b16 %v4601
    %v4914 = vunpack.c.l.b16 %v4602
    %v4915 = vunpack.c.l.b16 %v4603
    %v4916 = vunpack.c.l.b16 %v4604
    %v4917 = vunpack.c.l.b16 %v4605
    %v4918 = vunpack.c.l.b16 %v4606
    %v4919 = vunpack.c.l.b16 %v4607
    %v4920 = vunpack.c.l.b16 %v4608
    %v4921 = vunpack.c.l.b16 %v4609
    %v4922 = vunpack.c.l.b16 %v4610
    %v4923 = vunpack.c.l.b16 %v4611
    %v4924 = vunpack.c.l.b16 %v4612
    %v4925 = vunpack.c.l.b16 %v4613
    %v4926 = vunpack.c.l.b16 %v4614
    %v4927 = vunpack.c.l.b16 %v4615
    %v4928 = vunpack.c.l.b16 %v4616
    %v4929 = vunpack.c.l.b16 %v4617
    %v4930 = vunpack.c.l.b16 %v4618
    %v4931 = vunpack.c.l.b16 %v4619
    %v4932 = vunpack.c.l.b16 %v4620
    %v4933 = vunpack.c.l.b16 %v4621
    %v4934 = vunpack.c.l.b16 %v4622
    %v4935 = vunpack.c.l.b16 %v4623
    %v4936 = vunpack.c.l.b16 %v4624
    %v4937 = vunpack.c.l.b16 %v4625
    %v4938 = vunpack.c.l.b16 %v4626
    %v4939 = vunpack.c.l.b16 %v4627
    %v4940 = vunpack.c.l.b16 %v4628
    %v4941 = vunpack.c.l.b16 %v4629
    %v4942 = vunpack.c.l.b16 %v4630
    %v4943 = vunpack.c.l.b16 %v4631
    %v4944 = vunpack.c.l.b16 %v4632
    %v4945 = vunpack.c.l.b16 %v4633
    %v4946 = vunpack.c.l.b16 %v4634
    %v4947 = vunpack.c.l.b16 %v4635
    %v4948 = vunpack.c.l.b16 %v4636
    %v4949 = vunpack.c.l.b16 %v4637
    %v4950 = vunpack.c.l.b16 %v4638
    %v4951 = vunpack.c.l.b16 %v4639
    %v4952 = vunpack.c.l.b16 %v4640
    %v4953 = vunpack.c.l.b16 %v4641
    %v4954 = vunpack.c.l.b16 %v4642
    %v4955 = vunpack.c.l.b16 %v4643
    %v4956 = vunpack.c.l.b16 %v4644
    %v4957 = vunpack.c.l.b16 %v4645
    %v4958 = vunpack.c.l.b16 %v4646
    %v4959 = vunpack.c.l.b16 %v4647
    %v4960 = vunpack.c.l.b16 %v4648
    %v4961 = vunpack.c.l.b16 %v4649
    %v4962 = vunpack.c.l.b16 %v4650
    %v4963 = vunpack.c.l.b16 %v4651
    %v4964 = vunpack.c.l.b16 %v4652
    %v4965 = vunpack.c.l.b16 %v4653
    %v4966 = vunpack.c.l.b16 %v4654
    %v4967 = vunpack.c.l.b16 %v4655
    %v4968 = vunpack.c.l.b16 %v4656
    %v4969 = vunpack.c.l.b16 %v4657
    %v4970 = vunpack.c.l.b16 %v4658
    %v4971 = vunpack.c.l.b16 %v4659
    %v4972 = vunpack.c.l.b16 %v4660
    %v4973 = vunpack.c.l.b16 %v4661
    %v4974 = vunpack.c.l.b16 %v4662
    %v4975 = vunpack.c.l.b16 %v4663
    %v4976 = vunpack.c.l.b16 %v4664
    %v4977 = vunpack.c.l.b16 %v4665
    %v4978 = vunpack.c.l.b16 %v4666
    %v4979 = vunpack.c.l.b16 %v4667
    %v4980 = vunpack.c.l.b16 %v4668
    %v4981 = vunpack.c.l.b16 %v4669
    %v4982 = vunpack.c.l.b16 %v4670
    %v4983 = vunpack.c.l.b16 %v4671
    %v4984 = vunpack.c.l.b16 %v4672
    %v4985 = vunpack.c.l.b16 %v4673
    %v4986 = vunpack.c.l.b16 %v4674
    %v4987 = vunpack.c.l.b16 %v4675
    %v4988 = vunpack.c.l.b16 %v4676
    %v4989 = vunpack.c.l.b16 %v4677
    %v4990 = vunpack.c.l.b16 %v4678
    %v4991 = vunpack.c.l.b16 %v4679
    %v4992 = vunpack.c.l.b16 %v4680
    %v4993 = vunpack.c.l.b16 %v4681
    %v4994 = vunpack.c.l.b16 %v4682
    %v4995 = vunpack.c.l.b16 %v4683
    %v4996 = vunpack.c.l.b16 %v4684
    %v4997 = vunpack.c.l.b16 %v4685
    %v4998 = vunpack.c.l.b16 %v4686
    %v4999 = vunpack.c.l.b16 %v4687
    %v5000 = vunpack.c.l.b16 %v4688
    %v5001 = vunpack.c.l.b16 %v4689
    %v5002 = vunpack.c.l.b16 %v4690
    %v5003 = vunpack.c.l.b16 %v4691
    %v5004 = vunpack.c.l.b16 %v4692
    %v5005 = vunpack.c.l.b16 %v4693
    %v5006 = vunpack.c.l.b16 %v4694
    %v5007 = vunpack.c.l.b16 %v4695
    %v5008 = vunpack.c.l.b16 %v4696
    %v5009 = vunpack.c.l.b16 %v4697
    %v5010 = vunpack.c.l.b16 %v4698
    %v5011 = vunpack.c.l.b16 %v4699
    %v5012 = vunpack.c.l.b16 %v4700
    %v5013 = vunpack.c.l.b16 %v4701
    %v5014 = vunpack.c.l.b16 %v4702
    %v5015 = vunpack.c.l.b16 %v4703
    %v5016 = vpack.c.b16 %v4889, %v4888
    %v5017 = vpack.c.b16 %v4891, %v4890
    %v5018 = vpack.c.b16 %v4893, %v4892
    %v5019 = vpack.c.b16 %v4895, %v4894
    %v5020 = vpack.c.b16 %v4897, %v4896
    %v5021 = vpack.c.b16 %v4899, %v4898
    %v5022 = vpack.c.b16 %v4901, %v4900
    %v5023 = vpack.c.b16 %v4903, %v4902
    %v5024 = vpack.c.b16 %v4905, %v4904
    %v5025 = vpack.c.b16 %v4907, %v4906
    %v5026 = vpack.c.b16 %v4909, %v4908
    %v5027 = vpack.c.b16 %v4911, %v4910
    %v5028 = vpack.c.b16 %v4913, %v4912
    %v5029 = vpack.c.b16 %v4915, %v4914
    %v5030 = vpack.c.b16 %v4917, %v4916
    %v5031 = vpack.c.b16 %v4919, %v4918
    %v5032 = vpack.c.b16 %v4921, %v4920
    %v5033 = vpack.c.b16 %v4923, %v4922
    %v5034 = vpack.c.b16 %v4925, %v4924
    %v5035 = vpack.c.b16 %v4927, %v4926
    %v5036 = vpack.c.b16 %v4929, %v4928
    %v5037 = vpack.c.b16 %v4931, %v4930
    %v5038 = vpack.c.b16 %v4933, %v4932
    %v5039 = vpack.c.b16 %v4935, %v4934
    %v5040 = vpack.c.b16 %v4937, %v4936
    %v5041 = vpack.c.b16 %v4939, %v4938
    %v5042 = vpack.c.b16 %v4941, %v4940
    %v5043 = vpack.c.b16 %v4943, %v4942
    %v5044 = vpack.c.b16 %v4945, %v4944
    %v5045 = vpack.c.b16 %v4947, %v4946
    %v5046 = vpack.c.b16 %v4949, %v4948
    %v5047 = vpack.c.b16 %v4951, %v4950
    %v5048 = vpack.c.b16 %v4953, %v4952
    %v5049 = vpack.c.b16 %v4955, %v4954
    %v5050 = vpack.c.b16 %v4957, %v4956
    %v5051 = vpack.c.b16 %v4959, %v4958
    %v5052 = vpack.c.b16 %v4961, %v4960
    %v5053 = vpack.c.b16 %v4963, %v4962
    %v5054 = vpack.c.b16 %v4965, %v4964
    %v5055 = vpack.c.b16 %v4967, %v4966
    %v5056 = vpack.c.b16 %v4969, %v4968
    %v5057 = vpack.c.b16 %v4971, %v4970
    %v5058 = vpack.c.b16 %v4973, %v4972
    %v5059 = vpack.c.b16 %v4975, %v4974
    %v5060 = vpack.c.b16 %v4977, %v4976
    %v5061 = vpack.c.b16 %v4979, %v4978
    %v5062 = vpack.c.b16 %v4981, %v4980
    %v5063 = vpack.c.b16 %v4983, %v4982
    %v5064 = vpack.c.b16 %v4985, %v4984
    %v5065 = vpack.c.b16 %v4987, %v4986
    %v5066 = vpack.c.b16 %v4989, %v4988
    %v5067 = vpack.c.b16 %v4991, %v4990
    %v5068 = vpack.c.b16 %v4993, %v4992
    %v5069 = vpack.c.b16 %v4995, %v4994
    %v5070 = vpack.c.b16 %v4997, %v4996
    %v5071 = vpack.c.b16 %v4999, %v4998
    %v5072 = vpack.c.b16 %v5001, %v5000
    %v5073 = vpack.c.b16 %v5003, %v5002
    %v5074 = vpack.c.b16 %v5005, %v5004
    %v5075 = vpack.c.b16 %v5007, %v5006
    %v5076 = vpack.c.b16 %v5009, %v5008
    %v5077 = vpack.c.b16 %v5011, %v5010
    %v5078 = vpack.c.b16 %v5013, %v5012
    %v5079 = vpack.c.b16 %v5015, %v5014
    %5144 = vmatpush.bf16.msra.mxu0 %v5023
    %5145 = vmatpush.bf16.msra.mxu0 %v5022
    %5146 = vmatpush.bf16.msra.mxu0 %v5021
    %5147 = vmatpush.bf16.msra.mxu0 %v5020
    %5148 = vmatpush.bf16.msra.mxu0 %v5019
    %5149 = vmatpush.bf16.msra.mxu0 %v5018
    %5150 = vmatpush.bf16.msra.mxu0 %v5017
    %5151 = vmatpush.bf16.msra.mxu0 %v5016
    %5152 = vmatmul.bf16.gmra.mxu0 %v4744
    %v5153 = vpop.f32.mrf.mxu0
    %v5154 = vadd.f32 0.0, %v5153
    %v5155 = vpop.f32.mrf.mxu0
    %5156 = vdwg.mxu0
    %5157 = vmatpush.bf16.msra.mxu0 %v5031
    %5158 = vmatpush.bf16.msra.mxu0 %v5030
    %5159 = vmatpush.bf16.msra.mxu0 %v5029
    %5160 = vmatpush.bf16.msra.mxu0 %v5028
    %5161 = vmatpush.bf16.msra.mxu0 %v5027
    %5162 = vmatpush.bf16.msra.mxu0 %v5026
    %5163 = vmatpush.bf16.msra.mxu0 %v5025
    %5164 = vmatpush.bf16.msra.mxu0 %v5024
    %5165 = vmatmul.bf16.gmra.mxu0 %v4745
    %v5166 = vpop.f32.mrf.mxu0
    %v5167 = vadd.f32 %v5154, %v5166
    %v5168 = vpop.f32.mrf.mxu0
    %5169 = vdwg.mxu0
    %5170 = vmatpush.bf16.msra.mxu0 %v5039
    %5171 = vmatpush.bf16.msra.mxu0 %v5038
    %5172 = vmatpush.bf16.msra.mxu0 %v5037
    %5173 = vmatpush.bf16.msra.mxu0 %v5036
    %5174 = vmatpush.bf16.msra.mxu0 %v5035
    %5175 = vmatpush.bf16.msra.mxu0 %v5034
    %5176 = vmatpush.bf16.msra.mxu0 %v5033
    %5177 = vmatpush.bf16.msra.mxu0 %v5032
    %5178 = vmatmul.bf16.gmra.mxu0 %v4746
    %v5179 = vpop.f32.mrf.mxu0
    %v5180 = vadd.f32 %v5167, %v5179
    %v5181 = vpop.f32.mrf.mxu0
    %5182 = vdwg.mxu0
    %5183 = vmatpush.bf16.msra.mxu0 %v5047
    %5184 = vmatpush.bf16.msra.mxu0 %v5046
    %5185 = vmatpush.bf16.msra.mxu0 %v5045
    %5186 = vmatpush.bf16.msra.mxu0 %v5044
    %5187 = vmatpush.bf16.msra.mxu0 %v5043
    %5188 = vmatpush.bf16.msra.mxu0 %v5042
    %5189 = vmatpush.bf16.msra.mxu0 %v5041
    %5190 = vmatpush.bf16.msra.mxu0 %v5040
    %5191 = vmatmul.bf16.gmra.mxu0 %v4747
    %v5192 = vpop.f32.mrf.mxu0
    %v5193 = vadd.f32 %v5180, %v5192
    %v5194 = vpop.f32.mrf.mxu0
    %5195 = vdwg.mxu0
    %5196 = vmatpush.bf16.msra.mxu0 %v5055
    %5197 = vmatpush.bf16.msra.mxu0 %v5054
    %5198 = vmatpush.bf16.msra.mxu0 %v5053
    %5199 = vmatpush.bf16.msra.mxu0 %v5052
    %5200 = vmatpush.bf16.msra.mxu0 %v5051
    %5201 = vmatpush.bf16.msra.mxu0 %v5050
    %5202 = vmatpush.bf16.msra.mxu0 %v5049
    %5203 = vmatpush.bf16.msra.mxu0 %v5048
    %5204 = vmatmul.bf16.gmra.mxu0 %v4748
    %v5205 = vpop.f32.mrf.mxu0
    %v5206 = vadd.f32 %v5193, %v5205
    %v5207 = vpop.f32.mrf.mxu0
    %5208 = vdwg.mxu0
    %5209 = vmatpush.bf16.msra.mxu0 %v5063
    %5210 = vmatpush.bf16.msra.mxu0 %v5062
    %5211 = vmatpush.bf16.msra.mxu0 %v5061
    %5212 = vmatpush.bf16.msra.mxu0 %v5060
    %5213 = vmatpush.bf16.msra.mxu0 %v5059
    %5214 = vmatpush.bf16.msra.mxu0 %v5058
    %5215 = vmatpush.bf16.msra.mxu0 %v5057
    %5216 = vmatpush.bf16.msra.mxu0 %v5056
    %5217 = vmatmul.bf16.gmra.mxu0 %v4749
    %v5218 = vpop.f32.mrf.mxu0
    %v5219 = vadd.f32 %v5206, %v5218
    %v5220 = vpop.f32.mrf.mxu0
    %5221 = vdwg.mxu0
    %5222 = vmatpush.bf16.msra.mxu0 %v5071
    %5223 = vmatpush.bf16.msra.mxu0 %v5070
    %5224 = vmatpush.bf16.msra.mxu0 %v5069
    %5225 = vmatpush.bf16.msra.mxu0 %v5068
    %5226 = vmatpush.bf16.msra.mxu0 %v5067
    %5227 = vmatpush.bf16.msra.mxu0 %v5066
    %5228 = vmatpush.bf16.msra.mxu0 %v5065
    %5229 = vmatpush.bf16.msra.mxu0 %v5064
    %5230 = vmatmul.bf16.gmra.mxu0 %v4750
    %v5231 = vpop.f32.mrf.mxu0
    %v5232 = vadd.f32 %v5219, %v5231
    %v5233 = vpop.f32.mrf.mxu0
    %5234 = vdwg.mxu0
    %5235 = vmatpush.bf16.msra.mxu0 %v5079
    %5236 = vmatpush.bf16.msra.mxu0 %v5078
    %5237 = vmatpush.bf16.msra.mxu0 %v5077
    %5238 = vmatpush.bf16.msra.mxu0 %v5076
    %5239 = vmatpush.bf16.msra.mxu0 %v5075
    %5240 = vmatpush.bf16.msra.mxu0 %v5074
    %5241 = vmatpush.bf16.msra.mxu0 %v5073
    %5242 = vmatpush.bf16.msra.mxu0 %v5072
    %5243 = vmatmul.bf16.gmra.mxu0 %v4751
    %v5244 = vpop.f32.mrf.mxu0
    %v5245 = vadd.f32 %v5232, %v5244
    %v5246 = vpop.f32.mrf.mxu0
    %5247 = vdwg.mxu0
    %v5248 = vadd.f32 %v3208, %v5245
    %s5249 = scalar_lea.vmem [#allocation8], 2048
    %v5250 = vld [vmem:[%s5249] sm:$0xff]
    %v5251 = vld [vmem:[%s5249 + $0x8] sm:$0xff]
    %v5252 = vld [vmem:[%s5249 + $0x10] sm:$0xff]
    %v5253 = vld [vmem:[%s5249 + $0x18] sm:$0xff]
    %v5254 = vld [vmem:[%s5249 + $0x20] sm:$0xff]
    %v5255 = vld [vmem:[%s5249 + $0x28] sm:$0xff]
    %v5256 = vld [vmem:[%s5249 + $0x30] sm:$0xff]
    %v5257 = vld [vmem:[%s5249 + $0x38] sm:$0xff]
    %v5258 = vld [vmem:[%s5249 + $0x40] sm:$0xff]
    %v5259 = vld [vmem:[%s5249 + $0x48] sm:$0xff]
    %v5260 = vld [vmem:[%s5249 + $0x50] sm:$0xff]
    %v5261 = vld [vmem:[%s5249 + $0x58] sm:$0xff]
    %v5262 = vld [vmem:[%s5249 + $0x60] sm:$0xff]
    %v5263 = vld [vmem:[%s5249 + $0x68] sm:$0xff]
    %v5264 = vld [vmem:[%s5249 + $0x70] sm:$0xff]
    %v5265 = vld [vmem:[%s5249 + $0x78] sm:$0xff]
    %v5266 = vld [vmem:[%s5249 + $0x80] sm:$0xff]
    %v5267 = vld [vmem:[%s5249 + $0x88] sm:$0xff]
    %v5268 = vld [vmem:[%s5249 + $0x90] sm:$0xff]
    %v5269 = vld [vmem:[%s5249 + $0x98] sm:$0xff]
    %v5270 = vld [vmem:[%s5249 + $0xa0] sm:$0xff]
    %v5271 = vld [vmem:[%s5249 + $0xa8] sm:$0xff]
    %v5272 = vld [vmem:[%s5249 + $0xb0] sm:$0xff]
    %v5273 = vld [vmem:[%s5249 + $0xb8] sm:$0xff]
    %v5274 = vld [vmem:[%s5249 + $0xc0] sm:$0xff]
    %v5275 = vld [vmem:[%s5249 + $0xc8] sm:$0xff]
    %v5276 = vld [vmem:[%s5249 + $0xd0] sm:$0xff]
    %v5277 = vld [vmem:[%s5249 + $0xd8] sm:$0xff]
    %v5278 = vld [vmem:[%s5249 + $0xe0] sm:$0xff]
    %v5279 = vld [vmem:[%s5249 + $0xe8] sm:$0xff]
    %v5280 = vld [vmem:[%s5249 + $0xf0] sm:$0xff]
    %v5281 = vld [vmem:[%s5249 + $0xf8] sm:$0xff]
    %v5282 = vld [vmem:[%s5249 + $0x100] sm:$0xff]
    %v5283 = vld [vmem:[%s5249 + $0x108] sm:$0xff]
    %v5284 = vld [vmem:[%s5249 + $0x110] sm:$0xff]
    %v5285 = vld [vmem:[%s5249 + $0x118] sm:$0xff]
    %v5286 = vld [vmem:[%s5249 + $0x120] sm:$0xff]
    %v5287 = vld [vmem:[%s5249 + $0x128] sm:$0xff]
    %v5288 = vld [vmem:[%s5249 + $0x130] sm:$0xff]
    %v5289 = vld [vmem:[%s5249 + $0x138] sm:$0xff]
    %v5290 = vld [vmem:[%s5249 + $0x140] sm:$0xff]
    %v5291 = vld [vmem:[%s5249 + $0x148] sm:$0xff]
    %v5292 = vld [vmem:[%s5249 + $0x150] sm:$0xff]
    %v5293 = vld [vmem:[%s5249 + $0x158] sm:$0xff]
    %v5294 = vld [vmem:[%s5249 + $0x160] sm:$0xff]
    %v5295 = vld [vmem:[%s5249 + $0x168] sm:$0xff]
    %v5296 = vld [vmem:[%s5249 + $0x170] sm:$0xff]
    %v5297 = vld [vmem:[%s5249 + $0x178] sm:$0xff]
    %v5298 = vld [vmem:[%s5249 + $0x180] sm:$0xff]
    %v5299 = vld [vmem:[%s5249 + $0x188] sm:$0xff]
    %v5300 = vld [vmem:[%s5249 + $0x190] sm:$0xff]
    %v5301 = vld [vmem:[%s5249 + $0x198] sm:$0xff]
    %v5302 = vld [vmem:[%s5249 + $0x1a0] sm:$0xff]
    %v5303 = vld [vmem:[%s5249 + $0x1a8] sm:$0xff]
    %v5304 = vld [vmem:[%s5249 + $0x1b0] sm:$0xff]
    %v5305 = vld [vmem:[%s5249 + $0x1b8] sm:$0xff]
    %v5306 = vld [vmem:[%s5249 + $0x1c0] sm:$0xff]
    %v5307 = vld [vmem:[%s5249 + $0x1c8] sm:$0xff]
    %v5308 = vld [vmem:[%s5249 + $0x1d0] sm:$0xff]
    %v5309 = vld [vmem:[%s5249 + $0x1d8] sm:$0xff]
    %v5310 = vld [vmem:[%s5249 + $0x1e0] sm:$0xff]
    %v5311 = vld [vmem:[%s5249 + $0x1e8] sm:$0xff]
    %v5312 = vld [vmem:[%s5249 + $0x1f0] sm:$0xff]
    %v5313 = vld [vmem:[%s5249 + $0x1f8] sm:$0xff]
    %v5314 = vld [vmem:[%s5249 + $0x200] sm:$0xff]
    %v5315 = vld [vmem:[%s5249 + $0x208] sm:$0xff]
    %v5316 = vld [vmem:[%s5249 + $0x210] sm:$0xff]
    %v5317 = vld [vmem:[%s5249 + $0x218] sm:$0xff]
    %v5318 = vld [vmem:[%s5249 + $0x220] sm:$0xff]
    %v5319 = vld [vmem:[%s5249 + $0x228] sm:$0xff]
    %v5320 = vld [vmem:[%s5249 + $0x230] sm:$0xff]
    %v5321 = vld [vmem:[%s5249 + $0x238] sm:$0xff]
    %v5322 = vld [vmem:[%s5249 + $0x240] sm:$0xff]
    %v5323 = vld [vmem:[%s5249 + $0x248] sm:$0xff]
    %v5324 = vld [vmem:[%s5249 + $0x250] sm:$0xff]
    %v5325 = vld [vmem:[%s5249 + $0x258] sm:$0xff]
    %v5326 = vld [vmem:[%s5249 + $0x260] sm:$0xff]
    %v5327 = vld [vmem:[%s5249 + $0x268] sm:$0xff]
    %v5328 = vld [vmem:[%s5249 + $0x270] sm:$0xff]
    %v5329 = vld [vmem:[%s5249 + $0x278] sm:$0xff]
    %v5330 = vld [vmem:[%s5249 + $0x280] sm:$0xff]
    %v5331 = vld [vmem:[%s5249 + $0x288] sm:$0xff]
    %v5332 = vld [vmem:[%s5249 + $0x290] sm:$0xff]
    %v5333 = vld [vmem:[%s5249 + $0x298] sm:$0xff]
    %v5334 = vld [vmem:[%s5249 + $0x2a0] sm:$0xff]
    %v5335 = vld [vmem:[%s5249 + $0x2a8] sm:$0xff]
    %v5336 = vld [vmem:[%s5249 + $0x2b0] sm:$0xff]
    %v5337 = vld [vmem:[%s5249 + $0x2b8] sm:$0xff]
    %v5338 = vld [vmem:[%s5249 + $0x2c0] sm:$0xff]
    %v5339 = vld [vmem:[%s5249 + $0x2c8] sm:$0xff]
    %v5340 = vld [vmem:[%s5249 + $0x2d0] sm:$0xff]
    %v5341 = vld [vmem:[%s5249 + $0x2d8] sm:$0xff]
    %v5342 = vld [vmem:[%s5249 + $0x2e0] sm:$0xff]
    %v5343 = vld [vmem:[%s5249 + $0x2e8] sm:$0xff]
    %v5344 = vld [vmem:[%s5249 + $0x2f0] sm:$0xff]
    %v5345 = vld [vmem:[%s5249 + $0x2f8] sm:$0xff]
    %v5346 = vld [vmem:[%s5249 + $0x300] sm:$0xff]
    %v5347 = vld [vmem:[%s5249 + $0x308] sm:$0xff]
    %v5348 = vld [vmem:[%s5249 + $0x310] sm:$0xff]
    %v5349 = vld [vmem:[%s5249 + $0x318] sm:$0xff]
    %v5350 = vld [vmem:[%s5249 + $0x320] sm:$0xff]
    %v5351 = vld [vmem:[%s5249 + $0x328] sm:$0xff]
    %v5352 = vld [vmem:[%s5249 + $0x330] sm:$0xff]
    %v5353 = vld [vmem:[%s5249 + $0x338] sm:$0xff]
    %v5354 = vld [vmem:[%s5249 + $0x340] sm:$0xff]
    %v5355 = vld [vmem:[%s5249 + $0x348] sm:$0xff]
    %v5356 = vld [vmem:[%s5249 + $0x350] sm:$0xff]
    %v5357 = vld [vmem:[%s5249 + $0x358] sm:$0xff]
    %v5358 = vld [vmem:[%s5249 + $0x360] sm:$0xff]
    %v5359 = vld [vmem:[%s5249 + $0x368] sm:$0xff]
    %v5360 = vld [vmem:[%s5249 + $0x370] sm:$0xff]
    %v5361 = vld [vmem:[%s5249 + $0x378] sm:$0xff]
    %v5362 = vld [vmem:[%s5249 + $0x380] sm:$0xff]
    %v5363 = vld [vmem:[%s5249 + $0x388] sm:$0xff]
    %v5364 = vld [vmem:[%s5249 + $0x390] sm:$0xff]
    %v5365 = vld [vmem:[%s5249 + $0x398] sm:$0xff]
    %v5366 = vld [vmem:[%s5249 + $0x3a0] sm:$0xff]
    %v5367 = vld [vmem:[%s5249 + $0x3a8] sm:$0xff]
    %v5368 = vld [vmem:[%s5249 + $0x3b0] sm:$0xff]
    %v5369 = vld [vmem:[%s5249 + $0x3b8] sm:$0xff]
    %v5370 = vld [vmem:[%s5249 + $0x3c0] sm:$0xff]
    %v5371 = vld [vmem:[%s5249 + $0x3c8] sm:$0xff]
    %v5372 = vld [vmem:[%s5249 + $0x3d0] sm:$0xff]
    %v5373 = vld [vmem:[%s5249 + $0x3d8] sm:$0xff]
    %v5374 = vld [vmem:[%s5249 + $0x3e0] sm:$0xff]
    %v5375 = vld [vmem:[%s5249 + $0x3e8] sm:$0xff]
    %v5376 = vld [vmem:[%s5249 + $0x3f0] sm:$0xff]
    %v5377 = vld [vmem:[%s5249 + $0x3f8] sm:$0xff]
    %s5378 = scalar_lea.vmem [#allocation10], 4
    %v5379 = vld [vmem:[%s5378] sm:$0x3]
    %v5381 = vperm.slane %v5379, 0
    %v5382 = vperm.slane %v5379, 1
    %v5513 = vunpack.c.l.b16 %v5250
    %v5514 = vunpack.c.h.b16 %v5250
    %v5515 = vunpack.c.l.b16 %v5251
    %v5516 = vunpack.c.h.b16 %v5251
    %v5517 = vunpack.c.l.b16 %v5252
    %v5518 = vunpack.c.h.b16 %v5252
    %v5519 = vunpack.c.l.b16 %v5253
    %v5520 = vunpack.c.h.b16 %v5253
    %v5521 = vunpack.c.l.b16 %v5254
    %v5522 = vunpack.c.h.b16 %v5254
    %v5523 = vunpack.c.l.b16 %v5255
    %v5524 = vunpack.c.h.b16 %v5255
    %v5525 = vunpack.c.l.b16 %v5256
    %v5526 = vunpack.c.h.b16 %v5256
    %v5527 = vunpack.c.l.b16 %v5257
    %v5528 = vunpack.c.h.b16 %v5257
    %v5529 = vunpack.c.l.b16 %v5258
    %v5530 = vunpack.c.h.b16 %v5258
    %v5531 = vunpack.c.l.b16 %v5259
    %v5532 = vunpack.c.h.b16 %v5259
    %v5533 = vunpack.c.l.b16 %v5260
    %v5534 = vunpack.c.h.b16 %v5260
    %v5535 = vunpack.c.l.b16 %v5261
    %v5536 = vunpack.c.h.b16 %v5261
    %v5537 = vunpack.c.l.b16 %v5262
    %v5538 = vunpack.c.h.b16 %v5262
    %v5539 = vunpack.c.l.b16 %v5263
    %v5540 = vunpack.c.h.b16 %v5263
    %v5541 = vunpack.c.l.b16 %v5264
    %v5542 = vunpack.c.h.b16 %v5264
    %v5543 = vunpack.c.l.b16 %v5265
    %v5544 = vunpack.c.h.b16 %v5265
    %v5545 = vunpack.c.l.b16 %v5266
    %v5546 = vunpack.c.h.b16 %v5266
    %v5547 = vunpack.c.l.b16 %v5267
    %v5548 = vunpack.c.h.b16 %v5267
    %v5549 = vunpack.c.l.b16 %v5268
    %v5550 = vunpack.c.h.b16 %v5268
    %v5551 = vunpack.c.l.b16 %v5269
    %v5552 = vunpack.c.h.b16 %v5269
    %v5553 = vunpack.c.l.b16 %v5270
    %v5554 = vunpack.c.h.b16 %v5270
    %v5555 = vunpack.c.l.b16 %v5271
    %v5556 = vunpack.c.h.b16 %v5271
    %v5557 = vunpack.c.l.b16 %v5272
    %v5558 = vunpack.c.h.b16 %v5272
    %v5559 = vunpack.c.l.b16 %v5273
    %v5560 = vunpack.c.h.b16 %v5273
    %v5561 = vunpack.c.l.b16 %v5274
    %v5562 = vunpack.c.h.b16 %v5274
    %v5563 = vunpack.c.l.b16 %v5275
    %v5564 = vunpack.c.h.b16 %v5275
    %v5565 = vunpack.c.l.b16 %v5276
    %v5566 = vunpack.c.h.b16 %v5276
    %v5567 = vunpack.c.l.b16 %v5277
    %v5568 = vunpack.c.h.b16 %v5277
    %v5569 = vunpack.c.l.b16 %v5278
    %v5570 = vunpack.c.h.b16 %v5278
    %v5571 = vunpack.c.l.b16 %v5279
    %v5572 = vunpack.c.h.b16 %v5279
    %v5573 = vunpack.c.l.b16 %v5280
    %v5574 = vunpack.c.h.b16 %v5280
    %v5575 = vunpack.c.l.b16 %v5281
    %v5576 = vunpack.c.h.b16 %v5281
    %v5577 = vunpack.c.l.b16 %v5282
    %v5578 = vunpack.c.h.b16 %v5282
    %v5579 = vunpack.c.l.b16 %v5283
    %v5580 = vunpack.c.h.b16 %v5283
    %v5581 = vunpack.c.l.b16 %v5284
    %v5582 = vunpack.c.h.b16 %v5284
    %v5583 = vunpack.c.l.b16 %v5285
    %v5584 = vunpack.c.h.b16 %v5285
    %v5585 = vunpack.c.l.b16 %v5286
    %v5586 = vunpack.c.h.b16 %v5286
    %v5587 = vunpack.c.l.b16 %v5287
    %v5588 = vunpack.c.h.b16 %v5287
    %v5589 = vunpack.c.l.b16 %v5288
    %v5590 = vunpack.c.h.b16 %v5288
    %v5591 = vunpack.c.l.b16 %v5289
    %v5592 = vunpack.c.h.b16 %v5289
    %v5593 = vunpack.c.l.b16 %v5290
    %v5594 = vunpack.c.h.b16 %v5290
    %v5595 = vunpack.c.l.b16 %v5291
    %v5596 = vunpack.c.h.b16 %v5291
    %v5597 = vunpack.c.l.b16 %v5292
    %v5598 = vunpack.c.h.b16 %v5292
    %v5599 = vunpack.c.l.b16 %v5293
    %v5600 = vunpack.c.h.b16 %v5293
    %v5601 = vunpack.c.l.b16 %v5294
    %v5602 = vunpack.c.h.b16 %v5294
    %v5603 = vunpack.c.l.b16 %v5295
    %v5604 = vunpack.c.h.b16 %v5295
    %v5605 = vunpack.c.l.b16 %v5296
    %v5606 = vunpack.c.h.b16 %v5296
    %v5607 = vunpack.c.l.b16 %v5297
    %v5608 = vunpack.c.h.b16 %v5297
    %v5609 = vunpack.c.l.b16 %v5298
    %v5610 = vunpack.c.h.b16 %v5298
    %v5611 = vunpack.c.l.b16 %v5299
    %v5612 = vunpack.c.h.b16 %v5299
    %v5613 = vunpack.c.l.b16 %v5300
    %v5614 = vunpack.c.h.b16 %v5300
    %v5615 = vunpack.c.l.b16 %v5301
    %v5616 = vunpack.c.h.b16 %v5301
    %v5617 = vunpack.c.l.b16 %v5302
    %v5618 = vunpack.c.h.b16 %v5302
    %v5619 = vunpack.c.l.b16 %v5303
    %v5620 = vunpack.c.h.b16 %v5303
    %v5621 = vunpack.c.l.b16 %v5304
    %v5622 = vunpack.c.h.b16 %v5304
    %v5623 = vunpack.c.l.b16 %v5305
    %v5624 = vunpack.c.h.b16 %v5305
    %v5625 = vunpack.c.l.b16 %v5306
    %v5626 = vunpack.c.h.b16 %v5306
    %v5627 = vunpack.c.l.b16 %v5307
    %v5628 = vunpack.c.h.b16 %v5307
    %v5629 = vunpack.c.l.b16 %v5308
    %v5630 = vunpack.c.h.b16 %v5308
    %v5631 = vunpack.c.l.b16 %v5309
    %v5632 = vunpack.c.h.b16 %v5309
    %v5633 = vunpack.c.l.b16 %v5310
    %v5634 = vunpack.c.h.b16 %v5310
    %v5635 = vunpack.c.l.b16 %v5311
    %v5636 = vunpack.c.h.b16 %v5311
    %v5637 = vunpack.c.l.b16 %v5312
    %v5638 = vunpack.c.h.b16 %v5312
    %v5639 = vunpack.c.l.b16 %v5313
    %v5640 = vunpack.c.h.b16 %v5313
    %v5641 = vunpack.c.l.b16 %v5314
    %v5642 = vunpack.c.h.b16 %v5314
    %v5643 = vunpack.c.l.b16 %v5315
    %v5644 = vunpack.c.h.b16 %v5315
    %v5645 = vunpack.c.l.b16 %v5316
    %v5646 = vunpack.c.h.b16 %v5316
    %v5647 = vunpack.c.l.b16 %v5317
    %v5648 = vunpack.c.h.b16 %v5317
    %v5649 = vunpack.c.l.b16 %v5318
    %v5650 = vunpack.c.h.b16 %v5318
    %v5651 = vunpack.c.l.b16 %v5319
    %v5652 = vunpack.c.h.b16 %v5319
    %v5653 = vunpack.c.l.b16 %v5320
    %v5654 = vunpack.c.h.b16 %v5320
    %v5655 = vunpack.c.l.b16 %v5321
    %v5656 = vunpack.c.h.b16 %v5321
    %v5657 = vunpack.c.l.b16 %v5322
    %v5658 = vunpack.c.h.b16 %v5322
    %v5659 = vunpack.c.l.b16 %v5323
    %v5660 = vunpack.c.h.b16 %v5323
    %v5661 = vunpack.c.l.b16 %v5324
    %v5662 = vunpack.c.h.b16 %v5324
    %v5663 = vunpack.c.l.b16 %v5325
    %v5664 = vunpack.c.h.b16 %v5325
    %v5665 = vunpack.c.l.b16 %v5326
    %v5666 = vunpack.c.h.b16 %v5326
    %v5667 = vunpack.c.l.b16 %v5327
    %v5668 = vunpack.c.h.b16 %v5327
    %v5669 = vunpack.c.l.b16 %v5328
    %v5670 = vunpack.c.h.b16 %v5328
    %v5671 = vunpack.c.l.b16 %v5329
    %v5672 = vunpack.c.h.b16 %v5329
    %v5673 = vunpack.c.l.b16 %v5330
    %v5674 = vunpack.c.h.b16 %v5330
    %v5675 = vunpack.c.l.b16 %v5331
    %v5676 = vunpack.c.h.b16 %v5331
    %v5677 = vunpack.c.l.b16 %v5332
    %v5678 = vunpack.c.h.b16 %v5332
    %v5679 = vunpack.c.l.b16 %v5333
    %v5680 = vunpack.c.h.b16 %v5333
    %v5681 = vunpack.c.l.b16 %v5334
    %v5682 = vunpack.c.h.b16 %v5334
    %v5683 = vunpack.c.l.b16 %v5335
    %v5684 = vunpack.c.h.b16 %v5335
    %v5685 = vunpack.c.l.b16 %v5336
    %v5686 = vunpack.c.h.b16 %v5336
    %v5687 = vunpack.c.l.b16 %v5337
    %v5688 = vunpack.c.h.b16 %v5337
    %v5689 = vunpack.c.l.b16 %v5338
    %v5690 = vunpack.c.h.b16 %v5338
    %v5691 = vunpack.c.l.b16 %v5339
    %v5692 = vunpack.c.h.b16 %v5339
    %v5693 = vunpack.c.l.b16 %v5340
    %v5694 = vunpack.c.h.b16 %v5340
    %v5695 = vunpack.c.l.b16 %v5341
    %v5696 = vunpack.c.h.b16 %v5341
    %v5697 = vunpack.c.l.b16 %v5342
    %v5698 = vunpack.c.h.b16 %v5342
    %v5699 = vunpack.c.l.b16 %v5343
    %v5700 = vunpack.c.h.b16 %v5343
    %v5701 = vunpack.c.l.b16 %v5344
    %v5702 = vunpack.c.h.b16 %v5344
    %v5703 = vunpack.c.l.b16 %v5345
    %v5704 = vunpack.c.h.b16 %v5345
    %v5705 = vunpack.c.l.b16 %v5346
    %v5706 = vunpack.c.h.b16 %v5346
    %v5707 = vunpack.c.l.b16 %v5347
    %v5708 = vunpack.c.h.b16 %v5347
    %v5709 = vunpack.c.l.b16 %v5348
    %v5710 = vunpack.c.h.b16 %v5348
    %v5711 = vunpack.c.l.b16 %v5349
    %v5712 = vunpack.c.h.b16 %v5349
    %v5713 = vunpack.c.l.b16 %v5350
    %v5714 = vunpack.c.h.b16 %v5350
    %v5715 = vunpack.c.l.b16 %v5351
    %v5716 = vunpack.c.h.b16 %v5351
    %v5717 = vunpack.c.l.b16 %v5352
    %v5718 = vunpack.c.h.b16 %v5352
    %v5719 = vunpack.c.l.b16 %v5353
    %v5720 = vunpack.c.h.b16 %v5353
    %v5721 = vunpack.c.l.b16 %v5354
    %v5722 = vunpack.c.h.b16 %v5354
    %v5723 = vunpack.c.l.b16 %v5355
    %v5724 = vunpack.c.h.b16 %v5355
    %v5725 = vunpack.c.l.b16 %v5356
    %v5726 = vunpack.c.h.b16 %v5356
    %v5727 = vunpack.c.l.b16 %v5357
    %v5728 = vunpack.c.h.b16 %v5357
    %v5729 = vunpack.c.l.b16 %v5358
    %v5730 = vunpack.c.h.b16 %v5358
    %v5731 = vunpack.c.l.b16 %v5359
    %v5732 = vunpack.c.h.b16 %v5359
    %v5733 = vunpack.c.l.b16 %v5360
    %v5734 = vunpack.c.h.b16 %v5360
    %v5735 = vunpack.c.l.b16 %v5361
    %v5736 = vunpack.c.h.b16 %v5361
    %v5737 = vunpack.c.l.b16 %v5362
    %v5738 = vunpack.c.h.b16 %v5362
    %v5739 = vunpack.c.l.b16 %v5363
    %v5740 = vunpack.c.h.b16 %v5363
    %v5741 = vunpack.c.l.b16 %v5364
    %v5742 = vunpack.c.h.b16 %v5364
    %v5743 = vunpack.c.l.b16 %v5365
    %v5744 = vunpack.c.h.b16 %v5365
    %v5745 = vunpack.c.l.b16 %v5366
    %v5746 = vunpack.c.h.b16 %v5366
    %v5747 = vunpack.c.l.b16 %v5367
    %v5748 = vunpack.c.h.b16 %v5367
    %v5749 = vunpack.c.l.b16 %v5368
    %v5750 = vunpack.c.h.b16 %v5368
    %v5751 = vunpack.c.l.b16 %v5369
    %v5752 = vunpack.c.h.b16 %v5369
    %v5753 = vunpack.c.l.b16 %v5370
    %v5754 = vunpack.c.h.b16 %v5370
    %v5755 = vunpack.c.l.b16 %v5371
    %v5756 = vunpack.c.h.b16 %v5371
    %v5757 = vunpack.c.l.b16 %v5372
    %v5758 = vunpack.c.h.b16 %v5372
    %v5759 = vunpack.c.l.b16 %v5373
    %v5760 = vunpack.c.h.b16 %v5373
    %v5761 = vunpack.c.l.b16 %v5374
    %v5762 = vunpack.c.h.b16 %v5374
    %v5763 = vunpack.c.l.b16 %v5375
    %v5764 = vunpack.c.h.b16 %v5375
    %v5765 = vunpack.c.l.b16 %v5376
    %v5766 = vunpack.c.h.b16 %v5376
    %v5767 = vunpack.c.l.b16 %v5377
    %v5768 = vunpack.c.h.b16 %v5377
    %v5769 = vpack.c.b16 %v5515, %v5513
    %v5770 = vpack.c.b16 %v5516, %v5514
    %v5771 = vpack.c.b16 %v5519, %v5517
    %v5772 = vpack.c.b16 %v5520, %v5518
    %v5773 = vpack.c.b16 %v5523, %v5521
    %v5774 = vpack.c.b16 %v5524, %v5522
    %v5775 = vpack.c.b16 %v5527, %v5525
    %v5776 = vpack.c.b16 %v5528, %v5526
    %v5777 = vpack.c.b16 %v5531, %v5529
    %v5778 = vpack.c.b16 %v5532, %v5530
    %v5779 = vpack.c.b16 %v5535, %v5533
    %v5780 = vpack.c.b16 %v5536, %v5534
    %v5781 = vpack.c.b16 %v5539, %v5537
    %v5782 = vpack.c.b16 %v5540, %v5538
    %v5783 = vpack.c.b16 %v5543, %v5541
    %v5784 = vpack.c.b16 %v5544, %v5542
    %v5785 = vpack.c.b16 %v5547, %v5545
    %v5786 = vpack.c.b16 %v5548, %v5546
    %v5787 = vpack.c.b16 %v5551, %v5549
    %v5788 = vpack.c.b16 %v5552, %v5550
    %v5789 = vpack.c.b16 %v5555, %v5553
    %v5790 = vpack.c.b16 %v5556, %v5554
    %v5791 = vpack.c.b16 %v5559, %v5557
    %v5792 = vpack.c.b16 %v5560, %v5558
    %v5793 = vpack.c.b16 %v5563, %v5561
    %v5794 = vpack.c.b16 %v5564, %v5562
    %v5795 = vpack.c.b16 %v5567, %v5565
    %v5796 = vpack.c.b16 %v5568, %v5566
    %v5797 = vpack.c.b16 %v5571, %v5569
    %v5798 = vpack.c.b16 %v5572, %v5570
    %v5799 = vpack.c.b16 %v5575, %v5573
    %v5800 = vpack.c.b16 %v5576, %v5574
    %v5801 = vpack.c.b16 %v5579, %v5577
    %v5802 = vpack.c.b16 %v5580, %v5578
    %v5803 = vpack.c.b16 %v5583, %v5581
    %v5804 = vpack.c.b16 %v5584, %v5582
    %v5805 = vpack.c.b16 %v5587, %v5585
    %v5806 = vpack.c.b16 %v5588, %v5586
    %v5807 = vpack.c.b16 %v5591, %v5589
    %v5808 = vpack.c.b16 %v5592, %v5590
    %v5809 = vpack.c.b16 %v5595, %v5593
    %v5810 = vpack.c.b16 %v5596, %v5594
    %v5811 = vpack.c.b16 %v5599, %v5597
    %v5812 = vpack.c.b16 %v5600, %v5598
    %v5813 = vpack.c.b16 %v5603, %v5601
    %v5814 = vpack.c.b16 %v5604, %v5602
    %v5815 = vpack.c.b16 %v5607, %v5605
    %v5816 = vpack.c.b16 %v5608, %v5606
    %v5817 = vpack.c.b16 %v5611, %v5609
    %v5818 = vpack.c.b16 %v5612, %v5610
    %v5819 = vpack.c.b16 %v5615, %v5613
    %v5820 = vpack.c.b16 %v5616, %v5614
    %v5821 = vpack.c.b16 %v5619, %v5617
    %v5822 = vpack.c.b16 %v5620, %v5618
    %v5823 = vpack.c.b16 %v5623, %v5621
    %v5824 = vpack.c.b16 %v5624, %v5622
    %v5825 = vpack.c.b16 %v5627, %v5625
    %v5826 = vpack.c.b16 %v5628, %v5626
    %v5827 = vpack.c.b16 %v5631, %v5629
    %v5828 = vpack.c.b16 %v5632, %v5630
    %v5829 = vpack.c.b16 %v5635, %v5633
    %v5830 = vpack.c.b16 %v5636, %v5634
    %v5831 = vpack.c.b16 %v5639, %v5637
    %v5832 = vpack.c.b16 %v5640, %v5638
    %v5833 = vpack.c.b16 %v5643, %v5641
    %v5834 = vpack.c.b16 %v5644, %v5642
    %v5835 = vpack.c.b16 %v5647, %v5645
    %v5836 = vpack.c.b16 %v5648, %v5646
    %v5837 = vpack.c.b16 %v5651, %v5649
    %v5838 = vpack.c.b16 %v5652, %v5650
    %v5839 = vpack.c.b16 %v5655, %v5653
    %v5840 = vpack.c.b16 %v5656, %v5654
    %v5841 = vpack.c.b16 %v5659, %v5657
    %v5842 = vpack.c.b16 %v5660, %v5658
    %v5843 = vpack.c.b16 %v5663, %v5661
    %v5844 = vpack.c.b16 %v5664, %v5662
    %v5845 = vpack.c.b16 %v5667, %v5665
    %v5846 = vpack.c.b16 %v5668, %v5666
    %v5847 = vpack.c.b16 %v5671, %v5669
    %v5848 = vpack.c.b16 %v5672, %v5670
    %v5849 = vpack.c.b16 %v5675, %v5673
    %v5850 = vpack.c.b16 %v5676, %v5674
    %v5851 = vpack.c.b16 %v5679, %v5677
    %v5852 = vpack.c.b16 %v5680, %v5678
    %v5853 = vpack.c.b16 %v5683, %v5681
    %v5854 = vpack.c.b16 %v5684, %v5682
    %v5855 = vpack.c.b16 %v5687, %v5685
    %v5856 = vpack.c.b16 %v5688, %v5686
    %v5857 = vpack.c.b16 %v5691, %v5689
    %v5858 = vpack.c.b16 %v5692, %v5690
    %v5859 = vpack.c.b16 %v5695, %v5693
    %v5860 = vpack.c.b16 %v5696, %v5694
    %v5861 = vpack.c.b16 %v5699, %v5697
    %v5862 = vpack.c.b16 %v5700, %v5698
    %v5863 = vpack.c.b16 %v5703, %v5701
    %v5864 = vpack.c.b16 %v5704, %v5702
    %v5865 = vpack.c.b16 %v5707, %v5705
    %v5866 = vpack.c.b16 %v5708, %v5706
    %v5867 = vpack.c.b16 %v5711, %v5709
    %v5868 = vpack.c.b16 %v5712, %v5710
    %v5869 = vpack.c.b16 %v5715, %v5713
    %v5870 = vpack.c.b16 %v5716, %v5714
    %v5871 = vpack.c.b16 %v5719, %v5717
    %v5872 = vpack.c.b16 %v5720, %v5718
    %v5873 = vpack.c.b16 %v5723, %v5721
    %v5874 = vpack.c.b16 %v5724, %v5722
    %v5875 = vpack.c.b16 %v5727, %v5725
    %v5876 = vpack.c.b16 %v5728, %v5726
    %v5877 = vpack.c.b16 %v5731, %v5729
    %v5878 = vpack.c.b16 %v5732, %v5730
    %v5879 = vpack.c.b16 %v5735, %v5733
    %v5880 = vpack.c.b16 %v5736, %v5734
    %v5881 = vpack.c.b16 %v5739, %v5737
    %v5882 = vpack.c.b16 %v5740, %v5738
    %v5883 = vpack.c.b16 %v5743, %v5741
    %v5884 = vpack.c.b16 %v5744, %v5742
    %v5885 = vpack.c.b16 %v5747, %v5745
    %v5886 = vpack.c.b16 %v5748, %v5746
    %v5887 = vpack.c.b16 %v5751, %v5749
    %v5888 = vpack.c.b16 %v5752, %v5750
    %v5889 = vpack.c.b16 %v5755, %v5753
    %v5890 = vpack.c.b16 %v5756, %v5754
    %v5891 = vpack.c.b16 %v5759, %v5757
    %v5892 = vpack.c.b16 %v5760, %v5758
    %v5893 = vpack.c.b16 %v5763, %v5761
    %v5894 = vpack.c.b16 %v5764, %v5762
    %v5895 = vpack.c.b16 %v5767, %v5765
    %v5896 = vpack.c.b16 %v5768, %v5766
    %6025 = vmatpush.bf16.msra.mxu0 %v5783
    %6026 = vmatpush.bf16.msra.mxu0 %v5781
    %6027 = vmatpush.bf16.msra.mxu0 %v5779
    %6028 = vmatpush.bf16.msra.mxu0 %v5777
    %6029 = vmatpush.bf16.msra.mxu0 %v5775
    %6030 = vmatpush.bf16.msra.mxu0 %v5773
    %6031 = vmatpush.bf16.msra.mxu0 %v5771
    %6032 = vmatpush.bf16.msra.mxu0 %v5769
    %6033 = vmatmul.bf16.gmra.mxu0 %v4744
    %v6034 = vpop.f32.mrf.mxu0
    %v6035 = vadd.f32 %v5381, %v6034
    %v6036 = vpop.f32.mrf.mxu0
    %6037 = vdwg.mxu0
    %6038 = vmatpush.bf16.msra.mxu0 %v5799
    %6039 = vmatpush.bf16.msra.mxu0 %v5797
    %6040 = vmatpush.bf16.msra.mxu0 %v5795
    %6041 = vmatpush.bf16.msra.mxu0 %v5793
    %6042 = vmatpush.bf16.msra.mxu0 %v5791
    %6043 = vmatpush.bf16.msra.mxu0 %v5789
    %6044 = vmatpush.bf16.msra.mxu0 %v5787
    %6045 = vmatpush.bf16.msra.mxu0 %v5785
    %6046 = vmatmul.bf16.gmra.mxu0 %v4745
    %v6047 = vpop.f32.mrf.mxu0
    %v6048 = vadd.f32 %v6035, %v6047
    %v6049 = vpop.f32.mrf.mxu0
    %6050 = vdwg.mxu0
    %6051 = vmatpush.bf16.msra.mxu0 %v5815
    %6052 = vmatpush.bf16.msra.mxu0 %v5813
    %6053 = vmatpush.bf16.msra.mxu0 %v5811
    %6054 = vmatpush.bf16.msra.mxu0 %v5809
    %6055 = vmatpush.bf16.msra.mxu0 %v5807
    %6056 = vmatpush.bf16.msra.mxu0 %v5805
    %6057 = vmatpush.bf16.msra.mxu0 %v5803
    %6058 = vmatpush.bf16.msra.mxu0 %v5801
    %6059 = vmatmul.bf16.gmra.mxu0 %v4746
    %v6060 = vpop.f32.mrf.mxu0
    %v6061 = vadd.f32 %v6048, %v6060
    %v6062 = vpop.f32.mrf.mxu0
    %6063 = vdwg.mxu0
    %6064 = vmatpush.bf16.msra.mxu0 %v5831
    %6065 = vmatpush.bf16.msra.mxu0 %v5829
    %6066 = vmatpush.bf16.msra.mxu0 %v5827
    %6067 = vmatpush.bf16.msra.mxu0 %v5825
    %6068 = vmatpush.bf16.msra.mxu0 %v5823
    %6069 = vmatpush.bf16.msra.mxu0 %v5821
    %6070 = vmatpush.bf16.msra.mxu0 %v5819
    %6071 = vmatpush.bf16.msra.mxu0 %v5817
    %6072 = vmatmul.bf16.gmra.mxu0 %v4747
    %v6073 = vpop.f32.mrf.mxu0
    %v6074 = vadd.f32 %v6061, %v6073
    %v6075 = vpop.f32.mrf.mxu0
    %6076 = vdwg.mxu0
    %6077 = vmatpush.bf16.msra.mxu0 %v5847
    %6078 = vmatpush.bf16.msra.mxu0 %v5845
    %6079 = vmatpush.bf16.msra.mxu0 %v5843
    %6080 = vmatpush.bf16.msra.mxu0 %v5841
    %6081 = vmatpush.bf16.msra.mxu0 %v5839
    %6082 = vmatpush.bf16.msra.mxu0 %v5837
    %6083 = vmatpush.bf16.msra.mxu0 %v5835
    %6084 = vmatpush.bf16.msra.mxu0 %v5833
    %6085 = vmatmul.bf16.gmra.mxu0 %v4748
    %v6086 = vpop.f32.mrf.mxu0
    %v6087 = vadd.f32 %v6074, %v6086
    %v6088 = vpop.f32.mrf.mxu0
    %6089 = vdwg.mxu0
    %6090 = vmatpush.bf16.msra.mxu0 %v5863
    %6091 = vmatpush.bf16.msra.mxu0 %v5861
    %6092 = vmatpush.bf16.msra.mxu0 %v5859
    %6093 = vmatpush.bf16.msra.mxu0 %v5857
    %6094 = vmatpush.bf16.msra.mxu0 %v5855
    %6095 = vmatpush.bf16.msra.mxu0 %v5853
    %6096 = vmatpush.bf16.msra.mxu0 %v5851
    %6097 = vmatpush.bf16.msra.mxu0 %v5849
    %6098 = vmatmul.bf16.gmra.mxu0 %v4749
    %v6099 = vpop.f32.mrf.mxu0
    %v6100 = vadd.f32 %v6087, %v6099
    %v6101 = vpop.f32.mrf.mxu0
    %6102 = vdwg.mxu0
    %6103 = vmatpush.bf16.msra.mxu0 %v5879
    %6104 = vmatpush.bf16.msra.mxu0 %v5877
    %6105 = vmatpush.bf16.msra.mxu0 %v5875
    %6106 = vmatpush.bf16.msra.mxu0 %v5873
    %6107 = vmatpush.bf16.msra.mxu0 %v5871
    %6108 = vmatpush.bf16.msra.mxu0 %v5869
    %6109 = vmatpush.bf16.msra.mxu0 %v5867
    %6110 = vmatpush.bf16.msra.mxu0 %v5865
    %6111 = vmatmul.bf16.gmra.mxu0 %v4750
    %v6112 = vpop.f32.mrf.mxu0
    %v6113 = vadd.f32 %v6100, %v6112
    %v6114 = vpop.f32.mrf.mxu0
    %6115 = vdwg.mxu0
    %6116 = vmatpush.bf16.msra.mxu0 %v5895
    %6117 = vmatpush.bf16.msra.mxu0 %v5893
    %6118 = vmatpush.bf16.msra.mxu0 %v5891
    %6119 = vmatpush.bf16.msra.mxu0 %v5889
    %6120 = vmatpush.bf16.msra.mxu0 %v5887
    %6121 = vmatpush.bf16.msra.mxu0 %v5885
    %6122 = vmatpush.bf16.msra.mxu0 %v5883
    %6123 = vmatpush.bf16.msra.mxu0 %v5881
    %6124 = vmatmul.bf16.gmra.mxu0 %v4751
    %v6125 = vpop.f32.mrf.mxu0
    %v6126 = vadd.f32 %v6113, %v6125
    %v6127 = vpop.f32.mrf.mxu0
    %6128 = vdwg.mxu0
    %6129 = vmatpush.bf16.msra.mxu0 %v5784
    %6130 = vmatpush.bf16.msra.mxu0 %v5782
    %6131 = vmatpush.bf16.msra.mxu0 %v5780
    %6132 = vmatpush.bf16.msra.mxu0 %v5778
    %6133 = vmatpush.bf16.msra.mxu0 %v5776
    %6134 = vmatpush.bf16.msra.mxu0 %v5774
    %6135 = vmatpush.bf16.msra.mxu0 %v5772
    %6136 = vmatpush.bf16.msra.mxu0 %v5770
    %6137 = vmatmul.bf16.gmra.mxu0 %v4744
    %v6138 = vpop.f32.mrf.mxu0
    %v6139 = vadd.f32 %v5382, %v6138
    %v6140 = vpop.f32.mrf.mxu0
    %6141 = vdwg.mxu0
    %6142 = vmatpush.bf16.msra.mxu0 %v5800
    %6143 = vmatpush.bf16.msra.mxu0 %v5798
    %6144 = vmatpush.bf16.msra.mxu0 %v5796
    %6145 = vmatpush.bf16.msra.mxu0 %v5794
    %6146 = vmatpush.bf16.msra.mxu0 %v5792
    %6147 = vmatpush.bf16.msra.mxu0 %v5790
    %6148 = vmatpush.bf16.msra.mxu0 %v5788
    %6149 = vmatpush.bf16.msra.mxu0 %v5786
    %6150 = vmatmul.bf16.gmra.mxu0 %v4745
    %v6151 = vpop.f32.mrf.mxu0
    %v6152 = vadd.f32 %v6139, %v6151
    %v6153 = vpop.f32.mrf.mxu0
    %6154 = vdwg.mxu0
    %6155 = vmatpush.bf16.msra.mxu0 %v5816
    %6156 = vmatpush.bf16.msra.mxu0 %v5814
    %6157 = vmatpush.bf16.msra.mxu0 %v5812
    %6158 = vmatpush.bf16.msra.mxu0 %v5810
    %6159 = vmatpush.bf16.msra.mxu0 %v5808
    %6160 = vmatpush.bf16.msra.mxu0 %v5806
    %6161 = vmatpush.bf16.msra.mxu0 %v5804
    %6162 = vmatpush.bf16.msra.mxu0 %v5802
    %6163 = vmatmul.bf16.gmra.mxu0 %v4746
    %v6164 = vpop.f32.mrf.mxu0
    %v6165 = vadd.f32 %v6152, %v6164
    %v6166 = vpop.f32.mrf.mxu0
    %6167 = vdwg.mxu0
    %6168 = vmatpush.bf16.msra.mxu0 %v5832
    %6169 = vmatpush.bf16.msra.mxu0 %v5830
    %6170 = vmatpush.bf16.msra.mxu0 %v5828
    %6171 = vmatpush.bf16.msra.mxu0 %v5826
    %6172 = vmatpush.bf16.msra.mxu0 %v5824
    %6173 = vmatpush.bf16.msra.mxu0 %v5822
    %6174 = vmatpush.bf16.msra.mxu0 %v5820
    %6175 = vmatpush.bf16.msra.mxu0 %v5818
    %6176 = vmatmul.bf16.gmra.mxu0 %v4747
    %v6177 = vpop.f32.mrf.mxu0
    %v6178 = vadd.f32 %v6165, %v6177
    %v6179 = vpop.f32.mrf.mxu0
    %6180 = vdwg.mxu0
    %6181 = vmatpush.bf16.msra.mxu0 %v5848
    %6182 = vmatpush.bf16.msra.mxu0 %v5846
    %6183 = vmatpush.bf16.msra.mxu0 %v5844
    %6184 = vmatpush.bf16.msra.mxu0 %v5842
    %6185 = vmatpush.bf16.msra.mxu0 %v5840
    %6186 = vmatpush.bf16.msra.mxu0 %v5838
    %6187 = vmatpush.bf16.msra.mxu0 %v5836
    %6188 = vmatpush.bf16.msra.mxu0 %v5834
    %6189 = vmatmul.bf16.gmra.mxu0 %v4748
    %v6190 = vpop.f32.mrf.mxu0
    %v6191 = vadd.f32 %v6178, %v6190
    %v6192 = vpop.f32.mrf.mxu0
    %6193 = vdwg.mxu0
    %6194 = vmatpush.bf16.msra.mxu0 %v5864
    %6195 = vmatpush.bf16.msra.mxu0 %v5862
    %6196 = vmatpush.bf16.msra.mxu0 %v5860
    %6197 = vmatpush.bf16.msra.mxu0 %v5858
    %6198 = vmatpush.bf16.msra.mxu0 %v5856
    %6199 = vmatpush.bf16.msra.mxu0 %v5854
    %6200 = vmatpush.bf16.msra.mxu0 %v5852
    %6201 = vmatpush.bf16.msra.mxu0 %v5850
    %6202 = vmatmul.bf16.gmra.mxu0 %v4749
    %v6203 = vpop.f32.mrf.mxu0
    %v6204 = vadd.f32 %v6191, %v6203
    %v6205 = vpop.f32.mrf.mxu0
    %6206 = vdwg.mxu0
    %6207 = vmatpush.bf16.msra.mxu0 %v5880
    %6208 = vmatpush.bf16.msra.mxu0 %v5878
    %6209 = vmatpush.bf16.msra.mxu0 %v5876
    %6210 = vmatpush.bf16.msra.mxu0 %v5874
    %6211 = vmatpush.bf16.msra.mxu0 %v5872
    %6212 = vmatpush.bf16.msra.mxu0 %v5870
    %6213 = vmatpush.bf16.msra.mxu0 %v5868
    %6214 = vmatpush.bf16.msra.mxu0 %v5866
    %6215 = vmatmul.bf16.gmra.mxu0 %v4750
    %v6216 = vpop.f32.mrf.mxu0
    %v6217 = vadd.f32 %v6204, %v6216
    %v6218 = vpop.f32.mrf.mxu0
    %6219 = vdwg.mxu0
    %6220 = vmatpush.bf16.msra.mxu0 %v5896
    %6221 = vmatpush.bf16.msra.mxu0 %v5894
    %6222 = vmatpush.bf16.msra.mxu0 %v5892
    %6223 = vmatpush.bf16.msra.mxu0 %v5890
    %6224 = vmatpush.bf16.msra.mxu0 %v5888
    %6225 = vmatpush.bf16.msra.mxu0 %v5886
    %6226 = vmatpush.bf16.msra.mxu0 %v5884
    %6227 = vmatpush.bf16.msra.mxu0 %v5882
    %6228 = vmatmul.bf16.gmra.mxu0 %v4751
    %v6229 = vpop.f32.mrf.mxu0
    %v6230 = vadd.f32 %v6217, %v6229
    %v6231 = vpop.f32.mrf.mxu0
    %6232 = vdwg.mxu0
    %s6233 = scalar_lea.vmem [#allocation11], 4
    %v6234 = vld [vmem:[%s6233] sm:$0x3]
    %s6235 = scalar_lea.vmem [#allocation16], 4
    %v6236 = vld [vmem:[%s6235] sm:$0x3]
    %v6237 = vadd.f32 %v6236, 1e-05
    %v6238 = vrsqrt.pop %v6237
    %v6239 = vmul.f32 %v6238, %v6237
    %v6240 = vmul.f32 %v6239, %v6238
    %v6241 = vmul.f32 0.5, %v6240
    %v6242 = vsub.f32 1.5, %v6241
    %v6243 = vmul.f32 %v6238, %v6242
    %vm6244 = vweird.f32 %v6237
    %vm6245 = vweird.f32 %v6238
    %vm6246 = vmor %vm6244, %vm6245
    %v6247 = vsel %vm6246, %v6238, %v6243
    %v6248 = vmul.f32 %v6234, %v6247
    %s6249 = scalar_lea.vmem [#allocation14], 4
    %v6250 = vld [vmem:[%s6249] sm:$0x3]
    %v6252 = vperm.slane %v6250, 0
    %v6253 = vperm.slane %v6250, 1
    %v6256 = vsub.f32 %v6126, %v6252
    %v6257 = vsub.f32 %v6230, %v6253
    %v6259 = vperm.slane %v6248, 0
    %v6260 = vperm.slane %v6248, 1
    %v6263 = vmul.f32 %v6256, %v6259
    %v6264 = vmul.f32 %v6257, %v6260
    %s6265 = scalar_lea.vmem [#allocation13], 4
    %v6266 = vld [vmem:[%s6265] sm:$0x3]
    %v6268 = vperm.slane %v6266, 0
    %v6269 = vperm.slane %v6266, 1
    %v6272 = vadd.f32 %v6263, %v6268
    %v6273 = vadd.f32 %v6264, %v6269
    %v6276 = vrot.slane %v6273, 7
    %v6277 = vsel %vm460, %v6272, %v6276
    %v6278 = vsel %vm798, %v6272, %v6276
    %v6279 = vrot.slane %v6278, 1
    %s6282 = scalar_lea.vmem %s11, 2
    %6283 = vst.msk [vmem:[%s6282] ss:$8 sm:$0x3] %vm1719, %v6277
    %6284 = vst.msk [vmem:[%s6282] ss:$8 sm:$0x0] %vm1719, %v6277
    %s6285 = scalar_lea.vmem %s11, 18
    %6286 = vst.msk [vmem:[%s6285] ss:$8 sm:$0x3] %vm1719, %v6279
    %6287 = vst.msk [vmem:[%s6285] ss:$8 sm:$0x0] %vm1719, %v6279
    %s6288 = scalar_lea.vmem [#allocation2], 384
    %v6289 = vld [vmem:[%s6288] sm:$0xff]
    %v6290 = vld [vmem:[%s6288 + $0x8] sm:$0xff]
    %v6291 = vld [vmem:[%s6288 + $0x10] sm:$0xff]
    %v6292 = vld [vmem:[%s6288 + $0x18] sm:$0xff]
    %v6293 = vld [vmem:[%s6288 + $0x20] sm:$0xff]
    %v6294 = vld [vmem:[%s6288 + $0x28] sm:$0xff]
    %v6295 = vld [vmem:[%s6288 + $0x30] sm:$0xff]
    %v6296 = vld [vmem:[%s6288 + $0x38] sm:$0xff]
    %v6297 = vld [vmem:[%s6288 + $0x40] sm:$0xff]
    %v6298 = vld [vmem:[%s6288 + $0x48] sm:$0xff]
    %v6299 = vld [vmem:[%s6288 + $0x50] sm:$0xff]
    %v6300 = vld [vmem:[%s6288 + $0x58] sm:$0xff]
    %v6301 = vld [vmem:[%s6288 + $0x60] sm:$0xff]
    %v6302 = vld [vmem:[%s6288 + $0x68] sm:$0xff]
    %v6303 = vld [vmem:[%s6288 + $0x70] sm:$0xff]
    %v6304 = vld [vmem:[%s6288 + $0x78] sm:$0xff]
    %v6305 = vld [vmem:[%s6288 + $0x300] sm:$0xff]
    %v6306 = vld [vmem:[%s6288 + $0x308] sm:$0xff]
    %v6307 = vld [vmem:[%s6288 + $0x310] sm:$0xff]
    %v6308 = vld [vmem:[%s6288 + $0x318] sm:$0xff]
    %v6309 = vld [vmem:[%s6288 + $0x320] sm:$0xff]
    %v6310 = vld [vmem:[%s6288 + $0x328] sm:$0xff]
    %v6311 = vld [vmem:[%s6288 + $0x330] sm:$0xff]
    %v6312 = vld [vmem:[%s6288 + $0x338] sm:$0xff]
    %v6313 = vld [vmem:[%s6288 + $0x340] sm:$0xff]
    %v6314 = vld [vmem:[%s6288 + $0x348] sm:$0xff]
    %v6315 = vld [vmem:[%s6288 + $0x350] sm:$0xff]
    %v6316 = vld [vmem:[%s6288 + $0x358] sm:$0xff]
    %v6317 = vld [vmem:[%s6288 + $0x360] sm:$0xff]
    %v6318 = vld [vmem:[%s6288 + $0x368] sm:$0xff]
    %v6319 = vld [vmem:[%s6288 + $0x370] sm:$0xff]
    %v6320 = vld [vmem:[%s6288 + $0x378] sm:$0xff]
    %v6321 = vunpack.c.l.bf16 %v6289
    %v6322 = vunpack.c.h.bf16 %v6289
    %v6323 = vunpack.c.l.bf16 %v6290
    %v6324 = vunpack.c.h.bf16 %v6290
    %v6325 = vunpack.c.l.bf16 %v6291
    %v6326 = vunpack.c.h.bf16 %v6291
    %v6327 = vunpack.c.l.bf16 %v6292
    %v6328 = vunpack.c.h.bf16 %v6292
    %v6329 = vunpack.c.l.bf16 %v6293
    %v6330 = vunpack.c.h.bf16 %v6293
    %v6331 = vunpack.c.l.bf16 %v6294
    %v6332 = vunpack.c.h.bf16 %v6294
    %v6333 = vunpack.c.l.bf16 %v6295
    %v6334 = vunpack.c.h.bf16 %v6295
    %v6335 = vunpack.c.l.bf16 %v6296
    %v6336 = vunpack.c.h.bf16 %v6296
    %v6337 = vunpack.c.l.bf16 %v6297
    %v6338 = vunpack.c.h.bf16 %v6297
    %v6339 = vunpack.c.l.bf16 %v6298
    %v6340 = vunpack.c.h.bf16 %v6298
    %v6341 = vunpack.c.l.bf16 %v6299
    %v6342 = vunpack.c.h.bf16 %v6299
    %v6343 = vunpack.c.l.bf16 %v6300
    %v6344 = vunpack.c.h.bf16 %v6300
    %v6345 = vunpack.c.l.bf16 %v6301
    %v6346 = vunpack.c.h.bf16 %v6301
    %v6347 = vunpack.c.l.bf16 %v6302
    %v6348 = vunpack.c.h.bf16 %v6302
    %v6349 = vunpack.c.l.bf16 %v6303
    %v6350 = vunpack.c.h.bf16 %v6303
    %v6351 = vunpack.c.l.bf16 %v6304
    %v6352 = vunpack.c.h.bf16 %v6304
    %v6353 = vunpack.c.l.bf16 %v6305
    %v6354 = vunpack.c.h.bf16 %v6305
    %v6355 = vunpack.c.l.bf16 %v6306
    %v6356 = vunpack.c.h.bf16 %v6306
    %v6357 = vunpack.c.l.bf16 %v6307
    %v6358 = vunpack.c.h.bf16 %v6307
    %v6359 = vunpack.c.l.bf16 %v6308
    %v6360 = vunpack.c.h.bf16 %v6308
    %v6361 = vunpack.c.l.bf16 %v6309
    %v6362 = vunpack.c.h.bf16 %v6309
    %v6363 = vunpack.c.l.bf16 %v6310
    %v6364 = vunpack.c.h.bf16 %v6310
    %v6365 = vunpack.c.l.bf16 %v6311
    %v6366 = vunpack.c.h.bf16 %v6311
    %v6367 = vunpack.c.l.bf16 %v6312
    %v6368 = vunpack.c.h.bf16 %v6312
    %v6369 = vunpack.c.l.bf16 %v6313
    %v6370 = vunpack.c.h.bf16 %v6313
    %v6371 = vunpack.c.l.bf16 %v6314
    %v6372 = vunpack.c.h.bf16 %v6314
    %v6373 = vunpack.c.l.bf16 %v6315
    %v6374 = vunpack.c.h.bf16 %v6315
    %v6375 = vunpack.c.l.bf16 %v6316
    %v6376 = vunpack.c.h.bf16 %v6316
    %v6377 = vunpack.c.l.bf16 %v6317
    %v6378 = vunpack.c.h.bf16 %v6317
    %v6379 = vunpack.c.l.bf16 %v6318
    %v6380 = vunpack.c.h.bf16 %v6318
    %v6381 = vunpack.c.l.bf16 %v6319
    %v6382 = vunpack.c.h.bf16 %v6319
    %v6383 = vunpack.c.l.bf16 %v6320
    %v6384 = vunpack.c.h.bf16 %v6320
    %v6385 = vadd.f32 %v6321, %v6329
    %v6386 = vadd.f32 %v6385, %v6337
    %v6387 = vadd.f32 %v6386, %v6345
    %v6388 = vrot.slane %v6387, 4
    %v6389 = vadd.f32 %v6387, %v6388
    %v6390 = vrot.slane %v6389, 2
    %v6391 = vadd.f32 %v6389, %v6390
    %v6392 = vrot.slane %v6391, 1
    %v6393 = vadd.f32 %v6391, %v6392
    %v6394 = vadd.f32 %v6322, %v6330
    %v6395 = vadd.f32 %v6394, %v6338
    %v6396 = vadd.f32 %v6395, %v6346
    %v6397 = vrot.slane %v6396, 4
    %v6398 = vadd.f32 %v6396, %v6397
    %v6399 = vrot.slane %v6398, 2
    %v6400 = vadd.f32 %v6398, %v6399
    %v6401 = vrot.slane %v6400, 1
    %v6402 = vadd.f32 %v6400, %v6401
    %v6403 = vadd.f32 %v6323, %v6331
    %v6404 = vadd.f32 %v6403, %v6339
    %v6405 = vadd.f32 %v6404, %v6347
    %v6406 = vrot.slane %v6405, 4
    %v6407 = vadd.f32 %v6405, %v6406
    %v6408 = vrot.slane %v6407, 2
    %v6409 = vadd.f32 %v6407, %v6408
    %v6410 = vrot.slane %v6409, 1
    %v6411 = vadd.f32 %v6409, %v6410
    %v6412 = vadd.f32 %v6324, %v6332
    %v6413 = vadd.f32 %v6412, %v6340
    %v6414 = vadd.f32 %v6413, %v6348
    %v6415 = vrot.slane %v6414, 4
    %v6416 = vadd.f32 %v6414, %v6415
    %v6417 = vrot.slane %v6416, 2
    %v6418 = vadd.f32 %v6416, %v6417
    %v6419 = vrot.slane %v6418, 1
    %v6420 = vadd.f32 %v6418, %v6419
    %v6421 = vadd.f32 %v6325, %v6333
    %v6422 = vadd.f32 %v6421, %v6341
    %v6423 = vadd.f32 %v6422, %v6349
    %v6424 = vrot.slane %v6423, 4
    %v6425 = vadd.f32 %v6423, %v6424
    %v6426 = vrot.slane %v6425, 2
    %v6427 = vadd.f32 %v6425, %v6426
    %v6428 = vrot.slane %v6427, 1
    %v6429 = vadd.f32 %v6427, %v6428
    %v6430 = vadd.f32 %v6326, %v6334
    %v6431 = vadd.f32 %v6430, %v6342
    %v6432 = vadd.f32 %v6431, %v6350
    %v6433 = vrot.slane %v6432, 4
    %v6434 = vadd.f32 %v6432, %v6433
    %v6435 = vrot.slane %v6434, 2
    %v6436 = vadd.f32 %v6434, %v6435
    %v6437 = vrot.slane %v6436, 1
    %v6438 = vadd.f32 %v6436, %v6437
    %v6439 = vadd.f32 %v6327, %v6335
    %v6440 = vadd.f32 %v6439, %v6343
    %v6441 = vadd.f32 %v6440, %v6351
    %v6442 = vrot.slane %v6441, 4
    %v6443 = vadd.f32 %v6441, %v6442
    %v6444 = vrot.slane %v6443, 2
    %v6445 = vadd.f32 %v6443, %v6444
    %v6446 = vrot.slane %v6445, 1
    %v6447 = vadd.f32 %v6445, %v6446
    %v6448 = vadd.f32 %v6328, %v6336
    %v6449 = vadd.f32 %v6448, %v6344
    %v6450 = vadd.f32 %v6449, %v6352
    %v6451 = vrot.slane %v6450, 4
    %v6452 = vadd.f32 %v6450, %v6451
    %v6453 = vrot.slane %v6452, 2
    %v6454 = vadd.f32 %v6452, %v6453
    %v6455 = vrot.slane %v6454, 1
    %v6456 = vadd.f32 %v6454, %v6455
    %v6457 = vadd.f32 %v6353, %v6361
    %v6458 = vadd.f32 %v6457, %v6369
    %v6459 = vadd.f32 %v6458, %v6377
    %v6460 = vrot.slane %v6459, 4
    %v6461 = vadd.f32 %v6459, %v6460
    %v6462 = vrot.slane %v6461, 2
    %v6463 = vadd.f32 %v6461, %v6462
    %v6464 = vrot.slane %v6463, 1
    %v6465 = vadd.f32 %v6463, %v6464
    %v6466 = vadd.f32 %v6354, %v6362
    %v6467 = vadd.f32 %v6466, %v6370
    %v6468 = vadd.f32 %v6467, %v6378
    %v6469 = vrot.slane %v6468, 4
    %v6470 = vadd.f32 %v6468, %v6469
    %v6471 = vrot.slane %v6470, 2
    %v6472 = vadd.f32 %v6470, %v6471
    %v6473 = vrot.slane %v6472, 1
    %v6474 = vadd.f32 %v6472, %v6473
    %v6475 = vadd.f32 %v6355, %v6363
    %v6476 = vadd.f32 %v6475, %v6371
    %v6477 = vadd.f32 %v6476, %v6379
    %v6478 = vrot.slane %v6477, 4
    %v6479 = vadd.f32 %v6477, %v6478
    %v6480 = vrot.slane %v6479, 2
    %v6481 = vadd.f32 %v6479, %v6480
    %v6482 = vrot.slane %v6481, 1
    %v6483 = vadd.f32 %v6481, %v6482
    %v6484 = vadd.f32 %v6356, %v6364
    %v6485 = vadd.f32 %v6484, %v6372
    %v6486 = vadd.f32 %v6485, %v6380
    %v6487 = vrot.slane %v6486, 4
    %v6488 = vadd.f32 %v6486, %v6487
    %v6489 = vrot.slane %v6488, 2
    %v6490 = vadd.f32 %v6488, %v6489
    %v6491 = vrot.slane %v6490, 1
    %v6492 = vadd.f32 %v6490, %v6491
    %v6493 = vadd.f32 %v6357, %v6365
    %v6494 = vadd.f32 %v6493, %v6373
    %v6495 = vadd.f32 %v6494, %v6381
    %v6496 = vrot.slane %v6495, 4
    %v6497 = vadd.f32 %v6495, %v6496
    %v6498 = vrot.slane %v6497, 2
    %v6499 = vadd.f32 %v6497, %v6498
    %v6500 = vrot.slane %v6499, 1
    %v6501 = vadd.f32 %v6499, %v6500
    %v6502 = vadd.f32 %v6358, %v6366
    %v6503 = vadd.f32 %v6502, %v6374
    %v6504 = vadd.f32 %v6503, %v6382
    %v6505 = vrot.slane %v6504, 4
    %v6506 = vadd.f32 %v6504, %v6505
    %v6507 = vrot.slane %v6506, 2
    %v6508 = vadd.f32 %v6506, %v6507
    %v6509 = vrot.slane %v6508, 1
    %v6510 = vadd.f32 %v6508, %v6509
    %v6511 = vadd.f32 %v6359, %v6367
    %v6512 = vadd.f32 %v6511, %v6375
    %v6513 = vadd.f32 %v6512, %v6383
    %v6514 = vrot.slane %v6513, 4
    %v6515 = vadd.f32 %v6513, %v6514
    %v6516 = vrot.slane %v6515, 2
    %v6517 = vadd.f32 %v6515, %v6516
    %v6518 = vrot.slane %v6517, 1
    %v6519 = vadd.f32 %v6517, %v6518
    %v6520 = vadd.f32 %v6360, %v6368
    %v6521 = vadd.f32 %v6520, %v6376
    %v6522 = vadd.f32 %v6521, %v6384
    %v6523 = vrot.slane %v6522, 4
    %v6524 = vadd.f32 %v6522, %v6523
    %v6525 = vrot.slane %v6524, 2
    %v6526 = vadd.f32 %v6524, %v6525
    %v6527 = vrot.slane %v6526, 1
    %v6528 = vadd.f32 %v6526, %v6527
    %v6529 = vmul.f32 %v6393, 0.03125
    %v6530 = vmul.f32 %v6402, 0.03125
    %v6531 = vmul.f32 %v6411, 0.03125
    %v6532 = vmul.f32 %v6420, 0.03125
    %v6533 = vmul.f32 %v6429, 0.03125
    %v6534 = vmul.f32 %v6438, 0.03125
    %v6535 = vmul.f32 %v6447, 0.03125
    %v6536 = vmul.f32 %v6456, 0.03125
    %v6537 = vmul.f32 %v6465, 0.03125
    %v6538 = vmul.f32 %v6474, 0.03125
    %v6539 = vmul.f32 %v6483, 0.03125
    %v6540 = vmul.f32 %v6492, 0.03125
    %v6541 = vmul.f32 %v6501, 0.03125
    %v6542 = vmul.f32 %v6510, 0.03125
    %v6543 = vmul.f32 %v6519, 0.03125
    %v6544 = vmul.f32 %v6528, 0.03125
    %v6561 = vrot.slane %v6530, 7
    %v6562 = vrot.slane %v6531, 6
    %v6563 = vrot.slane %v6532, 5
    %v6564 = vrot.slane %v6533, 4
    %v6565 = vrot.slane %v6534, 3
    %v6566 = vrot.slane %v6535, 2
    %v6567 = vrot.slane %v6536, 1
    %v6568 = vrot.slane %v6538, 7
    %v6569 = vrot.slane %v6539, 6
    %v6570 = vrot.slane %v6540, 5
    %v6571 = vrot.slane %v6541, 4
    %v6572 = vrot.slane %v6542, 3
    %v6573 = vrot.slane %v6543, 2
    %v6574 = vrot.slane %v6544, 1
    %v6575 = vsel %vm460, %v6529, %v6561
    %v6576 = vsel %vm462, %v6562, %v6563
    %v6577 = vsel %vm464, %v6575, %v6576
    %v6578 = vsel %vm466, %v6564, %v6565
    %v6579 = vsel %vm468, %v6566, %v6567
    %v6580 = vsel %vm470, %v6578, %v6579
    %v6581 = vsel %vm472, %v6577, %v6580
    %v6582 = vsel %vm460, %v6537, %v6568
    %v6583 = vsel %vm462, %v6569, %v6570
    %v6584 = vsel %vm464, %v6582, %v6583
    %v6585 = vsel %vm466, %v6571, %v6572
    %v6586 = vsel %vm468, %v6573, %v6574
    %v6587 = vsel %vm470, %v6585, %v6586
    %v6588 = vsel %vm472, %v6584, %v6587
    %s6591 = scalar_lea.vmem %s9, 3
    %6592 = vst [vmem:[%s6591] ss:$8 sm:$0xf] %v6581
    %6593 = vst [vmem:[%s6591] ss:$8 sm:$0xf0] %v6581
    %s6594 = scalar_lea.vmem %s9, 67
    %6595 = vst [vmem:[%s6594] ss:$8 sm:$0xf] %v6588
    %6596 = vst [vmem:[%s6594] ss:$8 sm:$0xf0] %v6588
    %v6597 = vpack.c.bf16 %v6529, %v6529
    %v6598 = vpack.c.bf16 %v6530, %v6530
    %v6599 = vpack.c.bf16 %v6531, %v6531
    %v6600 = vpack.c.bf16 %v6532, %v6532
    %v6601 = vpack.c.bf16 %v6533, %v6533
    %v6602 = vpack.c.bf16 %v6534, %v6534
    %v6603 = vpack.c.bf16 %v6535, %v6535
    %v6604 = vpack.c.bf16 %v6536, %v6536
    %v6605 = vpack.c.bf16 %v6537, %v6537
    %v6606 = vpack.c.bf16 %v6538, %v6538
    %v6607 = vpack.c.bf16 %v6539, %v6539
    %v6608 = vpack.c.bf16 %v6540, %v6540
    %v6609 = vpack.c.bf16 %v6541, %v6541
    %v6610 = vpack.c.bf16 %v6542, %v6542
    %v6611 = vpack.c.bf16 %v6543, %v6543
    %v6612 = vpack.c.bf16 %v6544, %v6544
    %s6613 = scalar_lea.vmem [#allocation5], 1536
    %v6614 = vld [vmem:[%s6613] sm:$0xf]
    %v6615 = vld [vmem:[%s6613 + $0x4] sm:$0xf]
    %v6616 = vld [vmem:[%s6613 + $0x8] sm:$0xf]
    %v6617 = vld [vmem:[%s6613 + $0xc] sm:$0xf]
    %v6618 = vld [vmem:[%s6613 + $0x10] sm:$0xf]
    %v6619 = vld [vmem:[%s6613 + $0x14] sm:$0xf]
    %v6620 = vld [vmem:[%s6613 + $0x18] sm:$0xf]
    %v6621 = vld [vmem:[%s6613 + $0x1c] sm:$0xf]
    %v6622 = vld [vmem:[%s6613 + $0x20] sm:$0xf]
    %v6623 = vld [vmem:[%s6613 + $0x24] sm:$0xf]
    %v6624 = vld [vmem:[%s6613 + $0x28] sm:$0xf]
    %v6625 = vld [vmem:[%s6613 + $0x2c] sm:$0xf]
    %v6626 = vld [vmem:[%s6613 + $0x30] sm:$0xf]
    %v6627 = vld [vmem:[%s6613 + $0x34] sm:$0xf]
    %v6628 = vld [vmem:[%s6613 + $0x38] sm:$0xf]
    %v6629 = vld [vmem:[%s6613 + $0x3c] sm:$0xf]
    %v6630 = vld [vmem:[%s6613 + $0x40] sm:$0xf]
    %v6631 = vld [vmem:[%s6613 + $0x44] sm:$0xf]
    %v6632 = vld [vmem:[%s6613 + $0x48] sm:$0xf]
    %v6633 = vld [vmem:[%s6613 + $0x4c] sm:$0xf]
    %v6634 = vld [vmem:[%s6613 + $0x50] sm:$0xf]
    %v6635 = vld [vmem:[%s6613 + $0x54] sm:$0xf]
    %v6636 = vld [vmem:[%s6613 + $0x58] sm:$0xf]
    %v6637 = vld [vmem:[%s6613 + $0x5c] sm:$0xf]
    %v6638 = vld [vmem:[%s6613 + $0x60] sm:$0xf]
    %v6639 = vld [vmem:[%s6613 + $0x64] sm:$0xf]
    %v6640 = vld [vmem:[%s6613 + $0x68] sm:$0xf]
    %v6641 = vld [vmem:[%s6613 + $0x6c] sm:$0xf]
    %v6642 = vld [vmem:[%s6613 + $0x70] sm:$0xf]
    %v6643 = vld [vmem:[%s6613 + $0x74] sm:$0xf]
    %v6644 = vld [vmem:[%s6613 + $0x78] sm:$0xf]
    %v6645 = vld [vmem:[%s6613 + $0x7c] sm:$0xf]
    %v6646 = vld [vmem:[%s6613 + $0x80] sm:$0xf]
    %v6647 = vld [vmem:[%s6613 + $0x84] sm:$0xf]
    %v6648 = vld [vmem:[%s6613 + $0x88] sm:$0xf]
    %v6649 = vld [vmem:[%s6613 + $0x8c] sm:$0xf]
    %v6650 = vld [vmem:[%s6613 + $0x90] sm:$0xf]
    %v6651 = vld [vmem:[%s6613 + $0x94] sm:$0xf]
    %v6652 = vld [vmem:[%s6613 + $0x98] sm:$0xf]
    %v6653 = vld [vmem:[%s6613 + $0x9c] sm:$0xf]
    %v6654 = vld [vmem:[%s6613 + $0xa0] sm:$0xf]
    %v6655 = vld [vmem:[%s6613 + $0xa4] sm:$0xf]
    %v6656 = vld [vmem:[%s6613 + $0xa8] sm:$0xf]
    %v6657 = vld [vmem:[%s6613 + $0xac] sm:$0xf]
    %v6658 = vld [vmem:[%s6613 + $0xb0] sm:$0xf]
    %v6659 = vld [vmem:[%s6613 + $0xb4] sm:$0xf]
    %v6660 = vld [vmem:[%s6613 + $0xb8] sm:$0xf]
    %v6661 = vld [vmem:[%s6613 + $0xbc] sm:$0xf]
    %v6662 = vld [vmem:[%s6613 + $0xc0] sm:$0xf]
    %v6663 = vld [vmem:[%s6613 + $0xc4] sm:$0xf]
    %v6664 = vld [vmem:[%s6613 + $0xc8] sm:$0xf]
    %v6665 = vld [vmem:[%s6613 + $0xcc] sm:$0xf]
    %v6666 = vld [vmem:[%s6613 + $0xd0] sm:$0xf]
    %v6667 = vld [vmem:[%s6613 + $0xd4] sm:$0xf]
    %v6668 = vld [vmem:[%s6613 + $0xd8] sm:$0xf]
    %v6669 = vld [vmem:[%s6613 + $0xdc] sm:$0xf]
    %v6670 = vld [vmem:[%s6613 + $0xe0] sm:$0xf]
    %v6671 = vld [vmem:[%s6613 + $0xe4] sm:$0xf]
    %v6672 = vld [vmem:[%s6613 + $0xe8] sm:$0xf]
    %v6673 = vld [vmem:[%s6613 + $0xec] sm:$0xf]
    %v6674 = vld [vmem:[%s6613 + $0xf0] sm:$0xf]
    %v6675 = vld [vmem:[%s6613 + $0xf4] sm:$0xf]
    %v6676 = vld [vmem:[%s6613 + $0xf8] sm:$0xf]
    %v6677 = vld [vmem:[%s6613 + $0xfc] sm:$0xf]
    %v6678 = vld [vmem:[%s6613 + $0x100] sm:$0xf]
    %v6679 = vld [vmem:[%s6613 + $0x104] sm:$0xf]
    %v6680 = vld [vmem:[%s6613 + $0x108] sm:$0xf]
    %v6681 = vld [vmem:[%s6613 + $0x10c] sm:$0xf]
    %v6682 = vld [vmem:[%s6613 + $0x110] sm:$0xf]
    %v6683 = vld [vmem:[%s6613 + $0x114] sm:$0xf]
    %v6684 = vld [vmem:[%s6613 + $0x118] sm:$0xf]
    %v6685 = vld [vmem:[%s6613 + $0x11c] sm:$0xf]
    %v6686 = vld [vmem:[%s6613 + $0x120] sm:$0xf]
    %v6687 = vld [vmem:[%s6613 + $0x124] sm:$0xf]
    %v6688 = vld [vmem:[%s6613 + $0x128] sm:$0xf]
    %v6689 = vld [vmem:[%s6613 + $0x12c] sm:$0xf]
    %v6690 = vld [vmem:[%s6613 + $0x130] sm:$0xf]
    %v6691 = vld [vmem:[%s6613 + $0x134] sm:$0xf]
    %v6692 = vld [vmem:[%s6613 + $0x138] sm:$0xf]
    %v6693 = vld [vmem:[%s6613 + $0x13c] sm:$0xf]
    %v6694 = vld [vmem:[%s6613 + $0x140] sm:$0xf]
    %v6695 = vld [vmem:[%s6613 + $0x144] sm:$0xf]
    %v6696 = vld [vmem:[%s6613 + $0x148] sm:$0xf]
    %v6697 = vld [vmem:[%s6613 + $0x14c] sm:$0xf]
    %v6698 = vld [vmem:[%s6613 + $0x150] sm:$0xf]
    %v6699 = vld [vmem:[%s6613 + $0x154] sm:$0xf]
    %v6700 = vld [vmem:[%s6613 + $0x158] sm:$0xf]
    %v6701 = vld [vmem:[%s6613 + $0x15c] sm:$0xf]
    %v6702 = vld [vmem:[%s6613 + $0x160] sm:$0xf]
    %v6703 = vld [vmem:[%s6613 + $0x164] sm:$0xf]
    %v6704 = vld [vmem:[%s6613 + $0x168] sm:$0xf]
    %v6705 = vld [vmem:[%s6613 + $0x16c] sm:$0xf]
    %v6706 = vld [vmem:[%s6613 + $0x170] sm:$0xf]
    %v6707 = vld [vmem:[%s6613 + $0x174] sm:$0xf]
    %v6708 = vld [vmem:[%s6613 + $0x178] sm:$0xf]
    %v6709 = vld [vmem:[%s6613 + $0x17c] sm:$0xf]
    %v6710 = vld [vmem:[%s6613 + $0x180] sm:$0xf]
    %v6711 = vld [vmem:[%s6613 + $0x184] sm:$0xf]
    %v6712 = vld [vmem:[%s6613 + $0x188] sm:$0xf]
    %v6713 = vld [vmem:[%s6613 + $0x18c] sm:$0xf]
    %v6714 = vld [vmem:[%s6613 + $0x190] sm:$0xf]
    %v6715 = vld [vmem:[%s6613 + $0x194] sm:$0xf]
    %v6716 = vld [vmem:[%s6613 + $0x198] sm:$0xf]
    %v6717 = vld [vmem:[%s6613 + $0x19c] sm:$0xf]
    %v6718 = vld [vmem:[%s6613 + $0x1a0] sm:$0xf]
    %v6719 = vld [vmem:[%s6613 + $0x1a4] sm:$0xf]
    %v6720 = vld [vmem:[%s6613 + $0x1a8] sm:$0xf]
    %v6721 = vld [vmem:[%s6613 + $0x1ac] sm:$0xf]
    %v6722 = vld [vmem:[%s6613 + $0x1b0] sm:$0xf]
    %v6723 = vld [vmem:[%s6613 + $0x1b4] sm:$0xf]
    %v6724 = vld [vmem:[%s6613 + $0x1b8] sm:$0xf]
    %v6725 = vld [vmem:[%s6613 + $0x1bc] sm:$0xf]
    %v6726 = vld [vmem:[%s6613 + $0x1c0] sm:$0xf]
    %v6727 = vld [vmem:[%s6613 + $0x1c4] sm:$0xf]
    %v6728 = vld [vmem:[%s6613 + $0x1c8] sm:$0xf]
    %v6729 = vld [vmem:[%s6613 + $0x1cc] sm:$0xf]
    %v6730 = vld [vmem:[%s6613 + $0x1d0] sm:$0xf]
    %v6731 = vld [vmem:[%s6613 + $0x1d4] sm:$0xf]
    %v6732 = vld [vmem:[%s6613 + $0x1d8] sm:$0xf]
    %v6733 = vld [vmem:[%s6613 + $0x1dc] sm:$0xf]
    %v6734 = vld [vmem:[%s6613 + $0x1e0] sm:$0xf]
    %v6735 = vld [vmem:[%s6613 + $0x1e4] sm:$0xf]
    %v6736 = vld [vmem:[%s6613 + $0x1e8] sm:$0xf]
    %v6737 = vld [vmem:[%s6613 + $0x1ec] sm:$0xf]
    %v6738 = vld [vmem:[%s6613 + $0x1f0] sm:$0xf]
    %v6739 = vld [vmem:[%s6613 + $0x1f4] sm:$0xf]
    %v6740 = vld [vmem:[%s6613 + $0x1f8] sm:$0xf]
    %v6741 = vld [vmem:[%s6613 + $0x1fc] sm:$0xf]
    %v6758 = vunpack.c.l.b16 %v6597
    %v6759 = vunpack.c.l.b16 %v6598
    %v6760 = vunpack.c.l.b16 %v6599
    %v6761 = vunpack.c.l.b16 %v6600
    %v6762 = vunpack.c.l.b16 %v6601
    %v6763 = vunpack.c.l.b16 %v6602
    %v6764 = vunpack.c.l.b16 %v6603
    %v6765 = vunpack.c.l.b16 %v6604
    %v6766 = vunpack.c.l.b16 %v6605
    %v6767 = vunpack.c.l.b16 %v6606
    %v6768 = vunpack.c.l.b16 %v6607
    %v6769 = vunpack.c.l.b16 %v6608
    %v6770 = vunpack.c.l.b16 %v6609
    %v6771 = vunpack.c.l.b16 %v6610
    %v6772 = vunpack.c.l.b16 %v6611
    %v6773 = vunpack.c.l.b16 %v6612
    %v6774 = vsel %vm798, %v6766, %v6758
    %v6775 = vsel %vm798, %v6767, %v6759
    %v6776 = vsel %vm798, %v6768, %v6760
    %v6777 = vsel %vm798, %v6769, %v6761
    %v6778 = vsel %vm798, %v6770, %v6762
    %v6779 = vsel %vm798, %v6771, %v6763
    %v6780 = vsel %vm798, %v6772, %v6764
    %v6781 = vsel %vm798, %v6773, %v6765
    %v6782 = vpack.c.b16 %v6774, %v6774
    %v6783 = vpack.c.b16 %v6775, %v6775
    %v6784 = vpack.c.b16 %v6776, %v6776
    %v6785 = vpack.c.b16 %v6777, %v6777
    %v6786 = vpack.c.b16 %v6778, %v6778
    %v6787 = vpack.c.b16 %v6779, %v6779
    %v6788 = vpack.c.b16 %v6780, %v6780
    %v6789 = vpack.c.b16 %v6781, %v6781
    %v6926 = vunpack.c.l.b16 %v6614
    %v6927 = vunpack.c.l.b16 %v6615
    %v6928 = vunpack.c.l.b16 %v6616
    %v6929 = vunpack.c.l.b16 %v6617
    %v6930 = vunpack.c.l.b16 %v6618
    %v6931 = vunpack.c.l.b16 %v6619
    %v6932 = vunpack.c.l.b16 %v6620
    %v6933 = vunpack.c.l.b16 %v6621
    %v6934 = vunpack.c.l.b16 %v6622
    %v6935 = vunpack.c.l.b16 %v6623
    %v6936 = vunpack.c.l.b16 %v6624
    %v6937 = vunpack.c.l.b16 %v6625
    %v6938 = vunpack.c.l.b16 %v6626
    %v6939 = vunpack.c.l.b16 %v6627
    %v6940 = vunpack.c.l.b16 %v6628
    %v6941 = vunpack.c.l.b16 %v6629
    %v6942 = vunpack.c.l.b16 %v6630
    %v6943 = vunpack.c.l.b16 %v6631
    %v6944 = vunpack.c.l.b16 %v6632
    %v6945 = vunpack.c.l.b16 %v6633
    %v6946 = vunpack.c.l.b16 %v6634
    %v6947 = vunpack.c.l.b16 %v6635
    %v6948 = vunpack.c.l.b16 %v6636
    %v6949 = vunpack.c.l.b16 %v6637
    %v6950 = vunpack.c.l.b16 %v6638
    %v6951 = vunpack.c.l.b16 %v6639
    %v6952 = vunpack.c.l.b16 %v6640
    %v6953 = vunpack.c.l.b16 %v6641
    %v6954 = vunpack.c.l.b16 %v6642
    %v6955 = vunpack.c.l.b16 %v6643
    %v6956 = vunpack.c.l.b16 %v6644
    %v6957 = vunpack.c.l.b16 %v6645
    %v6958 = vunpack.c.l.b16 %v6646
    %v6959 = vunpack.c.l.b16 %v6647
    %v6960 = vunpack.c.l.b16 %v6648
    %v6961 = vunpack.c.l.b16 %v6649
    %v6962 = vunpack.c.l.b16 %v6650
    %v6963 = vunpack.c.l.b16 %v6651
    %v6964 = vunpack.c.l.b16 %v6652
    %v6965 = vunpack.c.l.b16 %v6653
    %v6966 = vunpack.c.l.b16 %v6654
    %v6967 = vunpack.c.l.b16 %v6655
    %v6968 = vunpack.c.l.b16 %v6656
    %v6969 = vunpack.c.l.b16 %v6657
    %v6970 = vunpack.c.l.b16 %v6658
    %v6971 = vunpack.c.l.b16 %v6659
    %v6972 = vunpack.c.l.b16 %v6660
    %v6973 = vunpack.c.l.b16 %v6661
    %v6974 = vunpack.c.l.b16 %v6662
    %v6975 = vunpack.c.l.b16 %v6663
    %v6976 = vunpack.c.l.b16 %v6664
    %v6977 = vunpack.c.l.b16 %v6665
    %v6978 = vunpack.c.l.b16 %v6666
    %v6979 = vunpack.c.l.b16 %v6667
    %v6980 = vunpack.c.l.b16 %v6668
    %v6981 = vunpack.c.l.b16 %v6669
    %v6982 = vunpack.c.l.b16 %v6670
    %v6983 = vunpack.c.l.b16 %v6671
    %v6984 = vunpack.c.l.b16 %v6672
    %v6985 = vunpack.c.l.b16 %v6673
    %v6986 = vunpack.c.l.b16 %v6674
    %v6987 = vunpack.c.l.b16 %v6675
    %v6988 = vunpack.c.l.b16 %v6676
    %v6989 = vunpack.c.l.b16 %v6677
    %v6990 = vunpack.c.l.b16 %v6678
    %v6991 = vunpack.c.l.b16 %v6679
    %v6992 = vunpack.c.l.b16 %v6680
    %v6993 = vunpack.c.l.b16 %v6681
    %v6994 = vunpack.c.l.b16 %v6682
    %v6995 = vunpack.c.l.b16 %v6683
    %v6996 = vunpack.c.l.b16 %v6684
    %v6997 = vunpack.c.l.b16 %v6685
    %v6998 = vunpack.c.l.b16 %v6686
    %v6999 = vunpack.c.l.b16 %v6687
    %v7000 = vunpack.c.l.b16 %v6688
    %v7001 = vunpack.c.l.b16 %v6689
    %v7002 = vunpack.c.l.b16 %v6690
    %v7003 = vunpack.c.l.b16 %v6691
    %v7004 = vunpack.c.l.b16 %v6692
    %v7005 = vunpack.c.l.b16 %v6693
    %v7006 = vunpack.c.l.b16 %v6694
    %v7007 = vunpack.c.l.b16 %v6695
    %v7008 = vunpack.c.l.b16 %v6696
    %v7009 = vunpack.c.l.b16 %v6697
    %v7010 = vunpack.c.l.b16 %v6698
    %v7011 = vunpack.c.l.b16 %v6699
    %v7012 = vunpack.c.l.b16 %v6700
    %v7013 = vunpack.c.l.b16 %v6701
    %v7014 = vunpack.c.l.b16 %v6702
    %v7015 = vunpack.c.l.b16 %v6703
    %v7016 = vunpack.c.l.b16 %v6704
    %v7017 = vunpack.c.l.b16 %v6705
    %v7018 = vunpack.c.l.b16 %v6706
    %v7019 = vunpack.c.l.b16 %v6707
    %v7020 = vunpack.c.l.b16 %v6708
    %v7021 = vunpack.c.l.b16 %v6709
    %v7022 = vunpack.c.l.b16 %v6710
    %v7023 = vunpack.c.l.b16 %v6711
    %v7024 = vunpack.c.l.b16 %v6712
    %v7025 = vunpack.c.l.b16 %v6713
    %v7026 = vunpack.c.l.b16 %v6714
    %v7027 = vunpack.c.l.b16 %v6715
    %v7028 = vunpack.c.l.b16 %v6716
    %v7029 = vunpack.c.l.b16 %v6717
    %v7030 = vunpack.c.l.b16 %v6718
    %v7031 = vunpack.c.l.b16 %v6719
    %v7032 = vunpack.c.l.b16 %v6720
    %v7033 = vunpack.c.l.b16 %v6721
    %v7034 = vunpack.c.l.b16 %v6722
    %v7035 = vunpack.c.l.b16 %v6723
    %v7036 = vunpack.c.l.b16 %v6724
    %v7037 = vunpack.c.l.b16 %v6725
    %v7038 = vunpack.c.l.b16 %v6726
    %v7039 = vunpack.c.l.b16 %v6727
    %v7040 = vunpack.c.l.b16 %v6728
    %v7041 = vunpack.c.l.b16 %v6729
    %v7042 = vunpack.c.l.b16 %v6730
    %v7043 = vunpack.c.l.b16 %v6731
    %v7044 = vunpack.c.l.b16 %v6732
    %v7045 = vunpack.c.l.b16 %v6733
    %v7046 = vunpack.c.l.b16 %v6734
    %v7047 = vunpack.c.l.b16 %v6735
    %v7048 = vunpack.c.l.b16 %v6736
    %v7049 = vunpack.c.l.b16 %v6737
    %v7050 = vunpack.c.l.b16 %v6738
    %v7051 = vunpack.c.l.b16 %v6739
    %v7052 = vunpack.c.l.b16 %v6740
    %v7053 = vunpack.c.l.b16 %v6741
    %v7054 = vpack.c.b16 %v6927, %v6926
    %v7055 = vpack.c.b16 %v6929, %v6928
    %v7056 = vpack.c.b16 %v6931, %v6930
    %v7057 = vpack.c.b16 %v6933, %v6932
    %v7058 = vpack.c.b16 %v6935, %v6934
    %v7059 = vpack.c.b16 %v6937, %v6936
    %v7060 = vpack.c.b16 %v6939, %v6938
    %v7061 = vpack.c.b16 %v6941, %v6940
    %v7062 = vpack.c.b16 %v6943, %v6942
    %v7063 = vpack.c.b16 %v6945, %v6944
    %v7064 = vpack.c.b16 %v6947, %v6946
    %v7065 = vpack.c.b16 %v6949, %v6948
    %v7066 = vpack.c.b16 %v6951, %v6950
    %v7067 = vpack.c.b16 %v6953, %v6952
    %v7068 = vpack.c.b16 %v6955, %v6954
    %v7069 = vpack.c.b16 %v6957, %v6956
    %v7070 = vpack.c.b16 %v6959, %v6958
    %v7071 = vpack.c.b16 %v6961, %v6960
    %v7072 = vpack.c.b16 %v6963, %v6962
    %v7073 = vpack.c.b16 %v6965, %v6964
    %v7074 = vpack.c.b16 %v6967, %v6966
    %v7075 = vpack.c.b16 %v6969, %v6968
    %v7076 = vpack.c.b16 %v6971, %v6970
    %v7077 = vpack.c.b16 %v6973, %v6972
    %v7078 = vpack.c.b16 %v6975, %v6974
    %v7079 = vpack.c.b16 %v6977, %v6976
    %v7080 = vpack.c.b16 %v6979, %v6978
    %v7081 = vpack.c.b16 %v6981, %v6980
    %v7082 = vpack.c.b16 %v6983, %v6982
    %v7083 = vpack.c.b16 %v6985, %v6984
    %v7084 = vpack.c.b16 %v6987, %v6986
    %v7085 = vpack.c.b16 %v6989, %v6988
    %v7086 = vpack.c.b16 %v6991, %v6990
    %v7087 = vpack.c.b16 %v6993, %v6992
    %v7088 = vpack.c.b16 %v6995, %v6994
    %v7089 = vpack.c.b16 %v6997, %v6996
    %v7090 = vpack.c.b16 %v6999, %v6998
    %v7091 = vpack.c.b16 %v7001, %v7000
    %v7092 = vpack.c.b16 %v7003, %v7002
    %v7093 = vpack.c.b16 %v7005, %v7004
    %v7094 = vpack.c.b16 %v7007, %v7006
    %v7095 = vpack.c.b16 %v7009, %v7008
    %v7096 = vpack.c.b16 %v7011, %v7010
    %v7097 = vpack.c.b16 %v7013, %v7012
    %v7098 = vpack.c.b16 %v7015, %v7014
    %v7099 = vpack.c.b16 %v7017, %v7016
    %v7100 = vpack.c.b16 %v7019, %v7018
    %v7101 = vpack.c.b16 %v7021, %v7020
    %v7102 = vpack.c.b16 %v7023, %v7022
    %v7103 = vpack.c.b16 %v7025, %v7024
    %v7104 = vpack.c.b16 %v7027, %v7026
    %v7105 = vpack.c.b16 %v7029, %v7028
    %v7106 = vpack.c.b16 %v7031, %v7030
    %v7107 = vpack.c.b16 %v7033, %v7032
    %v7108 = vpack.c.b16 %v7035, %v7034
    %v7109 = vpack.c.b16 %v7037, %v7036
    %v7110 = vpack.c.b16 %v7039, %v7038
    %v7111 = vpack.c.b16 %v7041, %v7040
    %v7112 = vpack.c.b16 %v7043, %v7042
    %v7113 = vpack.c.b16 %v7045, %v7044
    %v7114 = vpack.c.b16 %v7047, %v7046
    %v7115 = vpack.c.b16 %v7049, %v7048
    %v7116 = vpack.c.b16 %v7051, %v7050
    %v7117 = vpack.c.b16 %v7053, %v7052
    %7182 = vmatpush.bf16.msra.mxu0 %v7061
    %7183 = vmatpush.bf16.msra.mxu0 %v7060
    %7184 = vmatpush.bf16.msra.mxu0 %v7059
    %7185 = vmatpush.bf16.msra.mxu0 %v7058
    %7186 = vmatpush.bf16.msra.mxu0 %v7057
    %7187 = vmatpush.bf16.msra.mxu0 %v7056
    %7188 = vmatpush.bf16.msra.mxu0 %v7055
    %7189 = vmatpush.bf16.msra.mxu0 %v7054
    %7190 = vmatmul.bf16.gmra.mxu0 %v6782
    %v7191 = vpop.f32.mrf.mxu0
    %v7192 = vadd.f32 0.0, %v7191
    %v7193 = vpop.f32.mrf.mxu0
    %7194 = vdwg.mxu0
    %7195 = vmatpush.bf16.msra.mxu0 %v7069
    %7196 = vmatpush.bf16.msra.mxu0 %v7068
    %7197 = vmatpush.bf16.msra.mxu0 %v7067
    %7198 = vmatpush.bf16.msra.mxu0 %v7066
    %7199 = vmatpush.bf16.msra.mxu0 %v7065
    %7200 = vmatpush.bf16.msra.mxu0 %v7064
    %7201 = vmatpush.bf16.msra.mxu0 %v7063
    %7202 = vmatpush.bf16.msra.mxu0 %v7062
    %7203 = vmatmul.bf16.gmra.mxu0 %v6783
    %v7204 = vpop.f32.mrf.mxu0
    %v7205 = vadd.f32 %v7192, %v7204
    %v7206 = vpop.f32.mrf.mxu0
    %7207 = vdwg.mxu0
    %7208 = vmatpush.bf16.msra.mxu0 %v7077
    %7209 = vmatpush.bf16.msra.mxu0 %v7076
    %7210 = vmatpush.bf16.msra.mxu0 %v7075
    %7211 = vmatpush.bf16.msra.mxu0 %v7074
    %7212 = vmatpush.bf16.msra.mxu0 %v7073
    %7213 = vmatpush.bf16.msra.mxu0 %v7072
    %7214 = vmatpush.bf16.msra.mxu0 %v7071
    %7215 = vmatpush.bf16.msra.mxu0 %v7070
    %7216 = vmatmul.bf16.gmra.mxu0 %v6784
    %v7217 = vpop.f32.mrf.mxu0
    %v7218 = vadd.f32 %v7205, %v7217
    %v7219 = vpop.f32.mrf.mxu0
    %7220 = vdwg.mxu0
    %7221 = vmatpush.bf16.msra.mxu0 %v7085
    %7222 = vmatpush.bf16.msra.mxu0 %v7084
    %7223 = vmatpush.bf16.msra.mxu0 %v7083
    %7224 = vmatpush.bf16.msra.mxu0 %v7082
    %7225 = vmatpush.bf16.msra.mxu0 %v7081
    %7226 = vmatpush.bf16.msra.mxu0 %v7080
    %7227 = vmatpush.bf16.msra.mxu0 %v7079
    %7228 = vmatpush.bf16.msra.mxu0 %v7078
    %7229 = vmatmul.bf16.gmra.mxu0 %v6785
    %v7230 = vpop.f32.mrf.mxu0
    %v7231 = vadd.f32 %v7218, %v7230
    %v7232 = vpop.f32.mrf.mxu0
    %7233 = vdwg.mxu0
    %7234 = vmatpush.bf16.msra.mxu0 %v7093
    %7235 = vmatpush.bf16.msra.mxu0 %v7092
    %7236 = vmatpush.bf16.msra.mxu0 %v7091
    %7237 = vmatpush.bf16.msra.mxu0 %v7090
    %7238 = vmatpush.bf16.msra.mxu0 %v7089
    %7239 = vmatpush.bf16.msra.mxu0 %v7088
    %7240 = vmatpush.bf16.msra.mxu0 %v7087
    %7241 = vmatpush.bf16.msra.mxu0 %v7086
    %7242 = vmatmul.bf16.gmra.mxu0 %v6786
    %v7243 = vpop.f32.mrf.mxu0
    %v7244 = vadd.f32 %v7231, %v7243
    %v7245 = vpop.f32.mrf.mxu0
    %7246 = vdwg.mxu0
    %7247 = vmatpush.bf16.msra.mxu0 %v7101
    %7248 = vmatpush.bf16.msra.mxu0 %v7100
    %7249 = vmatpush.bf16.msra.mxu0 %v7099
    %7250 = vmatpush.bf16.msra.mxu0 %v7098
    %7251 = vmatpush.bf16.msra.mxu0 %v7097
    %7252 = vmatpush.bf16.msra.mxu0 %v7096
    %7253 = vmatpush.bf16.msra.mxu0 %v7095
    %7254 = vmatpush.bf16.msra.mxu0 %v7094
    %7255 = vmatmul.bf16.gmra.mxu0 %v6787
    %v7256 = vpop.f32.mrf.mxu0
    %v7257 = vadd.f32 %v7244, %v7256
    %v7258 = vpop.f32.mrf.mxu0
    %7259 = vdwg.mxu0
    %7260 = vmatpush.bf16.msra.mxu0 %v7109
    %7261 = vmatpush.bf16.msra.mxu0 %v7108
    %7262 = vmatpush.bf16.msra.mxu0 %v7107
    %7263 = vmatpush.bf16.msra.mxu0 %v7106
    %7264 = vmatpush.bf16.msra.mxu0 %v7105
    %7265 = vmatpush.bf16.msra.mxu0 %v7104
    %7266 = vmatpush.bf16.msra.mxu0 %v7103
    %7267 = vmatpush.bf16.msra.mxu0 %v7102
    %7268 = vmatmul.bf16.gmra.mxu0 %v6788
    %v7269 = vpop.f32.mrf.mxu0
    %v7270 = vadd.f32 %v7257, %v7269
    %v7271 = vpop.f32.mrf.mxu0
    %7272 = vdwg.mxu0
    %7273 = vmatpush.bf16.msra.mxu0 %v7117
    %7274 = vmatpush.bf16.msra.mxu0 %v7116
    %7275 = vmatpush.bf16.msra.mxu0 %v7115
    %7276 = vmatpush.bf16.msra.mxu0 %v7114
    %7277 = vmatpush.bf16.msra.mxu0 %v7113
    %7278 = vmatpush.bf16.msra.mxu0 %v7112
    %7279 = vmatpush.bf16.msra.mxu0 %v7111
    %7280 = vmatpush.bf16.msra.mxu0 %v7110
    %7281 = vmatmul.bf16.gmra.mxu0 %v6789
    %v7282 = vpop.f32.mrf.mxu0
    %v7283 = vadd.f32 %v7270, %v7282
    %v7284 = vpop.f32.mrf.mxu0
    %7285 = vdwg.mxu0
    %v7286 = vadd.f32 %v5248, %v7283
    %s7287 = scalar_lea.vmem [#allocation8], 3072
    %v7288 = vld [vmem:[%s7287] sm:$0xff]
    %v7289 = vld [vmem:[%s7287 + $0x8] sm:$0xff]
    %v7290 = vld [vmem:[%s7287 + $0x10] sm:$0xff]
    %v7291 = vld [vmem:[%s7287 + $0x18] sm:$0xff]
    %v7292 = vld [vmem:[%s7287 + $0x20] sm:$0xff]
    %v7293 = vld [vmem:[%s7287 + $0x28] sm:$0xff]
    %v7294 = vld [vmem:[%s7287 + $0x30] sm:$0xff]
    %v7295 = vld [vmem:[%s7287 + $0x38] sm:$0xff]
    %v7296 = vld [vmem:[%s7287 + $0x40] sm:$0xff]
    %v7297 = vld [vmem:[%s7287 + $0x48] sm:$0xff]
    %v7298 = vld [vmem:[%s7287 + $0x50] sm:$0xff]
    %v7299 = vld [vmem:[%s7287 + $0x58] sm:$0xff]
    %v7300 = vld [vmem:[%s7287 + $0x60] sm:$0xff]
    %v7301 = vld [vmem:[%s7287 + $0x68] sm:$0xff]
    %v7302 = vld [vmem:[%s7287 + $0x70] sm:$0xff]
    %v7303 = vld [vmem:[%s7287 + $0x78] sm:$0xff]
    %v7304 = vld [vmem:[%s7287 + $0x80] sm:$0xff]
    %v7305 = vld [vmem:[%s7287 + $0x88] sm:$0xff]
    %v7306 = vld [vmem:[%s7287 + $0x90] sm:$0xff]
    %v7307 = vld [vmem:[%s7287 + $0x98] sm:$0xff]
    %v7308 = vld [vmem:[%s7287 + $0xa0] sm:$0xff]
    %v7309 = vld [vmem:[%s7287 + $0xa8] sm:$0xff]
    %v7310 = vld [vmem:[%s7287 + $0xb0] sm:$0xff]
    %v7311 = vld [vmem:[%s7287 + $0xb8] sm:$0xff]
    %v7312 = vld [vmem:[%s7287 + $0xc0] sm:$0xff]
    %v7313 = vld [vmem:[%s7287 + $0xc8] sm:$0xff]
    %v7314 = vld [vmem:[%s7287 + $0xd0] sm:$0xff]
    %v7315 = vld [vmem:[%s7287 + $0xd8] sm:$0xff]
    %v7316 = vld [vmem:[%s7287 + $0xe0] sm:$0xff]
    %v7317 = vld [vmem:[%s7287 + $0xe8] sm:$0xff]
    %v7318 = vld [vmem:[%s7287 + $0xf0] sm:$0xff]
    %v7319 = vld [vmem:[%s7287 + $0xf8] sm:$0xff]
    %v7320 = vld [vmem:[%s7287 + $0x100] sm:$0xff]
    %v7321 = vld [vmem:[%s7287 + $0x108] sm:$0xff]
    %v7322 = vld [vmem:[%s7287 + $0x110] sm:$0xff]
    %v7323 = vld [vmem:[%s7287 + $0x118] sm:$0xff]
    %v7324 = vld [vmem:[%s7287 + $0x120] sm:$0xff]
    %v7325 = vld [vmem:[%s7287 + $0x128] sm:$0xff]
    %v7326 = vld [vmem:[%s7287 + $0x130] sm:$0xff]
    %v7327 = vld [vmem:[%s7287 + $0x138] sm:$0xff]
    %v7328 = vld [vmem:[%s7287 + $0x140] sm:$0xff]
    %v7329 = vld [vmem:[%s7287 + $0x148] sm:$0xff]
    %v7330 = vld [vmem:[%s7287 + $0x150] sm:$0xff]
    %v7331 = vld [vmem:[%s7287 + $0x158] sm:$0xff]
    %v7332 = vld [vmem:[%s7287 + $0x160] sm:$0xff]
    %v7333 = vld [vmem:[%s7287 + $0x168] sm:$0xff]
    %v7334 = vld [vmem:[%s7287 + $0x170] sm:$0xff]
    %v7335 = vld [vmem:[%s7287 + $0x178] sm:$0xff]
    %v7336 = vld [vmem:[%s7287 + $0x180] sm:$0xff]
    %v7337 = vld [vmem:[%s7287 + $0x188] sm:$0xff]
    %v7338 = vld [vmem:[%s7287 + $0x190] sm:$0xff]
    %v7339 = vld [vmem:[%s7287 + $0x198] sm:$0xff]
    %v7340 = vld [vmem:[%s7287 + $0x1a0] sm:$0xff]
    %v7341 = vld [vmem:[%s7287 + $0x1a8] sm:$0xff]
    %v7342 = vld [vmem:[%s7287 + $0x1b0] sm:$0xff]
    %v7343 = vld [vmem:[%s7287 + $0x1b8] sm:$0xff]
    %v7344 = vld [vmem:[%s7287 + $0x1c0] sm:$0xff]
    %v7345 = vld [vmem:[%s7287 + $0x1c8] sm:$0xff]
    %v7346 = vld [vmem:[%s7287 + $0x1d0] sm:$0xff]
    %v7347 = vld [vmem:[%s7287 + $0x1d8] sm:$0xff]
    %v7348 = vld [vmem:[%s7287 + $0x1e0] sm:$0xff]
    %v7349 = vld [vmem:[%s7287 + $0x1e8] sm:$0xff]
    %v7350 = vld [vmem:[%s7287 + $0x1f0] sm:$0xff]
    %v7351 = vld [vmem:[%s7287 + $0x1f8] sm:$0xff]
    %v7352 = vld [vmem:[%s7287 + $0x200] sm:$0xff]
    %v7353 = vld [vmem:[%s7287 + $0x208] sm:$0xff]
    %v7354 = vld [vmem:[%s7287 + $0x210] sm:$0xff]
    %v7355 = vld [vmem:[%s7287 + $0x218] sm:$0xff]
    %v7356 = vld [vmem:[%s7287 + $0x220] sm:$0xff]
    %v7357 = vld [vmem:[%s7287 + $0x228] sm:$0xff]
    %v7358 = vld [vmem:[%s7287 + $0x230] sm:$0xff]
    %v7359 = vld [vmem:[%s7287 + $0x238] sm:$0xff]
    %v7360 = vld [vmem:[%s7287 + $0x240] sm:$0xff]
    %v7361 = vld [vmem:[%s7287 + $0x248] sm:$0xff]
    %v7362 = vld [vmem:[%s7287 + $0x250] sm:$0xff]
    %v7363 = vld [vmem:[%s7287 + $0x258] sm:$0xff]
    %v7364 = vld [vmem:[%s7287 + $0x260] sm:$0xff]
    %v7365 = vld [vmem:[%s7287 + $0x268] sm:$0xff]
    %v7366 = vld [vmem:[%s7287 + $0x270] sm:$0xff]
    %v7367 = vld [vmem:[%s7287 + $0x278] sm:$0xff]
    %v7368 = vld [vmem:[%s7287 + $0x280] sm:$0xff]
    %v7369 = vld [vmem:[%s7287 + $0x288] sm:$0xff]
    %v7370 = vld [vmem:[%s7287 + $0x290] sm:$0xff]
    %v7371 = vld [vmem:[%s7287 + $0x298] sm:$0xff]
    %v7372 = vld [vmem:[%s7287 + $0x2a0] sm:$0xff]
    %v7373 = vld [vmem:[%s7287 + $0x2a8] sm:$0xff]
    %v7374 = vld [vmem:[%s7287 + $0x2b0] sm:$0xff]
    %v7375 = vld [vmem:[%s7287 + $0x2b8] sm:$0xff]
    %v7376 = vld [vmem:[%s7287 + $0x2c0] sm:$0xff]
    %v7377 = vld [vmem:[%s7287 + $0x2c8] sm:$0xff]
    %v7378 = vld [vmem:[%s7287 + $0x2d0] sm:$0xff]
    %v7379 = vld [vmem:[%s7287 + $0x2d8] sm:$0xff]
    %v7380 = vld [vmem:[%s7287 + $0x2e0] sm:$0xff]
    %v7381 = vld [vmem:[%s7287 + $0x2e8] sm:$0xff]
    %v7382 = vld [vmem:[%s7287 + $0x2f0] sm:$0xff]
    %v7383 = vld [vmem:[%s7287 + $0x2f8] sm:$0xff]
    %v7384 = vld [vmem:[%s7287 + $0x300] sm:$0xff]
    %v7385 = vld [vmem:[%s7287 + $0x308] sm:$0xff]
    %v7386 = vld [vmem:[%s7287 + $0x310] sm:$0xff]
    %v7387 = vld [vmem:[%s7287 + $0x318] sm:$0xff]
    %v7388 = vld [vmem:[%s7287 + $0x320] sm:$0xff]
    %v7389 = vld [vmem:[%s7287 + $0x328] sm:$0xff]
    %v7390 = vld [vmem:[%s7287 + $0x330] sm:$0xff]
    %v7391 = vld [vmem:[%s7287 + $0x338] sm:$0xff]
    %v7392 = vld [vmem:[%s7287 + $0x340] sm:$0xff]
    %v7393 = vld [vmem:[%s7287 + $0x348] sm:$0xff]
    %v7394 = vld [vmem:[%s7287 + $0x350] sm:$0xff]
    %v7395 = vld [vmem:[%s7287 + $0x358] sm:$0xff]
    %v7396 = vld [vmem:[%s7287 + $0x360] sm:$0xff]
    %v7397 = vld [vmem:[%s7287 + $0x368] sm:$0xff]
    %v7398 = vld [vmem:[%s7287 + $0x370] sm:$0xff]
    %v7399 = vld [vmem:[%s7287 + $0x378] sm:$0xff]
    %v7400 = vld [vmem:[%s7287 + $0x380] sm:$0xff]
    %v7401 = vld [vmem:[%s7287 + $0x388] sm:$0xff]
    %v7402 = vld [vmem:[%s7287 + $0x390] sm:$0xff]
    %v7403 = vld [vmem:[%s7287 + $0x398] sm:$0xff]
    %v7404 = vld [vmem:[%s7287 + $0x3a0] sm:$0xff]
    %v7405 = vld [vmem:[%s7287 + $0x3a8] sm:$0xff]
    %v7406 = vld [vmem:[%s7287 + $0x3b0] sm:$0xff]
    %v7407 = vld [vmem:[%s7287 + $0x3b8] sm:$0xff]
    %v7408 = vld [vmem:[%s7287 + $0x3c0] sm:$0xff]
    %v7409 = vld [vmem:[%s7287 + $0x3c8] sm:$0xff]
    %v7410 = vld [vmem:[%s7287 + $0x3d0] sm:$0xff]
    %v7411 = vld [vmem:[%s7287 + $0x3d8] sm:$0xff]
    %v7412 = vld [vmem:[%s7287 + $0x3e0] sm:$0xff]
    %v7413 = vld [vmem:[%s7287 + $0x3e8] sm:$0xff]
    %v7414 = vld [vmem:[%s7287 + $0x3f0] sm:$0xff]
    %v7415 = vld [vmem:[%s7287 + $0x3f8] sm:$0xff]
    %s7416 = scalar_lea.vmem [#allocation10], 6
    %v7417 = vld [vmem:[%s7416] sm:$0x3]
    %v7419 = vperm.slane %v7417, 0
    %v7420 = vperm.slane %v7417, 1
    %v7551 = vunpack.c.l.b16 %v7288
    %v7552 = vunpack.c.h.b16 %v7288
    %v7553 = vunpack.c.l.b16 %v7289
    %v7554 = vunpack.c.h.b16 %v7289
    %v7555 = vunpack.c.l.b16 %v7290
    %v7556 = vunpack.c.h.b16 %v7290
    %v7557 = vunpack.c.l.b16 %v7291
    %v7558 = vunpack.c.h.b16 %v7291
    %v7559 = vunpack.c.l.b16 %v7292
    %v7560 = vunpack.c.h.b16 %v7292
    %v7561 = vunpack.c.l.b16 %v7293
    %v7562 = vunpack.c.h.b16 %v7293
    %v7563 = vunpack.c.l.b16 %v7294
    %v7564 = vunpack.c.h.b16 %v7294
    %v7565 = vunpack.c.l.b16 %v7295
    %v7566 = vunpack.c.h.b16 %v7295
    %v7567 = vunpack.c.l.b16 %v7296
    %v7568 = vunpack.c.h.b16 %v7296
    %v7569 = vunpack.c.l.b16 %v7297
    %v7570 = vunpack.c.h.b16 %v7297
    %v7571 = vunpack.c.l.b16 %v7298
    %v7572 = vunpack.c.h.b16 %v7298
    %v7573 = vunpack.c.l.b16 %v7299
    %v7574 = vunpack.c.h.b16 %v7299
    %v7575 = vunpack.c.l.b16 %v7300
    %v7576 = vunpack.c.h.b16 %v7300
    %v7577 = vunpack.c.l.b16 %v7301
    %v7578 = vunpack.c.h.b16 %v7301
    %v7579 = vunpack.c.l.b16 %v7302
    %v7580 = vunpack.c.h.b16 %v7302
    %v7581 = vunpack.c.l.b16 %v7303
    %v7582 = vunpack.c.h.b16 %v7303
    %v7583 = vunpack.c.l.b16 %v7304
    %v7584 = vunpack.c.h.b16 %v7304
    %v7585 = vunpack.c.l.b16 %v7305
    %v7586 = vunpack.c.h.b16 %v7305
    %v7587 = vunpack.c.l.b16 %v7306
    %v7588 = vunpack.c.h.b16 %v7306
    %v7589 = vunpack.c.l.b16 %v7307
    %v7590 = vunpack.c.h.b16 %v7307
    %v7591 = vunpack.c.l.b16 %v7308
    %v7592 = vunpack.c.h.b16 %v7308
    %v7593 = vunpack.c.l.b16 %v7309
    %v7594 = vunpack.c.h.b16 %v7309
    %v7595 = vunpack.c.l.b16 %v7310
    %v7596 = vunpack.c.h.b16 %v7310
    %v7597 = vunpack.c.l.b16 %v7311
    %v7598 = vunpack.c.h.b16 %v7311
    %v7599 = vunpack.c.l.b16 %v7312
    %v7600 = vunpack.c.h.b16 %v7312
    %v7601 = vunpack.c.l.b16 %v7313
    %v7602 = vunpack.c.h.b16 %v7313
    %v7603 = vunpack.c.l.b16 %v7314
    %v7604 = vunpack.c.h.b16 %v7314
    %v7605 = vunpack.c.l.b16 %v7315
    %v7606 = vunpack.c.h.b16 %v7315
    %v7607 = vunpack.c.l.b16 %v7316
    %v7608 = vunpack.c.h.b16 %v7316
    %v7609 = vunpack.c.l.b16 %v7317
    %v7610 = vunpack.c.h.b16 %v7317
    %v7611 = vunpack.c.l.b16 %v7318
    %v7612 = vunpack.c.h.b16 %v7318
    %v7613 = vunpack.c.l.b16 %v7319
    %v7614 = vunpack.c.h.b16 %v7319
    %v7615 = vunpack.c.l.b16 %v7320
    %v7616 = vunpack.c.h.b16 %v7320
    %v7617 = vunpack.c.l.b16 %v7321
    %v7618 = vunpack.c.h.b16 %v7321
    %v7619 = vunpack.c.l.b16 %v7322
    %v7620 = vunpack.c.h.b16 %v7322
    %v7621 = vunpack.c.l.b16 %v7323
    %v7622 = vunpack.c.h.b16 %v7323
    %v7623 = vunpack.c.l.b16 %v7324
    %v7624 = vunpack.c.h.b16 %v7324
    %v7625 = vunpack.c.l.b16 %v7325
    %v7626 = vunpack.c.h.b16 %v7325
    %v7627 = vunpack.c.l.b16 %v7326
    %v7628 = vunpack.c.h.b16 %v7326
    %v7629 = vunpack.c.l.b16 %v7327
    %v7630 = vunpack.c.h.b16 %v7327
    %v7631 = vunpack.c.l.b16 %v7328
    %v7632 = vunpack.c.h.b16 %v7328
    %v7633 = vunpack.c.l.b16 %v7329
    %v7634 = vunpack.c.h.b16 %v7329
    %v7635 = vunpack.c.l.b16 %v7330
    %v7636 = vunpack.c.h.b16 %v7330
    %v7637 = vunpack.c.l.b16 %v7331
    %v7638 = vunpack.c.h.b16 %v7331
    %v7639 = vunpack.c.l.b16 %v7332
    %v7640 = vunpack.c.h.b16 %v7332
    %v7641 = vunpack.c.l.b16 %v7333
    %v7642 = vunpack.c.h.b16 %v7333
    %v7643 = vunpack.c.l.b16 %v7334
    %v7644 = vunpack.c.h.b16 %v7334
    %v7645 = vunpack.c.l.b16 %v7335
    %v7646 = vunpack.c.h.b16 %v7335
    %v7647 = vunpack.c.l.b16 %v7336
    %v7648 = vunpack.c.h.b16 %v7336
    %v7649 = vunpack.c.l.b16 %v7337
    %v7650 = vunpack.c.h.b16 %v7337
    %v7651 = vunpack.c.l.b16 %v7338
    %v7652 = vunpack.c.h.b16 %v7338
    %v7653 = vunpack.c.l.b16 %v7339
    %v7654 = vunpack.c.h.b16 %v7339
    %v7655 = vunpack.c.l.b16 %v7340
    %v7656 = vunpack.c.h.b16 %v7340
    %v7657 = vunpack.c.l.b16 %v7341
    %v7658 = vunpack.c.h.b16 %v7341
    %v7659 = vunpack.c.l.b16 %v7342
    %v7660 = vunpack.c.h.b16 %v7342
    %v7661 = vunpack.c.l.b16 %v7343
    %v7662 = vunpack.c.h.b16 %v7343
    %v7663 = vunpack.c.l.b16 %v7344
    %v7664 = vunpack.c.h.b16 %v7344
    %v7665 = vunpack.c.l.b16 %v7345
    %v7666 = vunpack.c.h.b16 %v7345
    %v7667 = vunpack.c.l.b16 %v7346
    %v7668 = vunpack.c.h.b16 %v7346
    %v7669 = vunpack.c.l.b16 %v7347
    %v7670 = vunpack.c.h.b16 %v7347
    %v7671 = vunpack.c.l.b16 %v7348
    %v7672 = vunpack.c.h.b16 %v7348
    %v7673 = vunpack.c.l.b16 %v7349
    %v7674 = vunpack.c.h.b16 %v7349
    %v7675 = vunpack.c.l.b16 %v7350
    %v7676 = vunpack.c.h.b16 %v7350
    %v7677 = vunpack.c.l.b16 %v7351
    %v7678 = vunpack.c.h.b16 %v7351
    %v7679 = vunpack.c.l.b16 %v7352
    %v7680 = vunpack.c.h.b16 %v7352
    %v7681 = vunpack.c.l.b16 %v7353
    %v7682 = vunpack.c.h.b16 %v7353
    %v7683 = vunpack.c.l.b16 %v7354
    %v7684 = vunpack.c.h.b16 %v7354
    %v7685 = vunpack.c.l.b16 %v7355
    %v7686 = vunpack.c.h.b16 %v7355
    %v7687 = vunpack.c.l.b16 %v7356
    %v7688 = vunpack.c.h.b16 %v7356
    %v7689 = vunpack.c.l.b16 %v7357
    %v7690 = vunpack.c.h.b16 %v7357
    %v7691 = vunpack.c.l.b16 %v7358
    %v7692 = vunpack.c.h.b16 %v7358
    %v7693 = vunpack.c.l.b16 %v7359
    %v7694 = vunpack.c.h.b16 %v7359
    %v7695 = vunpack.c.l.b16 %v7360
    %v7696 = vunpack.c.h.b16 %v7360
    %v7697 = vunpack.c.l.b16 %v7361
    %v7698 = vunpack.c.h.b16 %v7361
    %v7699 = vunpack.c.l.b16 %v7362
    %v7700 = vunpack.c.h.b16 %v7362
    %v7701 = vunpack.c.l.b16 %v7363
    %v7702 = vunpack.c.h.b16 %v7363
    %v7703 = vunpack.c.l.b16 %v7364
    %v7704 = vunpack.c.h.b16 %v7364
    %v7705 = vunpack.c.l.b16 %v7365
    %v7706 = vunpack.c.h.b16 %v7365
    %v7707 = vunpack.c.l.b16 %v7366
    %v7708 = vunpack.c.h.b16 %v7366
    %v7709 = vunpack.c.l.b16 %v7367
    %v7710 = vunpack.c.h.b16 %v7367
    %v7711 = vunpack.c.l.b16 %v7368
    %v7712 = vunpack.c.h.b16 %v7368
    %v7713 = vunpack.c.l.b16 %v7369
    %v7714 = vunpack.c.h.b16 %v7369
    %v7715 = vunpack.c.l.b16 %v7370
    %v7716 = vunpack.c.h.b16 %v7370
    %v7717 = vunpack.c.l.b16 %v7371
    %v7718 = vunpack.c.h.b16 %v7371
    %v7719 = vunpack.c.l.b16 %v7372
    %v7720 = vunpack.c.h.b16 %v7372
    %v7721 = vunpack.c.l.b16 %v7373
    %v7722 = vunpack.c.h.b16 %v7373
    %v7723 = vunpack.c.l.b16 %v7374
    %v7724 = vunpack.c.h.b16 %v7374
    %v7725 = vunpack.c.l.b16 %v7375
    %v7726 = vunpack.c.h.b16 %v7375
    %v7727 = vunpack.c.l.b16 %v7376
    %v7728 = vunpack.c.h.b16 %v7376
    %v7729 = vunpack.c.l.b16 %v7377
    %v7730 = vunpack.c.h.b16 %v7377
    %v7731 = vunpack.c.l.b16 %v7378
    %v7732 = vunpack.c.h.b16 %v7378
    %v7733 = vunpack.c.l.b16 %v7379
    %v7734 = vunpack.c.h.b16 %v7379
    %v7735 = vunpack.c.l.b16 %v7380
    %v7736 = vunpack.c.h.b16 %v7380
    %v7737 = vunpack.c.l.b16 %v7381
    %v7738 = vunpack.c.h.b16 %v7381
    %v7739 = vunpack.c.l.b16 %v7382
    %v7740 = vunpack.c.h.b16 %v7382
    %v7741 = vunpack.c.l.b16 %v7383
    %v7742 = vunpack.c.h.b16 %v7383
    %v7743 = vunpack.c.l.b16 %v7384
    %v7744 = vunpack.c.h.b16 %v7384
    %v7745 = vunpack.c.l.b16 %v7385
    %v7746 = vunpack.c.h.b16 %v7385
    %v7747 = vunpack.c.l.b16 %v7386
    %v7748 = vunpack.c.h.b16 %v7386
    %v7749 = vunpack.c.l.b16 %v7387
    %v7750 = vunpack.c.h.b16 %v7387
    %v7751 = vunpack.c.l.b16 %v7388
    %v7752 = vunpack.c.h.b16 %v7388
    %v7753 = vunpack.c.l.b16 %v7389
    %v7754 = vunpack.c.h.b16 %v7389
    %v7755 = vunpack.c.l.b16 %v7390
    %v7756 = vunpack.c.h.b16 %v7390
    %v7757 = vunpack.c.l.b16 %v7391
    %v7758 = vunpack.c.h.b16 %v7391
    %v7759 = vunpack.c.l.b16 %v7392
    %v7760 = vunpack.c.h.b16 %v7392
    %v7761 = vunpack.c.l.b16 %v7393
    %v7762 = vunpack.c.h.b16 %v7393
    %v7763 = vunpack.c.l.b16 %v7394
    %v7764 = vunpack.c.h.b16 %v7394
    %v7765 = vunpack.c.l.b16 %v7395
    %v7766 = vunpack.c.h.b16 %v7395
    %v7767 = vunpack.c.l.b16 %v7396
    %v7768 = vunpack.c.h.b16 %v7396
    %v7769 = vunpack.c.l.b16 %v7397
    %v7770 = vunpack.c.h.b16 %v7397
    %v7771 = vunpack.c.l.b16 %v7398
    %v7772 = vunpack.c.h.b16 %v7398
    %v7773 = vunpack.c.l.b16 %v7399
    %v7774 = vunpack.c.h.b16 %v7399
    %v7775 = vunpack.c.l.b16 %v7400
    %v7776 = vunpack.c.h.b16 %v7400
    %v7777 = vunpack.c.l.b16 %v7401
    %v7778 = vunpack.c.h.b16 %v7401
    %v7779 = vunpack.c.l.b16 %v7402
    %v7780 = vunpack.c.h.b16 %v7402
    %v7781 = vunpack.c.l.b16 %v7403
    %v7782 = vunpack.c.h.b16 %v7403
    %v7783 = vunpack.c.l.b16 %v7404
    %v7784 = vunpack.c.h.b16 %v7404
    %v7785 = vunpack.c.l.b16 %v7405
    %v7786 = vunpack.c.h.b16 %v7405
    %v7787 = vunpack.c.l.b16 %v7406
    %v7788 = vunpack.c.h.b16 %v7406
    %v7789 = vunpack.c.l.b16 %v7407
    %v7790 = vunpack.c.h.b16 %v7407
    %v7791 = vunpack.c.l.b16 %v7408
    %v7792 = vunpack.c.h.b16 %v7408
    %v7793 = vunpack.c.l.b16 %v7409
    %v7794 = vunpack.c.h.b16 %v7409
    %v7795 = vunpack.c.l.b16 %v7410
    %v7796 = vunpack.c.h.b16 %v7410
    %v7797 = vunpack.c.l.b16 %v7411
    %v7798 = vunpack.c.h.b16 %v7411
    %v7799 = vunpack.c.l.b16 %v7412
    %v7800 = vunpack.c.h.b16 %v7412
    %v7801 = vunpack.c.l.b16 %v7413
    %v7802 = vunpack.c.h.b16 %v7413
    %v7803 = vunpack.c.l.b16 %v7414
    %v7804 = vunpack.c.h.b16 %v7414
    %v7805 = vunpack.c.l.b16 %v7415
    %v7806 = vunpack.c.h.b16 %v7415
    %v7807 = vpack.c.b16 %v7553, %v7551
    %v7808 = vpack.c.b16 %v7554, %v7552
    %v7809 = vpack.c.b16 %v7557, %v7555
    %v7810 = vpack.c.b16 %v7558, %v7556
    %v7811 = vpack.c.b16 %v7561, %v7559
    %v7812 = vpack.c.b16 %v7562, %v7560
    %v7813 = vpack.c.b16 %v7565, %v7563
    %v7814 = vpack.c.b16 %v7566, %v7564
    %v7815 = vpack.c.b16 %v7569, %v7567
    %v7816 = vpack.c.b16 %v7570, %v7568
    %v7817 = vpack.c.b16 %v7573, %v7571
    %v7818 = vpack.c.b16 %v7574, %v7572
    %v7819 = vpack.c.b16 %v7577, %v7575
    %v7820 = vpack.c.b16 %v7578, %v7576
    %v7821 = vpack.c.b16 %v7581, %v7579
    %v7822 = vpack.c.b16 %v7582, %v7580
    %v7823 = vpack.c.b16 %v7585, %v7583
    %v7824 = vpack.c.b16 %v7586, %v7584
    %v7825 = vpack.c.b16 %v7589, %v7587
    %v7826 = vpack.c.b16 %v7590, %v7588
    %v7827 = vpack.c.b16 %v7593, %v7591
    %v7828 = vpack.c.b16 %v7594, %v7592
    %v7829 = vpack.c.b16 %v7597, %v7595
    %v7830 = vpack.c.b16 %v7598, %v7596
    %v7831 = vpack.c.b16 %v7601, %v7599
    %v7832 = vpack.c.b16 %v7602, %v7600
    %v7833 = vpack.c.b16 %v7605, %v7603
    %v7834 = vpack.c.b16 %v7606, %v7604
    %v7835 = vpack.c.b16 %v7609, %v7607
    %v7836 = vpack.c.b16 %v7610, %v7608
    %v7837 = vpack.c.b16 %v7613, %v7611
    %v7838 = vpack.c.b16 %v7614, %v7612
    %v7839 = vpack.c.b16 %v7617, %v7615
    %v7840 = vpack.c.b16 %v7618, %v7616
    %v7841 = vpack.c.b16 %v7621, %v7619
    %v7842 = vpack.c.b16 %v7622, %v7620
    %v7843 = vpack.c.b16 %v7625, %v7623
    %v7844 = vpack.c.b16 %v7626, %v7624
    %v7845 = vpack.c.b16 %v7629, %v7627
    %v7846 = vpack.c.b16 %v7630, %v7628
    %v7847 = vpack.c.b16 %v7633, %v7631
    %v7848 = vpack.c.b16 %v7634, %v7632
    %v7849 = vpack.c.b16 %v7637, %v7635
    %v7850 = vpack.c.b16 %v7638, %v7636
    %v7851 = vpack.c.b16 %v7641, %v7639
    %v7852 = vpack.c.b16 %v7642, %v7640
    %v7853 = vpack.c.b16 %v7645, %v7643
    %v7854 = vpack.c.b16 %v7646, %v7644
    %v7855 = vpack.c.b16 %v7649, %v7647
    %v7856 = vpack.c.b16 %v7650, %v7648
    %v7857 = vpack.c.b16 %v7653, %v7651
    %v7858 = vpack.c.b16 %v7654, %v7652
    %v7859 = vpack.c.b16 %v7657, %v7655
    %v7860 = vpack.c.b16 %v7658, %v7656
    %v7861 = vpack.c.b16 %v7661, %v7659
    %v7862 = vpack.c.b16 %v7662, %v7660
    %v7863 = vpack.c.b16 %v7665, %v7663
    %v7864 = vpack.c.b16 %v7666, %v7664
    %v7865 = vpack.c.b16 %v7669, %v7667
    %v7866 = vpack.c.b16 %v7670, %v7668
    %v7867 = vpack.c.b16 %v7673, %v7671
    %v7868 = vpack.c.b16 %v7674, %v7672
    %v7869 = vpack.c.b16 %v7677, %v7675
    %v7870 = vpack.c.b16 %v7678, %v7676
    %v7871 = vpack.c.b16 %v7681, %v7679
    %v7872 = vpack.c.b16 %v7682, %v7680
    %v7873 = vpack.c.b16 %v7685, %v7683
    %v7874 = vpack.c.b16 %v7686, %v7684
    %v7875 = vpack.c.b16 %v7689, %v7687
    %v7876 = vpack.c.b16 %v7690, %v7688
    %v7877 = vpack.c.b16 %v7693, %v7691
    %v7878 = vpack.c.b16 %v7694, %v7692
    %v7879 = vpack.c.b16 %v7697, %v7695
    %v7880 = vpack.c.b16 %v7698, %v7696
    %v7881 = vpack.c.b16 %v7701, %v7699
    %v7882 = vpack.c.b16 %v7702, %v7700
    %v7883 = vpack.c.b16 %v7705, %v7703
    %v7884 = vpack.c.b16 %v7706, %v7704
    %v7885 = vpack.c.b16 %v7709, %v7707
    %v7886 = vpack.c.b16 %v7710, %v7708
    %v7887 = vpack.c.b16 %v7713, %v7711
    %v7888 = vpack.c.b16 %v7714, %v7712
    %v7889 = vpack.c.b16 %v7717, %v7715
    %v7890 = vpack.c.b16 %v7718, %v7716
    %v7891 = vpack.c.b16 %v7721, %v7719
    %v7892 = vpack.c.b16 %v7722, %v7720
    %v7893 = vpack.c.b16 %v7725, %v7723
    %v7894 = vpack.c.b16 %v7726, %v7724
    %v7895 = vpack.c.b16 %v7729, %v7727
    %v7896 = vpack.c.b16 %v7730, %v7728
    %v7897 = vpack.c.b16 %v7733, %v7731
    %v7898 = vpack.c.b16 %v7734, %v7732
    %v7899 = vpack.c.b16 %v7737, %v7735
    %v7900 = vpack.c.b16 %v7738, %v7736
    %v7901 = vpack.c.b16 %v7741, %v7739
    %v7902 = vpack.c.b16 %v7742, %v7740
    %v7903 = vpack.c.b16 %v7745, %v7743
    %v7904 = vpack.c.b16 %v7746, %v7744
    %v7905 = vpack.c.b16 %v7749, %v7747
    %v7906 = vpack.c.b16 %v7750, %v7748
    %v7907 = vpack.c.b16 %v7753, %v7751
    %v7908 = vpack.c.b16 %v7754, %v7752
    %v7909 = vpack.c.b16 %v7757, %v7755
    %v7910 = vpack.c.b16 %v7758, %v7756
    %v7911 = vpack.c.b16 %v7761, %v7759
    %v7912 = vpack.c.b16 %v7762, %v7760
    %v7913 = vpack.c.b16 %v7765, %v7763
    %v7914 = vpack.c.b16 %v7766, %v7764
    %v7915 = vpack.c.b16 %v7769, %v7767
    %v7916 = vpack.c.b16 %v7770, %v7768
    %v7917 = vpack.c.b16 %v7773, %v7771
    %v7918 = vpack.c.b16 %v7774, %v7772
    %v7919 = vpack.c.b16 %v7777, %v7775
    %v7920 = vpack.c.b16 %v7778, %v7776
    %v7921 = vpack.c.b16 %v7781, %v7779
    %v7922 = vpack.c.b16 %v7782, %v7780
    %v7923 = vpack.c.b16 %v7785, %v7783
    %v7924 = vpack.c.b16 %v7786, %v7784
    %v7925 = vpack.c.b16 %v7789, %v7787
    %v7926 = vpack.c.b16 %v7790, %v7788
    %v7927 = vpack.c.b16 %v7793, %v7791
    %v7928 = vpack.c.b16 %v7794, %v7792
    %v7929 = vpack.c.b16 %v7797, %v7795
    %v7930 = vpack.c.b16 %v7798, %v7796
    %v7931 = vpack.c.b16 %v7801, %v7799
    %v7932 = vpack.c.b16 %v7802, %v7800
    %v7933 = vpack.c.b16 %v7805, %v7803
    %v7934 = vpack.c.b16 %v7806, %v7804
    %8063 = vmatpush.bf16.msra.mxu0 %v7821
    %8064 = vmatpush.bf16.msra.mxu0 %v7819
    %8065 = vmatpush.bf16.msra.mxu0 %v7817
    %8066 = vmatpush.bf16.msra.mxu0 %v7815
    %8067 = vmatpush.bf16.msra.mxu0 %v7813
    %8068 = vmatpush.bf16.msra.mxu0 %v7811
    %8069 = vmatpush.bf16.msra.mxu0 %v7809
    %8070 = vmatpush.bf16.msra.mxu0 %v7807
    %8071 = vmatmul.bf16.gmra.mxu0 %v6782
    %v8072 = vpop.f32.mrf.mxu0
    %v8073 = vadd.f32 %v7419, %v8072
    %v8074 = vpop.f32.mrf.mxu0
    %8075 = vdwg.mxu0
    %8076 = vmatpush.bf16.msra.mxu0 %v7837
    %8077 = vmatpush.bf16.msra.mxu0 %v7835
    %8078 = vmatpush.bf16.msra.mxu0 %v7833
    %8079 = vmatpush.bf16.msra.mxu0 %v7831
    %8080 = vmatpush.bf16.msra.mxu0 %v7829
    %8081 = vmatpush.bf16.msra.mxu0 %v7827
    %8082 = vmatpush.bf16.msra.mxu0 %v7825
    %8083 = vmatpush.bf16.msra.mxu0 %v7823
    %8084 = vmatmul.bf16.gmra.mxu0 %v6783
    %v8085 = vpop.f32.mrf.mxu0
    %v8086 = vadd.f32 %v8073, %v8085
    %v8087 = vpop.f32.mrf.mxu0
    %8088 = vdwg.mxu0
    %8089 = vmatpush.bf16.msra.mxu0 %v7853
    %8090 = vmatpush.bf16.msra.mxu0 %v7851
    %8091 = vmatpush.bf16.msra.mxu0 %v7849
    %8092 = vmatpush.bf16.msra.mxu0 %v7847
    %8093 = vmatpush.bf16.msra.mxu0 %v7845
    %8094 = vmatpush.bf16.msra.mxu0 %v7843
    %8095 = vmatpush.bf16.msra.mxu0 %v7841
    %8096 = vmatpush.bf16.msra.mxu0 %v7839
    %8097 = vmatmul.bf16.gmra.mxu0 %v6784
    %v8098 = vpop.f32.mrf.mxu0
    %v8099 = vadd.f32 %v8086, %v8098
    %v8100 = vpop.f32.mrf.mxu0
    %8101 = vdwg.mxu0
    %8102 = vmatpush.bf16.msra.mxu0 %v7869
    %8103 = vmatpush.bf16.msra.mxu0 %v7867
    %8104 = vmatpush.bf16.msra.mxu0 %v7865
    %8105 = vmatpush.bf16.msra.mxu0 %v7863
    %8106 = vmatpush.bf16.msra.mxu0 %v7861
    %8107 = vmatpush.bf16.msra.mxu0 %v7859
    %8108 = vmatpush.bf16.msra.mxu0 %v7857
    %8109 = vmatpush.bf16.msra.mxu0 %v7855
    %8110 = vmatmul.bf16.gmra.mxu0 %v6785
    %v8111 = vpop.f32.mrf.mxu0
    %v8112 = vadd.f32 %v8099, %v8111
    %v8113 = vpop.f32.mrf.mxu0
    %8114 = vdwg.mxu0
    %8115 = vmatpush.bf16.msra.mxu0 %v7885
    %8116 = vmatpush.bf16.msra.mxu0 %v7883
    %8117 = vmatpush.bf16.msra.mxu0 %v7881
    %8118 = vmatpush.bf16.msra.mxu0 %v7879
    %8119 = vmatpush.bf16.msra.mxu0 %v7877
    %8120 = vmatpush.bf16.msra.mxu0 %v7875
    %8121 = vmatpush.bf16.msra.mxu0 %v7873
    %8122 = vmatpush.bf16.msra.mxu0 %v7871
    %8123 = vmatmul.bf16.gmra.mxu0 %v6786
    %v8124 = vpop.f32.mrf.mxu0
    %v8125 = vadd.f32 %v8112, %v8124
    %v8126 = vpop.f32.mrf.mxu0
    %8127 = vdwg.mxu0
    %8128 = vmatpush.bf16.msra.mxu0 %v7901
    %8129 = vmatpush.bf16.msra.mxu0 %v7899
    %8130 = vmatpush.bf16.msra.mxu0 %v7897
    %8131 = vmatpush.bf16.msra.mxu0 %v7895
    %8132 = vmatpush.bf16.msra.mxu0 %v7893
    %8133 = vmatpush.bf16.msra.mxu0 %v7891
    %8134 = vmatpush.bf16.msra.mxu0 %v7889
    %8135 = vmatpush.bf16.msra.mxu0 %v7887
    %8136 = vmatmul.bf16.gmra.mxu0 %v6787
    %v8137 = vpop.f32.mrf.mxu0
    %v8138 = vadd.f32 %v8125, %v8137
    %v8139 = vpop.f32.mrf.mxu0
    %8140 = vdwg.mxu0
    %8141 = vmatpush.bf16.msra.mxu0 %v7917
    %8142 = vmatpush.bf16.msra.mxu0 %v7915
    %8143 = vmatpush.bf16.msra.mxu0 %v7913
    %8144 = vmatpush.bf16.msra.mxu0 %v7911
    %8145 = vmatpush.bf16.msra.mxu0 %v7909
    %8146 = vmatpush.bf16.msra.mxu0 %v7907
    %8147 = vmatpush.bf16.msra.mxu0 %v7905
    %8148 = vmatpush.bf16.msra.mxu0 %v7903
    %8149 = vmatmul.bf16.gmra.mxu0 %v6788
    %v8150 = vpop.f32.mrf.mxu0
    %v8151 = vadd.f32 %v8138, %v8150
    %v8152 = vpop.f32.mrf.mxu0
    %8153 = vdwg.mxu0
    %8154 = vmatpush.bf16.msra.mxu0 %v7933
    %8155 = vmatpush.bf16.msra.mxu0 %v7931
    %8156 = vmatpush.bf16.msra.mxu0 %v7929
    %8157 = vmatpush.bf16.msra.mxu0 %v7927
    %8158 = vmatpush.bf16.msra.mxu0 %v7925
    %8159 = vmatpush.bf16.msra.mxu0 %v7923
    %8160 = vmatpush.bf16.msra.mxu0 %v7921
    %8161 = vmatpush.bf16.msra.mxu0 %v7919
    %8162 = vmatmul.bf16.gmra.mxu0 %v6789
    %v8163 = vpop.f32.mrf.mxu0
    %v8164 = vadd.f32 %v8151, %v8163
    %v8165 = vpop.f32.mrf.mxu0
    %8166 = vdwg.mxu0
    %8167 = vmatpush.bf16.msra.mxu0 %v7822
    %8168 = vmatpush.bf16.msra.mxu0 %v7820
    %8169 = vmatpush.bf16.msra.mxu0 %v7818
    %8170 = vmatpush.bf16.msra.mxu0 %v7816
    %8171 = vmatpush.bf16.msra.mxu0 %v7814
    %8172 = vmatpush.bf16.msra.mxu0 %v7812
    %8173 = vmatpush.bf16.msra.mxu0 %v7810
    %8174 = vmatpush.bf16.msra.mxu0 %v7808
    %8175 = vmatmul.bf16.gmra.mxu0 %v6782
    %v8176 = vpop.f32.mrf.mxu0
    %v8177 = vadd.f32 %v7420, %v8176
    %v8178 = vpop.f32.mrf.mxu0
    %8179 = vdwg.mxu0
    %8180 = vmatpush.bf16.msra.mxu0 %v7838
    %8181 = vmatpush.bf16.msra.mxu0 %v7836
    %8182 = vmatpush.bf16.msra.mxu0 %v7834
    %8183 = vmatpush.bf16.msra.mxu0 %v7832
    %8184 = vmatpush.bf16.msra.mxu0 %v7830
    %8185 = vmatpush.bf16.msra.mxu0 %v7828
    %8186 = vmatpush.bf16.msra.mxu0 %v7826
    %8187 = vmatpush.bf16.msra.mxu0 %v7824
    %8188 = vmatmul.bf16.gmra.mxu0 %v6783
    %v8189 = vpop.f32.mrf.mxu0
    %v8190 = vadd.f32 %v8177, %v8189
    %v8191 = vpop.f32.mrf.mxu0
    %8192 = vdwg.mxu0
    %8193 = vmatpush.bf16.msra.mxu0 %v7854
    %8194 = vmatpush.bf16.msra.mxu0 %v7852
    %8195 = vmatpush.bf16.msra.mxu0 %v7850
    %8196 = vmatpush.bf16.msra.mxu0 %v7848
    %8197 = vmatpush.bf16.msra.mxu0 %v7846
    %8198 = vmatpush.bf16.msra.mxu0 %v7844
    %8199 = vmatpush.bf16.msra.mxu0 %v7842
    %8200 = vmatpush.bf16.msra.mxu0 %v7840
    %8201 = vmatmul.bf16.gmra.mxu0 %v6784
    %v8202 = vpop.f32.mrf.mxu0
    %v8203 = vadd.f32 %v8190, %v8202
    %v8204 = vpop.f32.mrf.mxu0
    %8205 = vdwg.mxu0
    %8206 = vmatpush.bf16.msra.mxu0 %v7870
    %8207 = vmatpush.bf16.msra.mxu0 %v7868
    %8208 = vmatpush.bf16.msra.mxu0 %v7866
    %8209 = vmatpush.bf16.msra.mxu0 %v7864
    %8210 = vmatpush.bf16.msra.mxu0 %v7862
    %8211 = vmatpush.bf16.msra.mxu0 %v7860
    %8212 = vmatpush.bf16.msra.mxu0 %v7858
    %8213 = vmatpush.bf16.msra.mxu0 %v7856
    %8214 = vmatmul.bf16.gmra.mxu0 %v6785
    %v8215 = vpop.f32.mrf.mxu0
    %v8216 = vadd.f32 %v8203, %v8215
    %v8217 = vpop.f32.mrf.mxu0
    %8218 = vdwg.mxu0
    %8219 = vmatpush.bf16.msra.mxu0 %v7886
    %8220 = vmatpush.bf16.msra.mxu0 %v7884
    %8221 = vmatpush.bf16.msra.mxu0 %v7882
    %8222 = vmatpush.bf16.msra.mxu0 %v7880
    %8223 = vmatpush.bf16.msra.mxu0 %v7878
    %8224 = vmatpush.bf16.msra.mxu0 %v7876
    %8225 = vmatpush.bf16.msra.mxu0 %v7874
    %8226 = vmatpush.bf16.msra.mxu0 %v7872
    %8227 = vmatmul.bf16.gmra.mxu0 %v6786
    %v8228 = vpop.f32.mrf.mxu0
    %v8229 = vadd.f32 %v8216, %v8228
    %v8230 = vpop.f32.mrf.mxu0
    %8231 = vdwg.mxu0
    %8232 = vmatpush.bf16.msra.mxu0 %v7902
    %8233 = vmatpush.bf16.msra.mxu0 %v7900
    %8234 = vmatpush.bf16.msra.mxu0 %v7898
    %8235 = vmatpush.bf16.msra.mxu0 %v7896
    %8236 = vmatpush.bf16.msra.mxu0 %v7894
    %8237 = vmatpush.bf16.msra.mxu0 %v7892
    %8238 = vmatpush.bf16.msra.mxu0 %v7890
    %8239 = vmatpush.bf16.msra.mxu0 %v7888
    %8240 = vmatmul.bf16.gmra.mxu0 %v6787
    %v8241 = vpop.f32.mrf.mxu0
    %v8242 = vadd.f32 %v8229, %v8241
    %v8243 = vpop.f32.mrf.mxu0
    %8244 = vdwg.mxu0
    %8245 = vmatpush.bf16.msra.mxu0 %v7918
    %8246 = vmatpush.bf16.msra.mxu0 %v7916
    %8247 = vmatpush.bf16.msra.mxu0 %v7914
    %8248 = vmatpush.bf16.msra.mxu0 %v7912
    %8249 = vmatpush.bf16.msra.mxu0 %v7910
    %8250 = vmatpush.bf16.msra.mxu0 %v7908
    %8251 = vmatpush.bf16.msra.mxu0 %v7906
    %8252 = vmatpush.bf16.msra.mxu0 %v7904
    %8253 = vmatmul.bf16.gmra.mxu0 %v6788
    %v8254 = vpop.f32.mrf.mxu0
    %v8255 = vadd.f32 %v8242, %v8254
    %v8256 = vpop.f32.mrf.mxu0
    %8257 = vdwg.mxu0
    %8258 = vmatpush.bf16.msra.mxu0 %v7934
    %8259 = vmatpush.bf16.msra.mxu0 %v7932
    %8260 = vmatpush.bf16.msra.mxu0 %v7930
    %8261 = vmatpush.bf16.msra.mxu0 %v7928
    %8262 = vmatpush.bf16.msra.mxu0 %v7926
    %8263 = vmatpush.bf16.msra.mxu0 %v7924
    %8264 = vmatpush.bf16.msra.mxu0 %v7922
    %8265 = vmatpush.bf16.msra.mxu0 %v7920
    %8266 = vmatmul.bf16.gmra.mxu0 %v6789
    %v8267 = vpop.f32.mrf.mxu0
    %v8268 = vadd.f32 %v8255, %v8267
    %v8269 = vpop.f32.mrf.mxu0
    %8270 = vdwg.mxu0
    %s8271 = scalar_lea.vmem [#allocation11], 6
    %v8272 = vld [vmem:[%s8271] sm:$0x3]
    %s8273 = scalar_lea.vmem [#allocation16], 6
    %v8274 = vld [vmem:[%s8273] sm:$0x3]
    %v8275 = vadd.f32 %v8274, 1e-05
    %v8276 = vrsqrt.pop %v8275
    %v8277 = vmul.f32 %v8276, %v8275
    %v8278 = vmul.f32 %v8277, %v8276
    %v8279 = vmul.f32 0.5, %v8278
    %v8280 = vsub.f32 1.5, %v8279
    %v8281 = vmul.f32 %v8276, %v8280
    %vm8282 = vweird.f32 %v8275
    %vm8283 = vweird.f32 %v8276
    %vm8284 = vmor %vm8282, %vm8283
    %v8285 = vsel %vm8284, %v8276, %v8281
    %v8286 = vmul.f32 %v8272, %v8285
    %s8287 = scalar_lea.vmem [#allocation14], 6
    %v8288 = vld [vmem:[%s8287] sm:$0x3]
    %v8290 = vperm.slane %v8288, 0
    %v8291 = vperm.slane %v8288, 1
    %v8294 = vsub.f32 %v8164, %v8290
    %v8295 = vsub.f32 %v8268, %v8291
    %v8297 = vperm.slane %v8286, 0
    %v8298 = vperm.slane %v8286, 1
    %v8301 = vmul.f32 %v8294, %v8297
    %v8302 = vmul.f32 %v8295, %v8298
    %s8303 = scalar_lea.vmem [#allocation13], 6
    %v8304 = vld [vmem:[%s8303] sm:$0x3]
    %v8306 = vperm.slane %v8304, 0
    %v8307 = vperm.slane %v8304, 1
    %v8310 = vadd.f32 %v8301, %v8306
    %v8311 = vadd.f32 %v8302, %v8307
    %v8314 = vrot.slane %v8311, 7
    %v8315 = vsel %vm460, %v8310, %v8314
    %v8316 = vsel %vm798, %v8310, %v8314
    %v8317 = vrot.slane %v8316, 1
    %s8320 = scalar_lea.vmem %s11, 3
    %8321 = vst.msk [vmem:[%s8320] ss:$8 sm:$0x3] %vm1719, %v8315
    %8322 = vst.msk [vmem:[%s8320] ss:$8 sm:$0x0] %vm1719, %v8315
    %s8323 = scalar_lea.vmem %s11, 19
    %8324 = vst.msk [vmem:[%s8323] ss:$8 sm:$0x3] %vm1719, %v8317
    %8325 = vst.msk [vmem:[%s8323] ss:$8 sm:$0x0] %vm1719, %v8317
    %s8326 = scalar_lea.vmem [#allocation2], 512
    %v8327 = vld [vmem:[%s8326] sm:$0xff]
    %v8328 = vld [vmem:[%s8326 + $0x8] sm:$0xff]
    %v8329 = vld [vmem:[%s8326 + $0x10] sm:$0xff]
    %v8330 = vld [vmem:[%s8326 + $0x18] sm:$0xff]
    %v8331 = vld [vmem:[%s8326 + $0x20] sm:$0xff]
    %v8332 = vld [vmem:[%s8326 + $0x28] sm:$0xff]
    %v8333 = vld [vmem:[%s8326 + $0x30] sm:$0xff]
    %v8334 = vld [vmem:[%s8326 + $0x38] sm:$0xff]
    %v8335 = vld [vmem:[%s8326 + $0x40] sm:$0xff]
    %v8336 = vld [vmem:[%s8326 + $0x48] sm:$0xff]
    %v8337 = vld [vmem:[%s8326 + $0x50] sm:$0xff]
    %v8338 = vld [vmem:[%s8326 + $0x58] sm:$0xff]
    %v8339 = vld [vmem:[%s8326 + $0x60] sm:$0xff]
    %v8340 = vld [vmem:[%s8326 + $0x68] sm:$0xff]
    %v8341 = vld [vmem:[%s8326 + $0x70] sm:$0xff]
    %v8342 = vld [vmem:[%s8326 + $0x78] sm:$0xff]
    %v8343 = vld [vmem:[%s8326 + $0x300] sm:$0xff]
    %v8344 = vld [vmem:[%s8326 + $0x308] sm:$0xff]
    %v8345 = vld [vmem:[%s8326 + $0x310] sm:$0xff]
    %v8346 = vld [vmem:[%s8326 + $0x318] sm:$0xff]
    %v8347 = vld [vmem:[%s8326 + $0x320] sm:$0xff]
    %v8348 = vld [vmem:[%s8326 + $0x328] sm:$0xff]
    %v8349 = vld [vmem:[%s8326 + $0x330] sm:$0xff]
    %v8350 = vld [vmem:[%s8326 + $0x338] sm:$0xff]
    %v8351 = vld [vmem:[%s8326 + $0x340] sm:$0xff]
    %v8352 = vld [vmem:[%s8326 + $0x348] sm:$0xff]
    %v8353 = vld [vmem:[%s8326 + $0x350] sm:$0xff]
    %v8354 = vld [vmem:[%s8326 + $0x358] sm:$0xff]
    %v8355 = vld [vmem:[%s8326 + $0x360] sm:$0xff]
    %v8356 = vld [vmem:[%s8326 + $0x368] sm:$0xff]
    %v8357 = vld [vmem:[%s8326 + $0x370] sm:$0xff]
    %v8358 = vld [vmem:[%s8326 + $0x378] sm:$0xff]
    %v8359 = vunpack.c.l.bf16 %v8327
    %v8360 = vunpack.c.h.bf16 %v8327
    %v8361 = vunpack.c.l.bf16 %v8328
    %v8362 = vunpack.c.h.bf16 %v8328
    %v8363 = vunpack.c.l.bf16 %v8329
    %v8364 = vunpack.c.h.bf16 %v8329
    %v8365 = vunpack.c.l.bf16 %v8330
    %v8366 = vunpack.c.h.bf16 %v8330
    %v8367 = vunpack.c.l.bf16 %v8331
    %v8368 = vunpack.c.h.bf16 %v8331
    %v8369 = vunpack.c.l.bf16 %v8332
    %v8370 = vunpack.c.h.bf16 %v8332
    %v8371 = vunpack.c.l.bf16 %v8333
    %v8372 = vunpack.c.h.bf16 %v8333
    %v8373 = vunpack.c.l.bf16 %v8334
    %v8374 = vunpack.c.h.bf16 %v8334
    %v8375 = vunpack.c.l.bf16 %v8335
    %v8376 = vunpack.c.h.bf16 %v8335
    %v8377 = vunpack.c.l.bf16 %v8336
    %v8378 = vunpack.c.h.bf16 %v8336
    %v8379 = vunpack.c.l.bf16 %v8337
    %v8380 = vunpack.c.h.bf16 %v8337
    %v8381 = vunpack.c.l.bf16 %v8338
    %v8382 = vunpack.c.h.bf16 %v8338
    %v8383 = vunpack.c.l.bf16 %v8339
    %v8384 = vunpack.c.h.bf16 %v8339
    %v8385 = vunpack.c.l.bf16 %v8340
    %v8386 = vunpack.c.h.bf16 %v8340
    %v8387 = vunpack.c.l.bf16 %v8341
    %v8388 = vunpack.c.h.bf16 %v8341
    %v8389 = vunpack.c.l.bf16 %v8342
    %v8390 = vunpack.c.h.bf16 %v8342
    %v8391 = vunpack.c.l.bf16 %v8343
    %v8392 = vunpack.c.h.bf16 %v8343
    %v8393 = vunpack.c.l.bf16 %v8344
    %v8394 = vunpack.c.h.bf16 %v8344
    %v8395 = vunpack.c.l.bf16 %v8345
    %v8396 = vunpack.c.h.bf16 %v8345
    %v8397 = vunpack.c.l.bf16 %v8346
    %v8398 = vunpack.c.h.bf16 %v8346
    %v8399 = vunpack.c.l.bf16 %v8347
    %v8400 = vunpack.c.h.bf16 %v8347
    %v8401 = vunpack.c.l.bf16 %v8348
    %v8402 = vunpack.c.h.bf16 %v8348
    %v8403 = vunpack.c.l.bf16 %v8349
    %v8404 = vunpack.c.h.bf16 %v8349
    %v8405 = vunpack.c.l.bf16 %v8350
    %v8406 = vunpack.c.h.bf16 %v8350
    %v8407 = vunpack.c.l.bf16 %v8351
    %v8408 = vunpack.c.h.bf16 %v8351
    %v8409 = vunpack.c.l.bf16 %v8352
    %v8410 = vunpack.c.h.bf16 %v8352
    %v8411 = vunpack.c.l.bf16 %v8353
    %v8412 = vunpack.c.h.bf16 %v8353
    %v8413 = vunpack.c.l.bf16 %v8354
    %v8414 = vunpack.c.h.bf16 %v8354
    %v8415 = vunpack.c.l.bf16 %v8355
    %v8416 = vunpack.c.h.bf16 %v8355
    %v8417 = vunpack.c.l.bf16 %v8356
    %v8418 = vunpack.c.h.bf16 %v8356
    %v8419 = vunpack.c.l.bf16 %v8357
    %v8420 = vunpack.c.h.bf16 %v8357
    %v8421 = vunpack.c.l.bf16 %v8358
    %v8422 = vunpack.c.h.bf16 %v8358
    %v8423 = vadd.f32 %v8359, %v8367
    %v8424 = vadd.f32 %v8423, %v8375
    %v8425 = vadd.f32 %v8424, %v8383
    %v8426 = vrot.slane %v8425, 4
    %v8427 = vadd.f32 %v8425, %v8426
    %v8428 = vrot.slane %v8427, 2
    %v8429 = vadd.f32 %v8427, %v8428
    %v8430 = vrot.slane %v8429, 1
    %v8431 = vadd.f32 %v8429, %v8430
    %v8432 = vadd.f32 %v8360, %v8368
    %v8433 = vadd.f32 %v8432, %v8376
    %v8434 = vadd.f32 %v8433, %v8384
    %v8435 = vrot.slane %v8434, 4
    %v8436 = vadd.f32 %v8434, %v8435
    %v8437 = vrot.slane %v8436, 2
    %v8438 = vadd.f32 %v8436, %v8437
    %v8439 = vrot.slane %v8438, 1
    %v8440 = vadd.f32 %v8438, %v8439
    %v8441 = vadd.f32 %v8361, %v8369
    %v8442 = vadd.f32 %v8441, %v8377
    %v8443 = vadd.f32 %v8442, %v8385
    %v8444 = vrot.slane %v8443, 4
    %v8445 = vadd.f32 %v8443, %v8444
    %v8446 = vrot.slane %v8445, 2
    %v8447 = vadd.f32 %v8445, %v8446
    %v8448 = vrot.slane %v8447, 1
    %v8449 = vadd.f32 %v8447, %v8448
    %v8450 = vadd.f32 %v8362, %v8370
    %v8451 = vadd.f32 %v8450, %v8378
    %v8452 = vadd.f32 %v8451, %v8386
    %v8453 = vrot.slane %v8452, 4
    %v8454 = vadd.f32 %v8452, %v8453
    %v8455 = vrot.slane %v8454, 2
    %v8456 = vadd.f32 %v8454, %v8455
    %v8457 = vrot.slane %v8456, 1
    %v8458 = vadd.f32 %v8456, %v8457
    %v8459 = vadd.f32 %v8363, %v8371
    %v8460 = vadd.f32 %v8459, %v8379
    %v8461 = vadd.f32 %v8460, %v8387
    %v8462 = vrot.slane %v8461, 4
    %v8463 = vadd.f32 %v8461, %v8462
    %v8464 = vrot.slane %v8463, 2
    %v8465 = vadd.f32 %v8463, %v8464
    %v8466 = vrot.slane %v8465, 1
    %v8467 = vadd.f32 %v8465, %v8466
    %v8468 = vadd.f32 %v8364, %v8372
    %v8469 = vadd.f32 %v8468, %v8380
    %v8470 = vadd.f32 %v8469, %v8388
    %v8471 = vrot.slane %v8470, 4
    %v8472 = vadd.f32 %v8470, %v8471
    %v8473 = vrot.slane %v8472, 2
    %v8474 = vadd.f32 %v8472, %v8473
    %v8475 = vrot.slane %v8474, 1
    %v8476 = vadd.f32 %v8474, %v8475
    %v8477 = vadd.f32 %v8365, %v8373
    %v8478 = vadd.f32 %v8477, %v8381
    %v8479 = vadd.f32 %v8478, %v8389
    %v8480 = vrot.slane %v8479, 4
    %v8481 = vadd.f32 %v8479, %v8480
    %v8482 = vrot.slane %v8481, 2
    %v8483 = vadd.f32 %v8481, %v8482
    %v8484 = vrot.slane %v8483, 1
    %v8485 = vadd.f32 %v8483, %v8484
    %v8486 = vadd.f32 %v8366, %v8374
    %v8487 = vadd.f32 %v8486, %v8382
    %v8488 = vadd.f32 %v8487, %v8390
    %v8489 = vrot.slane %v8488, 4
    %v8490 = vadd.f32 %v8488, %v8489
    %v8491 = vrot.slane %v8490, 2
    %v8492 = vadd.f32 %v8490, %v8491
    %v8493 = vrot.slane %v8492, 1
    %v8494 = vadd.f32 %v8492, %v8493
    %v8495 = vadd.f32 %v8391, %v8399
    %v8496 = vadd.f32 %v8495, %v8407
    %v8497 = vadd.f32 %v8496, %v8415
    %v8498 = vrot.slane %v8497, 4
    %v8499 = vadd.f32 %v8497, %v8498
    %v8500 = vrot.slane %v8499, 2
    %v8501 = vadd.f32 %v8499, %v8500
    %v8502 = vrot.slane %v8501, 1
    %v8503 = vadd.f32 %v8501, %v8502
    %v8504 = vadd.f32 %v8392, %v8400
    %v8505 = vadd.f32 %v8504, %v8408
    %v8506 = vadd.f32 %v8505, %v8416
    %v8507 = vrot.slane %v8506, 4
    %v8508 = vadd.f32 %v8506, %v8507
    %v8509 = vrot.slane %v8508, 2
    %v8510 = vadd.f32 %v8508, %v8509
    %v8511 = vrot.slane %v8510, 1
    %v8512 = vadd.f32 %v8510, %v8511
    %v8513 = vadd.f32 %v8393, %v8401
    %v8514 = vadd.f32 %v8513, %v8409
    %v8515 = vadd.f32 %v8514, %v8417
    %v8516 = vrot.slane %v8515, 4
    %v8517 = vadd.f32 %v8515, %v8516
    %v8518 = vrot.slane %v8517, 2
    %v8519 = vadd.f32 %v8517, %v8518
    %v8520 = vrot.slane %v8519, 1
    %v8521 = vadd.f32 %v8519, %v8520
    %v8522 = vadd.f32 %v8394, %v8402
    %v8523 = vadd.f32 %v8522, %v8410
    %v8524 = vadd.f32 %v8523, %v8418
    %v8525 = vrot.slane %v8524, 4
    %v8526 = vadd.f32 %v8524, %v8525
    %v8527 = vrot.slane %v8526, 2
    %v8528 = vadd.f32 %v8526, %v8527
    %v8529 = vrot.slane %v8528, 1
    %v8530 = vadd.f32 %v8528, %v8529
    %v8531 = vadd.f32 %v8395, %v8403
    %v8532 = vadd.f32 %v8531, %v8411
    %v8533 = vadd.f32 %v8532, %v8419
    %v8534 = vrot.slane %v8533, 4
    %v8535 = vadd.f32 %v8533, %v8534
    %v8536 = vrot.slane %v8535, 2
    %v8537 = vadd.f32 %v8535, %v8536
    %v8538 = vrot.slane %v8537, 1
    %v8539 = vadd.f32 %v8537, %v8538
    %v8540 = vadd.f32 %v8396, %v8404
    %v8541 = vadd.f32 %v8540, %v8412
    %v8542 = vadd.f32 %v8541, %v8420
    %v8543 = vrot.slane %v8542, 4
    %v8544 = vadd.f32 %v8542, %v8543
    %v8545 = vrot.slane %v8544, 2
    %v8546 = vadd.f32 %v8544, %v8545
    %v8547 = vrot.slane %v8546, 1
    %v8548 = vadd.f32 %v8546, %v8547
    %v8549 = vadd.f32 %v8397, %v8405
    %v8550 = vadd.f32 %v8549, %v8413
    %v8551 = vadd.f32 %v8550, %v8421
    %v8552 = vrot.slane %v8551, 4
    %v8553 = vadd.f32 %v8551, %v8552
    %v8554 = vrot.slane %v8553, 2
    %v8555 = vadd.f32 %v8553, %v8554
    %v8556 = vrot.slane %v8555, 1
    %v8557 = vadd.f32 %v8555, %v8556
    %v8558 = vadd.f32 %v8398, %v8406
    %v8559 = vadd.f32 %v8558, %v8414
    %v8560 = vadd.f32 %v8559, %v8422
    %v8561 = vrot.slane %v8560, 4
    %v8562 = vadd.f32 %v8560, %v8561
    %v8563 = vrot.slane %v8562, 2
    %v8564 = vadd.f32 %v8562, %v8563
    %v8565 = vrot.slane %v8564, 1
    %v8566 = vadd.f32 %v8564, %v8565
    %v8567 = vmul.f32 %v8431, 0.03125
    %v8568 = vmul.f32 %v8440, 0.03125
    %v8569 = vmul.f32 %v8449, 0.03125
    %v8570 = vmul.f32 %v8458, 0.03125
    %v8571 = vmul.f32 %v8467, 0.03125
    %v8572 = vmul.f32 %v8476, 0.03125
    %v8573 = vmul.f32 %v8485, 0.03125
    %v8574 = vmul.f32 %v8494, 0.03125
    %v8575 = vmul.f32 %v8503, 0.03125
    %v8576 = vmul.f32 %v8512, 0.03125
    %v8577 = vmul.f32 %v8521, 0.03125
    %v8578 = vmul.f32 %v8530, 0.03125
    %v8579 = vmul.f32 %v8539, 0.03125
    %v8580 = vmul.f32 %v8548, 0.03125
    %v8581 = vmul.f32 %v8557, 0.03125
    %v8582 = vmul.f32 %v8566, 0.03125
    %v8599 = vrot.slane %v8568, 7
    %v8600 = vrot.slane %v8569, 6
    %v8601 = vrot.slane %v8570, 5
    %v8602 = vrot.slane %v8571, 4
    %v8603 = vrot.slane %v8572, 3
    %v8604 = vrot.slane %v8573, 2
    %v8605 = vrot.slane %v8574, 1
    %v8606 = vrot.slane %v8576, 7
    %v8607 = vrot.slane %v8577, 6
    %v8608 = vrot.slane %v8578, 5
    %v8609 = vrot.slane %v8579, 4
    %v8610 = vrot.slane %v8580, 3
    %v8611 = vrot.slane %v8581, 2
    %v8612 = vrot.slane %v8582, 1
    %v8613 = vsel %vm460, %v8567, %v8599
    %v8614 = vsel %vm462, %v8600, %v8601
    %v8615 = vsel %vm464, %v8613, %v8614
    %v8616 = vsel %vm466, %v8602, %v8603
    %v8617 = vsel %vm468, %v8604, %v8605
    %v8618 = vsel %vm470, %v8616, %v8617
    %v8619 = vsel %vm472, %v8615, %v8618
    %v8620 = vsel %vm460, %v8575, %v8606
    %v8621 = vsel %vm462, %v8607, %v8608
    %v8622 = vsel %vm464, %v8620, %v8621
    %v8623 = vsel %vm466, %v8609, %v8610
    %v8624 = vsel %vm468, %v8611, %v8612
    %v8625 = vsel %vm470, %v8623, %v8624
    %v8626 = vsel %vm472, %v8622, %v8625
    %s8629 = scalar_lea.vmem %s9, 4
    %8630 = vst [vmem:[%s8629] ss:$8 sm:$0xf] %v8619
    %8631 = vst [vmem:[%s8629] ss:$8 sm:$0xf0] %v8619
    %s8632 = scalar_lea.vmem %s9, 68
    %8633 = vst [vmem:[%s8632] ss:$8 sm:$0xf] %v8626
    %8634 = vst [vmem:[%s8632] ss:$8 sm:$0xf0] %v8626
    %v8635 = vpack.c.bf16 %v8567, %v8567
    %v8636 = vpack.c.bf16 %v8568, %v8568
    %v8637 = vpack.c.bf16 %v8569, %v8569
    %v8638 = vpack.c.bf16 %v8570, %v8570
    %v8639 = vpack.c.bf16 %v8571, %v8571
    %v8640 = vpack.c.bf16 %v8572, %v8572
    %v8641 = vpack.c.bf16 %v8573, %v8573
    %v8642 = vpack.c.bf16 %v8574, %v8574
    %v8643 = vpack.c.bf16 %v8575, %v8575
    %v8644 = vpack.c.bf16 %v8576, %v8576
    %v8645 = vpack.c.bf16 %v8577, %v8577
    %v8646 = vpack.c.bf16 %v8578, %v8578
    %v8647 = vpack.c.bf16 %v8579, %v8579
    %v8648 = vpack.c.bf16 %v8580, %v8580
    %v8649 = vpack.c.bf16 %v8581, %v8581
    %v8650 = vpack.c.bf16 %v8582, %v8582
    %s8651 = scalar_lea.vmem [#allocation5], 2048
    %v8652 = vld [vmem:[%s8651] sm:$0xf]
    %v8653 = vld [vmem:[%s8651 + $0x4] sm:$0xf]
    %v8654 = vld [vmem:[%s8651 + $0x8] sm:$0xf]
    %v8655 = vld [vmem:[%s8651 + $0xc] sm:$0xf]
    %v8656 = vld [vmem:[%s8651 + $0x10] sm:$0xf]
    %v8657 = vld [vmem:[%s8651 + $0x14] sm:$0xf]
    %v8658 = vld [vmem:[%s8651 + $0x18] sm:$0xf]
    %v8659 = vld [vmem:[%s8651 + $0x1c] sm:$0xf]
    %v8660 = vld [vmem:[%s8651 + $0x20] sm:$0xf]
    %v8661 = vld [vmem:[%s8651 + $0x24] sm:$0xf]
    %v8662 = vld [vmem:[%s8651 + $0x28] sm:$0xf]
    %v8663 = vld [vmem:[%s8651 + $0x2c] sm:$0xf]
    %v8664 = vld [vmem:[%s8651 + $0x30] sm:$0xf]
    %v8665 = vld [vmem:[%s8651 + $0x34] sm:$0xf]
    %v8666 = vld [vmem:[%s8651 + $0x38] sm:$0xf]
    %v8667 = vld [vmem:[%s8651 + $0x3c] sm:$0xf]
    %v8668 = vld [vmem:[%s8651 + $0x40] sm:$0xf]
    %v8669 = vld [vmem:[%s8651 + $0x44] sm:$0xf]
    %v8670 = vld [vmem:[%s8651 + $0x48] sm:$0xf]
    %v8671 = vld [vmem:[%s8651 + $0x4c] sm:$0xf]
    %v8672 = vld [vmem:[%s8651 + $0x50] sm:$0xf]
    %v8673 = vld [vmem:[%s8651 + $0x54] sm:$0xf]
    %v8674 = vld [vmem:[%s8651 + $0x58] sm:$0xf]
    %v8675 = vld [vmem:[%s8651 + $0x5c] sm:$0xf]
    %v8676 = vld [vmem:[%s8651 + $0x60] sm:$0xf]
    %v8677 = vld [vmem:[%s8651 + $0x64] sm:$0xf]
    %v8678 = vld [vmem:[%s8651 + $0x68] sm:$0xf]
    %v8679 = vld [vmem:[%s8651 + $0x6c] sm:$0xf]
    %v8680 = vld [vmem:[%s8651 + $0x70] sm:$0xf]
    %v8681 = vld [vmem:[%s8651 + $0x74] sm:$0xf]
    %v8682 = vld [vmem:[%s8651 + $0x78] sm:$0xf]
    %v8683 = vld [vmem:[%s8651 + $0x7c] sm:$0xf]
    %v8684 = vld [vmem:[%s8651 + $0x80] sm:$0xf]
    %v8685 = vld [vmem:[%s8651 + $0x84] sm:$0xf]
    %v8686 = vld [vmem:[%s8651 + $0x88] sm:$0xf]
    %v8687 = vld [vmem:[%s8651 + $0x8c] sm:$0xf]
    %v8688 = vld [vmem:[%s8651 + $0x90] sm:$0xf]
    %v8689 = vld [vmem:[%s8651 + $0x94] sm:$0xf]
    %v8690 = vld [vmem:[%s8651 + $0x98] sm:$0xf]
    %v8691 = vld [vmem:[%s8651 + $0x9c] sm:$0xf]
    %v8692 = vld [vmem:[%s8651 + $0xa0] sm:$0xf]
    %v8693 = vld [vmem:[%s8651 + $0xa4] sm:$0xf]
    %v8694 = vld [vmem:[%s8651 + $0xa8] sm:$0xf]
    %v8695 = vld [vmem:[%s8651 + $0xac] sm:$0xf]
    %v8696 = vld [vmem:[%s8651 + $0xb0] sm:$0xf]
    %v8697 = vld [vmem:[%s8651 + $0xb4] sm:$0xf]
    %v8698 = vld [vmem:[%s8651 + $0xb8] sm:$0xf]
    %v8699 = vld [vmem:[%s8651 + $0xbc] sm:$0xf]
    %v8700 = vld [vmem:[%s8651 + $0xc0] sm:$0xf]
    %v8701 = vld [vmem:[%s8651 + $0xc4] sm:$0xf]
    %v8702 = vld [vmem:[%s8651 + $0xc8] sm:$0xf]
    %v8703 = vld [vmem:[%s8651 + $0xcc] sm:$0xf]
    %v8704 = vld [vmem:[%s8651 + $0xd0] sm:$0xf]
    %v8705 = vld [vmem:[%s8651 + $0xd4] sm:$0xf]
    %v8706 = vld [vmem:[%s8651 + $0xd8] sm:$0xf]
    %v8707 = vld [vmem:[%s8651 + $0xdc] sm:$0xf]
    %v8708 = vld [vmem:[%s8651 + $0xe0] sm:$0xf]
    %v8709 = vld [vmem:[%s8651 + $0xe4] sm:$0xf]
    %v8710 = vld [vmem:[%s8651 + $0xe8] sm:$0xf]
    %v8711 = vld [vmem:[%s8651 + $0xec] sm:$0xf]
    %v8712 = vld [vmem:[%s8651 + $0xf0] sm:$0xf]
    %v8713 = vld [vmem:[%s8651 + $0xf4] sm:$0xf]
    %v8714 = vld [vmem:[%s8651 + $0xf8] sm:$0xf]
    %v8715 = vld [vmem:[%s8651 + $0xfc] sm:$0xf]
    %v8716 = vld [vmem:[%s8651 + $0x100] sm:$0xf]
    %v8717 = vld [vmem:[%s8651 + $0x104] sm:$0xf]
    %v8718 = vld [vmem:[%s8651 + $0x108] sm:$0xf]
    %v8719 = vld [vmem:[%s8651 + $0x10c] sm:$0xf]
    %v8720 = vld [vmem:[%s8651 + $0x110] sm:$0xf]
    %v8721 = vld [vmem:[%s8651 + $0x114] sm:$0xf]
    %v8722 = vld [vmem:[%s8651 + $0x118] sm:$0xf]
    %v8723 = vld [vmem:[%s8651 + $0x11c] sm:$0xf]
    %v8724 = vld [vmem:[%s8651 + $0x120] sm:$0xf]
    %v8725 = vld [vmem:[%s8651 + $0x124] sm:$0xf]
    %v8726 = vld [vmem:[%s8651 + $0x128] sm:$0xf]
    %v8727 = vld [vmem:[%s8651 + $0x12c] sm:$0xf]
    %v8728 = vld [vmem:[%s8651 + $0x130] sm:$0xf]
    %v8729 = vld [vmem:[%s8651 + $0x134] sm:$0xf]
    %v8730 = vld [vmem:[%s8651 + $0x138] sm:$0xf]
    %v8731 = vld [vmem:[%s8651 + $0x13c] sm:$0xf]
    %v8732 = vld [vmem:[%s8651 + $0x140] sm:$0xf]
    %v8733 = vld [vmem:[%s8651 + $0x144] sm:$0xf]
    %v8734 = vld [vmem:[%s8651 + $0x148] sm:$0xf]
    %v8735 = vld [vmem:[%s8651 + $0x14c] sm:$0xf]
    %v8736 = vld [vmem:[%s8651 + $0x150] sm:$0xf]
    %v8737 = vld [vmem:[%s8651 + $0x154] sm:$0xf]
    %v8738 = vld [vmem:[%s8651 + $0x158] sm:$0xf]
    %v8739 = vld [vmem:[%s8651 + $0x15c] sm:$0xf]
    %v8740 = vld [vmem:[%s8651 + $0x160] sm:$0xf]
    %v8741 = vld [vmem:[%s8651 + $0x164] sm:$0xf]
    %v8742 = vld [vmem:[%s8651 + $0x168] sm:$0xf]
    %v8743 = vld [vmem:[%s8651 + $0x16c] sm:$0xf]
    %v8744 = vld [vmem:[%s8651 + $0x170] sm:$0xf]
    %v8745 = vld [vmem:[%s8651 + $0x174] sm:$0xf]
    %v8746 = vld [vmem:[%s8651 + $0x178] sm:$0xf]
    %v8747 = vld [vmem:[%s8651 + $0x17c] sm:$0xf]
    %v8748 = vld [vmem:[%s8651 + $0x180] sm:$0xf]
    %v8749 = vld [vmem:[%s8651 + $0x184] sm:$0xf]
    %v8750 = vld [vmem:[%s8651 + $0x188] sm:$0xf]
    %v8751 = vld [vmem:[%s8651 + $0x18c] sm:$0xf]
    %v8752 = vld [vmem:[%s8651 + $0x190] sm:$0xf]
    %v8753 = vld [vmem:[%s8651 + $0x194] sm:$0xf]
    %v8754 = vld [vmem:[%s8651 + $0x198] sm:$0xf]
    %v8755 = vld [vmem:[%s8651 + $0x19c] sm:$0xf]
    %v8756 = vld [vmem:[%s8651 + $0x1a0] sm:$0xf]
    %v8757 = vld [vmem:[%s8651 + $0x1a4] sm:$0xf]
    %v8758 = vld [vmem:[%s8651 + $0x1a8] sm:$0xf]
    %v8759 = vld [vmem:[%s8651 + $0x1ac] sm:$0xf]
    %v8760 = vld [vmem:[%s8651 + $0x1b0] sm:$0xf]
    %v8761 = vld [vmem:[%s8651 + $0x1b4] sm:$0xf]
    %v8762 = vld [vmem:[%s8651 + $0x1b8] sm:$0xf]
    %v8763 = vld [vmem:[%s8651 + $0x1bc] sm:$0xf]
    %v8764 = vld [vmem:[%s8651 + $0x1c0] sm:$0xf]
    %v8765 = vld [vmem:[%s8651 + $0x1c4] sm:$0xf]
    %v8766 = vld [vmem:[%s8651 + $0x1c8] sm:$0xf]
    %v8767 = vld [vmem:[%s8651 + $0x1cc] sm:$0xf]
    %v8768 = vld [vmem:[%s8651 + $0x1d0] sm:$0xf]
    %v8769 = vld [vmem:[%s8651 + $0x1d4] sm:$0xf]
    %v8770 = vld [vmem:[%s8651 + $0x1d8] sm:$0xf]
    %v8771 = vld [vmem:[%s8651 + $0x1dc] sm:$0xf]
    %v8772 = vld [vmem:[%s8651 + $0x1e0] sm:$0xf]
    %v8773 = vld [vmem:[%s8651 + $0x1e4] sm:$0xf]
    %v8774 = vld [vmem:[%s8651 + $0x1e8] sm:$0xf]
    %v8775 = vld [vmem:[%s8651 + $0x1ec] sm:$0xf]
    %v8776 = vld [vmem:[%s8651 + $0x1f0] sm:$0xf]
    %v8777 = vld [vmem:[%s8651 + $0x1f4] sm:$0xf]
    %v8778 = vld [vmem:[%s8651 + $0x1f8] sm:$0xf]
    %v8779 = vld [vmem:[%s8651 + $0x1fc] sm:$0xf]
    %v8796 = vunpack.c.l.b16 %v8635
    %v8797 = vunpack.c.l.b16 %v8636
    %v8798 = vunpack.c.l.b16 %v8637
    %v8799 = vunpack.c.l.b16 %v8638
    %v8800 = vunpack.c.l.b16 %v8639
    %v8801 = vunpack.c.l.b16 %v8640
    %v8802 = vunpack.c.l.b16 %v8641
    %v8803 = vunpack.c.l.b16 %v8642
    %v8804 = vunpack.c.l.b16 %v8643
    %v8805 = vunpack.c.l.b16 %v8644
    %v8806 = vunpack.c.l.b16 %v8645
    %v8807 = vunpack.c.l.b16 %v8646
    %v8808 = vunpack.c.l.b16 %v8647
    %v8809 = vunpack.c.l.b16 %v8648
    %v8810 = vunpack.c.l.b16 %v8649
    %v8811 = vunpack.c.l.b16 %v8650
    %v8812 = vsel %vm798, %v8804, %v8796
    %v8813 = vsel %vm798, %v8805, %v8797
    %v8814 = vsel %vm798, %v8806, %v8798
    %v8815 = vsel %vm798, %v8807, %v8799
    %v8816 = vsel %vm798, %v8808, %v8800
    %v8817 = vsel %vm798, %v8809, %v8801
    %v8818 = vsel %vm798, %v8810, %v8802
    %v8819 = vsel %vm798, %v8811, %v8803
    %v8820 = vpack.c.b16 %v8812, %v8812
    %v8821 = vpack.c.b16 %v8813, %v8813
    %v8822 = vpack.c.b16 %v8814, %v8814
    %v8823 = vpack.c.b16 %v8815, %v8815
    %v8824 = vpack.c.b16 %v8816, %v8816
    %v8825 = vpack.c.b16 %v8817, %v8817
    %v8826 = vpack.c.b16 %v8818, %v8818
    %v8827 = vpack.c.b16 %v8819, %v8819
    %v8964 = vunpack.c.l.b16 %v8652
    %v8965 = vunpack.c.l.b16 %v8653
    %v8966 = vunpack.c.l.b16 %v8654
    %v8967 = vunpack.c.l.b16 %v8655
    %v8968 = vunpack.c.l.b16 %v8656
    %v8969 = vunpack.c.l.b16 %v8657
    %v8970 = vunpack.c.l.b16 %v8658
    %v8971 = vunpack.c.l.b16 %v8659
    %v8972 = vunpack.c.l.b16 %v8660
    %v8973 = vunpack.c.l.b16 %v8661
    %v8974 = vunpack.c.l.b16 %v8662
    %v8975 = vunpack.c.l.b16 %v8663
    %v8976 = vunpack.c.l.b16 %v8664
    %v8977 = vunpack.c.l.b16 %v8665
    %v8978 = vunpack.c.l.b16 %v8666
    %v8979 = vunpack.c.l.b16 %v8667
    %v8980 = vunpack.c.l.b16 %v8668
    %v8981 = vunpack.c.l.b16 %v8669
    %v8982 = vunpack.c.l.b16 %v8670
    %v8983 = vunpack.c.l.b16 %v8671
    %v8984 = vunpack.c.l.b16 %v8672
    %v8985 = vunpack.c.l.b16 %v8673
    %v8986 = vunpack.c.l.b16 %v8674
    %v8987 = vunpack.c.l.b16 %v8675
    %v8988 = vunpack.c.l.b16 %v8676
    %v8989 = vunpack.c.l.b16 %v8677
    %v8990 = vunpack.c.l.b16 %v8678
    %v8991 = vunpack.c.l.b16 %v8679
    %v8992 = vunpack.c.l.b16 %v8680
    %v8993 = vunpack.c.l.b16 %v8681
    %v8994 = vunpack.c.l.b16 %v8682
    %v8995 = vunpack.c.l.b16 %v8683
    %v8996 = vunpack.c.l.b16 %v8684
    %v8997 = vunpack.c.l.b16 %v8685
    %v8998 = vunpack.c.l.b16 %v8686
    %v8999 = vunpack.c.l.b16 %v8687
    %v9000 = vunpack.c.l.b16 %v8688
    %v9001 = vunpack.c.l.b16 %v8689
    %v9002 = vunpack.c.l.b16 %v8690
    %v9003 = vunpack.c.l.b16 %v8691
    %v9004 = vunpack.c.l.b16 %v8692
    %v9005 = vunpack.c.l.b16 %v8693
    %v9006 = vunpack.c.l.b16 %v8694
    %v9007 = vunpack.c.l.b16 %v8695
    %v9008 = vunpack.c.l.b16 %v8696
    %v9009 = vunpack.c.l.b16 %v8697
    %v9010 = vunpack.c.l.b16 %v8698
    %v9011 = vunpack.c.l.b16 %v8699
    %v9012 = vunpack.c.l.b16 %v8700
    %v9013 = vunpack.c.l.b16 %v8701
    %v9014 = vunpack.c.l.b16 %v8702
    %v9015 = vunpack.c.l.b16 %v8703
    %v9016 = vunpack.c.l.b16 %v8704
    %v9017 = vunpack.c.l.b16 %v8705
    %v9018 = vunpack.c.l.b16 %v8706
    %v9019 = vunpack.c.l.b16 %v8707
    %v9020 = vunpack.c.l.b16 %v8708
    %v9021 = vunpack.c.l.b16 %v8709
    %v9022 = vunpack.c.l.b16 %v8710
    %v9023 = vunpack.c.l.b16 %v8711
    %v9024 = vunpack.c.l.b16 %v8712
    %v9025 = vunpack.c.l.b16 %v8713
    %v9026 = vunpack.c.l.b16 %v8714
    %v9027 = vunpack.c.l.b16 %v8715
    %v9028 = vunpack.c.l.b16 %v8716
    %v9029 = vunpack.c.l.b16 %v8717
    %v9030 = vunpack.c.l.b16 %v8718
    %v9031 = vunpack.c.l.b16 %v8719
    %v9032 = vunpack.c.l.b16 %v8720
    %v9033 = vunpack.c.l.b16 %v8721
    %v9034 = vunpack.c.l.b16 %v8722
    %v9035 = vunpack.c.l.b16 %v8723
    %v9036 = vunpack.c.l.b16 %v8724
    %v9037 = vunpack.c.l.b16 %v8725
    %v9038 = vunpack.c.l.b16 %v8726
    %v9039 = vunpack.c.l.b16 %v8727
    %v9040 = vunpack.c.l.b16 %v8728
    %v9041 = vunpack.c.l.b16 %v8729
    %v9042 = vunpack.c.l.b16 %v8730
    %v9043 = vunpack.c.l.b16 %v8731
    %v9044 = vunpack.c.l.b16 %v8732
    %v9045 = vunpack.c.l.b16 %v8733
    %v9046 = vunpack.c.l.b16 %v8734
    %v9047 = vunpack.c.l.b16 %v8735
    %v9048 = vunpack.c.l.b16 %v8736
    %v9049 = vunpack.c.l.b16 %v8737
    %v9050 = vunpack.c.l.b16 %v8738
    %v9051 = vunpack.c.l.b16 %v8739
    %v9052 = vunpack.c.l.b16 %v8740
    %v9053 = vunpack.c.l.b16 %v8741
    %v9054 = vunpack.c.l.b16 %v8742
    %v9055 = vunpack.c.l.b16 %v8743
    %v9056 = vunpack.c.l.b16 %v8744
    %v9057 = vunpack.c.l.b16 %v8745
    %v9058 = vunpack.c.l.b16 %v8746
    %v9059 = vunpack.c.l.b16 %v8747
    %v9060 = vunpack.c.l.b16 %v8748
    %v9061 = vunpack.c.l.b16 %v8749
    %v9062 = vunpack.c.l.b16 %v8750
    %v9063 = vunpack.c.l.b16 %v8751
    %v9064 = vunpack.c.l.b16 %v8752
    %v9065 = vunpack.c.l.b16 %v8753
    %v9066 = vunpack.c.l.b16 %v8754
    %v9067 = vunpack.c.l.b16 %v8755
    %v9068 = vunpack.c.l.b16 %v8756
    %v9069 = vunpack.c.l.b16 %v8757
    %v9070 = vunpack.c.l.b16 %v8758
    %v9071 = vunpack.c.l.b16 %v8759
    %v9072 = vunpack.c.l.b16 %v8760
    %v9073 = vunpack.c.l.b16 %v8761
    %v9074 = vunpack.c.l.b16 %v8762
    %v9075 = vunpack.c.l.b16 %v8763
    %v9076 = vunpack.c.l.b16 %v8764
    %v9077 = vunpack.c.l.b16 %v8765
    %v9078 = vunpack.c.l.b16 %v8766
    %v9079 = vunpack.c.l.b16 %v8767
    %v9080 = vunpack.c.l.b16 %v8768
    %v9081 = vunpack.c.l.b16 %v8769
    %v9082 = vunpack.c.l.b16 %v8770
    %v9083 = vunpack.c.l.b16 %v8771
    %v9084 = vunpack.c.l.b16 %v8772
    %v9085 = vunpack.c.l.b16 %v8773
    %v9086 = vunpack.c.l.b16 %v8774
    %v9087 = vunpack.c.l.b16 %v8775
    %v9088 = vunpack.c.l.b16 %v8776
    %v9089 = vunpack.c.l.b16 %v8777
    %v9090 = vunpack.c.l.b16 %v8778
    %v9091 = vunpack.c.l.b16 %v8779
    %v9092 = vpack.c.b16 %v8965, %v8964
    %v9093 = vpack.c.b16 %v8967, %v8966
    %v9094 = vpack.c.b16 %v8969, %v8968
    %v9095 = vpack.c.b16 %v8971, %v8970
    %v9096 = vpack.c.b16 %v8973, %v8972
    %v9097 = vpack.c.b16 %v8975, %v8974
    %v9098 = vpack.c.b16 %v8977, %v8976
    %v9099 = vpack.c.b16 %v8979, %v8978
    %v9100 = vpack.c.b16 %v8981, %v8980
    %v9101 = vpack.c.b16 %v8983, %v8982
    %v9102 = vpack.c.b16 %v8985, %v8984
    %v9103 = vpack.c.b16 %v8987, %v8986
    %v9104 = vpack.c.b16 %v8989, %v8988
    %v9105 = vpack.c.b16 %v8991, %v8990
    %v9106 = vpack.c.b16 %v8993, %v8992
    %v9107 = vpack.c.b16 %v8995, %v8994
    %v9108 = vpack.c.b16 %v8997, %v8996
    %v9109 = vpack.c.b16 %v8999, %v8998
    %v9110 = vpack.c.b16 %v9001, %v9000
    %v9111 = vpack.c.b16 %v9003, %v9002
    %v9112 = vpack.c.b16 %v9005, %v9004
    %v9113 = vpack.c.b16 %v9007, %v9006
    %v9114 = vpack.c.b16 %v9009, %v9008
    %v9115 = vpack.c.b16 %v9011, %v9010
    %v9116 = vpack.c.b16 %v9013, %v9012
    %v9117 = vpack.c.b16 %v9015, %v9014
    %v9118 = vpack.c.b16 %v9017, %v9016
    %v9119 = vpack.c.b16 %v9019, %v9018
    %v9120 = vpack.c.b16 %v9021, %v9020
    %v9121 = vpack.c.b16 %v9023, %v9022
    %v9122 = vpack.c.b16 %v9025, %v9024
    %v9123 = vpack.c.b16 %v9027, %v9026
    %v9124 = vpack.c.b16 %v9029, %v9028
    %v9125 = vpack.c.b16 %v9031, %v9030
    %v9126 = vpack.c.b16 %v9033, %v9032
    %v9127 = vpack.c.b16 %v9035, %v9034
    %v9128 = vpack.c.b16 %v9037, %v9036
    %v9129 = vpack.c.b16 %v9039, %v9038
    %v9130 = vpack.c.b16 %v9041, %v9040
    %v9131 = vpack.c.b16 %v9043, %v9042
    %v9132 = vpack.c.b16 %v9045, %v9044
    %v9133 = vpack.c.b16 %v9047, %v9046
    %v9134 = vpack.c.b16 %v9049, %v9048
    %v9135 = vpack.c.b16 %v9051, %v9050
    %v9136 = vpack.c.b16 %v9053, %v9052
    %v9137 = vpack.c.b16 %v9055, %v9054
    %v9138 = vpack.c.b16 %v9057, %v9056
    %v9139 = vpack.c.b16 %v9059, %v9058
    %v9140 = vpack.c.b16 %v9061, %v9060
    %v9141 = vpack.c.b16 %v9063, %v9062
    %v9142 = vpack.c.b16 %v9065, %v9064
    %v9143 = vpack.c.b16 %v9067, %v9066
    %v9144 = vpack.c.b16 %v9069, %v9068
    %v9145 = vpack.c.b16 %v9071, %v9070
    %v9146 = vpack.c.b16 %v9073, %v9072
    %v9147 = vpack.c.b16 %v9075, %v9074
    %v9148 = vpack.c.b16 %v9077, %v9076
    %v9149 = vpack.c.b16 %v9079, %v9078
    %v9150 = vpack.c.b16 %v9081, %v9080
    %v9151 = vpack.c.b16 %v9083, %v9082
    %v9152 = vpack.c.b16 %v9085, %v9084
    %v9153 = vpack.c.b16 %v9087, %v9086
    %v9154 = vpack.c.b16 %v9089, %v9088
    %v9155 = vpack.c.b16 %v9091, %v9090
    %9220 = vmatpush.bf16.msra.mxu0 %v9099
    %9221 = vmatpush.bf16.msra.mxu0 %v9098
    %9222 = vmatpush.bf16.msra.mxu0 %v9097
    %9223 = vmatpush.bf16.msra.mxu0 %v9096
    %9224 = vmatpush.bf16.msra.mxu0 %v9095
    %9225 = vmatpush.bf16.msra.mxu0 %v9094
    %9226 = vmatpush.bf16.msra.mxu0 %v9093
    %9227 = vmatpush.bf16.msra.mxu0 %v9092
    %9228 = vmatmul.bf16.gmra.mxu0 %v8820
    %v9229 = vpop.f32.mrf.mxu0
    %v9230 = vadd.f32 0.0, %v9229
    %v9231 = vpop.f32.mrf.mxu0
    %9232 = vdwg.mxu0
    %9233 = vmatpush.bf16.msra.mxu0 %v9107
    %9234 = vmatpush.bf16.msra.mxu0 %v9106
    %9235 = vmatpush.bf16.msra.mxu0 %v9105
    %9236 = vmatpush.bf16.msra.mxu0 %v9104
    %9237 = vmatpush.bf16.msra.mxu0 %v9103
    %9238 = vmatpush.bf16.msra.mxu0 %v9102
    %9239 = vmatpush.bf16.msra.mxu0 %v9101
    %9240 = vmatpush.bf16.msra.mxu0 %v9100
    %9241 = vmatmul.bf16.gmra.mxu0 %v8821
    %v9242 = vpop.f32.mrf.mxu0
    %v9243 = vadd.f32 %v9230, %v9242
    %v9244 = vpop.f32.mrf.mxu0
    %9245 = vdwg.mxu0
    %9246 = vmatpush.bf16.msra.mxu0 %v9115
    %9247 = vmatpush.bf16.msra.mxu0 %v9114
    %9248 = vmatpush.bf16.msra.mxu0 %v9113
    %9249 = vmatpush.bf16.msra.mxu0 %v9112
    %9250 = vmatpush.bf16.msra.mxu0 %v9111
    %9251 = vmatpush.bf16.msra.mxu0 %v9110
    %9252 = vmatpush.bf16.msra.mxu0 %v9109
    %9253 = vmatpush.bf16.msra.mxu0 %v9108
    %9254 = vmatmul.bf16.gmra.mxu0 %v8822
    %v9255 = vpop.f32.mrf.mxu0
    %v9256 = vadd.f32 %v9243, %v9255
    %v9257 = vpop.f32.mrf.mxu0
    %9258 = vdwg.mxu0
    %9259 = vmatpush.bf16.msra.mxu0 %v9123
    %9260 = vmatpush.bf16.msra.mxu0 %v9122
    %9261 = vmatpush.bf16.msra.mxu0 %v9121
    %9262 = vmatpush.bf16.msra.mxu0 %v9120
    %9263 = vmatpush.bf16.msra.mxu0 %v9119
    %9264 = vmatpush.bf16.msra.mxu0 %v9118
    %9265 = vmatpush.bf16.msra.mxu0 %v9117
    %9266 = vmatpush.bf16.msra.mxu0 %v9116
    %9267 = vmatmul.bf16.gmra.mxu0 %v8823
    %v9268 = vpop.f32.mrf.mxu0
    %v9269 = vadd.f32 %v9256, %v9268
    %v9270 = vpop.f32.mrf.mxu0
    %9271 = vdwg.mxu0
    %9272 = vmatpush.bf16.msra.mxu0 %v9131
    %9273 = vmatpush.bf16.msra.mxu0 %v9130
    %9274 = vmatpush.bf16.msra.mxu0 %v9129
    %9275 = vmatpush.bf16.msra.mxu0 %v9128
    %9276 = vmatpush.bf16.msra.mxu0 %v9127
    %9277 = vmatpush.bf16.msra.mxu0 %v9126
    %9278 = vmatpush.bf16.msra.mxu0 %v9125
    %9279 = vmatpush.bf16.msra.mxu0 %v9124
    %9280 = vmatmul.bf16.gmra.mxu0 %v8824
    %v9281 = vpop.f32.mrf.mxu0
    %v9282 = vadd.f32 %v9269, %v9281
    %v9283 = vpop.f32.mrf.mxu0
    %9284 = vdwg.mxu0
    %9285 = vmatpush.bf16.msra.mxu0 %v9139
    %9286 = vmatpush.bf16.msra.mxu0 %v9138
    %9287 = vmatpush.bf16.msra.mxu0 %v9137
    %9288 = vmatpush.bf16.msra.mxu0 %v9136
    %9289 = vmatpush.bf16.msra.mxu0 %v9135
    %9290 = vmatpush.bf16.msra.mxu0 %v9134
    %9291 = vmatpush.bf16.msra.mxu0 %v9133
    %9292 = vmatpush.bf16.msra.mxu0 %v9132
    %9293 = vmatmul.bf16.gmra.mxu0 %v8825
    %v9294 = vpop.f32.mrf.mxu0
    %v9295 = vadd.f32 %v9282, %v9294
    %v9296 = vpop.f32.mrf.mxu0
    %9297 = vdwg.mxu0
    %9298 = vmatpush.bf16.msra.mxu0 %v9147
    %9299 = vmatpush.bf16.msra.mxu0 %v9146
    %9300 = vmatpush.bf16.msra.mxu0 %v9145
    %9301 = vmatpush.bf16.msra.mxu0 %v9144
    %9302 = vmatpush.bf16.msra.mxu0 %v9143
    %9303 = vmatpush.bf16.msra.mxu0 %v9142
    %9304 = vmatpush.bf16.msra.mxu0 %v9141
    %9305 = vmatpush.bf16.msra.mxu0 %v9140
    %9306 = vmatmul.bf16.gmra.mxu0 %v8826
    %v9307 = vpop.f32.mrf.mxu0
    %v9308 = vadd.f32 %v9295, %v9307
    %v9309 = vpop.f32.mrf.mxu0
    %9310 = vdwg.mxu0
    %9311 = vmatpush.bf16.msra.mxu0 %v9155
    %9312 = vmatpush.bf16.msra.mxu0 %v9154
    %9313 = vmatpush.bf16.msra.mxu0 %v9153
    %9314 = vmatpush.bf16.msra.mxu0 %v9152
    %9315 = vmatpush.bf16.msra.mxu0 %v9151
    %9316 = vmatpush.bf16.msra.mxu0 %v9150
    %9317 = vmatpush.bf16.msra.mxu0 %v9149
    %9318 = vmatpush.bf16.msra.mxu0 %v9148
    %9319 = vmatmul.bf16.gmra.mxu0 %v8827
    %v9320 = vpop.f32.mrf.mxu0
    %v9321 = vadd.f32 %v9308, %v9320
    %v9322 = vpop.f32.mrf.mxu0
    %9323 = vdwg.mxu0
    %v9324 = vadd.f32 %v7286, %v9321
    %s9325 = scalar_lea.vmem [#allocation8], 4096
    %v9326 = vld [vmem:[%s9325] sm:$0xff]
    %v9327 = vld [vmem:[%s9325 + $0x8] sm:$0xff]
    %v9328 = vld [vmem:[%s9325 + $0x10] sm:$0xff]
    %v9329 = vld [vmem:[%s9325 + $0x18] sm:$0xff]
    %v9330 = vld [vmem:[%s9325 + $0x20] sm:$0xff]
    %v9331 = vld [vmem:[%s9325 + $0x28] sm:$0xff]
    %v9332 = vld [vmem:[%s9325 + $0x30] sm:$0xff]
    %v9333 = vld [vmem:[%s9325 + $0x38] sm:$0xff]
    %v9334 = vld [vmem:[%s9325 + $0x40] sm:$0xff]
    %v9335 = vld [vmem:[%s9325 + $0x48] sm:$0xff]
    %v9336 = vld [vmem:[%s9325 + $0x50] sm:$0xff]
    %v9337 = vld [vmem:[%s9325 + $0x58] sm:$0xff]
    %v9338 = vld [vmem:[%s9325 + $0x60] sm:$0xff]
    %v9339 = vld [vmem:[%s9325 + $0x68] sm:$0xff]
    %v9340 = vld [vmem:[%s9325 + $0x70] sm:$0xff]
    %v9341 = vld [vmem:[%s9325 + $0x78] sm:$0xff]
    %v9342 = vld [vmem:[%s9325 + $0x80] sm:$0xff]
    %v9343 = vld [vmem:[%s9325 + $0x88] sm:$0xff]
    %v9344 = vld [vmem:[%s9325 + $0x90] sm:$0xff]
    %v9345 = vld [vmem:[%s9325 + $0x98] sm:$0xff]
    %v9346 = vld [vmem:[%s9325 + $0xa0] sm:$0xff]
    %v9347 = vld [vmem:[%s9325 + $0xa8] sm:$0xff]
    %v9348 = vld [vmem:[%s9325 + $0xb0] sm:$0xff]
    %v9349 = vld [vmem:[%s9325 + $0xb8] sm:$0xff]
    %v9350 = vld [vmem:[%s9325 + $0xc0] sm:$0xff]
    %v9351 = vld [vmem:[%s9325 + $0xc8] sm:$0xff]
    %v9352 = vld [vmem:[%s9325 + $0xd0] sm:$0xff]
    %v9353 = vld [vmem:[%s9325 + $0xd8] sm:$0xff]
    %v9354 = vld [vmem:[%s9325 + $0xe0] sm:$0xff]
    %v9355 = vld [vmem:[%s9325 + $0xe8] sm:$0xff]
    %v9356 = vld [vmem:[%s9325 + $0xf0] sm:$0xff]
    %v9357 = vld [vmem:[%s9325 + $0xf8] sm:$0xff]
    %v9358 = vld [vmem:[%s9325 + $0x100] sm:$0xff]
    %v9359 = vld [vmem:[%s9325 + $0x108] sm:$0xff]
    %v9360 = vld [vmem:[%s9325 + $0x110] sm:$0xff]
    %v9361 = vld [vmem:[%s9325 + $0x118] sm:$0xff]
    %v9362 = vld [vmem:[%s9325 + $0x120] sm:$0xff]
    %v9363 = vld [vmem:[%s9325 + $0x128] sm:$0xff]
    %v9364 = vld [vmem:[%s9325 + $0x130] sm:$0xff]
    %v9365 = vld [vmem:[%s9325 + $0x138] sm:$0xff]
    %v9366 = vld [vmem:[%s9325 + $0x140] sm:$0xff]
    %v9367 = vld [vmem:[%s9325 + $0x148] sm:$0xff]
    %v9368 = vld [vmem:[%s9325 + $0x150] sm:$0xff]
    %v9369 = vld [vmem:[%s9325 + $0x158] sm:$0xff]
    %v9370 = vld [vmem:[%s9325 + $0x160] sm:$0xff]
    %v9371 = vld [vmem:[%s9325 + $0x168] sm:$0xff]
    %v9372 = vld [vmem:[%s9325 + $0x170] sm:$0xff]
    %v9373 = vld [vmem:[%s9325 + $0x178] sm:$0xff]
    %v9374 = vld [vmem:[%s9325 + $0x180] sm:$0xff]
    %v9375 = vld [vmem:[%s9325 + $0x188] sm:$0xff]
    %v9376 = vld [vmem:[%s9325 + $0x190] sm:$0xff]
    %v9377 = vld [vmem:[%s9325 + $0x198] sm:$0xff]
    %v9378 = vld [vmem:[%s9325 + $0x1a0] sm:$0xff]
    %v9379 = vld [vmem:[%s9325 + $0x1a8] sm:$0xff]
    %v9380 = vld [vmem:[%s9325 + $0x1b0] sm:$0xff]
    %v9381 = vld [vmem:[%s9325 + $0x1b8] sm:$0xff]
    %v9382 = vld [vmem:[%s9325 + $0x1c0] sm:$0xff]
    %v9383 = vld [vmem:[%s9325 + $0x1c8] sm:$0xff]
    %v9384 = vld [vmem:[%s9325 + $0x1d0] sm:$0xff]
    %v9385 = vld [vmem:[%s9325 + $0x1d8] sm:$0xff]
    %v9386 = vld [vmem:[%s9325 + $0x1e0] sm:$0xff]
    %v9387 = vld [vmem:[%s9325 + $0x1e8] sm:$0xff]
    %v9388 = vld [vmem:[%s9325 + $0x1f0] sm:$0xff]
    %v9389 = vld [vmem:[%s9325 + $0x1f8] sm:$0xff]
    %v9390 = vld [vmem:[%s9325 + $0x200] sm:$0xff]
    %v9391 = vld [vmem:[%s9325 + $0x208] sm:$0xff]
    %v9392 = vld [vmem:[%s9325 + $0x210] sm:$0xff]
    %v9393 = vld [vmem:[%s9325 + $0x218] sm:$0xff]
    %v9394 = vld [vmem:[%s9325 + $0x220] sm:$0xff]
    %v9395 = vld [vmem:[%s9325 + $0x228] sm:$0xff]
    %v9396 = vld [vmem:[%s9325 + $0x230] sm:$0xff]
    %v9397 = vld [vmem:[%s9325 + $0x238] sm:$0xff]
    %v9398 = vld [vmem:[%s9325 + $0x240] sm:$0xff]
    %v9399 = vld [vmem:[%s9325 + $0x248] sm:$0xff]
    %v9400 = vld [vmem:[%s9325 + $0x250] sm:$0xff]
    %v9401 = vld [vmem:[%s9325 + $0x258] sm:$0xff]
    %v9402 = vld [vmem:[%s9325 + $0x260] sm:$0xff]
    %v9403 = vld [vmem:[%s9325 + $0x268] sm:$0xff]
    %v9404 = vld [vmem:[%s9325 + $0x270] sm:$0xff]
    %v9405 = vld [vmem:[%s9325 + $0x278] sm:$0xff]
    %v9406 = vld [vmem:[%s9325 + $0x280] sm:$0xff]
    %v9407 = vld [vmem:[%s9325 + $0x288] sm:$0xff]
    %v9408 = vld [vmem:[%s9325 + $0x290] sm:$0xff]
    %v9409 = vld [vmem:[%s9325 + $0x298] sm:$0xff]
    %v9410 = vld [vmem:[%s9325 + $0x2a0] sm:$0xff]
    %v9411 = vld [vmem:[%s9325 + $0x2a8] sm:$0xff]
    %v9412 = vld [vmem:[%s9325 + $0x2b0] sm:$0xff]
    %v9413 = vld [vmem:[%s9325 + $0x2b8] sm:$0xff]
    %v9414 = vld [vmem:[%s9325 + $0x2c0] sm:$0xff]
    %v9415 = vld [vmem:[%s9325 + $0x2c8] sm:$0xff]
    %v9416 = vld [vmem:[%s9325 + $0x2d0] sm:$0xff]
    %v9417 = vld [vmem:[%s9325 + $0x2d8] sm:$0xff]
    %v9418 = vld [vmem:[%s9325 + $0x2e0] sm:$0xff]
    %v9419 = vld [vmem:[%s9325 + $0x2e8] sm:$0xff]
    %v9420 = vld [vmem:[%s9325 + $0x2f0] sm:$0xff]
    %v9421 = vld [vmem:[%s9325 + $0x2f8] sm:$0xff]
    %v9422 = vld [vmem:[%s9325 + $0x300] sm:$0xff]
    %v9423 = vld [vmem:[%s9325 + $0x308] sm:$0xff]
    %v9424 = vld [vmem:[%s9325 + $0x310] sm:$0xff]
    %v9425 = vld [vmem:[%s9325 + $0x318] sm:$0xff]
    %v9426 = vld [vmem:[%s9325 + $0x320] sm:$0xff]
    %v9427 = vld [vmem:[%s9325 + $0x328] sm:$0xff]
    %v9428 = vld [vmem:[%s9325 + $0x330] sm:$0xff]
    %v9429 = vld [vmem:[%s9325 + $0x338] sm:$0xff]
    %v9430 = vld [vmem:[%s9325 + $0x340] sm:$0xff]
    %v9431 = vld [vmem:[%s9325 + $0x348] sm:$0xff]
    %v9432 = vld [vmem:[%s9325 + $0x350] sm:$0xff]
    %v9433 = vld [vmem:[%s9325 + $0x358] sm:$0xff]
    %v9434 = vld [vmem:[%s9325 + $0x360] sm:$0xff]
    %v9435 = vld [vmem:[%s9325 + $0x368] sm:$0xff]
    %v9436 = vld [vmem:[%s9325 + $0x370] sm:$0xff]
    %v9437 = vld [vmem:[%s9325 + $0x378] sm:$0xff]
    %v9438 = vld [vmem:[%s9325 + $0x380] sm:$0xff]
    %v9439 = vld [vmem:[%s9325 + $0x388] sm:$0xff]
    %v9440 = vld [vmem:[%s9325 + $0x390] sm:$0xff]
    %v9441 = vld [vmem:[%s9325 + $0x398] sm:$0xff]
    %v9442 = vld [vmem:[%s9325 + $0x3a0] sm:$0xff]
    %v9443 = vld [vmem:[%s9325 + $0x3a8] sm:$0xff]
    %v9444 = vld [vmem:[%s9325 + $0x3b0] sm:$0xff]
    %v9445 = vld [vmem:[%s9325 + $0x3b8] sm:$0xff]
    %v9446 = vld [vmem:[%s9325 + $0x3c0] sm:$0xff]
    %v9447 = vld [vmem:[%s9325 + $0x3c8] sm:$0xff]
    %v9448 = vld [vmem:[%s9325 + $0x3d0] sm:$0xff]
    %v9449 = vld [vmem:[%s9325 + $0x3d8] sm:$0xff]
    %v9450 = vld [vmem:[%s9325 + $0x3e0] sm:$0xff]
    %v9451 = vld [vmem:[%s9325 + $0x3e8] sm:$0xff]
    %v9452 = vld [vmem:[%s9325 + $0x3f0] sm:$0xff]
    %v9453 = vld [vmem:[%s9325 + $0x3f8] sm:$0xff]
    %s9454 = scalar_lea.vmem [#allocation10], 8
    %v9455 = vld [vmem:[%s9454] sm:$0x3]
    %v9457 = vperm.slane %v9455, 0
    %v9458 = vperm.slane %v9455, 1
    %v9589 = vunpack.c.l.b16 %v9326
    %v9590 = vunpack.c.h.b16 %v9326
    %v9591 = vunpack.c.l.b16 %v9327
    %v9592 = vunpack.c.h.b16 %v9327
    %v9593 = vunpack.c.l.b16 %v9328
    %v9594 = vunpack.c.h.b16 %v9328
    %v9595 = vunpack.c.l.b16 %v9329
    %v9596 = vunpack.c.h.b16 %v9329
    %v9597 = vunpack.c.l.b16 %v9330
    %v9598 = vunpack.c.h.b16 %v9330
    %v9599 = vunpack.c.l.b16 %v9331
    %v9600 = vunpack.c.h.b16 %v9331
    %v9601 = vunpack.c.l.b16 %v9332
    %v9602 = vunpack.c.h.b16 %v9332
    %v9603 = vunpack.c.l.b16 %v9333
    %v9604 = vunpack.c.h.b16 %v9333
    %v9605 = vunpack.c.l.b16 %v9334
    %v9606 = vunpack.c.h.b16 %v9334
    %v9607 = vunpack.c.l.b16 %v9335
    %v9608 = vunpack.c.h.b16 %v9335
    %v9609 = vunpack.c.l.b16 %v9336
    %v9610 = vunpack.c.h.b16 %v9336
    %v9611 = vunpack.c.l.b16 %v9337
    %v9612 = vunpack.c.h.b16 %v9337
    %v9613 = vunpack.c.l.b16 %v9338
    %v9614 = vunpack.c.h.b16 %v9338
    %v9615 = vunpack.c.l.b16 %v9339
    %v9616 = vunpack.c.h.b16 %v9339
    %v9617 = vunpack.c.l.b16 %v9340
    %v9618 = vunpack.c.h.b16 %v9340
    %v9619 = vunpack.c.l.b16 %v9341
    %v9620 = vunpack.c.h.b16 %v9341
    %v9621 = vunpack.c.l.b16 %v9342
    %v9622 = vunpack.c.h.b16 %v9342
    %v9623 = vunpack.c.l.b16 %v9343
    %v9624 = vunpack.c.h.b16 %v9343
    %v9625 = vunpack.c.l.b16 %v9344
    %v9626 = vunpack.c.h.b16 %v9344
    %v9627 = vunpack.c.l.b16 %v9345
    %v9628 = vunpack.c.h.b16 %v9345
    %v9629 = vunpack.c.l.b16 %v9346
    %v9630 = vunpack.c.h.b16 %v9346
    %v9631 = vunpack.c.l.b16 %v9347
    %v9632 = vunpack.c.h.b16 %v9347
    %v9633 = vunpack.c.l.b16 %v9348
    %v9634 = vunpack.c.h.b16 %v9348
    %v9635 = vunpack.c.l.b16 %v9349
    %v9636 = vunpack.c.h.b16 %v9349
    %v9637 = vunpack.c.l.b16 %v9350
    %v9638 = vunpack.c.h.b16 %v9350
    %v9639 = vunpack.c.l.b16 %v9351
    %v9640 = vunpack.c.h.b16 %v9351
    %v9641 = vunpack.c.l.b16 %v9352
    %v9642 = vunpack.c.h.b16 %v9352
    %v9643 = vunpack.c.l.b16 %v9353
    %v9644 = vunpack.c.h.b16 %v9353
    %v9645 = vunpack.c.l.b16 %v9354
    %v9646 = vunpack.c.h.b16 %v9354
    %v9647 = vunpack.c.l.b16 %v9355
    %v9648 = vunpack.c.h.b16 %v9355
    %v9649 = vunpack.c.l.b16 %v9356
    %v9650 = vunpack.c.h.b16 %v9356
    %v9651 = vunpack.c.l.b16 %v9357
    %v9652 = vunpack.c.h.b16 %v9357
    %v9653 = vunpack.c.l.b16 %v9358
    %v9654 = vunpack.c.h.b16 %v9358
    %v9655 = vunpack.c.l.b16 %v9359
    %v9656 = vunpack.c.h.b16 %v9359
    %v9657 = vunpack.c.l.b16 %v9360
    %v9658 = vunpack.c.h.b16 %v9360
    %v9659 = vunpack.c.l.b16 %v9361
    %v9660 = vunpack.c.h.b16 %v9361
    %v9661 = vunpack.c.l.b16 %v9362
    %v9662 = vunpack.c.h.b16 %v9362
    %v9663 = vunpack.c.l.b16 %v9363
    %v9664 = vunpack.c.h.b16 %v9363
    %v9665 = vunpack.c.l.b16 %v9364
    %v9666 = vunpack.c.h.b16 %v9364
    %v9667 = vunpack.c.l.b16 %v9365
    %v9668 = vunpack.c.h.b16 %v9365
    %v9669 = vunpack.c.l.b16 %v9366
    %v9670 = vunpack.c.h.b16 %v9366
    %v9671 = vunpack.c.l.b16 %v9367
    %v9672 = vunpack.c.h.b16 %v9367
    %v9673 = vunpack.c.l.b16 %v9368
    %v9674 = vunpack.c.h.b16 %v9368
    %v9675 = vunpack.c.l.b16 %v9369
    %v9676 = vunpack.c.h.b16 %v9369
    %v9677 = vunpack.c.l.b16 %v9370
    %v9678 = vunpack.c.h.b16 %v9370
    %v9679 = vunpack.c.l.b16 %v9371
    %v9680 = vunpack.c.h.b16 %v9371
    %v9681 = vunpack.c.l.b16 %v9372
    %v9682 = vunpack.c.h.b16 %v9372
    %v9683 = vunpack.c.l.b16 %v9373
    %v9684 = vunpack.c.h.b16 %v9373
    %v9685 = vunpack.c.l.b16 %v9374
    %v9686 = vunpack.c.h.b16 %v9374
    %v9687 = vunpack.c.l.b16 %v9375
    %v9688 = vunpack.c.h.b16 %v9375
    %v9689 = vunpack.c.l.b16 %v9376
    %v9690 = vunpack.c.h.b16 %v9376
    %v9691 = vunpack.c.l.b16 %v9377
    %v9692 = vunpack.c.h.b16 %v9377
    %v9693 = vunpack.c.l.b16 %v9378
    %v9694 = vunpack.c.h.b16 %v9378
    %v9695 = vunpack.c.l.b16 %v9379
    %v9696 = vunpack.c.h.b16 %v9379
    %v9697 = vunpack.c.l.b16 %v9380
    %v9698 = vunpack.c.h.b16 %v9380
    %v9699 = vunpack.c.l.b16 %v9381
    %v9700 = vunpack.c.h.b16 %v9381
    %v9701 = vunpack.c.l.b16 %v9382
    %v9702 = vunpack.c.h.b16 %v9382
    %v9703 = vunpack.c.l.b16 %v9383
    %v9704 = vunpack.c.h.b16 %v9383
    %v9705 = vunpack.c.l.b16 %v9384
    %v9706 = vunpack.c.h.b16 %v9384
    %v9707 = vunpack.c.l.b16 %v9385
    %v9708 = vunpack.c.h.b16 %v9385
    %v9709 = vunpack.c.l.b16 %v9386
    %v9710 = vunpack.c.h.b16 %v9386
    %v9711 = vunpack.c.l.b16 %v9387
    %v9712 = vunpack.c.h.b16 %v9387
    %v9713 = vunpack.c.l.b16 %v9388
    %v9714 = vunpack.c.h.b16 %v9388
    %v9715 = vunpack.c.l.b16 %v9389
    %v9716 = vunpack.c.h.b16 %v9389
    %v9717 = vunpack.c.l.b16 %v9390
    %v9718 = vunpack.c.h.b16 %v9390
    %v9719 = vunpack.c.l.b16 %v9391
    %v9720 = vunpack.c.h.b16 %v9391
    %v9721 = vunpack.c.l.b16 %v9392
    %v9722 = vunpack.c.h.b16 %v9392
    %v9723 = vunpack.c.l.b16 %v9393
    %v9724 = vunpack.c.h.b16 %v9393
    %v9725 = vunpack.c.l.b16 %v9394
    %v9726 = vunpack.c.h.b16 %v9394
    %v9727 = vunpack.c.l.b16 %v9395
    %v9728 = vunpack.c.h.b16 %v9395
    %v9729 = vunpack.c.l.b16 %v9396
    %v9730 = vunpack.c.h.b16 %v9396
    %v9731 = vunpack.c.l.b16 %v9397
    %v9732 = vunpack.c.h.b16 %v9397
    %v9733 = vunpack.c.l.b16 %v9398
    %v9734 = vunpack.c.h.b16 %v9398
    %v9735 = vunpack.c.l.b16 %v9399
    %v9736 = vunpack.c.h.b16 %v9399
    %v9737 = vunpack.c.l.b16 %v9400
    %v9738 = vunpack.c.h.b16 %v9400
    %v9739 = vunpack.c.l.b16 %v9401
    %v9740 = vunpack.c.h.b16 %v9401
    %v9741 = vunpack.c.l.b16 %v9402
    %v9742 = vunpack.c.h.b16 %v9402
    %v9743 = vunpack.c.l.b16 %v9403
    %v9744 = vunpack.c.h.b16 %v9403
    %v9745 = vunpack.c.l.b16 %v9404
    %v9746 = vunpack.c.h.b16 %v9404
    %v9747 = vunpack.c.l.b16 %v9405
    %v9748 = vunpack.c.h.b16 %v9405
    %v9749 = vunpack.c.l.b16 %v9406
    %v9750 = vunpack.c.h.b16 %v9406
    %v9751 = vunpack.c.l.b16 %v9407
    %v9752 = vunpack.c.h.b16 %v9407
    %v9753 = vunpack.c.l.b16 %v9408
    %v9754 = vunpack.c.h.b16 %v9408
    %v9755 = vunpack.c.l.b16 %v9409
    %v9756 = vunpack.c.h.b16 %v9409
    %v9757 = vunpack.c.l.b16 %v9410
    %v9758 = vunpack.c.h.b16 %v9410
    %v9759 = vunpack.c.l.b16 %v9411
    %v9760 = vunpack.c.h.b16 %v9411
    %v9761 = vunpack.c.l.b16 %v9412
    %v9762 = vunpack.c.h.b16 %v9412
    %v9763 = vunpack.c.l.b16 %v9413
    %v9764 = vunpack.c.h.b16 %v9413
    %v9765 = vunpack.c.l.b16 %v9414
    %v9766 = vunpack.c.h.b16 %v9414
    %v9767 = vunpack.c.l.b16 %v9415
    %v9768 = vunpack.c.h.b16 %v9415
    %v9769 = vunpack.c.l.b16 %v9416
    %v9770 = vunpack.c.h.b16 %v9416
    %v9771 = vunpack.c.l.b16 %v9417
    %v9772 = vunpack.c.h.b16 %v9417
    %v9773 = vunpack.c.l.b16 %v9418
    %v9774 = vunpack.c.h.b16 %v9418
    %v9775 = vunpack.c.l.b16 %v9419
    %v9776 = vunpack.c.h.b16 %v9419
    %v9777 = vunpack.c.l.b16 %v9420
    %v9778 = vunpack.c.h.b16 %v9420
    %v9779 = vunpack.c.l.b16 %v9421
    %v9780 = vunpack.c.h.b16 %v9421
    %v9781 = vunpack.c.l.b16 %v9422
    %v9782 = vunpack.c.h.b16 %v9422
    %v9783 = vunpack.c.l.b16 %v9423
    %v9784 = vunpack.c.h.b16 %v9423
    %v9785 = vunpack.c.l.b16 %v9424
    %v9786 = vunpack.c.h.b16 %v9424
    %v9787 = vunpack.c.l.b16 %v9425
    %v9788 = vunpack.c.h.b16 %v9425
    %v9789 = vunpack.c.l.b16 %v9426
    %v9790 = vunpack.c.h.b16 %v9426
    %v9791 = vunpack.c.l.b16 %v9427
    %v9792 = vunpack.c.h.b16 %v9427
    %v9793 = vunpack.c.l.b16 %v9428
    %v9794 = vunpack.c.h.b16 %v9428
    %v9795 = vunpack.c.l.b16 %v9429
    %v9796 = vunpack.c.h.b16 %v9429
    %v9797 = vunpack.c.l.b16 %v9430
    %v9798 = vunpack.c.h.b16 %v9430
    %v9799 = vunpack.c.l.b16 %v9431
    %v9800 = vunpack.c.h.b16 %v9431
    %v9801 = vunpack.c.l.b16 %v9432
    %v9802 = vunpack.c.h.b16 %v9432
    %v9803 = vunpack.c.l.b16 %v9433
    %v9804 = vunpack.c.h.b16 %v9433
    %v9805 = vunpack.c.l.b16 %v9434
    %v9806 = vunpack.c.h.b16 %v9434
    %v9807 = vunpack.c.l.b16 %v9435
    %v9808 = vunpack.c.h.b16 %v9435
    %v9809 = vunpack.c.l.b16 %v9436
    %v9810 = vunpack.c.h.b16 %v9436
    %v9811 = vunpack.c.l.b16 %v9437
    %v9812 = vunpack.c.h.b16 %v9437
    %v9813 = vunpack.c.l.b16 %v9438
    %v9814 = vunpack.c.h.b16 %v9438
    %v9815 = vunpack.c.l.b16 %v9439
    %v9816 = vunpack.c.h.b16 %v9439
    %v9817 = vunpack.c.l.b16 %v9440
    %v9818 = vunpack.c.h.b16 %v9440
    %v9819 = vunpack.c.l.b16 %v9441
    %v9820 = vunpack.c.h.b16 %v9441
    %v9821 = vunpack.c.l.b16 %v9442
    %v9822 = vunpack.c.h.b16 %v9442
    %v9823 = vunpack.c.l.b16 %v9443
    %v9824 = vunpack.c.h.b16 %v9443
    %v9825 = vunpack.c.l.b16 %v9444
    %v9826 = vunpack.c.h.b16 %v9444
    %v9827 = vunpack.c.l.b16 %v9445
    %v9828 = vunpack.c.h.b16 %v9445
    %v9829 = vunpack.c.l.b16 %v9446
    %v9830 = vunpack.c.h.b16 %v9446
    %v9831 = vunpack.c.l.b16 %v9447
    %v9832 = vunpack.c.h.b16 %v9447
    %v9833 = vunpack.c.l.b16 %v9448
    %v9834 = vunpack.c.h.b16 %v9448
    %v9835 = vunpack.c.l.b16 %v9449
    %v9836 = vunpack.c.h.b16 %v9449
    %v9837 = vunpack.c.l.b16 %v9450
    %v9838 = vunpack.c.h.b16 %v9450
    %v9839 = vunpack.c.l.b16 %v9451
    %v9840 = vunpack.c.h.b16 %v9451
    %v9841 = vunpack.c.l.b16 %v9452
    %v9842 = vunpack.c.h.b16 %v9452
    %v9843 = vunpack.c.l.b16 %v9453
    %v9844 = vunpack.c.h.b16 %v9453
    %v9845 = vpack.c.b16 %v9591, %v9589
    %v9846 = vpack.c.b16 %v9592, %v9590
    %v9847 = vpack.c.b16 %v9595, %v9593
    %v9848 = vpack.c.b16 %v9596, %v9594
    %v9849 = vpack.c.b16 %v9599, %v9597
    %v9850 = vpack.c.b16 %v9600, %v9598
    %v9851 = vpack.c.b16 %v9603, %v9601
    %v9852 = vpack.c.b16 %v9604, %v9602
    %v9853 = vpack.c.b16 %v9607, %v9605
    %v9854 = vpack.c.b16 %v9608, %v9606
    %v9855 = vpack.c.b16 %v9611, %v9609
    %v9856 = vpack.c.b16 %v9612, %v9610
    %v9857 = vpack.c.b16 %v9615, %v9613
    %v9858 = vpack.c.b16 %v9616, %v9614
    %v9859 = vpack.c.b16 %v9619, %v9617
    %v9860 = vpack.c.b16 %v9620, %v9618
    %v9861 = vpack.c.b16 %v9623, %v9621
    %v9862 = vpack.c.b16 %v9624, %v9622
    %v9863 = vpack.c.b16 %v9627, %v9625
    %v9864 = vpack.c.b16 %v9628, %v9626
    %v9865 = vpack.c.b16 %v9631, %v9629
    %v9866 = vpack.c.b16 %v9632, %v9630
    %v9867 = vpack.c.b16 %v9635, %v9633
    %v9868 = vpack.c.b16 %v9636, %v9634
    %v9869 = vpack.c.b16 %v9639, %v9637
    %v9870 = vpack.c.b16 %v9640, %v9638
    %v9871 = vpack.c.b16 %v9643, %v9641
    %v9872 = vpack.c.b16 %v9644, %v9642
    %v9873 = vpack.c.b16 %v9647, %v9645
    %v9874 = vpack.c.b16 %v9648, %v9646
    %v9875 = vpack.c.b16 %v9651, %v9649
    %v9876 = vpack.c.b16 %v9652, %v9650
    %v9877 = vpack.c.b16 %v9655, %v9653
    %v9878 = vpack.c.b16 %v9656, %v9654
    %v9879 = vpack.c.b16 %v9659, %v9657
    %v9880 = vpack.c.b16 %v9660, %v9658
    %v9881 = vpack.c.b16 %v9663, %v9661
    %v9882 = vpack.c.b16 %v9664, %v9662
    %v9883 = vpack.c.b16 %v9667, %v9665
    %v9884 = vpack.c.b16 %v9668, %v9666
    %v9885 = vpack.c.b16 %v9671, %v9669
    %v9886 = vpack.c.b16 %v9672, %v9670
    %v9887 = vpack.c.b16 %v9675, %v9673
    %v9888 = vpack.c.b16 %v9676, %v9674
    %v9889 = vpack.c.b16 %v9679, %v9677
    %v9890 = vpack.c.b16 %v9680, %v9678
    %v9891 = vpack.c.b16 %v9683, %v9681
    %v9892 = vpack.c.b16 %v9684, %v9682
    %v9893 = vpack.c.b16 %v9687, %v9685
    %v9894 = vpack.c.b16 %v9688, %v9686
    %v9895 = vpack.c.b16 %v9691, %v9689
    %v9896 = vpack.c.b16 %v9692, %v9690
    %v9897 = vpack.c.b16 %v9695, %v9693
    %v9898 = vpack.c.b16 %v9696, %v9694
    %v9899 = vpack.c.b16 %v9699, %v9697
    %v9900 = vpack.c.b16 %v9700, %v9698
    %v9901 = vpack.c.b16 %v9703, %v9701
    %v9902 = vpack.c.b16 %v9704, %v9702
    %v9903 = vpack.c.b16 %v9707, %v9705
    %v9904 = vpack.c.b16 %v9708, %v9706
    %v9905 = vpack.c.b16 %v9711, %v9709
    %v9906 = vpack.c.b16 %v9712, %v9710
    %v9907 = vpack.c.b16 %v9715, %v9713
    %v9908 = vpack.c.b16 %v9716, %v9714
    %v9909 = vpack.c.b16 %v9719, %v9717
    %v9910 = vpack.c.b16 %v9720, %v9718
    %v9911 = vpack.c.b16 %v9723, %v9721
    %v9912 = vpack.c.b16 %v9724, %v9722
    %v9913 = vpack.c.b16 %v9727, %v9725
    %v9914 = vpack.c.b16 %v9728, %v9726
    %v9915 = vpack.c.b16 %v9731, %v9729
    %v9916 = vpack.c.b16 %v9732, %v9730
    %v9917 = vpack.c.b16 %v9735, %v9733
    %v9918 = vpack.c.b16 %v9736, %v9734
    %v9919 = vpack.c.b16 %v9739, %v9737
    %v9920 = vpack.c.b16 %v9740, %v9738
    %v9921 = vpack.c.b16 %v9743, %v9741
    %v9922 = vpack.c.b16 %v9744, %v9742
    %v9923 = vpack.c.b16 %v9747, %v9745
    %v9924 = vpack.c.b16 %v9748, %v9746
    %v9925 = vpack.c.b16 %v9751, %v9749
    %v9926 = vpack.c.b16 %v9752, %v9750
    %v9927 = vpack.c.b16 %v9755, %v9753
    %v9928 = vpack.c.b16 %v9756, %v9754
    %v9929 = vpack.c.b16 %v9759, %v9757
    %v9930 = vpack.c.b16 %v9760, %v9758
    %v9931 = vpack.c.b16 %v9763, %v9761
    %v9932 = vpack.c.b16 %v9764, %v9762
    %v9933 = vpack.c.b16 %v9767, %v9765
    %v9934 = vpack.c.b16 %v9768, %v9766
    %v9935 = vpack.c.b16 %v9771, %v9769
    %v9936 = vpack.c.b16 %v9772, %v9770
    %v9937 = vpack.c.b16 %v9775, %v9773
    %v9938 = vpack.c.b16 %v9776, %v9774
    %v9939 = vpack.c.b16 %v9779, %v9777
    %v9940 = vpack.c.b16 %v9780, %v9778
    %v9941 = vpack.c.b16 %v9783, %v9781
    %v9942 = vpack.c.b16 %v9784, %v9782
    %v9943 = vpack.c.b16 %v9787, %v9785
    %v9944 = vpack.c.b16 %v9788, %v9786
    %v9945 = vpack.c.b16 %v9791, %v9789
    %v9946 = vpack.c.b16 %v9792, %v9790
    %v9947 = vpack.c.b16 %v9795, %v9793
    %v9948 = vpack.c.b16 %v9796, %v9794
    %v9949 = vpack.c.b16 %v9799, %v9797
    %v9950 = vpack.c.b16 %v9800, %v9798
    %v9951 = vpack.c.b16 %v9803, %v9801
    %v9952 = vpack.c.b16 %v9804, %v9802
    %v9953 = vpack.c.b16 %v9807, %v9805
    %v9954 = vpack.c.b16 %v9808, %v9806
    %v9955 = vpack.c.b16 %v9811, %v9809
    %v9956 = vpack.c.b16 %v9812, %v9810
    %v9957 = vpack.c.b16 %v9815, %v9813
    %v9958 = vpack.c.b16 %v9816, %v9814
    %v9959 = vpack.c.b16 %v9819, %v9817
    %v9960 = vpack.c.b16 %v9820, %v9818
    %v9961 = vpack.c.b16 %v9823, %v9821
    %v9962 = vpack.c.b16 %v9824, %v9822
    %v9963 = vpack.c.b16 %v9827, %v9825
    %v9964 = vpack.c.b16 %v9828, %v9826
    %v9965 = vpack.c.b16 %v9831, %v9829
    %v9966 = vpack.c.b16 %v9832, %v9830
    %v9967 = vpack.c.b16 %v9835, %v9833
    %v9968 = vpack.c.b16 %v9836, %v9834
    %v9969 = vpack.c.b16 %v9839, %v9837
    %v9970 = vpack.c.b16 %v9840, %v9838
    %v9971 = vpack.c.b16 %v9843, %v9841
    %v9972 = vpack.c.b16 %v9844, %v9842
    %10101 = vmatpush.bf16.msra.mxu0 %v9859
    %10102 = vmatpush.bf16.msra.mxu0 %v9857
    %10103 = vmatpush.bf16.msra.mxu0 %v9855
    %10104 = vmatpush.bf16.msra.mxu0 %v9853
    %10105 = vmatpush.bf16.msra.mxu0 %v9851
    %10106 = vmatpush.bf16.msra.mxu0 %v9849
    %10107 = vmatpush.bf16.msra.mxu0 %v9847
    %10108 = vmatpush.bf16.msra.mxu0 %v9845
    %10109 = vmatmul.bf16.gmra.mxu0 %v8820
    %v10110 = vpop.f32.mrf.mxu0
    %v10111 = vadd.f32 %v9457, %v10110
    %v10112 = vpop.f32.mrf.mxu0
    %10113 = vdwg.mxu0
    %10114 = vmatpush.bf16.msra.mxu0 %v9875
    %10115 = vmatpush.bf16.msra.mxu0 %v9873
    %10116 = vmatpush.bf16.msra.mxu0 %v9871
    %10117 = vmatpush.bf16.msra.mxu0 %v9869
    %10118 = vmatpush.bf16.msra.mxu0 %v9867
    %10119 = vmatpush.bf16.msra.mxu0 %v9865
    %10120 = vmatpush.bf16.msra.mxu0 %v9863
    %10121 = vmatpush.bf16.msra.mxu0 %v9861
    %10122 = vmatmul.bf16.gmra.mxu0 %v8821
    %v10123 = vpop.f32.mrf.mxu0
    %v10124 = vadd.f32 %v10111, %v10123
    %v10125 = vpop.f32.mrf.mxu0
    %10126 = vdwg.mxu0
    %10127 = vmatpush.bf16.msra.mxu0 %v9891
    %10128 = vmatpush.bf16.msra.mxu0 %v9889
    %10129 = vmatpush.bf16.msra.mxu0 %v9887
    %10130 = vmatpush.bf16.msra.mxu0 %v9885
    %10131 = vmatpush.bf16.msra.mxu0 %v9883
    %10132 = vmatpush.bf16.msra.mxu0 %v9881
    %10133 = vmatpush.bf16.msra.mxu0 %v9879
    %10134 = vmatpush.bf16.msra.mxu0 %v9877
    %10135 = vmatmul.bf16.gmra.mxu0 %v8822
    %v10136 = vpop.f32.mrf.mxu0
    %v10137 = vadd.f32 %v10124, %v10136
    %v10138 = vpop.f32.mrf.mxu0
    %10139 = vdwg.mxu0
    %10140 = vmatpush.bf16.msra.mxu0 %v9907
    %10141 = vmatpush.bf16.msra.mxu0 %v9905
    %10142 = vmatpush.bf16.msra.mxu0 %v9903
    %10143 = vmatpush.bf16.msra.mxu0 %v9901
    %10144 = vmatpush.bf16.msra.mxu0 %v9899
    %10145 = vmatpush.bf16.msra.mxu0 %v9897
    %10146 = vmatpush.bf16.msra.mxu0 %v9895
    %10147 = vmatpush.bf16.msra.mxu0 %v9893
    %10148 = vmatmul.bf16.gmra.mxu0 %v8823
    %v10149 = vpop.f32.mrf.mxu0
    %v10150 = vadd.f32 %v10137, %v10149
    %v10151 = vpop.f32.mrf.mxu0
    %10152 = vdwg.mxu0
    %10153 = vmatpush.bf16.msra.mxu0 %v9923
    %10154 = vmatpush.bf16.msra.mxu0 %v9921
    %10155 = vmatpush.bf16.msra.mxu0 %v9919
    %10156 = vmatpush.bf16.msra.mxu0 %v9917
    %10157 = vmatpush.bf16.msra.mxu0 %v9915
    %10158 = vmatpush.bf16.msra.mxu0 %v9913
    %10159 = vmatpush.bf16.msra.mxu0 %v9911
    %10160 = vmatpush.bf16.msra.mxu0 %v9909
    %10161 = vmatmul.bf16.gmra.mxu0 %v8824
    %v10162 = vpop.f32.mrf.mxu0
    %v10163 = vadd.f32 %v10150, %v10162
    %v10164 = vpop.f32.mrf.mxu0
    %10165 = vdwg.mxu0
    %10166 = vmatpush.bf16.msra.mxu0 %v9939
    %10167 = vmatpush.bf16.msra.mxu0 %v9937
    %10168 = vmatpush.bf16.msra.mxu0 %v9935
    %10169 = vmatpush.bf16.msra.mxu0 %v9933
    %10170 = vmatpush.bf16.msra.mxu0 %v9931
    %10171 = vmatpush.bf16.msra.mxu0 %v9929
    %10172 = vmatpush.bf16.msra.mxu0 %v9927
    %10173 = vmatpush.bf16.msra.mxu0 %v9925
    %10174 = vmatmul.bf16.gmra.mxu0 %v8825
    %v10175 = vpop.f32.mrf.mxu0
    %v10176 = vadd.f32 %v10163, %v10175
    %v10177 = vpop.f32.mrf.mxu0
    %10178 = vdwg.mxu0
    %10179 = vmatpush.bf16.msra.mxu0 %v9955
    %10180 = vmatpush.bf16.msra.mxu0 %v9953
    %10181 = vmatpush.bf16.msra.mxu0 %v9951
    %10182 = vmatpush.bf16.msra.mxu0 %v9949
    %10183 = vmatpush.bf16.msra.mxu0 %v9947
    %10184 = vmatpush.bf16.msra.mxu0 %v9945
    %10185 = vmatpush.bf16.msra.mxu0 %v9943
    %10186 = vmatpush.bf16.msra.mxu0 %v9941
    %10187 = vmatmul.bf16.gmra.mxu0 %v8826
    %v10188 = vpop.f32.mrf.mxu0
    %v10189 = vadd.f32 %v10176, %v10188
    %v10190 = vpop.f32.mrf.mxu0
    %10191 = vdwg.mxu0
    %10192 = vmatpush.bf16.msra.mxu0 %v9971
    %10193 = vmatpush.bf16.msra.mxu0 %v9969
    %10194 = vmatpush.bf16.msra.mxu0 %v9967
    %10195 = vmatpush.bf16.msra.mxu0 %v9965
    %10196 = vmatpush.bf16.msra.mxu0 %v9963
    %10197 = vmatpush.bf16.msra.mxu0 %v9961
    %10198 = vmatpush.bf16.msra.mxu0 %v9959
    %10199 = vmatpush.bf16.msra.mxu0 %v9957
    %10200 = vmatmul.bf16.gmra.mxu0 %v8827
    %v10201 = vpop.f32.mrf.mxu0
    %v10202 = vadd.f32 %v10189, %v10201
    %v10203 = vpop.f32.mrf.mxu0
    %10204 = vdwg.mxu0
    %10205 = vmatpush.bf16.msra.mxu0 %v9860
    %10206 = vmatpush.bf16.msra.mxu0 %v9858
    %10207 = vmatpush.bf16.msra.mxu0 %v9856
    %10208 = vmatpush.bf16.msra.mxu0 %v9854
    %10209 = vmatpush.bf16.msra.mxu0 %v9852
    %10210 = vmatpush.bf16.msra.mxu0 %v9850
    %10211 = vmatpush.bf16.msra.mxu0 %v9848
    %10212 = vmatpush.bf16.msra.mxu0 %v9846
    %10213 = vmatmul.bf16.gmra.mxu0 %v8820
    %v10214 = vpop.f32.mrf.mxu0
    %v10215 = vadd.f32 %v9458, %v10214
    %v10216 = vpop.f32.mrf.mxu0
    %10217 = vdwg.mxu0
    %10218 = vmatpush.bf16.msra.mxu0 %v9876
    %10219 = vmatpush.bf16.msra.mxu0 %v9874
    %10220 = vmatpush.bf16.msra.mxu0 %v9872
    %10221 = vmatpush.bf16.msra.mxu0 %v9870
    %10222 = vmatpush.bf16.msra.mxu0 %v9868
    %10223 = vmatpush.bf16.msra.mxu0 %v9866
    %10224 = vmatpush.bf16.msra.mxu0 %v9864
    %10225 = vmatpush.bf16.msra.mxu0 %v9862
    %10226 = vmatmul.bf16.gmra.mxu0 %v8821
    %v10227 = vpop.f32.mrf.mxu0
    %v10228 = vadd.f32 %v10215, %v10227
    %v10229 = vpop.f32.mrf.mxu0
    %10230 = vdwg.mxu0
    %10231 = vmatpush.bf16.msra.mxu0 %v9892
    %10232 = vmatpush.bf16.msra.mxu0 %v9890
    %10233 = vmatpush.bf16.msra.mxu0 %v9888
    %10234 = vmatpush.bf16.msra.mxu0 %v9886
    %10235 = vmatpush.bf16.msra.mxu0 %v9884
    %10236 = vmatpush.bf16.msra.mxu0 %v9882
    %10237 = vmatpush.bf16.msra.mxu0 %v9880
    %10238 = vmatpush.bf16.msra.mxu0 %v9878
    %10239 = vmatmul.bf16.gmra.mxu0 %v8822
    %v10240 = vpop.f32.mrf.mxu0
    %v10241 = vadd.f32 %v10228, %v10240
    %v10242 = vpop.f32.mrf.mxu0
    %10243 = vdwg.mxu0
    %10244 = vmatpush.bf16.msra.mxu0 %v9908
    %10245 = vmatpush.bf16.msra.mxu0 %v9906
    %10246 = vmatpush.bf16.msra.mxu0 %v9904
    %10247 = vmatpush.bf16.msra.mxu0 %v9902
    %10248 = vmatpush.bf16.msra.mxu0 %v9900
    %10249 = vmatpush.bf16.msra.mxu0 %v9898
    %10250 = vmatpush.bf16.msra.mxu0 %v9896
    %10251 = vmatpush.bf16.msra.mxu0 %v9894
    %10252 = vmatmul.bf16.gmra.mxu0 %v8823
    %v10253 = vpop.f32.mrf.mxu0
    %v10254 = vadd.f32 %v10241, %v10253
    %v10255 = vpop.f32.mrf.mxu0
    %10256 = vdwg.mxu0
    %10257 = vmatpush.bf16.msra.mxu0 %v9924
    %10258 = vmatpush.bf16.msra.mxu0 %v9922
    %10259 = vmatpush.bf16.msra.mxu0 %v9920
    %10260 = vmatpush.bf16.msra.mxu0 %v9918
    %10261 = vmatpush.bf16.msra.mxu0 %v9916
    %10262 = vmatpush.bf16.msra.mxu0 %v9914
    %10263 = vmatpush.bf16.msra.mxu0 %v9912
    %10264 = vmatpush.bf16.msra.mxu0 %v9910
    %10265 = vmatmul.bf16.gmra.mxu0 %v8824
    %v10266 = vpop.f32.mrf.mxu0
    %v10267 = vadd.f32 %v10254, %v10266
    %v10268 = vpop.f32.mrf.mxu0
    %10269 = vdwg.mxu0
    %10270 = vmatpush.bf16.msra.mxu0 %v9940
    %10271 = vmatpush.bf16.msra.mxu0 %v9938
    %10272 = vmatpush.bf16.msra.mxu0 %v9936
    %10273 = vmatpush.bf16.msra.mxu0 %v9934
    %10274 = vmatpush.bf16.msra.mxu0 %v9932
    %10275 = vmatpush.bf16.msra.mxu0 %v9930
    %10276 = vmatpush.bf16.msra.mxu0 %v9928
    %10277 = vmatpush.bf16.msra.mxu0 %v9926
    %10278 = vmatmul.bf16.gmra.mxu0 %v8825
    %v10279 = vpop.f32.mrf.mxu0
    %v10280 = vadd.f32 %v10267, %v10279
    %v10281 = vpop.f32.mrf.mxu0
    %10282 = vdwg.mxu0
    %10283 = vmatpush.bf16.msra.mxu0 %v9956
    %10284 = vmatpush.bf16.msra.mxu0 %v9954
    %10285 = vmatpush.bf16.msra.mxu0 %v9952
    %10286 = vmatpush.bf16.msra.mxu0 %v9950
    %10287 = vmatpush.bf16.msra.mxu0 %v9948
    %10288 = vmatpush.bf16.msra.mxu0 %v9946
    %10289 = vmatpush.bf16.msra.mxu0 %v9944
    %10290 = vmatpush.bf16.msra.mxu0 %v9942
    %10291 = vmatmul.bf16.gmra.mxu0 %v8826
    %v10292 = vpop.f32.mrf.mxu0
    %v10293 = vadd.f32 %v10280, %v10292
    %v10294 = vpop.f32.mrf.mxu0
    %10295 = vdwg.mxu0
    %10296 = vmatpush.bf16.msra.mxu0 %v9972
    %10297 = vmatpush.bf16.msra.mxu0 %v9970
    %10298 = vmatpush.bf16.msra.mxu0 %v9968
    %10299 = vmatpush.bf16.msra.mxu0 %v9966
    %10300 = vmatpush.bf16.msra.mxu0 %v9964
    %10301 = vmatpush.bf16.msra.mxu0 %v9962
    %10302 = vmatpush.bf16.msra.mxu0 %v9960
    %10303 = vmatpush.bf16.msra.mxu0 %v9958
    %10304 = vmatmul.bf16.gmra.mxu0 %v8827
    %v10305 = vpop.f32.mrf.mxu0
    %v10306 = vadd.f32 %v10293, %v10305
    %v10307 = vpop.f32.mrf.mxu0
    %10308 = vdwg.mxu0
    %s10309 = scalar_lea.vmem [#allocation11], 8
    %v10310 = vld [vmem:[%s10309] sm:$0x3]
    %s10311 = scalar_lea.vmem [#allocation16], 8
    %v10312 = vld [vmem:[%s10311] sm:$0x3]
    %v10313 = vadd.f32 %v10312, 1e-05
    %v10314 = vrsqrt.pop %v10313
    %v10315 = vmul.f32 %v10314, %v10313
    %v10316 = vmul.f32 %v10315, %v10314
    %v10317 = vmul.f32 0.5, %v10316
    %v10318 = vsub.f32 1.5, %v10317
    %v10319 = vmul.f32 %v10314, %v10318
    %vm10320 = vweird.f32 %v10313
    %vm10321 = vweird.f32 %v10314
    %vm10322 = vmor %vm10320, %vm10321
    %v10323 = vsel %vm10322, %v10314, %v10319
    %v10324 = vmul.f32 %v10310, %v10323
    %s10325 = scalar_lea.vmem [#allocation14], 8
    %v10326 = vld [vmem:[%s10325] sm:$0x3]
    %v10328 = vperm.slane %v10326, 0
    %v10329 = vperm.slane %v10326, 1
    %v10332 = vsub.f32 %v10202, %v10328
    %v10333 = vsub.f32 %v10306, %v10329
    %v10335 = vperm.slane %v10324, 0
    %v10336 = vperm.slane %v10324, 1
    %v10339 = vmul.f32 %v10332, %v10335
    %v10340 = vmul.f32 %v10333, %v10336
    %s10341 = scalar_lea.vmem [#allocation13], 8
    %v10342 = vld [vmem:[%s10341] sm:$0x3]
    %v10344 = vperm.slane %v10342, 0
    %v10345 = vperm.slane %v10342, 1
    %v10348 = vadd.f32 %v10339, %v10344
    %v10349 = vadd.f32 %v10340, %v10345
    %v10352 = vrot.slane %v10349, 7
    %v10353 = vsel %vm460, %v10348, %v10352
    %v10354 = vsel %vm798, %v10348, %v10352
    %v10355 = vrot.slane %v10354, 1
    %s10358 = scalar_lea.vmem %s11, 4
    %10359 = vst.msk [vmem:[%s10358] ss:$8 sm:$0x3] %vm1719, %v10353
    %10360 = vst.msk [vmem:[%s10358] ss:$8 sm:$0x0] %vm1719, %v10353
    %s10361 = scalar_lea.vmem %s11, 20
    %10362 = vst.msk [vmem:[%s10361] ss:$8 sm:$0x3] %vm1719, %v10355
    %10363 = vst.msk [vmem:[%s10361] ss:$8 sm:$0x0] %vm1719, %v10355
    %s10364 = scalar_lea.vmem [#allocation2], 640
    %v10365 = vld [vmem:[%s10364] sm:$0xff]
    %v10366 = vld [vmem:[%s10364 + $0x8] sm:$0xff]
    %v10367 = vld [vmem:[%s10364 + $0x10] sm:$0xff]
    %v10368 = vld [vmem:[%s10364 + $0x18] sm:$0xff]
    %v10369 = vld [vmem:[%s10364 + $0x20] sm:$0xff]
    %v10370 = vld [vmem:[%s10364 + $0x28] sm:$0xff]
    %v10371 = vld [vmem:[%s10364 + $0x30] sm:$0xff]
    %v10372 = vld [vmem:[%s10364 + $0x38] sm:$0xff]
    %v10373 = vld [vmem:[%s10364 + $0x40] sm:$0xff]
    %v10374 = vld [vmem:[%s10364 + $0x48] sm:$0xff]
    %v10375 = vld [vmem:[%s10364 + $0x50] sm:$0xff]
    %v10376 = vld [vmem:[%s10364 + $0x58] sm:$0xff]
    %v10377 = vld [vmem:[%s10364 + $0x60] sm:$0xff]
    %v10378 = vld [vmem:[%s10364 + $0x68] sm:$0xff]
    %v10379 = vld [vmem:[%s10364 + $0x70] sm:$0xff]
    %v10380 = vld [vmem:[%s10364 + $0x78] sm:$0xff]
    %v10381 = vld [vmem:[%s10364 + $0x300] sm:$0xff]
    %v10382 = vld [vmem:[%s10364 + $0x308] sm:$0xff]
    %v10383 = vld [vmem:[%s10364 + $0x310] sm:$0xff]
    %v10384 = vld [vmem:[%s10364 + $0x318] sm:$0xff]
    %v10385 = vld [vmem:[%s10364 + $0x320] sm:$0xff]
    %v10386 = vld [vmem:[%s10364 + $0x328] sm:$0xff]
    %v10387 = vld [vmem:[%s10364 + $0x330] sm:$0xff]
    %v10388 = vld [vmem:[%s10364 + $0x338] sm:$0xff]
    %v10389 = vld [vmem:[%s10364 + $0x340] sm:$0xff]
    %v10390 = vld [vmem:[%s10364 + $0x348] sm:$0xff]
    %v10391 = vld [vmem:[%s10364 + $0x350] sm:$0xff]
    %v10392 = vld [vmem:[%s10364 + $0x358] sm:$0xff]
    %v10393 = vld [vmem:[%s10364 + $0x360] sm:$0xff]
    %v10394 = vld [vmem:[%s10364 + $0x368] sm:$0xff]
    %v10395 = vld [vmem:[%s10364 + $0x370] sm:$0xff]
    %v10396 = vld [vmem:[%s10364 + $0x378] sm:$0xff]
    %v10397 = vunpack.c.l.bf16 %v10365
    %v10398 = vunpack.c.h.bf16 %v10365
    %v10399 = vunpack.c.l.bf16 %v10366
    %v10400 = vunpack.c.h.bf16 %v10366
    %v10401 = vunpack.c.l.bf16 %v10367
    %v10402 = vunpack.c.h.bf16 %v10367
    %v10403 = vunpack.c.l.bf16 %v10368
    %v10404 = vunpack.c.h.bf16 %v10368
    %v10405 = vunpack.c.l.bf16 %v10369
    %v10406 = vunpack.c.h.bf16 %v10369
    %v10407 = vunpack.c.l.bf16 %v10370
    %v10408 = vunpack.c.h.bf16 %v10370
    %v10409 = vunpack.c.l.bf16 %v10371
    %v10410 = vunpack.c.h.bf16 %v10371
    %v10411 = vunpack.c.l.bf16 %v10372
    %v10412 = vunpack.c.h.bf16 %v10372
    %v10413 = vunpack.c.l.bf16 %v10373
    %v10414 = vunpack.c.h.bf16 %v10373
    %v10415 = vunpack.c.l.bf16 %v10374
    %v10416 = vunpack.c.h.bf16 %v10374
    %v10417 = vunpack.c.l.bf16 %v10375
    %v10418 = vunpack.c.h.bf16 %v10375
    %v10419 = vunpack.c.l.bf16 %v10376
    %v10420 = vunpack.c.h.bf16 %v10376
    %v10421 = vunpack.c.l.bf16 %v10377
    %v10422 = vunpack.c.h.bf16 %v10377
    %v10423 = vunpack.c.l.bf16 %v10378
    %v10424 = vunpack.c.h.bf16 %v10378
    %v10425 = vunpack.c.l.bf16 %v10379
    %v10426 = vunpack.c.h.bf16 %v10379
    %v10427 = vunpack.c.l.bf16 %v10380
    %v10428 = vunpack.c.h.bf16 %v10380
    %v10429 = vunpack.c.l.bf16 %v10381
    %v10430 = vunpack.c.h.bf16 %v10381
    %v10431 = vunpack.c.l.bf16 %v10382
    %v10432 = vunpack.c.h.bf16 %v10382
    %v10433 = vunpack.c.l.bf16 %v10383
    %v10434 = vunpack.c.h.bf16 %v10383
    %v10435 = vunpack.c.l.bf16 %v10384
    %v10436 = vunpack.c.h.bf16 %v10384
    %v10437 = vunpack.c.l.bf16 %v10385
    %v10438 = vunpack.c.h.bf16 %v10385
    %v10439 = vunpack.c.l.bf16 %v10386
    %v10440 = vunpack.c.h.bf16 %v10386
    %v10441 = vunpack.c.l.bf16 %v10387
    %v10442 = vunpack.c.h.bf16 %v10387
    %v10443 = vunpack.c.l.bf16 %v10388
    %v10444 = vunpack.c.h.bf16 %v10388
    %v10445 = vunpack.c.l.bf16 %v10389
    %v10446 = vunpack.c.h.bf16 %v10389
    %v10447 = vunpack.c.l.bf16 %v10390
    %v10448 = vunpack.c.h.bf16 %v10390
    %v10449 = vunpack.c.l.bf16 %v10391
    %v10450 = vunpack.c.h.bf16 %v10391
    %v10451 = vunpack.c.l.bf16 %v10392
    %v10452 = vunpack.c.h.bf16 %v10392
    %v10453 = vunpack.c.l.bf16 %v10393
    %v10454 = vunpack.c.h.bf16 %v10393
    %v10455 = vunpack.c.l.bf16 %v10394
    %v10456 = vunpack.c.h.bf16 %v10394
    %v10457 = vunpack.c.l.bf16 %v10395
    %v10458 = vunpack.c.h.bf16 %v10395
    %v10459 = vunpack.c.l.bf16 %v10396
    %v10460 = vunpack.c.h.bf16 %v10396
    %v10461 = vadd.f32 %v10397, %v10405
    %v10462 = vadd.f32 %v10461, %v10413
    %v10463 = vadd.f32 %v10462, %v10421
    %v10464 = vrot.slane %v10463, 4
    %v10465 = vadd.f32 %v10463, %v10464
    %v10466 = vrot.slane %v10465, 2
    %v10467 = vadd.f32 %v10465, %v10466
    %v10468 = vrot.slane %v10467, 1
    %v10469 = vadd.f32 %v10467, %v10468
    %v10470 = vadd.f32 %v10398, %v10406
    %v10471 = vadd.f32 %v10470, %v10414
    %v10472 = vadd.f32 %v10471, %v10422
    %v10473 = vrot.slane %v10472, 4
    %v10474 = vadd.f32 %v10472, %v10473
    %v10475 = vrot.slane %v10474, 2
    %v10476 = vadd.f32 %v10474, %v10475
    %v10477 = vrot.slane %v10476, 1
    %v10478 = vadd.f32 %v10476, %v10477
    %v10479 = vadd.f32 %v10399, %v10407
    %v10480 = vadd.f32 %v10479, %v10415
    %v10481 = vadd.f32 %v10480, %v10423
    %v10482 = vrot.slane %v10481, 4
    %v10483 = vadd.f32 %v10481, %v10482
    %v10484 = vrot.slane %v10483, 2
    %v10485 = vadd.f32 %v10483, %v10484
    %v10486 = vrot.slane %v10485, 1
    %v10487 = vadd.f32 %v10485, %v10486
    %v10488 = vadd.f32 %v10400, %v10408
    %v10489 = vadd.f32 %v10488, %v10416
    %v10490 = vadd.f32 %v10489, %v10424
    %v10491 = vrot.slane %v10490, 4
    %v10492 = vadd.f32 %v10490, %v10491
    %v10493 = vrot.slane %v10492, 2
    %v10494 = vadd.f32 %v10492, %v10493
    %v10495 = vrot.slane %v10494, 1
    %v10496 = vadd.f32 %v10494, %v10495
    %v10497 = vadd.f32 %v10401, %v10409
    %v10498 = vadd.f32 %v10497, %v10417
    %v10499 = vadd.f32 %v10498, %v10425
    %v10500 = vrot.slane %v10499, 4
    %v10501 = vadd.f32 %v10499, %v10500
    %v10502 = vrot.slane %v10501, 2
    %v10503 = vadd.f32 %v10501, %v10502
    %v10504 = vrot.slane %v10503, 1
    %v10505 = vadd.f32 %v10503, %v10504
    %v10506 = vadd.f32 %v10402, %v10410
    %v10507 = vadd.f32 %v10506, %v10418
    %v10508 = vadd.f32 %v10507, %v10426
    %v10509 = vrot.slane %v10508, 4
    %v10510 = vadd.f32 %v10508, %v10509
    %v10511 = vrot.slane %v10510, 2
    %v10512 = vadd.f32 %v10510, %v10511
    %v10513 = vrot.slane %v10512, 1
    %v10514 = vadd.f32 %v10512, %v10513
    %v10515 = vadd.f32 %v10403, %v10411
    %v10516 = vadd.f32 %v10515, %v10419
    %v10517 = vadd.f32 %v10516, %v10427
    %v10518 = vrot.slane %v10517, 4
    %v10519 = vadd.f32 %v10517, %v10518
    %v10520 = vrot.slane %v10519, 2
    %v10521 = vadd.f32 %v10519, %v10520
    %v10522 = vrot.slane %v10521, 1
    %v10523 = vadd.f32 %v10521, %v10522
    %v10524 = vadd.f32 %v10404, %v10412
    %v10525 = vadd.f32 %v10524, %v10420
    %v10526 = vadd.f32 %v10525, %v10428
    %v10527 = vrot.slane %v10526, 4
    %v10528 = vadd.f32 %v10526, %v10527
    %v10529 = vrot.slane %v10528, 2
    %v10530 = vadd.f32 %v10528, %v10529
    %v10531 = vrot.slane %v10530, 1
    %v10532 = vadd.f32 %v10530, %v10531
    %v10533 = vadd.f32 %v10429, %v10437
    %v10534 = vadd.f32 %v10533, %v10445
    %v10535 = vadd.f32 %v10534, %v10453
    %v10536 = vrot.slane %v10535, 4
    %v10537 = vadd.f32 %v10535, %v10536
    %v10538 = vrot.slane %v10537, 2
    %v10539 = vadd.f32 %v10537, %v10538
    %v10540 = vrot.slane %v10539, 1
    %v10541 = vadd.f32 %v10539, %v10540
    %v10542 = vadd.f32 %v10430, %v10438
    %v10543 = vadd.f32 %v10542, %v10446
    %v10544 = vadd.f32 %v10543, %v10454
    %v10545 = vrot.slane %v10544, 4
    %v10546 = vadd.f32 %v10544, %v10545
    %v10547 = vrot.slane %v10546, 2
    %v10548 = vadd.f32 %v10546, %v10547
    %v10549 = vrot.slane %v10548, 1
    %v10550 = vadd.f32 %v10548, %v10549
    %v10551 = vadd.f32 %v10431, %v10439
    %v10552 = vadd.f32 %v10551, %v10447
    %v10553 = vadd.f32 %v10552, %v10455
    %v10554 = vrot.slane %v10553, 4
    %v10555 = vadd.f32 %v10553, %v10554
    %v10556 = vrot.slane %v10555, 2
    %v10557 = vadd.f32 %v10555, %v10556
    %v10558 = vrot.slane %v10557, 1
    %v10559 = vadd.f32 %v10557, %v10558
    %v10560 = vadd.f32 %v10432, %v10440
    %v10561 = vadd.f32 %v10560, %v10448
    %v10562 = vadd.f32 %v10561, %v10456
    %v10563 = vrot.slane %v10562, 4
    %v10564 = vadd.f32 %v10562, %v10563
    %v10565 = vrot.slane %v10564, 2
    %v10566 = vadd.f32 %v10564, %v10565
    %v10567 = vrot.slane %v10566, 1
    %v10568 = vadd.f32 %v10566, %v10567
    %v10569 = vadd.f32 %v10433, %v10441
    %v10570 = vadd.f32 %v10569, %v10449
    %v10571 = vadd.f32 %v10570, %v10457
    %v10572 = vrot.slane %v10571, 4
    %v10573 = vadd.f32 %v10571, %v10572
    %v10574 = vrot.slane %v10573, 2
    %v10575 = vadd.f32 %v10573, %v10574
    %v10576 = vrot.slane %v10575, 1
    %v10577 = vadd.f32 %v10575, %v10576
    %v10578 = vadd.f32 %v10434, %v10442
    %v10579 = vadd.f32 %v10578, %v10450
    %v10580 = vadd.f32 %v10579, %v10458
    %v10581 = vrot.slane %v10580, 4
    %v10582 = vadd.f32 %v10580, %v10581
    %v10583 = vrot.slane %v10582, 2
    %v10584 = vadd.f32 %v10582, %v10583
    %v10585 = vrot.slane %v10584, 1
    %v10586 = vadd.f32 %v10584, %v10585
    %v10587 = vadd.f32 %v10435, %v10443
    %v10588 = vadd.f32 %v10587, %v10451
    %v10589 = vadd.f32 %v10588, %v10459
    %v10590 = vrot.slane %v10589, 4
    %v10591 = vadd.f32 %v10589, %v10590
    %v10592 = vrot.slane %v10591, 2
    %v10593 = vadd.f32 %v10591, %v10592
    %v10594 = vrot.slane %v10593, 1
    %v10595 = vadd.f32 %v10593, %v10594
    %v10596 = vadd.f32 %v10436, %v10444
    %v10597 = vadd.f32 %v10596, %v10452
    %v10598 = vadd.f32 %v10597, %v10460
    %v10599 = vrot.slane %v10598, 4
    %v10600 = vadd.f32 %v10598, %v10599
    %v10601 = vrot.slane %v10600, 2
    %v10602 = vadd.f32 %v10600, %v10601
    %v10603 = vrot.slane %v10602, 1
    %v10604 = vadd.f32 %v10602, %v10603
    %v10605 = vmul.f32 %v10469, 0.03125
    %v10606 = vmul.f32 %v10478, 0.03125
    %v10607 = vmul.f32 %v10487, 0.03125
    %v10608 = vmul.f32 %v10496, 0.03125
    %v10609 = vmul.f32 %v10505, 0.03125
    %v10610 = vmul.f32 %v10514, 0.03125
    %v10611 = vmul.f32 %v10523, 0.03125
    %v10612 = vmul.f32 %v10532, 0.03125
    %v10613 = vmul.f32 %v10541, 0.03125
    %v10614 = vmul.f32 %v10550, 0.03125
    %v10615 = vmul.f32 %v10559, 0.03125
    %v10616 = vmul.f32 %v10568, 0.03125
    %v10617 = vmul.f32 %v10577, 0.03125
    %v10618 = vmul.f32 %v10586, 0.03125
    %v10619 = vmul.f32 %v10595, 0.03125
    %v10620 = vmul.f32 %v10604, 0.03125
    %v10637 = vrot.slane %v10606, 7
    %v10638 = vrot.slane %v10607, 6
    %v10639 = vrot.slane %v10608, 5
    %v10640 = vrot.slane %v10609, 4
    %v10641 = vrot.slane %v10610, 3
    %v10642 = vrot.slane %v10611, 2
    %v10643 = vrot.slane %v10612, 1
    %v10644 = vrot.slane %v10614, 7
    %v10645 = vrot.slane %v10615, 6
    %v10646 = vrot.slane %v10616, 5
    %v10647 = vrot.slane %v10617, 4
    %v10648 = vrot.slane %v10618, 3
    %v10649 = vrot.slane %v10619, 2
    %v10650 = vrot.slane %v10620, 1
    %v10651 = vsel %vm460, %v10605, %v10637
    %v10652 = vsel %vm462, %v10638, %v10639
    %v10653 = vsel %vm464, %v10651, %v10652
    %v10654 = vsel %vm466, %v10640, %v10641
    %v10655 = vsel %vm468, %v10642, %v10643
    %v10656 = vsel %vm470, %v10654, %v10655
    %v10657 = vsel %vm472, %v10653, %v10656
    %v10658 = vsel %vm460, %v10613, %v10644
    %v10659 = vsel %vm462, %v10645, %v10646
    %v10660 = vsel %vm464, %v10658, %v10659
    %v10661 = vsel %vm466, %v10647, %v10648
    %v10662 = vsel %vm468, %v10649, %v10650
    %v10663 = vsel %vm470, %v10661, %v10662
    %v10664 = vsel %vm472, %v10660, %v10663
    %s10667 = scalar_lea.vmem %s9, 5
    %10668 = vst [vmem:[%s10667] ss:$8 sm:$0xf] %v10657
    %10669 = vst [vmem:[%s10667] ss:$8 sm:$0xf0] %v10657
    %s10670 = scalar_lea.vmem %s9, 69
    %10671 = vst [vmem:[%s10670] ss:$8 sm:$0xf] %v10664
    %10672 = vst [vmem:[%s10670] ss:$8 sm:$0xf0] %v10664
    %v10673 = vpack.c.bf16 %v10605, %v10605
    %v10674 = vpack.c.bf16 %v10606, %v10606
    %v10675 = vpack.c.bf16 %v10607, %v10607
    %v10676 = vpack.c.bf16 %v10608, %v10608
    %v10677 = vpack.c.bf16 %v10609, %v10609
    %v10678 = vpack.c.bf16 %v10610, %v10610
    %v10679 = vpack.c.bf16 %v10611, %v10611
    %v10680 = vpack.c.bf16 %v10612, %v10612
    %v10681 = vpack.c.bf16 %v10613, %v10613
    %v10682 = vpack.c.bf16 %v10614, %v10614
    %v10683 = vpack.c.bf16 %v10615, %v10615
    %v10684 = vpack.c.bf16 %v10616, %v10616
    %v10685 = vpack.c.bf16 %v10617, %v10617
    %v10686 = vpack.c.bf16 %v10618, %v10618
    %v10687 = vpack.c.bf16 %v10619, %v10619
    %v10688 = vpack.c.bf16 %v10620, %v10620
    %s10689 = scalar_lea.vmem [#allocation5], 2560
    %v10690 = vld [vmem:[%s10689] sm:$0xf]
    %v10691 = vld [vmem:[%s10689 + $0x4] sm:$0xf]
    %v10692 = vld [vmem:[%s10689 + $0x8] sm:$0xf]
    %v10693 = vld [vmem:[%s10689 + $0xc] sm:$0xf]
    %v10694 = vld [vmem:[%s10689 + $0x10] sm:$0xf]
    %v10695 = vld [vmem:[%s10689 + $0x14] sm:$0xf]
    %v10696 = vld [vmem:[%s10689 + $0x18] sm:$0xf]
    %v10697 = vld [vmem:[%s10689 + $0x1c] sm:$0xf]
    %v10698 = vld [vmem:[%s10689 + $0x20] sm:$0xf]
    %v10699 = vld [vmem:[%s10689 + $0x24] sm:$0xf]
    %v10700 = vld [vmem:[%s10689 + $0x28] sm:$0xf]
    %v10701 = vld [vmem:[%s10689 + $0x2c] sm:$0xf]
    %v10702 = vld [vmem:[%s10689 + $0x30] sm:$0xf]
    %v10703 = vld [vmem:[%s10689 + $0x34] sm:$0xf]
    %v10704 = vld [vmem:[%s10689 + $0x38] sm:$0xf]
    %v10705 = vld [vmem:[%s10689 + $0x3c] sm:$0xf]
    %v10706 = vld [vmem:[%s10689 + $0x40] sm:$0xf]
    %v10707 = vld [vmem:[%s10689 + $0x44] sm:$0xf]
    %v10708 = vld [vmem:[%s10689 + $0x48] sm:$0xf]
    %v10709 = vld [vmem:[%s10689 + $0x4c] sm:$0xf]
    %v10710 = vld [vmem:[%s10689 + $0x50] sm:$0xf]
    %v10711 = vld [vmem:[%s10689 + $0x54] sm:$0xf]
    %v10712 = vld [vmem:[%s10689 + $0x58] sm:$0xf]
    %v10713 = vld [vmem:[%s10689 + $0x5c] sm:$0xf]
    %v10714 = vld [vmem:[%s10689 + $0x60] sm:$0xf]
    %v10715 = vld [vmem:[%s10689 + $0x64] sm:$0xf]
    %v10716 = vld [vmem:[%s10689 + $0x68] sm:$0xf]
    %v10717 = vld [vmem:[%s10689 + $0x6c] sm:$0xf]
    %v10718 = vld [vmem:[%s10689 + $0x70] sm:$0xf]
    %v10719 = vld [vmem:[%s10689 + $0x74] sm:$0xf]
    %v10720 = vld [vmem:[%s10689 + $0x78] sm:$0xf]
    %v10721 = vld [vmem:[%s10689 + $0x7c] sm:$0xf]
    %v10722 = vld [vmem:[%s10689 + $0x80] sm:$0xf]
    %v10723 = vld [vmem:[%s10689 + $0x84] sm:$0xf]
    %v10724 = vld [vmem:[%s10689 + $0x88] sm:$0xf]
    %v10725 = vld [vmem:[%s10689 + $0x8c] sm:$0xf]
    %v10726 = vld [vmem:[%s10689 + $0x90] sm:$0xf]
    %v10727 = vld [vmem:[%s10689 + $0x94] sm:$0xf]
    %v10728 = vld [vmem:[%s10689 + $0x98] sm:$0xf]
    %v10729 = vld [vmem:[%s10689 + $0x9c] sm:$0xf]
    %v10730 = vld [vmem:[%s10689 + $0xa0] sm:$0xf]
    %v10731 = vld [vmem:[%s10689 + $0xa4] sm:$0xf]
    %v10732 = vld [vmem:[%s10689 + $0xa8] sm:$0xf]
    %v10733 = vld [vmem:[%s10689 + $0xac] sm:$0xf]
    %v10734 = vld [vmem:[%s10689 + $0xb0] sm:$0xf]
    %v10735 = vld [vmem:[%s10689 + $0xb4] sm:$0xf]
    %v10736 = vld [vmem:[%s10689 + $0xb8] sm:$0xf]
    %v10737 = vld [vmem:[%s10689 + $0xbc] sm:$0xf]
    %v10738 = vld [vmem:[%s10689 + $0xc0] sm:$0xf]
    %v10739 = vld [vmem:[%s10689 + $0xc4] sm:$0xf]
    %v10740 = vld [vmem:[%s10689 + $0xc8] sm:$0xf]
    %v10741 = vld [vmem:[%s10689 + $0xcc] sm:$0xf]
    %v10742 = vld [vmem:[%s10689 + $0xd0] sm:$0xf]
    %v10743 = vld [vmem:[%s10689 + $0xd4] sm:$0xf]
    %v10744 = vld [vmem:[%s10689 + $0xd8] sm:$0xf]
    %v10745 = vld [vmem:[%s10689 + $0xdc] sm:$0xf]
    %v10746 = vld [vmem:[%s10689 + $0xe0] sm:$0xf]
    %v10747 = vld [vmem:[%s10689 + $0xe4] sm:$0xf]
    %v10748 = vld [vmem:[%s10689 + $0xe8] sm:$0xf]
    %v10749 = vld [vmem:[%s10689 + $0xec] sm:$0xf]
    %v10750 = vld [vmem:[%s10689 + $0xf0] sm:$0xf]
    %v10751 = vld [vmem:[%s10689 + $0xf4] sm:$0xf]
    %v10752 = vld [vmem:[%s10689 + $0xf8] sm:$0xf]
    %v10753 = vld [vmem:[%s10689 + $0xfc] sm:$0xf]
    %v10754 = vld [vmem:[%s10689 + $0x100] sm:$0xf]
    %v10755 = vld [vmem:[%s10689 + $0x104] sm:$0xf]
    %v10756 = vld [vmem:[%s10689 + $0x108] sm:$0xf]
    %v10757 = vld [vmem:[%s10689 + $0x10c] sm:$0xf]
    %v10758 = vld [vmem:[%s10689 + $0x110] sm:$0xf]
    %v10759 = vld [vmem:[%s10689 + $0x114] sm:$0xf]
    %v10760 = vld [vmem:[%s10689 + $0x118] sm:$0xf]
    %v10761 = vld [vmem:[%s10689 + $0x11c] sm:$0xf]
    %v10762 = vld [vmem:[%s10689 + $0x120] sm:$0xf]
    %v10763 = vld [vmem:[%s10689 + $0x124] sm:$0xf]
    %v10764 = vld [vmem:[%s10689 + $0x128] sm:$0xf]
    %v10765 = vld [vmem:[%s10689 + $0x12c] sm:$0xf]
    %v10766 = vld [vmem:[%s10689 + $0x130] sm:$0xf]
    %v10767 = vld [vmem:[%s10689 + $0x134] sm:$0xf]
    %v10768 = vld [vmem:[%s10689 + $0x138] sm:$0xf]
    %v10769 = vld [vmem:[%s10689 + $0x13c] sm:$0xf]
    %v10770 = vld [vmem:[%s10689 + $0x140] sm:$0xf]
    %v10771 = vld [vmem:[%s10689 + $0x144] sm:$0xf]
    %v10772 = vld [vmem:[%s10689 + $0x148] sm:$0xf]
    %v10773 = vld [vmem:[%s10689 + $0x14c] sm:$0xf]
    %v10774 = vld [vmem:[%s10689 + $0x150] sm:$0xf]
    %v10775 = vld [vmem:[%s10689 + $0x154] sm:$0xf]
    %v10776 = vld [vmem:[%s10689 + $0x158] sm:$0xf]
    %v10777 = vld [vmem:[%s10689 + $0x15c] sm:$0xf]
    %v10778 = vld [vmem:[%s10689 + $0x160] sm:$0xf]
    %v10779 = vld [vmem:[%s10689 + $0x164] sm:$0xf]
    %v10780 = vld [vmem:[%s10689 + $0x168] sm:$0xf]
    %v10781 = vld [vmem:[%s10689 + $0x16c] sm:$0xf]
    %v10782 = vld [vmem:[%s10689 + $0x170] sm:$0xf]
    %v10783 = vld [vmem:[%s10689 + $0x174] sm:$0xf]
    %v10784 = vld [vmem:[%s10689 + $0x178] sm:$0xf]
    %v10785 = vld [vmem:[%s10689 + $0x17c] sm:$0xf]
    %v10786 = vld [vmem:[%s10689 + $0x180] sm:$0xf]
    %v10787 = vld [vmem:[%s10689 + $0x184] sm:$0xf]
    %v10788 = vld [vmem:[%s10689 + $0x188] sm:$0xf]
    %v10789 = vld [vmem:[%s10689 + $0x18c] sm:$0xf]
    %v10790 = vld [vmem:[%s10689 + $0x190] sm:$0xf]
    %v10791 = vld [vmem:[%s10689 + $0x194] sm:$0xf]
    %v10792 = vld [vmem:[%s10689 + $0x198] sm:$0xf]
    %v10793 = vld [vmem:[%s10689 + $0x19c] sm:$0xf]
    %v10794 = vld [vmem:[%s10689 + $0x1a0] sm:$0xf]
    %v10795 = vld [vmem:[%s10689 + $0x1a4] sm:$0xf]
    %v10796 = vld [vmem:[%s10689 + $0x1a8] sm:$0xf]
    %v10797 = vld [vmem:[%s10689 + $0x1ac] sm:$0xf]
    %v10798 = vld [vmem:[%s10689 + $0x1b0] sm:$0xf]
    %v10799 = vld [vmem:[%s10689 + $0x1b4] sm:$0xf]
    %v10800 = vld [vmem:[%s10689 + $0x1b8] sm:$0xf]
    %v10801 = vld [vmem:[%s10689 + $0x1bc] sm:$0xf]
    %v10802 = vld [vmem:[%s10689 + $0x1c0] sm:$0xf]
    %v10803 = vld [vmem:[%s10689 + $0x1c4] sm:$0xf]
    %v10804 = vld [vmem:[%s10689 + $0x1c8] sm:$0xf]
    %v10805 = vld [vmem:[%s10689 + $0x1cc] sm:$0xf]
    %v10806 = vld [vmem:[%s10689 + $0x1d0] sm:$0xf]
    %v10807 = vld [vmem:[%s10689 + $0x1d4] sm:$0xf]
    %v10808 = vld [vmem:[%s10689 + $0x1d8] sm:$0xf]
    %v10809 = vld [vmem:[%s10689 + $0x1dc] sm:$0xf]
    %v10810 = vld [vmem:[%s10689 + $0x1e0] sm:$0xf]
    %v10811 = vld [vmem:[%s10689 + $0x1e4] sm:$0xf]
    %v10812 = vld [vmem:[%s10689 + $0x1e8] sm:$0xf]
    %v10813 = vld [vmem:[%s10689 + $0x1ec] sm:$0xf]
    %v10814 = vld [vmem:[%s10689 + $0x1f0] sm:$0xf]
    %v10815 = vld [vmem:[%s10689 + $0x1f4] sm:$0xf]
    %v10816 = vld [vmem:[%s10689 + $0x1f8] sm:$0xf]
    %v10817 = vld [vmem:[%s10689 + $0x1fc] sm:$0xf]
    %v10834 = vunpack.c.l.b16 %v10673
    %v10835 = vunpack.c.l.b16 %v10674
    %v10836 = vunpack.c.l.b16 %v10675
    %v10837 = vunpack.c.l.b16 %v10676
    %v10838 = vunpack.c.l.b16 %v10677
    %v10839 = vunpack.c.l.b16 %v10678
    %v10840 = vunpack.c.l.b16 %v10679
    %v10841 = vunpack.c.l.b16 %v10680
    %v10842 = vunpack.c.l.b16 %v10681
    %v10843 = vunpack.c.l.b16 %v10682
    %v10844 = vunpack.c.l.b16 %v10683
    %v10845 = vunpack.c.l.b16 %v10684
    %v10846 = vunpack.c.l.b16 %v10685
    %v10847 = vunpack.c.l.b16 %v10686
    %v10848 = vunpack.c.l.b16 %v10687
    %v10849 = vunpack.c.l.b16 %v10688
    %v10850 = vsel %vm798, %v10842, %v10834
    %v10851 = vsel %vm798, %v10843, %v10835
    %v10852 = vsel %vm798, %v10844, %v10836
    %v10853 = vsel %vm798, %v10845, %v10837
    %v10854 = vsel %vm798, %v10846, %v10838
    %v10855 = vsel %vm798, %v10847, %v10839
    %v10856 = vsel %vm798, %v10848, %v10840
    %v10857 = vsel %vm798, %v10849, %v10841
    %v10858 = vpack.c.b16 %v10850, %v10850
    %v10859 = vpack.c.b16 %v10851, %v10851
    %v10860 = vpack.c.b16 %v10852, %v10852
    %v10861 = vpack.c.b16 %v10853, %v10853
    %v10862 = vpack.c.b16 %v10854, %v10854
    %v10863 = vpack.c.b16 %v10855, %v10855
    %v10864 = vpack.c.b16 %v10856, %v10856
    %v10865 = vpack.c.b16 %v10857, %v10857
    %v11002 = vunpack.c.l.b16 %v10690
    %v11003 = vunpack.c.l.b16 %v10691
    %v11004 = vunpack.c.l.b16 %v10692
    %v11005 = vunpack.c.l.b16 %v10693
    %v11006 = vunpack.c.l.b16 %v10694
    %v11007 = vunpack.c.l.b16 %v10695
    %v11008 = vunpack.c.l.b16 %v10696
    %v11009 = vunpack.c.l.b16 %v10697
    %v11010 = vunpack.c.l.b16 %v10698
    %v11011 = vunpack.c.l.b16 %v10699
    %v11012 = vunpack.c.l.b16 %v10700
    %v11013 = vunpack.c.l.b16 %v10701
    %v11014 = vunpack.c.l.b16 %v10702
    %v11015 = vunpack.c.l.b16 %v10703
    %v11016 = vunpack.c.l.b16 %v10704
    %v11017 = vunpack.c.l.b16 %v10705
    %v11018 = vunpack.c.l.b16 %v10706
    %v11019 = vunpack.c.l.b16 %v10707
    %v11020 = vunpack.c.l.b16 %v10708
    %v11021 = vunpack.c.l.b16 %v10709
    %v11022 = vunpack.c.l.b16 %v10710
    %v11023 = vunpack.c.l.b16 %v10711
    %v11024 = vunpack.c.l.b16 %v10712
    %v11025 = vunpack.c.l.b16 %v10713
    %v11026 = vunpack.c.l.b16 %v10714
    %v11027 = vunpack.c.l.b16 %v10715
    %v11028 = vunpack.c.l.b16 %v10716
    %v11029 = vunpack.c.l.b16 %v10717
    %v11030 = vunpack.c.l.b16 %v10718
    %v11031 = vunpack.c.l.b16 %v10719
    %v11032 = vunpack.c.l.b16 %v10720
    %v11033 = vunpack.c.l.b16 %v10721
    %v11034 = vunpack.c.l.b16 %v10722
    %v11035 = vunpack.c.l.b16 %v10723
    %v11036 = vunpack.c.l.b16 %v10724
    %v11037 = vunpack.c.l.b16 %v10725
    %v11038 = vunpack.c.l.b16 %v10726
    %v11039 = vunpack.c.l.b16 %v10727
    %v11040 = vunpack.c.l.b16 %v10728
    %v11041 = vunpack.c.l.b16 %v10729
    %v11042 = vunpack.c.l.b16 %v10730
    %v11043 = vunpack.c.l.b16 %v10731
    %v11044 = vunpack.c.l.b16 %v10732
    %v11045 = vunpack.c.l.b16 %v10733
    %v11046 = vunpack.c.l.b16 %v10734
    %v11047 = vunpack.c.l.b16 %v10735
    %v11048 = vunpack.c.l.b16 %v10736
    %v11049 = vunpack.c.l.b16 %v10737
    %v11050 = vunpack.c.l.b16 %v10738
    %v11051 = vunpack.c.l.b16 %v10739
    %v11052 = vunpack.c.l.b16 %v10740
    %v11053 = vunpack.c.l.b16 %v10741
    %v11054 = vunpack.c.l.b16 %v10742
    %v11055 = vunpack.c.l.b16 %v10743
    %v11056 = vunpack.c.l.b16 %v10744
    %v11057 = vunpack.c.l.b16 %v10745
    %v11058 = vunpack.c.l.b16 %v10746
    %v11059 = vunpack.c.l.b16 %v10747
    %v11060 = vunpack.c.l.b16 %v10748
    %v11061 = vunpack.c.l.b16 %v10749
    %v11062 = vunpack.c.l.b16 %v10750
    %v11063 = vunpack.c.l.b16 %v10751
    %v11064 = vunpack.c.l.b16 %v10752
    %v11065 = vunpack.c.l.b16 %v10753
    %v11066 = vunpack.c.l.b16 %v10754
    %v11067 = vunpack.c.l.b16 %v10755
    %v11068 = vunpack.c.l.b16 %v10756
    %v11069 = vunpack.c.l.b16 %v10757
    %v11070 = vunpack.c.l.b16 %v10758
    %v11071 = vunpack.c.l.b16 %v10759
    %v11072 = vunpack.c.l.b16 %v10760
    %v11073 = vunpack.c.l.b16 %v10761
    %v11074 = vunpack.c.l.b16 %v10762
    %v11075 = vunpack.c.l.b16 %v10763
    %v11076 = vunpack.c.l.b16 %v10764
    %v11077 = vunpack.c.l.b16 %v10765
    %v11078 = vunpack.c.l.b16 %v10766
    %v11079 = vunpack.c.l.b16 %v10767
    %v11080 = vunpack.c.l.b16 %v10768
    %v11081 = vunpack.c.l.b16 %v10769
    %v11082 = vunpack.c.l.b16 %v10770
    %v11083 = vunpack.c.l.b16 %v10771
    %v11084 = vunpack.c.l.b16 %v10772
    %v11085 = vunpack.c.l.b16 %v10773
    %v11086 = vunpack.c.l.b16 %v10774
    %v11087 = vunpack.c.l.b16 %v10775
    %v11088 = vunpack.c.l.b16 %v10776
    %v11089 = vunpack.c.l.b16 %v10777
    %v11090 = vunpack.c.l.b16 %v10778
    %v11091 = vunpack.c.l.b16 %v10779
    %v11092 = vunpack.c.l.b16 %v10780
    %v11093 = vunpack.c.l.b16 %v10781
    %v11094 = vunpack.c.l.b16 %v10782
    %v11095 = vunpack.c.l.b16 %v10783
    %v11096 = vunpack.c.l.b16 %v10784
    %v11097 = vunpack.c.l.b16 %v10785
    %v11098 = vunpack.c.l.b16 %v10786
    %v11099 = vunpack.c.l.b16 %v10787
    %v11100 = vunpack.c.l.b16 %v10788
    %v11101 = vunpack.c.l.b16 %v10789
    %v11102 = vunpack.c.l.b16 %v10790
    %v11103 = vunpack.c.l.b16 %v10791
    %v11104 = vunpack.c.l.b16 %v10792
    %v11105 = vunpack.c.l.b16 %v10793
    %v11106 = vunpack.c.l.b16 %v10794
    %v11107 = vunpack.c.l.b16 %v10795
    %v11108 = vunpack.c.l.b16 %v10796
    %v11109 = vunpack.c.l.b16 %v10797
    %v11110 = vunpack.c.l.b16 %v10798
    %v11111 = vunpack.c.l.b16 %v10799
    %v11112 = vunpack.c.l.b16 %v10800
    %v11113 = vunpack.c.l.b16 %v10801
    %v11114 = vunpack.c.l.b16 %v10802
    %v11115 = vunpack.c.l.b16 %v10803
    %v11116 = vunpack.c.l.b16 %v10804
    %v11117 = vunpack.c.l.b16 %v10805
    %v11118 = vunpack.c.l.b16 %v10806
    %v11119 = vunpack.c.l.b16 %v10807
    %v11120 = vunpack.c.l.b16 %v10808
    %v11121 = vunpack.c.l.b16 %v10809
    %v11122 = vunpack.c.l.b16 %v10810
    %v11123 = vunpack.c.l.b16 %v10811
    %v11124 = vunpack.c.l.b16 %v10812
    %v11125 = vunpack.c.l.b16 %v10813
    %v11126 = vunpack.c.l.b16 %v10814
    %v11127 = vunpack.c.l.b16 %v10815
    %v11128 = vunpack.c.l.b16 %v10816
    %v11129 = vunpack.c.l.b16 %v10817
    %v11130 = vpack.c.b16 %v11003, %v11002
    %v11131 = vpack.c.b16 %v11005, %v11004
    %v11132 = vpack.c.b16 %v11007, %v11006
    %v11133 = vpack.c.b16 %v11009, %v11008
    %v11134 = vpack.c.b16 %v11011, %v11010
    %v11135 = vpack.c.b16 %v11013, %v11012
    %v11136 = vpack.c.b16 %v11015, %v11014
    %v11137 = vpack.c.b16 %v11017, %v11016
    %v11138 = vpack.c.b16 %v11019, %v11018
    %v11139 = vpack.c.b16 %v11021, %v11020
    %v11140 = vpack.c.b16 %v11023, %v11022
    %v11141 = vpack.c.b16 %v11025, %v11024
    %v11142 = vpack.c.b16 %v11027, %v11026
    %v11143 = vpack.c.b16 %v11029, %v11028
    %v11144 = vpack.c.b16 %v11031, %v11030
    %v11145 = vpack.c.b16 %v11033, %v11032
    %v11146 = vpack.c.b16 %v11035, %v11034
    %v11147 = vpack.c.b16 %v11037, %v11036
    %v11148 = vpack.c.b16 %v11039, %v11038
    %v11149 = vpack.c.b16 %v11041, %v11040
    %v11150 = vpack.c.b16 %v11043, %v11042
    %v11151 = vpack.c.b16 %v11045, %v11044
    %v11152 = vpack.c.b16 %v11047, %v11046
    %v11153 = vpack.c.b16 %v11049, %v11048
    %v11154 = vpack.c.b16 %v11051, %v11050
    %v11155 = vpack.c.b16 %v11053, %v11052
    %v11156 = vpack.c.b16 %v11055, %v11054
    %v11157 = vpack.c.b16 %v11057, %v11056
    %v11158 = vpack.c.b16 %v11059, %v11058
    %v11159 = vpack.c.b16 %v11061, %v11060
    %v11160 = vpack.c.b16 %v11063, %v11062
    %v11161 = vpack.c.b16 %v11065, %v11064
    %v11162 = vpack.c.b16 %v11067, %v11066
    %v11163 = vpack.c.b16 %v11069, %v11068
    %v11164 = vpack.c.b16 %v11071, %v11070
    %v11165 = vpack.c.b16 %v11073, %v11072
    %v11166 = vpack.c.b16 %v11075, %v11074
    %v11167 = vpack.c.b16 %v11077, %v11076
    %v11168 = vpack.c.b16 %v11079, %v11078
    %v11169 = vpack.c.b16 %v11081, %v11080
    %v11170 = vpack.c.b16 %v11083, %v11082
    %v11171 = vpack.c.b16 %v11085, %v11084
    %v11172 = vpack.c.b16 %v11087, %v11086
    %v11173 = vpack.c.b16 %v11089, %v11088
    %v11174 = vpack.c.b16 %v11091, %v11090
    %v11175 = vpack.c.b16 %v11093, %v11092
    %v11176 = vpack.c.b16 %v11095, %v11094
    %v11177 = vpack.c.b16 %v11097, %v11096
    %v11178 = vpack.c.b16 %v11099, %v11098
    %v11179 = vpack.c.b16 %v11101, %v11100
    %v11180 = vpack.c.b16 %v11103, %v11102
    %v11181 = vpack.c.b16 %v11105, %v11104
    %v11182 = vpack.c.b16 %v11107, %v11106
    %v11183 = vpack.c.b16 %v11109, %v11108
    %v11184 = vpack.c.b16 %v11111, %v11110
    %v11185 = vpack.c.b16 %v11113, %v11112
    %v11186 = vpack.c.b16 %v11115, %v11114
    %v11187 = vpack.c.b16 %v11117, %v11116
    %v11188 = vpack.c.b16 %v11119, %v11118
    %v11189 = vpack.c.b16 %v11121, %v11120
    %v11190 = vpack.c.b16 %v11123, %v11122
    %v11191 = vpack.c.b16 %v11125, %v11124
    %v11192 = vpack.c.b16 %v11127, %v11126
    %v11193 = vpack.c.b16 %v11129, %v11128
    %11258 = vmatpush.bf16.msra.mxu0 %v11137
    %11259 = vmatpush.bf16.msra.mxu0 %v11136
    %11260 = vmatpush.bf16.msra.mxu0 %v11135
    %11261 = vmatpush.bf16.msra.mxu0 %v11134
    %11262 = vmatpush.bf16.msra.mxu0 %v11133
    %11263 = vmatpush.bf16.msra.mxu0 %v11132
    %11264 = vmatpush.bf16.msra.mxu0 %v11131
    %11265 = vmatpush.bf16.msra.mxu0 %v11130
    %11266 = vmatmul.bf16.gmra.mxu0 %v10858
    %v11267 = vpop.f32.mrf.mxu0
    %v11268 = vadd.f32 0.0, %v11267
    %v11269 = vpop.f32.mrf.mxu0
    %11270 = vdwg.mxu0
    %11271 = vmatpush.bf16.msra.mxu0 %v11145
    %11272 = vmatpush.bf16.msra.mxu0 %v11144
    %11273 = vmatpush.bf16.msra.mxu0 %v11143
    %11274 = vmatpush.bf16.msra.mxu0 %v11142
    %11275 = vmatpush.bf16.msra.mxu0 %v11141
    %11276 = vmatpush.bf16.msra.mxu0 %v11140
    %11277 = vmatpush.bf16.msra.mxu0 %v11139
    %11278 = vmatpush.bf16.msra.mxu0 %v11138
    %11279 = vmatmul.bf16.gmra.mxu0 %v10859
    %v11280 = vpop.f32.mrf.mxu0
    %v11281 = vadd.f32 %v11268, %v11280
    %v11282 = vpop.f32.mrf.mxu0
    %11283 = vdwg.mxu0
    %11284 = vmatpush.bf16.msra.mxu0 %v11153
    %11285 = vmatpush.bf16.msra.mxu0 %v11152
    %11286 = vmatpush.bf16.msra.mxu0 %v11151
    %11287 = vmatpush.bf16.msra.mxu0 %v11150
    %11288 = vmatpush.bf16.msra.mxu0 %v11149
    %11289 = vmatpush.bf16.msra.mxu0 %v11148
    %11290 = vmatpush.bf16.msra.mxu0 %v11147
    %11291 = vmatpush.bf16.msra.mxu0 %v11146
    %11292 = vmatmul.bf16.gmra.mxu0 %v10860
    %v11293 = vpop.f32.mrf.mxu0
    %v11294 = vadd.f32 %v11281, %v11293
    %v11295 = vpop.f32.mrf.mxu0
    %11296 = vdwg.mxu0
    %11297 = vmatpush.bf16.msra.mxu0 %v11161
    %11298 = vmatpush.bf16.msra.mxu0 %v11160
    %11299 = vmatpush.bf16.msra.mxu0 %v11159
    %11300 = vmatpush.bf16.msra.mxu0 %v11158
    %11301 = vmatpush.bf16.msra.mxu0 %v11157
    %11302 = vmatpush.bf16.msra.mxu0 %v11156
    %11303 = vmatpush.bf16.msra.mxu0 %v11155
    %11304 = vmatpush.bf16.msra.mxu0 %v11154
    %11305 = vmatmul.bf16.gmra.mxu0 %v10861
    %v11306 = vpop.f32.mrf.mxu0
    %v11307 = vadd.f32 %v11294, %v11306
    %v11308 = vpop.f32.mrf.mxu0
    %11309 = vdwg.mxu0
    %11310 = vmatpush.bf16.msra.mxu0 %v11169
    %11311 = vmatpush.bf16.msra.mxu0 %v11168
    %11312 = vmatpush.bf16.msra.mxu0 %v11167
    %11313 = vmatpush.bf16.msra.mxu0 %v11166
    %11314 = vmatpush.bf16.msra.mxu0 %v11165
    %11315 = vmatpush.bf16.msra.mxu0 %v11164
    %11316 = vmatpush.bf16.msra.mxu0 %v11163
    %11317 = vmatpush.bf16.msra.mxu0 %v11162
    %11318 = vmatmul.bf16.gmra.mxu0 %v10862
    %v11319 = vpop.f32.mrf.mxu0
    %v11320 = vadd.f32 %v11307, %v11319
    %v11321 = vpop.f32.mrf.mxu0
    %11322 = vdwg.mxu0
    %11323 = vmatpush.bf16.msra.mxu0 %v11177
    %11324 = vmatpush.bf16.msra.mxu0 %v11176
    %11325 = vmatpush.bf16.msra.mxu0 %v11175
    %11326 = vmatpush.bf16.msra.mxu0 %v11174
    %11327 = vmatpush.bf16.msra.mxu0 %v11173
    %11328 = vmatpush.bf16.msra.mxu0 %v11172
    %11329 = vmatpush.bf16.msra.mxu0 %v11171
    %11330 = vmatpush.bf16.msra.mxu0 %v11170
    %11331 = vmatmul.bf16.gmra.mxu0 %v10863
    %v11332 = vpop.f32.mrf.mxu0
    %v11333 = vadd.f32 %v11320, %v11332
    %v11334 = vpop.f32.mrf.mxu0
    %11335 = vdwg.mxu0
    %11336 = vmatpush.bf16.msra.mxu0 %v11185
    %11337 = vmatpush.bf16.msra.mxu0 %v11184
    %11338 = vmatpush.bf16.msra.mxu0 %v11183
    %11339 = vmatpush.bf16.msra.mxu0 %v11182
    %11340 = vmatpush.bf16.msra.mxu0 %v11181
    %11341 = vmatpush.bf16.msra.mxu0 %v11180
    %11342 = vmatpush.bf16.msra.mxu0 %v11179
    %11343 = vmatpush.bf16.msra.mxu0 %v11178
    %11344 = vmatmul.bf16.gmra.mxu0 %v10864
    %v11345 = vpop.f32.mrf.mxu0
    %v11346 = vadd.f32 %v11333, %v11345
    %v11347 = vpop.f32.mrf.mxu0
    %11348 = vdwg.mxu0
    %11349 = vmatpush.bf16.msra.mxu0 %v11193
    %11350 = vmatpush.bf16.msra.mxu0 %v11192
    %11351 = vmatpush.bf16.msra.mxu0 %v11191
    %11352 = vmatpush.bf16.msra.mxu0 %v11190
    %11353 = vmatpush.bf16.msra.mxu0 %v11189
    %11354 = vmatpush.bf16.msra.mxu0 %v11188
    %11355 = vmatpush.bf16.msra.mxu0 %v11187
    %11356 = vmatpush.bf16.msra.mxu0 %v11186
    %11357 = vmatmul.bf16.gmra.mxu0 %v10865
    %v11358 = vpop.f32.mrf.mxu0
    %v11359 = vadd.f32 %v11346, %v11358
    %v11360 = vpop.f32.mrf.mxu0
    %11361 = vdwg.mxu0
    %v11362 = vadd.f32 %v9324, %v11359
    %s11363 = scalar_lea.vmem [#allocation8], 5120
    %v11364 = vld [vmem:[%s11363] sm:$0xff]
    %v11365 = vld [vmem:[%s11363 + $0x8] sm:$0xff]
    %v11366 = vld [vmem:[%s11363 + $0x10] sm:$0xff]
    %v11367 = vld [vmem:[%s11363 + $0x18] sm:$0xff]
    %v11368 = vld [vmem:[%s11363 + $0x20] sm:$0xff]
    %v11369 = vld [vmem:[%s11363 + $0x28] sm:$0xff]
    %v11370 = vld [vmem:[%s11363 + $0x30] sm:$0xff]
    %v11371 = vld [vmem:[%s11363 + $0x38] sm:$0xff]
    %v11372 = vld [vmem:[%s11363 + $0x40] sm:$0xff]
    %v11373 = vld [vmem:[%s11363 + $0x48] sm:$0xff]
    %v11374 = vld [vmem:[%s11363 + $0x50] sm:$0xff]
    %v11375 = vld [vmem:[%s11363 + $0x58] sm:$0xff]
    %v11376 = vld [vmem:[%s11363 + $0x60] sm:$0xff]
    %v11377 = vld [vmem:[%s11363 + $0x68] sm:$0xff]
    %v11378 = vld [vmem:[%s11363 + $0x70] sm:$0xff]
    %v11379 = vld [vmem:[%s11363 + $0x78] sm:$0xff]
    %v11380 = vld [vmem:[%s11363 + $0x80] sm:$0xff]
    %v11381 = vld [vmem:[%s11363 + $0x88] sm:$0xff]
    %v11382 = vld [vmem:[%s11363 + $0x90] sm:$0xff]
    %v11383 = vld [vmem:[%s11363 + $0x98] sm:$0xff]
    %v11384 = vld [vmem:[%s11363 + $0xa0] sm:$0xff]
    %v11385 = vld [vmem:[%s11363 + $0xa8] sm:$0xff]
    %v11386 = vld [vmem:[%s11363 + $0xb0] sm:$0xff]
    %v11387 = vld [vmem:[%s11363 + $0xb8] sm:$0xff]
    %v11388 = vld [vmem:[%s11363 + $0xc0] sm:$0xff]
    %v11389 = vld [vmem:[%s11363 + $0xc8] sm:$0xff]
    %v11390 = vld [vmem:[%s11363 + $0xd0] sm:$0xff]
    %v11391 = vld [vmem:[%s11363 + $0xd8] sm:$0xff]
    %v11392 = vld [vmem:[%s11363 + $0xe0] sm:$0xff]
    %v11393 = vld [vmem:[%s11363 + $0xe8] sm:$0xff]
    %v11394 = vld [vmem:[%s11363 + $0xf0] sm:$0xff]
    %v11395 = vld [vmem:[%s11363 + $0xf8] sm:$0xff]
    %v11396 = vld [vmem:[%s11363 + $0x100] sm:$0xff]
    %v11397 = vld [vmem:[%s11363 + $0x108] sm:$0xff]
    %v11398 = vld [vmem:[%s11363 + $0x110] sm:$0xff]
    %v11399 = vld [vmem:[%s11363 + $0x118] sm:$0xff]
    %v11400 = vld [vmem:[%s11363 + $0x120] sm:$0xff]
    %v11401 = vld [vmem:[%s11363 + $0x128] sm:$0xff]
    %v11402 = vld [vmem:[%s11363 + $0x130] sm:$0xff]
    %v11403 = vld [vmem:[%s11363 + $0x138] sm:$0xff]
    %v11404 = vld [vmem:[%s11363 + $0x140] sm:$0xff]
    %v11405 = vld [vmem:[%s11363 + $0x148] sm:$0xff]
    %v11406 = vld [vmem:[%s11363 + $0x150] sm:$0xff]
    %v11407 = vld [vmem:[%s11363 + $0x158] sm:$0xff]
    %v11408 = vld [vmem:[%s11363 + $0x160] sm:$0xff]
    %v11409 = vld [vmem:[%s11363 + $0x168] sm:$0xff]
    %v11410 = vld [vmem:[%s11363 + $0x170] sm:$0xff]
    %v11411 = vld [vmem:[%s11363 + $0x178] sm:$0xff]
    %v11412 = vld [vmem:[%s11363 + $0x180] sm:$0xff]
    %v11413 = vld [vmem:[%s11363 + $0x188] sm:$0xff]
    %v11414 = vld [vmem:[%s11363 + $0x190] sm:$0xff]
    %v11415 = vld [vmem:[%s11363 + $0x198] sm:$0xff]
    %v11416 = vld [vmem:[%s11363 + $0x1a0] sm:$0xff]
    %v11417 = vld [vmem:[%s11363 + $0x1a8] sm:$0xff]
    %v11418 = vld [vmem:[%s11363 + $0x1b0] sm:$0xff]
    %v11419 = vld [vmem:[%s11363 + $0x1b8] sm:$0xff]
    %v11420 = vld [vmem:[%s11363 + $0x1c0] sm:$0xff]
    %v11421 = vld [vmem:[%s11363 + $0x1c8] sm:$0xff]
    %v11422 = vld [vmem:[%s11363 + $0x1d0] sm:$0xff]
    %v11423 = vld [vmem:[%s11363 + $0x1d8] sm:$0xff]
    %v11424 = vld [vmem:[%s11363 + $0x1e0] sm:$0xff]
    %v11425 = vld [vmem:[%s11363 + $0x1e8] sm:$0xff]
    %v11426 = vld [vmem:[%s11363 + $0x1f0] sm:$0xff]
    %v11427 = vld [vmem:[%s11363 + $0x1f8] sm:$0xff]
    %v11428 = vld [vmem:[%s11363 + $0x200] sm:$0xff]
    %v11429 = vld [vmem:[%s11363 + $0x208] sm:$0xff]
    %v11430 = vld [vmem:[%s11363 + $0x210] sm:$0xff]
    %v11431 = vld [vmem:[%s11363 + $0x218] sm:$0xff]
    %v11432 = vld [vmem:[%s11363 + $0x220] sm:$0xff]
    %v11433 = vld [vmem:[%s11363 + $0x228] sm:$0xff]
    %v11434 = vld [vmem:[%s11363 + $0x230] sm:$0xff]
    %v11435 = vld [vmem:[%s11363 + $0x238] sm:$0xff]
    %v11436 = vld [vmem:[%s11363 + $0x240] sm:$0xff]
    %v11437 = vld [vmem:[%s11363 + $0x248] sm:$0xff]
    %v11438 = vld [vmem:[%s11363 + $0x250] sm:$0xff]
    %v11439 = vld [vmem:[%s11363 + $0x258] sm:$0xff]
    %v11440 = vld [vmem:[%s11363 + $0x260] sm:$0xff]
    %v11441 = vld [vmem:[%s11363 + $0x268] sm:$0xff]
    %v11442 = vld [vmem:[%s11363 + $0x270] sm:$0xff]
    %v11443 = vld [vmem:[%s11363 + $0x278] sm:$0xff]
    %v11444 = vld [vmem:[%s11363 + $0x280] sm:$0xff]
    %v11445 = vld [vmem:[%s11363 + $0x288] sm:$0xff]
    %v11446 = vld [vmem:[%s11363 + $0x290] sm:$0xff]
    %v11447 = vld [vmem:[%s11363 + $0x298] sm:$0xff]
    %v11448 = vld [vmem:[%s11363 + $0x2a0] sm:$0xff]
    %v11449 = vld [vmem:[%s11363 + $0x2a8] sm:$0xff]
    %v11450 = vld [vmem:[%s11363 + $0x2b0] sm:$0xff]
    %v11451 = vld [vmem:[%s11363 + $0x2b8] sm:$0xff]
    %v11452 = vld [vmem:[%s11363 + $0x2c0] sm:$0xff]
    %v11453 = vld [vmem:[%s11363 + $0x2c8] sm:$0xff]
    %v11454 = vld [vmem:[%s11363 + $0x2d0] sm:$0xff]
    %v11455 = vld [vmem:[%s11363 + $0x2d8] sm:$0xff]
    %v11456 = vld [vmem:[%s11363 + $0x2e0] sm:$0xff]
    %v11457 = vld [vmem:[%s11363 + $0x2e8] sm:$0xff]
    %v11458 = vld [vmem:[%s11363 + $0x2f0] sm:$0xff]
    %v11459 = vld [vmem:[%s11363 + $0x2f8] sm:$0xff]
    %v11460 = vld [vmem:[%s11363 + $0x300] sm:$0xff]
    %v11461 = vld [vmem:[%s11363 + $0x308] sm:$0xff]
    %v11462 = vld [vmem:[%s11363 + $0x310] sm:$0xff]
    %v11463 = vld [vmem:[%s11363 + $0x318] sm:$0xff]
    %v11464 = vld [vmem:[%s11363 + $0x320] sm:$0xff]
    %v11465 = vld [vmem:[%s11363 + $0x328] sm:$0xff]
    %v11466 = vld [vmem:[%s11363 + $0x330] sm:$0xff]
    %v11467 = vld [vmem:[%s11363 + $0x338] sm:$0xff]
    %v11468 = vld [vmem:[%s11363 + $0x340] sm:$0xff]
    %v11469 = vld [vmem:[%s11363 + $0x348] sm:$0xff]
    %v11470 = vld [vmem:[%s11363 + $0x350] sm:$0xff]
    %v11471 = vld [vmem:[%s11363 + $0x358] sm:$0xff]
    %v11472 = vld [vmem:[%s11363 + $0x360] sm:$0xff]
    %v11473 = vld [vmem:[%s11363 + $0x368] sm:$0xff]
    %v11474 = vld [vmem:[%s11363 + $0x370] sm:$0xff]
    %v11475 = vld [vmem:[%s11363 + $0x378] sm:$0xff]
    %v11476 = vld [vmem:[%s11363 + $0x380] sm:$0xff]
    %v11477 = vld [vmem:[%s11363 + $0x388] sm:$0xff]
    %v11478 = vld [vmem:[%s11363 + $0x390] sm:$0xff]
    %v11479 = vld [vmem:[%s11363 + $0x398] sm:$0xff]
    %v11480 = vld [vmem:[%s11363 + $0x3a0] sm:$0xff]
    %v11481 = vld [vmem:[%s11363 + $0x3a8] sm:$0xff]
    %v11482 = vld [vmem:[%s11363 + $0x3b0] sm:$0xff]
    %v11483 = vld [vmem:[%s11363 + $0x3b8] sm:$0xff]
    %v11484 = vld [vmem:[%s11363 + $0x3c0] sm:$0xff]
    %v11485 = vld [vmem:[%s11363 + $0x3c8] sm:$0xff]
    %v11486 = vld [vmem:[%s11363 + $0x3d0] sm:$0xff]
    %v11487 = vld [vmem:[%s11363 + $0x3d8] sm:$0xff]
    %v11488 = vld [vmem:[%s11363 + $0x3e0] sm:$0xff]
    %v11489 = vld [vmem:[%s11363 + $0x3e8] sm:$0xff]
    %v11490 = vld [vmem:[%s11363 + $0x3f0] sm:$0xff]
    %v11491 = vld [vmem:[%s11363 + $0x3f8] sm:$0xff]
    %s11492 = scalar_lea.vmem [#allocation10], 10
    %v11493 = vld [vmem:[%s11492] sm:$0x3]
    %v11495 = vperm.slane %v11493, 0
    %v11496 = vperm.slane %v11493, 1
    %v11627 = vunpack.c.l.b16 %v11364
    %v11628 = vunpack.c.h.b16 %v11364
    %v11629 = vunpack.c.l.b16 %v11365
    %v11630 = vunpack.c.h.b16 %v11365
    %v11631 = vunpack.c.l.b16 %v11366
    %v11632 = vunpack.c.h.b16 %v11366
    %v11633 = vunpack.c.l.b16 %v11367
    %v11634 = vunpack.c.h.b16 %v11367
    %v11635 = vunpack.c.l.b16 %v11368
    %v11636 = vunpack.c.h.b16 %v11368
    %v11637 = vunpack.c.l.b16 %v11369
    %v11638 = vunpack.c.h.b16 %v11369
    %v11639 = vunpack.c.l.b16 %v11370
    %v11640 = vunpack.c.h.b16 %v11370
    %v11641 = vunpack.c.l.b16 %v11371
    %v11642 = vunpack.c.h.b16 %v11371
    %v11643 = vunpack.c.l.b16 %v11372
    %v11644 = vunpack.c.h.b16 %v11372
    %v11645 = vunpack.c.l.b16 %v11373
    %v11646 = vunpack.c.h.b16 %v11373
    %v11647 = vunpack.c.l.b16 %v11374
    %v11648 = vunpack.c.h.b16 %v11374
    %v11649 = vunpack.c.l.b16 %v11375
    %v11650 = vunpack.c.h.b16 %v11375
    %v11651 = vunpack.c.l.b16 %v11376
    %v11652 = vunpack.c.h.b16 %v11376
    %v11653 = vunpack.c.l.b16 %v11377
    %v11654 = vunpack.c.h.b16 %v11377
    %v11655 = vunpack.c.l.b16 %v11378
    %v11656 = vunpack.c.h.b16 %v11378
    %v11657 = vunpack.c.l.b16 %v11379
    %v11658 = vunpack.c.h.b16 %v11379
    %v11659 = vunpack.c.l.b16 %v11380
    %v11660 = vunpack.c.h.b16 %v11380
    %v11661 = vunpack.c.l.b16 %v11381
    %v11662 = vunpack.c.h.b16 %v11381
    %v11663 = vunpack.c.l.b16 %v11382
    %v11664 = vunpack.c.h.b16 %v11382
    %v11665 = vunpack.c.l.b16 %v11383
    %v11666 = vunpack.c.h.b16 %v11383
    %v11667 = vunpack.c.l.b16 %v11384
    %v11668 = vunpack.c.h.b16 %v11384
    %v11669 = vunpack.c.l.b16 %v11385
    %v11670 = vunpack.c.h.b16 %v11385
    %v11671 = vunpack.c.l.b16 %v11386
    %v11672 = vunpack.c.h.b16 %v11386
    %v11673 = vunpack.c.l.b16 %v11387
    %v11674 = vunpack.c.h.b16 %v11387
    %v11675 = vunpack.c.l.b16 %v11388
    %v11676 = vunpack.c.h.b16 %v11388
    %v11677 = vunpack.c.l.b16 %v11389
    %v11678 = vunpack.c.h.b16 %v11389
    %v11679 = vunpack.c.l.b16 %v11390
    %v11680 = vunpack.c.h.b16 %v11390
    %v11681 = vunpack.c.l.b16 %v11391
    %v11682 = vunpack.c.h.b16 %v11391
    %v11683 = vunpack.c.l.b16 %v11392
    %v11684 = vunpack.c.h.b16 %v11392
    %v11685 = vunpack.c.l.b16 %v11393
    %v11686 = vunpack.c.h.b16 %v11393
    %v11687 = vunpack.c.l.b16 %v11394
    %v11688 = vunpack.c.h.b16 %v11394
    %v11689 = vunpack.c.l.b16 %v11395
    %v11690 = vunpack.c.h.b16 %v11395
    %v11691 = vunpack.c.l.b16 %v11396
    %v11692 = vunpack.c.h.b16 %v11396
    %v11693 = vunpack.c.l.b16 %v11397
    %v11694 = vunpack.c.h.b16 %v11397
    %v11695 = vunpack.c.l.b16 %v11398
    %v11696 = vunpack.c.h.b16 %v11398
    %v11697 = vunpack.c.l.b16 %v11399
    %v11698 = vunpack.c.h.b16 %v11399
    %v11699 = vunpack.c.l.b16 %v11400
    %v11700 = vunpack.c.h.b16 %v11400
    %v11701 = vunpack.c.l.b16 %v11401
    %v11702 = vunpack.c.h.b16 %v11401
    %v11703 = vunpack.c.l.b16 %v11402
    %v11704 = vunpack.c.h.b16 %v11402
    %v11705 = vunpack.c.l.b16 %v11403
    %v11706 = vunpack.c.h.b16 %v11403
    %v11707 = vunpack.c.l.b16 %v11404
    %v11708 = vunpack.c.h.b16 %v11404
    %v11709 = vunpack.c.l.b16 %v11405
    %v11710 = vunpack.c.h.b16 %v11405
    %v11711 = vunpack.c.l.b16 %v11406
    %v11712 = vunpack.c.h.b16 %v11406
    %v11713 = vunpack.c.l.b16 %v11407
    %v11714 = vunpack.c.h.b16 %v11407
    %v11715 = vunpack.c.l.b16 %v11408
    %v11716 = vunpack.c.h.b16 %v11408
    %v11717 = vunpack.c.l.b16 %v11409
    %v11718 = vunpack.c.h.b16 %v11409
    %v11719 = vunpack.c.l.b16 %v11410
    %v11720 = vunpack.c.h.b16 %v11410
    %v11721 = vunpack.c.l.b16 %v11411
    %v11722 = vunpack.c.h.b16 %v11411
    %v11723 = vunpack.c.l.b16 %v11412
    %v11724 = vunpack.c.h.b16 %v11412
    %v11725 = vunpack.c.l.b16 %v11413
    %v11726 = vunpack.c.h.b16 %v11413
    %v11727 = vunpack.c.l.b16 %v11414
    %v11728 = vunpack.c.h.b16 %v11414
    %v11729 = vunpack.c.l.b16 %v11415
    %v11730 = vunpack.c.h.b16 %v11415
    %v11731 = vunpack.c.l.b16 %v11416
    %v11732 = vunpack.c.h.b16 %v11416
    %v11733 = vunpack.c.l.b16 %v11417
    %v11734 = vunpack.c.h.b16 %v11417
    %v11735 = vunpack.c.l.b16 %v11418
    %v11736 = vunpack.c.h.b16 %v11418
    %v11737 = vunpack.c.l.b16 %v11419
    %v11738 = vunpack.c.h.b16 %v11419
    %v11739 = vunpack.c.l.b16 %v11420
    %v11740 = vunpack.c.h.b16 %v11420
    %v11741 = vunpack.c.l.b16 %v11421
    %v11742 = vunpack.c.h.b16 %v11421
    %v11743 = vunpack.c.l.b16 %v11422
    %v11744 = vunpack.c.h.b16 %v11422
    %v11745 = vunpack.c.l.b16 %v11423
    %v11746 = vunpack.c.h.b16 %v11423
    %v11747 = vunpack.c.l.b16 %v11424
    %v11748 = vunpack.c.h.b16 %v11424
    %v11749 = vunpack.c.l.b16 %v11425
    %v11750 = vunpack.c.h.b16 %v11425
    %v11751 = vunpack.c.l.b16 %v11426
    %v11752 = vunpack.c.h.b16 %v11426
    %v11753 = vunpack.c.l.b16 %v11427
    %v11754 = vunpack.c.h.b16 %v11427
    %v11755 = vunpack.c.l.b16 %v11428
    %v11756 = vunpack.c.h.b16 %v11428
    %v11757 = vunpack.c.l.b16 %v11429
    %v11758 = vunpack.c.h.b16 %v11429
    %v11759 = vunpack.c.l.b16 %v11430
    %v11760 = vunpack.c.h.b16 %v11430
    %v11761 = vunpack.c.l.b16 %v11431
    %v11762 = vunpack.c.h.b16 %v11431
    %v11763 = vunpack.c.l.b16 %v11432
    %v11764 = vunpack.c.h.b16 %v11432
    %v11765 = vunpack.c.l.b16 %v11433
    %v11766 = vunpack.c.h.b16 %v11433
    %v11767 = vunpack.c.l.b16 %v11434
    %v11768 = vunpack.c.h.b16 %v11434
    %v11769 = vunpack.c.l.b16 %v11435
    %v11770 = vunpack.c.h.b16 %v11435
    %v11771 = vunpack.c.l.b16 %v11436
    %v11772 = vunpack.c.h.b16 %v11436
    %v11773 = vunpack.c.l.b16 %v11437
    %v11774 = vunpack.c.h.b16 %v11437
    %v11775 = vunpack.c.l.b16 %v11438
    %v11776 = vunpack.c.h.b16 %v11438
    %v11777 = vunpack.c.l.b16 %v11439
    %v11778 = vunpack.c.h.b16 %v11439
    %v11779 = vunpack.c.l.b16 %v11440
    %v11780 = vunpack.c.h.b16 %v11440
    %v11781 = vunpack.c.l.b16 %v11441
    %v11782 = vunpack.c.h.b16 %v11441
    %v11783 = vunpack.c.l.b16 %v11442
    %v11784 = vunpack.c.h.b16 %v11442
    %v11785 = vunpack.c.l.b16 %v11443
    %v11786 = vunpack.c.h.b16 %v11443
    %v11787 = vunpack.c.l.b16 %v11444
    %v11788 = vunpack.c.h.b16 %v11444
    %v11789 = vunpack.c.l.b16 %v11445
    %v11790 = vunpack.c.h.b16 %v11445
    %v11791 = vunpack.c.l.b16 %v11446
    %v11792 = vunpack.c.h.b16 %v11446
    %v11793 = vunpack.c.l.b16 %v11447
    %v11794 = vunpack.c.h.b16 %v11447
    %v11795 = vunpack.c.l.b16 %v11448
    %v11796 = vunpack.c.h.b16 %v11448
    %v11797 = vunpack.c.l.b16 %v11449
    %v11798 = vunpack.c.h.b16 %v11449
    %v11799 = vunpack.c.l.b16 %v11450
    %v11800 = vunpack.c.h.b16 %v11450
    %v11801 = vunpack.c.l.b16 %v11451
    %v11802 = vunpack.c.h.b16 %v11451
    %v11803 = vunpack.c.l.b16 %v11452
    %v11804 = vunpack.c.h.b16 %v11452
    %v11805 = vunpack.c.l.b16 %v11453
    %v11806 = vunpack.c.h.b16 %v11453
    %v11807 = vunpack.c.l.b16 %v11454
    %v11808 = vunpack.c.h.b16 %v11454
    %v11809 = vunpack.c.l.b16 %v11455
    %v11810 = vunpack.c.h.b16 %v11455
    %v11811 = vunpack.c.l.b16 %v11456
    %v11812 = vunpack.c.h.b16 %v11456
    %v11813 = vunpack.c.l.b16 %v11457
    %v11814 = vunpack.c.h.b16 %v11457
    %v11815 = vunpack.c.l.b16 %v11458
    %v11816 = vunpack.c.h.b16 %v11458
    %v11817 = vunpack.c.l.b16 %v11459
    %v11818 = vunpack.c.h.b16 %v11459
    %v11819 = vunpack.c.l.b16 %v11460
    %v11820 = vunpack.c.h.b16 %v11460
    %v11821 = vunpack.c.l.b16 %v11461
    %v11822 = vunpack.c.h.b16 %v11461
    %v11823 = vunpack.c.l.b16 %v11462
    %v11824 = vunpack.c.h.b16 %v11462
    %v11825 = vunpack.c.l.b16 %v11463
    %v11826 = vunpack.c.h.b16 %v11463
    %v11827 = vunpack.c.l.b16 %v11464
    %v11828 = vunpack.c.h.b16 %v11464
    %v11829 = vunpack.c.l.b16 %v11465
    %v11830 = vunpack.c.h.b16 %v11465
    %v11831 = vunpack.c.l.b16 %v11466
    %v11832 = vunpack.c.h.b16 %v11466
    %v11833 = vunpack.c.l.b16 %v11467
    %v11834 = vunpack.c.h.b16 %v11467
    %v11835 = vunpack.c.l.b16 %v11468
    %v11836 = vunpack.c.h.b16 %v11468
    %v11837 = vunpack.c.l.b16 %v11469
    %v11838 = vunpack.c.h.b16 %v11469
    %v11839 = vunpack.c.l.b16 %v11470
    %v11840 = vunpack.c.h.b16 %v11470
    %v11841 = vunpack.c.l.b16 %v11471
    %v11842 = vunpack.c.h.b16 %v11471
    %v11843 = vunpack.c.l.b16 %v11472
    %v11844 = vunpack.c.h.b16 %v11472
    %v11845 = vunpack.c.l.b16 %v11473
    %v11846 = vunpack.c.h.b16 %v11473
    %v11847 = vunpack.c.l.b16 %v11474
    %v11848 = vunpack.c.h.b16 %v11474
    %v11849 = vunpack.c.l.b16 %v11475
    %v11850 = vunpack.c.h.b16 %v11475
    %v11851 = vunpack.c.l.b16 %v11476
    %v11852 = vunpack.c.h.b16 %v11476
    %v11853 = vunpack.c.l.b16 %v11477
    %v11854 = vunpack.c.h.b16 %v11477
    %v11855 = vunpack.c.l.b16 %v11478
    %v11856 = vunpack.c.h.b16 %v11478
    %v11857 = vunpack.c.l.b16 %v11479
    %v11858 = vunpack.c.h.b16 %v11479
    %v11859 = vunpack.c.l.b16 %v11480
    %v11860 = vunpack.c.h.b16 %v11480
    %v11861 = vunpack.c.l.b16 %v11481
    %v11862 = vunpack.c.h.b16 %v11481
    %v11863 = vunpack.c.l.b16 %v11482
    %v11864 = vunpack.c.h.b16 %v11482
    %v11865 = vunpack.c.l.b16 %v11483
    %v11866 = vunpack.c.h.b16 %v11483
    %v11867 = vunpack.c.l.b16 %v11484
    %v11868 = vunpack.c.h.b16 %v11484
    %v11869 = vunpack.c.l.b16 %v11485
    %v11870 = vunpack.c.h.b16 %v11485
    %v11871 = vunpack.c.l.b16 %v11486
    %v11872 = vunpack.c.h.b16 %v11486
    %v11873 = vunpack.c.l.b16 %v11487
    %v11874 = vunpack.c.h.b16 %v11487
    %v11875 = vunpack.c.l.b16 %v11488
    %v11876 = vunpack.c.h.b16 %v11488
    %v11877 = vunpack.c.l.b16 %v11489
    %v11878 = vunpack.c.h.b16 %v11489
    %v11879 = vunpack.c.l.b16 %v11490
    %v11880 = vunpack.c.h.b16 %v11490
    %v11881 = vunpack.c.l.b16 %v11491
    %v11882 = vunpack.c.h.b16 %v11491
    %v11883 = vpack.c.b16 %v11629, %v11627
    %v11884 = vpack.c.b16 %v11630, %v11628
    %v11885 = vpack.c.b16 %v11633, %v11631
    %v11886 = vpack.c.b16 %v11634, %v11632
    %v11887 = vpack.c.b16 %v11637, %v11635
    %v11888 = vpack.c.b16 %v11638, %v11636
    %v11889 = vpack.c.b16 %v11641, %v11639
    %v11890 = vpack.c.b16 %v11642, %v11640
    %v11891 = vpack.c.b16 %v11645, %v11643
    %v11892 = vpack.c.b16 %v11646, %v11644
    %v11893 = vpack.c.b16 %v11649, %v11647
    %v11894 = vpack.c.b16 %v11650, %v11648
    %v11895 = vpack.c.b16 %v11653, %v11651
    %v11896 = vpack.c.b16 %v11654, %v11652
    %v11897 = vpack.c.b16 %v11657, %v11655
    %v11898 = vpack.c.b16 %v11658, %v11656
    %v11899 = vpack.c.b16 %v11661, %v11659
    %v11900 = vpack.c.b16 %v11662, %v11660
    %v11901 = vpack.c.b16 %v11665, %v11663
    %v11902 = vpack.c.b16 %v11666, %v11664
    %v11903 = vpack.c.b16 %v11669, %v11667
    %v11904 = vpack.c.b16 %v11670, %v11668
    %v11905 = vpack.c.b16 %v11673, %v11671
    %v11906 = vpack.c.b16 %v11674, %v11672
    %v11907 = vpack.c.b16 %v11677, %v11675
    %v11908 = vpack.c.b16 %v11678, %v11676
    %v11909 = vpack.c.b16 %v11681, %v11679
    %v11910 = vpack.c.b16 %v11682, %v11680
    %v11911 = vpack.c.b16 %v11685, %v11683
    %v11912 = vpack.c.b16 %v11686, %v11684
    %v11913 = vpack.c.b16 %v11689, %v11687
    %v11914 = vpack.c.b16 %v11690, %v11688
    %v11915 = vpack.c.b16 %v11693, %v11691
    %v11916 = vpack.c.b16 %v11694, %v11692
    %v11917 = vpack.c.b16 %v11697, %v11695
    %v11918 = vpack.c.b16 %v11698, %v11696
    %v11919 = vpack.c.b16 %v11701, %v11699
    %v11920 = vpack.c.b16 %v11702, %v11700
    %v11921 = vpack.c.b16 %v11705, %v11703
    %v11922 = vpack.c.b16 %v11706, %v11704
    %v11923 = vpack.c.b16 %v11709, %v11707
    %v11924 = vpack.c.b16 %v11710, %v11708
    %v11925 = vpack.c.b16 %v11713, %v11711
    %v11926 = vpack.c.b16 %v11714, %v11712
    %v11927 = vpack.c.b16 %v11717, %v11715
    %v11928 = vpack.c.b16 %v11718, %v11716
    %v11929 = vpack.c.b16 %v11721, %v11719
    %v11930 = vpack.c.b16 %v11722, %v11720
    %v11931 = vpack.c.b16 %v11725, %v11723
    %v11932 = vpack.c.b16 %v11726, %v11724
    %v11933 = vpack.c.b16 %v11729, %v11727
    %v11934 = vpack.c.b16 %v11730, %v11728
    %v11935 = vpack.c.b16 %v11733, %v11731
    %v11936 = vpack.c.b16 %v11734, %v11732
    %v11937 = vpack.c.b16 %v11737, %v11735
    %v11938 = vpack.c.b16 %v11738, %v11736
    %v11939 = vpack.c.b16 %v11741, %v11739
    %v11940 = vpack.c.b16 %v11742, %v11740
    %v11941 = vpack.c.b16 %v11745, %v11743
    %v11942 = vpack.c.b16 %v11746, %v11744
    %v11943 = vpack.c.b16 %v11749, %v11747
    %v11944 = vpack.c.b16 %v11750, %v11748
    %v11945 = vpack.c.b16 %v11753, %v11751
    %v11946 = vpack.c.b16 %v11754, %v11752
    %v11947 = vpack.c.b16 %v11757, %v11755
    %v11948 = vpack.c.b16 %v11758, %v11756
    %v11949 = vpack.c.b16 %v11761, %v11759
    %v11950 = vpack.c.b16 %v11762, %v11760
    %v11951 = vpack.c.b16 %v11765, %v11763
    %v11952 = vpack.c.b16 %v11766, %v11764
    %v11953 = vpack.c.b16 %v11769, %v11767
    %v11954 = vpack.c.b16 %v11770, %v11768
    %v11955 = vpack.c.b16 %v11773, %v11771
    %v11956 = vpack.c.b16 %v11774, %v11772
    %v11957 = vpack.c.b16 %v11777, %v11775
    %v11958 = vpack.c.b16 %v11778, %v11776
    %v11959 = vpack.c.b16 %v11781, %v11779
    %v11960 = vpack.c.b16 %v11782, %v11780
    %v11961 = vpack.c.b16 %v11785, %v11783
    %v11962 = vpack.c.b16 %v11786, %v11784
    %v11963 = vpack.c.b16 %v11789, %v11787
    %v11964 = vpack.c.b16 %v11790, %v11788
    %v11965 = vpack.c.b16 %v11793, %v11791
    %v11966 = vpack.c.b16 %v11794, %v11792
    %v11967 = vpack.c.b16 %v11797, %v11795
    %v11968 = vpack.c.b16 %v11798, %v11796
    %v11969 = vpack.c.b16 %v11801, %v11799
    %v11970 = vpack.c.b16 %v11802, %v11800
    %v11971 = vpack.c.b16 %v11805, %v11803
    %v11972 = vpack.c.b16 %v11806, %v11804
    %v11973 = vpack.c.b16 %v11809, %v11807
    %v11974 = vpack.c.b16 %v11810, %v11808
    %v11975 = vpack.c.b16 %v11813, %v11811
    %v11976 = vpack.c.b16 %v11814, %v11812
    %v11977 = vpack.c.b16 %v11817, %v11815
    %v11978 = vpack.c.b16 %v11818, %v11816
    %v11979 = vpack.c.b16 %v11821, %v11819
    %v11980 = vpack.c.b16 %v11822, %v11820
    %v11981 = vpack.c.b16 %v11825, %v11823
    %v11982 = vpack.c.b16 %v11826, %v11824
    %v11983 = vpack.c.b16 %v11829, %v11827
    %v11984 = vpack.c.b16 %v11830, %v11828
    %v11985 = vpack.c.b16 %v11833, %v11831
    %v11986 = vpack.c.b16 %v11834, %v11832
    %v11987 = vpack.c.b16 %v11837, %v11835
    %v11988 = vpack.c.b16 %v11838, %v11836
    %v11989 = vpack.c.b16 %v11841, %v11839
    %v11990 = vpack.c.b16 %v11842, %v11840
    %v11991 = vpack.c.b16 %v11845, %v11843
    %v11992 = vpack.c.b16 %v11846, %v11844
    %v11993 = vpack.c.b16 %v11849, %v11847
    %v11994 = vpack.c.b16 %v11850, %v11848
    %v11995 = vpack.c.b16 %v11853, %v11851
    %v11996 = vpack.c.b16 %v11854, %v11852
    %v11997 = vpack.c.b16 %v11857, %v11855
    %v11998 = vpack.c.b16 %v11858, %v11856
    %v11999 = vpack.c.b16 %v11861, %v11859
    %v12000 = vpack.c.b16 %v11862, %v11860
    %v12001 = vpack.c.b16 %v11865, %v11863
    %v12002 = vpack.c.b16 %v11866, %v11864
    %v12003 = vpack.c.b16 %v11869, %v11867
    %v12004 = vpack.c.b16 %v11870, %v11868
    %v12005 = vpack.c.b16 %v11873, %v11871
    %v12006 = vpack.c.b16 %v11874, %v11872
    %v12007 = vpack.c.b16 %v11877, %v11875
    %v12008 = vpack.c.b16 %v11878, %v11876
    %v12009 = vpack.c.b16 %v11881, %v11879
    %v12010 = vpack.c.b16 %v11882, %v11880
    %12139 = vmatpush.bf16.msra.mxu0 %v11897
    %12140 = vmatpush.bf16.msra.mxu0 %v11895
    %12141 = vmatpush.bf16.msra.mxu0 %v11893
    %12142 = vmatpush.bf16.msra.mxu0 %v11891
    %12143 = vmatpush.bf16.msra.mxu0 %v11889
    %12144 = vmatpush.bf16.msra.mxu0 %v11887
    %12145 = vmatpush.bf16.msra.mxu0 %v11885
    %12146 = vmatpush.bf16.msra.mxu0 %v11883
    %12147 = vmatmul.bf16.gmra.mxu0 %v10858
    %v12148 = vpop.f32.mrf.mxu0
    %v12149 = vadd.f32 %v11495, %v12148
    %v12150 = vpop.f32.mrf.mxu0
    %12151 = vdwg.mxu0
    %12152 = vmatpush.bf16.msra.mxu0 %v11913
    %12153 = vmatpush.bf16.msra.mxu0 %v11911
    %12154 = vmatpush.bf16.msra.mxu0 %v11909
    %12155 = vmatpush.bf16.msra.mxu0 %v11907
    %12156 = vmatpush.bf16.msra.mxu0 %v11905
    %12157 = vmatpush.bf16.msra.mxu0 %v11903
    %12158 = vmatpush.bf16.msra.mxu0 %v11901
    %12159 = vmatpush.bf16.msra.mxu0 %v11899
    %12160 = vmatmul.bf16.gmra.mxu0 %v10859
    %v12161 = vpop.f32.mrf.mxu0
    %v12162 = vadd.f32 %v12149, %v12161
    %v12163 = vpop.f32.mrf.mxu0
    %12164 = vdwg.mxu0
    %12165 = vmatpush.bf16.msra.mxu0 %v11929
    %12166 = vmatpush.bf16.msra.mxu0 %v11927
    %12167 = vmatpush.bf16.msra.mxu0 %v11925
    %12168 = vmatpush.bf16.msra.mxu0 %v11923
    %12169 = vmatpush.bf16.msra.mxu0 %v11921
    %12170 = vmatpush.bf16.msra.mxu0 %v11919
    %12171 = vmatpush.bf16.msra.mxu0 %v11917
    %12172 = vmatpush.bf16.msra.mxu0 %v11915
    %12173 = vmatmul.bf16.gmra.mxu0 %v10860
    %v12174 = vpop.f32.mrf.mxu0
    %v12175 = vadd.f32 %v12162, %v12174
    %v12176 = vpop.f32.mrf.mxu0
    %12177 = vdwg.mxu0
    %12178 = vmatpush.bf16.msra.mxu0 %v11945
    %12179 = vmatpush.bf16.msra.mxu0 %v11943
    %12180 = vmatpush.bf16.msra.mxu0 %v11941
    %12181 = vmatpush.bf16.msra.mxu0 %v11939
    %12182 = vmatpush.bf16.msra.mxu0 %v11937
    %12183 = vmatpush.bf16.msra.mxu0 %v11935
    %12184 = vmatpush.bf16.msra.mxu0 %v11933
    %12185 = vmatpush.bf16.msra.mxu0 %v11931
    %12186 = vmatmul.bf16.gmra.mxu0 %v10861
    %v12187 = vpop.f32.mrf.mxu0
    %v12188 = vadd.f32 %v12175, %v12187
    %v12189 = vpop.f32.mrf.mxu0
    %12190 = vdwg.mxu0
    %12191 = vmatpush.bf16.msra.mxu0 %v11961
    %12192 = vmatpush.bf16.msra.mxu0 %v11959
    %12193 = vmatpush.bf16.msra.mxu0 %v11957
    %12194 = vmatpush.bf16.msra.mxu0 %v11955
    %12195 = vmatpush.bf16.msra.mxu0 %v11953
    %12196 = vmatpush.bf16.msra.mxu0 %v11951
    %12197 = vmatpush.bf16.msra.mxu0 %v11949
    %12198 = vmatpush.bf16.msra.mxu0 %v11947
    %12199 = vmatmul.bf16.gmra.mxu0 %v10862
    %v12200 = vpop.f32.mrf.mxu0
    %v12201 = vadd.f32 %v12188, %v12200
    %v12202 = vpop.f32.mrf.mxu0
    %12203 = vdwg.mxu0
    %12204 = vmatpush.bf16.msra.mxu0 %v11977
    %12205 = vmatpush.bf16.msra.mxu0 %v11975
    %12206 = vmatpush.bf16.msra.mxu0 %v11973
    %12207 = vmatpush.bf16.msra.mxu0 %v11971
    %12208 = vmatpush.bf16.msra.mxu0 %v11969
    %12209 = vmatpush.bf16.msra.mxu0 %v11967
    %12210 = vmatpush.bf16.msra.mxu0 %v11965
    %12211 = vmatpush.bf16.msra.mxu0 %v11963
    %12212 = vmatmul.bf16.gmra.mxu0 %v10863
    %v12213 = vpop.f32.mrf.mxu0
    %v12214 = vadd.f32 %v12201, %v12213
    %v12215 = vpop.f32.mrf.mxu0
    %12216 = vdwg.mxu0
    %12217 = vmatpush.bf16.msra.mxu0 %v11993
    %12218 = vmatpush.bf16.msra.mxu0 %v11991
    %12219 = vmatpush.bf16.msra.mxu0 %v11989
    %12220 = vmatpush.bf16.msra.mxu0 %v11987
    %12221 = vmatpush.bf16.msra.mxu0 %v11985
    %12222 = vmatpush.bf16.msra.mxu0 %v11983
    %12223 = vmatpush.bf16.msra.mxu0 %v11981
    %12224 = vmatpush.bf16.msra.mxu0 %v11979
    %12225 = vmatmul.bf16.gmra.mxu0 %v10864
    %v12226 = vpop.f32.mrf.mxu0
    %v12227 = vadd.f32 %v12214, %v12226
    %v12228 = vpop.f32.mrf.mxu0
    %12229 = vdwg.mxu0
    %12230 = vmatpush.bf16.msra.mxu0 %v12009
    %12231 = vmatpush.bf16.msra.mxu0 %v12007
    %12232 = vmatpush.bf16.msra.mxu0 %v12005
    %12233 = vmatpush.bf16.msra.mxu0 %v12003
    %12234 = vmatpush.bf16.msra.mxu0 %v12001
    %12235 = vmatpush.bf16.msra.mxu0 %v11999
    %12236 = vmatpush.bf16.msra.mxu0 %v11997
    %12237 = vmatpush.bf16.msra.mxu0 %v11995
    %12238 = vmatmul.bf16.gmra.mxu0 %v10865
    %v12239 = vpop.f32.mrf.mxu0
    %v12240 = vadd.f32 %v12227, %v12239
    %v12241 = vpop.f32.mrf.mxu0
    %12242 = vdwg.mxu0
    %12243 = vmatpush.bf16.msra.mxu0 %v11898
    %12244 = vmatpush.bf16.msra.mxu0 %v11896
    %12245 = vmatpush.bf16.msra.mxu0 %v11894
    %12246 = vmatpush.bf16.msra.mxu0 %v11892
    %12247 = vmatpush.bf16.msra.mxu0 %v11890
    %12248 = vmatpush.bf16.msra.mxu0 %v11888
    %12249 = vmatpush.bf16.msra.mxu0 %v11886
    %12250 = vmatpush.bf16.msra.mxu0 %v11884
    %12251 = vmatmul.bf16.gmra.mxu0 %v10858
    %v12252 = vpop.f32.mrf.mxu0
    %v12253 = vadd.f32 %v11496, %v12252
    %v12254 = vpop.f32.mrf.mxu0
    %12255 = vdwg.mxu0
    %12256 = vmatpush.bf16.msra.mxu0 %v11914
    %12257 = vmatpush.bf16.msra.mxu0 %v11912
    %12258 = vmatpush.bf16.msra.mxu0 %v11910
    %12259 = vmatpush.bf16.msra.mxu0 %v11908
    %12260 = vmatpush.bf16.msra.mxu0 %v11906
    %12261 = vmatpush.bf16.msra.mxu0 %v11904
    %12262 = vmatpush.bf16.msra.mxu0 %v11902
    %12263 = vmatpush.bf16.msra.mxu0 %v11900
    %12264 = vmatmul.bf16.gmra.mxu0 %v10859
    %v12265 = vpop.f32.mrf.mxu0
    %v12266 = vadd.f32 %v12253, %v12265
    %v12267 = vpop.f32.mrf.mxu0
    %12268 = vdwg.mxu0
    %12269 = vmatpush.bf16.msra.mxu0 %v11930
    %12270 = vmatpush.bf16.msra.mxu0 %v11928
    %12271 = vmatpush.bf16.msra.mxu0 %v11926
    %12272 = vmatpush.bf16.msra.mxu0 %v11924
    %12273 = vmatpush.bf16.msra.mxu0 %v11922
    %12274 = vmatpush.bf16.msra.mxu0 %v11920
    %12275 = vmatpush.bf16.msra.mxu0 %v11918
    %12276 = vmatpush.bf16.msra.mxu0 %v11916
    %12277 = vmatmul.bf16.gmra.mxu0 %v10860
    %v12278 = vpop.f32.mrf.mxu0
    %v12279 = vadd.f32 %v12266, %v12278
    %v12280 = vpop.f32.mrf.mxu0
    %12281 = vdwg.mxu0
    %12282 = vmatpush.bf16.msra.mxu0 %v11946
    %12283 = vmatpush.bf16.msra.mxu0 %v11944
    %12284 = vmatpush.bf16.msra.mxu0 %v11942
    %12285 = vmatpush.bf16.msra.mxu0 %v11940
    %12286 = vmatpush.bf16.msra.mxu0 %v11938
    %12287 = vmatpush.bf16.msra.mxu0 %v11936
    %12288 = vmatpush.bf16.msra.mxu0 %v11934
    %12289 = vmatpush.bf16.msra.mxu0 %v11932
    %12290 = vmatmul.bf16.gmra.mxu0 %v10861
    %v12291 = vpop.f32.mrf.mxu0
    %v12292 = vadd.f32 %v12279, %v12291
    %v12293 = vpop.f32.mrf.mxu0
    %12294 = vdwg.mxu0
    %12295 = vmatpush.bf16.msra.mxu0 %v11962
    %12296 = vmatpush.bf16.msra.mxu0 %v11960
    %12297 = vmatpush.bf16.msra.mxu0 %v11958
    %12298 = vmatpush.bf16.msra.mxu0 %v11956
    %12299 = vmatpush.bf16.msra.mxu0 %v11954
    %12300 = vmatpush.bf16.msra.mxu0 %v11952
    %12301 = vmatpush.bf16.msra.mxu0 %v11950
    %12302 = vmatpush.bf16.msra.mxu0 %v11948
    %12303 = vmatmul.bf16.gmra.mxu0 %v10862
    %v12304 = vpop.f32.mrf.mxu0
    %v12305 = vadd.f32 %v12292, %v12304
    %v12306 = vpop.f32.mrf.mxu0
    %12307 = vdwg.mxu0
    %12308 = vmatpush.bf16.msra.mxu0 %v11978
    %12309 = vmatpush.bf16.msra.mxu0 %v11976
    %12310 = vmatpush.bf16.msra.mxu0 %v11974
    %12311 = vmatpush.bf16.msra.mxu0 %v11972
    %12312 = vmatpush.bf16.msra.mxu0 %v11970
    %12313 = vmatpush.bf16.msra.mxu0 %v11968
    %12314 = vmatpush.bf16.msra.mxu0 %v11966
    %12315 = vmatpush.bf16.msra.mxu0 %v11964
    %12316 = vmatmul.bf16.gmra.mxu0 %v10863
    %v12317 = vpop.f32.mrf.mxu0
    %v12318 = vadd.f32 %v12305, %v12317
    %v12319 = vpop.f32.mrf.mxu0
    %12320 = vdwg.mxu0
    %12321 = vmatpush.bf16.msra.mxu0 %v11994
    %12322 = vmatpush.bf16.msra.mxu0 %v11992
    %12323 = vmatpush.bf16.msra.mxu0 %v11990
    %12324 = vmatpush.bf16.msra.mxu0 %v11988
    %12325 = vmatpush.bf16.msra.mxu0 %v11986
    %12326 = vmatpush.bf16.msra.mxu0 %v11984
    %12327 = vmatpush.bf16.msra.mxu0 %v11982
    %12328 = vmatpush.bf16.msra.mxu0 %v11980
    %12329 = vmatmul.bf16.gmra.mxu0 %v10864
    %v12330 = vpop.f32.mrf.mxu0
    %v12331 = vadd.f32 %v12318, %v12330
    %v12332 = vpop.f32.mrf.mxu0
    %12333 = vdwg.mxu0
    %12334 = vmatpush.bf16.msra.mxu0 %v12010
    %12335 = vmatpush.bf16.msra.mxu0 %v12008
    %12336 = vmatpush.bf16.msra.mxu0 %v12006
    %12337 = vmatpush.bf16.msra.mxu0 %v12004
    %12338 = vmatpush.bf16.msra.mxu0 %v12002
    %12339 = vmatpush.bf16.msra.mxu0 %v12000
    %12340 = vmatpush.bf16.msra.mxu0 %v11998
    %12341 = vmatpush.bf16.msra.mxu0 %v11996
    %12342 = vmatmul.bf16.gmra.mxu0 %v10865
    %v12343 = vpop.f32.mrf.mxu0
    %v12344 = vadd.f32 %v12331, %v12343
    %v12345 = vpop.f32.mrf.mxu0
    %12346 = vdwg.mxu0
    %s12347 = scalar_lea.vmem [#allocation11], 10
    %v12348 = vld [vmem:[%s12347] sm:$0x3]
    %s12349 = scalar_lea.vmem [#allocation16], 10
    %v12350 = vld [vmem:[%s12349] sm:$0x3]
    %v12351 = vadd.f32 %v12350, 1e-05
    %v12352 = vrsqrt.pop %v12351
    %v12353 = vmul.f32 %v12352, %v12351
    %v12354 = vmul.f32 %v12353, %v12352
    %v12355 = vmul.f32 0.5, %v12354
    %v12356 = vsub.f32 1.5, %v12355
    %v12357 = vmul.f32 %v12352, %v12356
    %vm12358 = vweird.f32 %v12351
    %vm12359 = vweird.f32 %v12352
    %vm12360 = vmor %vm12358, %vm12359
    %v12361 = vsel %vm12360, %v12352, %v12357
    %v12362 = vmul.f32 %v12348, %v12361
    %s12363 = scalar_lea.vmem [#allocation14], 10
    %v12364 = vld [vmem:[%s12363] sm:$0x3]
    %v12366 = vperm.slane %v12364, 0
    %v12367 = vperm.slane %v12364, 1
    %v12370 = vsub.f32 %v12240, %v12366
    %v12371 = vsub.f32 %v12344, %v12367
    %v12373 = vperm.slane %v12362, 0
    %v12374 = vperm.slane %v12362, 1
    %v12377 = vmul.f32 %v12370, %v12373
    %v12378 = vmul.f32 %v12371, %v12374
    %s12379 = scalar_lea.vmem [#allocation13], 10
    %v12380 = vld [vmem:[%s12379] sm:$0x3]
    %v12382 = vperm.slane %v12380, 0
    %v12383 = vperm.slane %v12380, 1
    %v12386 = vadd.f32 %v12377, %v12382
    %v12387 = vadd.f32 %v12378, %v12383
    %v12390 = vrot.slane %v12387, 7
    %v12391 = vsel %vm460, %v12386, %v12390
    %v12392 = vsel %vm798, %v12386, %v12390
    %v12393 = vrot.slane %v12392, 1
    %s12396 = scalar_lea.vmem %s11, 5
    %12397 = vst.msk [vmem:[%s12396] ss:$8 sm:$0x3] %vm1719, %v12391
    %12398 = vst.msk [vmem:[%s12396] ss:$8 sm:$0x0] %vm1719, %v12391
    %s12399 = scalar_lea.vmem %s11, 21
    %12400 = vst.msk [vmem:[%s12399] ss:$8 sm:$0x3] %vm1719, %v12393
    %12401 = vst.msk [vmem:[%s12399] ss:$8 sm:$0x0] %vm1719, %v12393
    %v12402 = vld [vmem:[#allocation7] sm:$0x1]
    %v12404 = vperm.slane %v12402, 0
    %v12406 = vadd.f32 %v11362, %v12404
    %v12408 = vrot.slane %v12406, 1
    %12410 = vst [vmem:[#allocation17] sm:$0x1] %v12406
    %12411 = vst [vmem:[#allocation17 + $0x1] sm:$0x1] %v12408
    // Predicated region
    $region74: #{tpu_custom_call.1} parent=1 // pred_check
      _
    $region75: #{tpu_custom_call.1} parent=1 // pred_check_branch
      %12413 = sbr.rel (0) target = $region77
    $region76: #{tpu_custom_call.1} parent=1 // pred_region
      _
    $region77: #{tpu_custom_call.1} parent=1 // pred_fallthru
      _
    // Predicated region
    $region78: #{tpu_custom_call.1} parent=1 // pred_check
      _
    $region79: #{tpu_custom_call.1} parent=1 // pred_check_branch
      %12415 = sbr.rel (0) target = $region81
    $region80: #{tpu_custom_call.1} parent=1 // pred_region
      %12417 = vsyncadd [#allocation4], 0
      %s12418 = sshll.u32 [#allocation17], 4
      %s12419 = int_to_ptr.vmem [resolvable:$true] %s12418
      %s12420 = sshll.u32 %s10, 4
      %s12421 = int_to_ptr.hbm [resolvable:$true] %s12420
      %12426 = dma.vmem_to_hbm [thread:$0]  %s12419, 32, %s12421, [#allocation4], 16, 16, 1
    $region81: #{tpu_custom_call.1} parent=1 // pred_fallthru
      _
    // Predicated region
    $region82: #{tpu_custom_call.1} parent=1 // pred_check
      _
    $region83: #{tpu_custom_call.1} parent=1 // pred_check_branch
      %12428 = sbr.rel (0) target = $region85
    $region84: #{tpu_custom_call.1} parent=1 // pred_region
      _
    $region85: #{tpu_custom_call.1} parent=1 // pred_fallthru
      _
    // Predicated region
    $region86: #{tpu_custom_call.1} parent=1 // pred_check
      _
    $region87: #{tpu_custom_call.1} parent=1 // pred_check_branch
      %12430 = sbr.rel (0) target = $region89
    $region88: #{tpu_custom_call.1} parent=1 // pred_region
      _
    $region89: #{tpu_custom_call.1} parent=1 // pred_fallthru
      _
    // Predicated region
    $region90: #{tpu_custom_call.1} parent=1 // pred_check
      _
    $region91: #{tpu_custom_call.1} parent=1 // pred_check_branch
      %12432 = sbr.rel (0) target = $region93
    $region92: #{tpu_custom_call.1} parent=1 // pred_region
      %12434 = dma.done [#allocation4], 32
    $region93: #{tpu_custom_call.1} parent=1 // pred_fallthru
      _
    // Predicated region
    $region94: #{tpu_custom_call.1} parent=1 // pred_check
      _
    $region95: #{tpu_custom_call.1} parent=1 // pred_check_branch
      %12436 = sbr.rel (0) target = $region97
    $region96: #{tpu_custom_call.1} parent=1 // pred_region
      _
    $region97: #{tpu_custom_call.1} parent=1 // pred_fallthru
      _
    %12437 = vsyncpa [#allocation3], 1
    %12438 = vsyncpa [#allocation6], 1
    %12439 = vsyncpa [#allocation9], 1
    %12440 = vsyncpa [#allocation12], 1
    %12441 = vsyncpa [#allocation15], 1
    %12442 = vsyncpa [#allocation4], 1

</llo_original>
